<compile_context>
chip_gen: v7x
topology: tpu7x:2x2x1
jax: 0.10.0
libtpu: 0.0.40
codegen_flags: <defaults>
</compile_context>

<pallas_src>
import functools
import math

import jax
import jax.numpy as jnp
from jax.experimental import pallas as pl
from jax.experimental.pallas import tpu as pltpu  # noqa: F401  (kept for TPU-specific tuning hooks)


# ----------------------------- configuration -------------------------------- #
CFG = dict(
    img_size=(16, 16),
    patch_size=(4, 2, 2),     # (temporal, h, w)
    in_chans=8,               # time bins -> D = 8 // 4 = 2 temporal tokens
    embed_dim=32,
    depths=[1, 1],
    num_heads=[2, 4],
    window_size=(2, 4, 4),    # 3D window (D, H, W)
    mlp_ratio=4.0,
    out_indices=(0, 1),
)
LIF_DECAY = 0.5
LIF_THRESH = 0.5


# ------------------------------ Pallas kernels ------------------------------ #
def _lif_value(x, wd, S):
    """LIF recurrence over the wd temporal slices of window tokens.

    x: (nW, wd*S, C) f32 membrane input, window token order is (d, h_local, w_local).
    Returns 0/1 f32 spikes, same shape.  Hard threshold, hard reset.
    """
    nW, _, C = x.shape
    mem = jnp.zeros((nW, S, C), jnp.float32)
    spikes = []
    for t in range(wd):                              # wd is tiny (=2): static unroll
        v = mem * LIF_DECAY + x[:, t * S:(t + 1) * S, :]
        fire = v >= LIF_THRESH
        spikes.append(fire.astype(jnp.float32))
        mem = jnp.where(fire, 0.0, v)
    return jnp.concatenate(spikes, axis=1)


def _swin_block_kernel(x_ref, wqkv_ref, bqkv_ref, wproj_ref, bproj_ref,
                       w1_ref, b1_ref, w2_ref, b2_ref, o_ref,
                       *, heads, wd, S, scale):
    """Fused spiking Swin block.  All refs are whole arrays resident in VMEM."""
    nW, N, C = x_ref.shape
    M = nW * N
    Dh = C // heads

    x = x_ref[...]                                   # (nW, N, C) residual stream, f32

    # ---- LIF #1 (f32 element-wise) -> spikes ----
    s1 = _lif_value(x, wd, S)

    # ---- QKV projection: bf16 MXU, f32 accumulate ----
    qkv = (jnp.dot(s1.reshape(M, C).astype(jnp.bfloat16), wqkv_ref[...],
                   preferred_element_type=jnp.float32)
           + bqkv_ref[...])                          # (M, 3C) f32
    qkv = qkv.reshape(nW, N, 3 * C)

    # ---- windowed multi-head attention, batched over all windows per head ----
    head_outs = []
    for h in range(heads):                           # heads = 2 or 4: static unroll
        q = qkv[:, :, h * Dh:(h + 1) * Dh].astype(jnp.bfloat16)
        k = qkv[:, :, C + h * Dh:C + (h + 1) * Dh].astype(jnp.bfloat16)
        v = qkv[:, :, 2 * C + h * Dh:2 * C + (h + 1) * Dh].astype(jnp.bfloat16)
        s = jnp.einsum('wnd,wmd->wnm', q, k,
                       preferred_element_type=jnp.float32) * scale   # (nW, N, N)
        s = s - jnp.max(s, axis=-1, keepdims=True)
        p = jnp.exp(s)
        p = p * pl.reciprocal(jnp.sum(p, axis=-1, keepdims=True), approx=True)
        head_outs.append(jnp.einsum('wnm,wmd->wnd', p.astype(jnp.bfloat16), v,
                                    preferred_element_type=jnp.float32))
    attn = jnp.concatenate(head_outs, axis=-1)       # (nW, N, C) f32

    # ---- output projection + residual ----
    proj = (jnp.dot(attn.reshape(M, C).astype(jnp.bfloat16), wproj_ref[...],
                    preferred_element_type=jnp.float32)
            + bproj_ref[...]).reshape(nW, N, C)
    x = x + proj

    # ---- spiking MLP + residual ----
    s2 = _lif_value(x, wd, S)
    hid = w1_ref.shape[1]
    h1 = (jnp.dot(s2.reshape(M, C).astype(jnp.bfloat16), w1_ref[...],
                  preferred_element_type=jnp.float32)
          + b1_ref[...]).reshape(nW, N, hid)
    h1 = _lif_value(h1, wd, S)
    h2 = (jnp.dot(h1.reshape(M, hid).astype(jnp.bfloat16), w2_ref[...],
                  preferred_element_type=jnp.float32)
          + b2_ref[...]).reshape(nW, N, C)

    o_ref[...] = (x + h2).astype(o_ref.dtype)


def fused_swin_block(xw, p, heads, window_size):
    """One pallas_call per block: xw (nW, N, C) windowed tokens -> same shape."""
    nW, N, C = xw.shape
    wd, wh, ww = window_size
    S = wh * ww
    hid = p["w1"].shape[1]
    Dh = C // heads
    M = nW * N

    flops = int(2 * M * C * 3 * C          # qkv
                + 4 * nW * heads * N * N * Dh  # QK^T and PV
                + 2 * M * C * C            # out proj
                + 4 * M * C * hid)         # mlp
    trans = int(nW * heads * N * N)        # softmax exp
    bytes_acc = int(2 * M * C * 4                               # in/out activations
                    + (3 * C * C + C * C + 2 * C * hid) * 2     # bf16 weights
                    + (3 * C + C + hid + C) * 4)                # f32 biases

    kern = functools.partial(_swin_block_kernel, heads=heads, wd=wd, S=S,
                             scale=1.0 / math.sqrt(Dh))
    return pl.pallas_call(
        kern,
        out_shape=jax.ShapeDtypeStruct((nW, N, C), jnp.float32),
        cost_estimate=pl.CostEstimate(flops=flops, transcendentals=trans,
                                      bytes_accessed=bytes_acc),
    )(xw, p["wqkv"], p["bqkv"], p["wproj"], p["bproj"],
      p["w1"], p["b1"], p["w2"], p["b2"])


def _linear_kernel(x_ref, w_ref, b_ref, o_ref):
    o_ref[...] = (jnp.dot(x_ref[...].astype(jnp.bfloat16), w_ref[...],
                          preferred_element_type=jnp.float32)
                  + b_ref[...]).astype(o_ref.dtype)


def pallas_linear(x2d, w, b2d):
    """Single-step (no-grid) linear: x2d (M, K) f32, w (K, N) bf16, b (1, N) f32."""
    M, K = x2d.shape
    N = w.shape[1]
    return pl.pallas_call(
        _linear_kernel,
        out_shape=jax.ShapeDtypeStruct((M, N), jnp.float32),
        cost_estimate=pl.CostEstimate(flops=int(2 * M * K * N), transcendentals=0,
                                      bytes_accessed=int(M * K * 4 + K * N * 2
                                                         + N * 4 + M * N * 4)),
    )(x2d, w, b2d)


# ------------------------------ glue (plain JAX) ---------------------------- #
def window_partition(x, ws):
    B, D, H, W, C = x.shape
    wd, wh, ww = ws
    x = x.reshape(B, D // wd, wd, H // wh, wh, W // ww, ww, C)
    x = jnp.transpose(x, (0, 1, 3, 5, 2, 4, 6, 7))
    return x.reshape(-1, wd * wh * ww, C)


def window_reverse(xw, ws, B, D, H, W):
    wd, wh, ww = ws
    C = xw.shape[-1]
    x = xw.reshape(B, D // wd, H // wh, W // ww, wd, wh, ww, C)
    x = jnp.transpose(x, (0, 1, 4, 2, 5, 3, 6, 7))
    return x.reshape(B, D, H, W, C)


def patch_merging(x, w, b):
    B, D, H, W, C = x.shape
    x0 = x[:, :, 0::2, 0::2]
    x1 = x[:, :, 1::2, 0::2]
    x2 = x[:, :, 0::2, 1::2]
    x3 = x[:, :, 1::2, 1::2]
    xc = jnp.concatenate([x0, x1, x2, x3], axis=-1).reshape(-1, 4 * C)
    out = pallas_linear(xc, w, b)
    return out.reshape(B, D, H // 2, W // 2, 2 * C)


def spiking_former_encoder_forward(x, params):
    """x: (B, in_chans, H, W) float32 (NCHW like PyTorch)."""
    B, Tin, H, W = x.shape
    pt, ph, pw = CFG["patch_size"]
    D, Hp, Wp = Tin // pt, H // ph, W // pw
    C = CFG["embed_dim"]
    wd = CFG["window_size"][0]
    assert D == wd, "fused windowed-LIF path assumes one temporal window"

    # PatchEmbedLocal: K = pt*ph*pw = 16 contraction -> plain XLA dot (per review:
    # too small to be worth a standalone Pallas custom call).
    xp = x.reshape(B, D, pt, Hp, ph, Wp, pw)
    xp = jnp.transpose(xp, (0, 1, 3, 5, 2, 4, 6)).reshape(B * D * Hp * Wp, pt * ph * pw)
    tok = (xp @ params["pe_w"] + params["pe_b"]).reshape(B, D, Hp, Wp, C)

    outs = []
    Hs, Ws = Hp, Wp
    for i, depth in enumerate(CFG["depths"]):
        stage = params["stages"][i]
        # Partition into (nW, N, C) windows ONCE per stage; all blocks in the
        # stage (no shift reproduced) run on this layout end-to-end.
        xw = window_partition(tok, CFG["window_size"])
        for blk in stage["blocks"]:
            xw = fused_swin_block(xw, blk, CFG["num_heads"][i], CFG["window_size"])
        tok = window_reverse(xw, CFG["window_size"], B, D, Hs, Ws)
        # feature i in Video-Swin layout then .permute(2,0,1,3,4) -> (D, B, C, H, W)
        outs.append(jnp.transpose(tok, (1, 0, 4, 2, 3)))
        if i < len(CFG["depths"]) - 1:
            tok = patch_merging(tok, stage["merge_w"], stage["merge_b"])
            Hs, Ws, C = Hs // 2, Ws // 2, 2 * C
    return outs


# ------------------------------ parameter init ------------------------------ #
def init_params(key):
    pt, ph, pw = CFG["patch_size"]
    embed_dim = CFG["embed_dim"]
    keys = iter(jax.random.split(key, 256))

    def nrm(shape, dtype=jnp.bfloat16):
        fan_in = shape[0]
        w = (1.0 / math.sqrt(fan_in)) * jax.random.normal(next(keys), shape,
                                                          dtype=jnp.float32)
        return w.astype(dtype)

    params = {
        "pe_w": nrm((pt * ph * pw, embed_dim), jnp.float32),   # used by XLA dot
        "pe_b": jnp.zeros((embed_dim,), jnp.float32),
        "stages": [],
    }
    for i, depth in enumerate(CFG["depths"]):
        C = embed_dim * (2 ** i)
        hid = int(C * CFG["mlp_ratio"])
        blocks = []
        for _ in range(depth):
            blocks.append(dict(
                wqkv=nrm((C, 3 * C)), bqkv=jnp.zeros((1, 3 * C), jnp.float32),
                wproj=nrm((C, C)), bproj=jnp.zeros((1, C), jnp.float32),
                w1=nrm((C, hid)), b1=jnp.zeros((1, hid), jnp.float32),
                w2=nrm((hid, C)), b2=jnp.zeros((1, C), jnp.float32),
            ))
        stage = dict(blocks=blocks)
        if i < len(CFG["depths"]) - 1:
            stage["merge_w"] = nrm((4 * C, 2 * C))
            stage["merge_b"] = jnp.zeros((1, 2 * C), jnp.float32)
        params["stages"].append(stage)
    return params


# ------------------------------------ main ----------------------------------- #
if __name__ == "__main__":
    key = jax.random.PRNGKey(0)
    kx, kp = jax.random.split(key)

    B = 2
    Hh, Ww = CFG["img_size"]
    x = jax.random.normal(kx, (B, CFG["in_chans"], Hh, Ww), dtype=jnp.float32)
    params = init_params(kp)

    fwd = jax.jit(spiking_former_encoder_forward)
    outs = fwd(x, params)
    outs = jax.block_until_ready(outs)

    # expected output shapes: (D, B, C_i, H_i, W_i)
    D = CFG["in_chans"] // CFG["patch_size"][0]
    Hp = Hh // CFG["patch_size"][1]
    Wp = Ww // CFG["patch_size"][2]
    assert outs[0].shape == (D, B, CFG["embed_dim"], Hp, Wp)
    assert outs[1].shape == (D, B, 2 * CFG["embed_dim"], Hp // 2, Wp // 2)
    assert all(bool(jnp.all(jnp.isfinite(o))) for o in outs)

    print("KERNEL_OK")
</pallas_src>

<mosaic_0001>
module attributes {stable_mosaic.version = 11 : i64} {
  func.func @_swin_block_kernel(%arg0: memref<8x32x32xf32, #tpu.memory_space<vmem>>, %arg1: memref<32x96xbf16, #tpu.memory_space<vmem>>, %arg2: memref<1x96xf32, #tpu.memory_space<vmem>>, %arg3: memref<32x32xbf16, #tpu.memory_space<vmem>>, %arg4: memref<1x32xf32, #tpu.memory_space<vmem>>, %arg5: memref<32x128xbf16, #tpu.memory_space<vmem>>, %arg6: memref<1x128xf32, #tpu.memory_space<vmem>>, %arg7: memref<128x32xbf16, #tpu.memory_space<vmem>>, %arg8: memref<1x32xf32, #tpu.memory_space<vmem>>, %arg9: memref<8x32x32xf32, #tpu.memory_space<vmem>>) attributes {dimension_semantics = [], scalar_prefetch = 0 : i64, scratch_operands = 0 : i64, tpu.core_type = #tpu.core_type<tc>} {
    %c0 = arith.constant 0 : index
    %c0_0 = arith.constant 0 : index
    %c0_1 = arith.constant 0 : index
    %0 = vector.load %arg0[%c0, %c0_0, %c0_1] : memref<8x32x32xf32, #tpu.memory_space<vmem>>, vector<8x32x32xf32>
    %cst = arith.constant 0.000000e+00 : f32
    %1 = vector.broadcast %cst : f32 to vector<8x16x32xf32>
    %cst_2 = arith.constant 5.000000e-01 : f32
    %2 = vector.broadcast %cst_2 : f32 to vector<8x16x32xf32>
    %3 = arith.mulf %1, %2 : vector<8x16x32xf32>
    %4 = vector.extract_strided_slice %0 {offsets = [0, 0, 0], sizes = [8, 16, 32], strides = [1, 1, 1]} : vector<8x32x32xf32> to vector<8x16x32xf32>
    %5 = arith.addf %3, %4 : vector<8x16x32xf32>
    %cst_3 = arith.constant 5.000000e-01 : f32
    %6 = vector.broadcast %cst_3 : f32 to vector<8x16x32xf32>
    %7 = arith.cmpf oge, %5, %6 : vector<8x16x32xf32>
    %8 = arith.extui %7 : vector<8x16x32xi1> to vector<8x16x32xi32>
    %9 = arith.sitofp %8 : vector<8x16x32xi32> to vector<8x16x32xf32>
    %cst_4 = arith.constant 0.000000e+00 : f32
    %10 = vector.broadcast %cst_4 : f32 to vector<8x16x32xf32>
    %11 = arith.select %7, %10, %5 : vector<8x16x32xi1>, vector<8x16x32xf32>
    %cst_5 = arith.constant 5.000000e-01 : f32
    %12 = vector.broadcast %cst_5 : f32 to vector<8x16x32xf32>
    %13 = arith.mulf %11, %12 : vector<8x16x32xf32>
    %14 = vector.extract_strided_slice %0 {offsets = [0, 16, 0], sizes = [8, 16, 32], strides = [1, 1, 1]} : vector<8x32x32xf32> to vector<8x16x32xf32>
    %15 = arith.addf %13, %14 : vector<8x16x32xf32>
    %cst_6 = arith.constant 5.000000e-01 : f32
    %16 = vector.broadcast %cst_6 : f32 to vector<8x16x32xf32>
    %17 = arith.cmpf oge, %15, %16 : vector<8x16x32xf32>
    %18 = arith.extui %17 : vector<8x16x32xi1> to vector<8x16x32xi32>
    %19 = arith.sitofp %18 : vector<8x16x32xi32> to vector<8x16x32xf32>
    %20 = tpu.concatenate %9, %19 in 1 : vector<8x16x32xf32>, vector<8x16x32xf32> -> vector<8x32x32xf32>
    %21 = vector.shape_cast %20 : vector<8x32x32xf32> to vector<256x32xf32>
    %22 = arith.truncf %21 : vector<256x32xf32> to vector<256x32xbf16>
    %c0_7 = arith.constant 0 : index
    %c0_8 = arith.constant 0 : index
    %23 = vector.load %arg1[%c0_7, %c0_8] : memref<32x96xbf16, #tpu.memory_space<vmem>>, vector<32x96xbf16>
    %cst_9 = arith.constant dense<0.000000e+00> : vector<256x96xf32>
    %24 = tpu.matmul %22, %23, %cst_9 {dimension_numbers = #tpu.dot_dimension_numbers<[1], [0], [0], [1], [0, 0, 1, 1], [], []>} : vector<256x32xbf16>, vector<32x96xbf16>, vector<256x96xf32> -> vector<256x96xf32>
    %c0_10 = arith.constant 0 : index
    %c0_11 = arith.constant 0 : index
    %25 = vector.load %arg2[%c0_10, %c0_11] : memref<1x96xf32, #tpu.memory_space<vmem>>, vector<1x96xf32>
    %26 = vector.broadcast %25 : vector<1x96xf32> to vector<256x96xf32>
    %27 = arith.addf %24, %26 : vector<256x96xf32>
    %28 = vector.shape_cast %27 : vector<256x96xf32> to vector<8x32x96xf32>
    %29 = vector.extract_strided_slice %28 {offsets = [0, 0, 0], sizes = [8, 32, 16], strides = [1, 1, 1]} : vector<8x32x96xf32> to vector<8x32x16xf32>
    %30 = arith.truncf %29 : vector<8x32x16xf32> to vector<8x32x16xbf16>
    %31 = vector.extract_strided_slice %28 {offsets = [0, 0, 32], sizes = [8, 32, 16], strides = [1, 1, 1]} : vector<8x32x96xf32> to vector<8x32x16xf32>
    %32 = arith.truncf %31 : vector<8x32x16xf32> to vector<8x32x16xbf16>
    %33 = vector.extract_strided_slice %28 {offsets = [0, 0, 64], sizes = [8, 32, 16], strides = [1, 1, 1]} : vector<8x32x96xf32> to vector<8x32x16xf32>
    %34 = arith.truncf %33 : vector<8x32x16xf32> to vector<8x32x16xbf16>
    "tpu.trace_start"() <{level = 10 : i32, message = "wnd,wmd->wnm"}> : () -> ()
    %cst_12 = arith.constant dense<0.000000e+00> : vector<8x32x32xf32>
    %35 = tpu.matmul %30, %32, %cst_12 {dimension_numbers = #tpu.dot_dimension_numbers<[2], [2], [1], [1], [0, 0, 0, 1, 1, 1], [0], [0]>} : vector<8x32x16xbf16>, vector<8x32x16xbf16>, vector<8x32x32xf32> -> vector<8x32x32xf32>
    "tpu.trace_stop"() : () -> ()
    %cst_13 = arith.constant 2.500000e-01 : f32
    %36 = vector.broadcast %cst_13 : f32 to vector<8x32x32xf32>
    %37 = arith.mulf %35, %36 : vector<8x32x32xf32>
    %cst_14 = arith.constant dense<0xFF800000> : vector<8x32xf32>
    %38 = vector.multi_reduction <maximumf>, %37, %cst_14 [2] : vector<8x32x32xf32> to vector<8x32xf32>
    %39 = vector.shape_cast %38 : vector<8x32xf32> to vector<8x32x1xf32>
    %40 = vector.broadcast %39 : vector<8x32x1xf32> to vector<8x32x32xf32>
    %41 = arith.subf %37, %40 : vector<8x32x32xf32>
    %42 = math.exp %41 : vector<8x32x32xf32>
    %cst_15 = arith.constant dense<0.000000e+00> : vector<8x32xf32>
    %43 = vector.multi_reduction <add>, %42, %cst_15 [2] : vector<8x32x32xf32> to vector<8x32xf32>
    %44 = vector.shape_cast %43 : vector<8x32xf32> to vector<8x32x1xf32>
    %45 = tpu.reciprocal %44 {approx = true} : vector<8x32x1xf32> -> vector<8x32x1xf32>
    %46 = vector.broadcast %45 : vector<8x32x1xf32> to vector<8x32x32xf32>
    %47 = arith.mulf %42, %46 : vector<8x32x32xf32>
    %48 = arith.truncf %47 : vector<8x32x32xf32> to vector<8x32x32xbf16>
    "tpu.trace_start"() <{level = 10 : i32, message = "wnm,wmd->wnd"}> : () -> ()
    %cst_16 = arith.constant dense<0.000000e+00> : vector<8x32x16xf32>
    %49 = tpu.matmul %48, %34, %cst_16 {dimension_numbers = #tpu.dot_dimension_numbers<[2], [1], [1], [2], [0, 0, 0, 1, 1, 2], [0], [0]>} : vector<8x32x32xbf16>, vector<8x32x16xbf16>, vector<8x32x16xf32> -> vector<8x32x16xf32>
    "tpu.trace_stop"() : () -> ()
    %50 = vector.extract_strided_slice %28 {offsets = [0, 0, 16], sizes = [8, 32, 16], strides = [1, 1, 1]} : vector<8x32x96xf32> to vector<8x32x16xf32>
    %51 = arith.truncf %50 : vector<8x32x16xf32> to vector<8x32x16xbf16>
    %52 = vector.extract_strided_slice %28 {offsets = [0, 0, 48], sizes = [8, 32, 16], strides = [1, 1, 1]} : vector<8x32x96xf32> to vector<8x32x16xf32>
    %53 = arith.truncf %52 : vector<8x32x16xf32> to vector<8x32x16xbf16>
    %54 = vector.extract_strided_slice %28 {offsets = [0, 0, 80], sizes = [8, 32, 16], strides = [1, 1, 1]} : vector<8x32x96xf32> to vector<8x32x16xf32>
    %55 = arith.truncf %54 : vector<8x32x16xf32> to vector<8x32x16xbf16>
    "tpu.trace_start"() <{level = 10 : i32, message = "wnd,wmd->wnm"}> : () -> ()
    %cst_17 = arith.constant dense<0.000000e+00> : vector<8x32x32xf32>
    %56 = tpu.matmul %51, %53, %cst_17 {dimension_numbers = #tpu.dot_dimension_numbers<[2], [2], [1], [1], [0, 0, 0, 1, 1, 1], [0], [0]>} : vector<8x32x16xbf16>, vector<8x32x16xbf16>, vector<8x32x32xf32> -> vector<8x32x32xf32>
    "tpu.trace_stop"() : () -> ()
    %cst_18 = arith.constant 2.500000e-01 : f32
    %57 = vector.broadcast %cst_18 : f32 to vector<8x32x32xf32>
    %58 = arith.mulf %56, %57 : vector<8x32x32xf32>
    %cst_19 = arith.constant dense<0xFF800000> : vector<8x32xf32>
    %59 = vector.multi_reduction <maximumf>, %58, %cst_19 [2] : vector<8x32x32xf32> to vector<8x32xf32>
    %60 = vector.shape_cast %59 : vector<8x32xf32> to vector<8x32x1xf32>
    %61 = vector.broadcast %60 : vector<8x32x1xf32> to vector<8x32x32xf32>
    %62 = arith.subf %58, %61 : vector<8x32x32xf32>
    %63 = math.exp %62 : vector<8x32x32xf32>
    %cst_20 = arith.constant dense<0.000000e+00> : vector<8x32xf32>
    %64 = vector.multi_reduction <add>, %63, %cst_20 [2] : vector<8x32x32xf32> to vector<8x32xf32>
    %65 = vector.shape_cast %64 : vector<8x32xf32> to vector<8x32x1xf32>
    %66 = tpu.reciprocal %65 {approx = true} : vector<8x32x1xf32> -> vector<8x32x1xf32>
    %67 = vector.broadcast %66 : vector<8x32x1xf32> to vector<8x32x32xf32>
    %68 = arith.mulf %63, %67 : vector<8x32x32xf32>
    %69 = arith.truncf %68 : vector<8x32x32xf32> to vector<8x32x32xbf16>
    "tpu.trace_start"() <{level = 10 : i32, message = "wnm,wmd->wnd"}> : () -> ()
    %cst_21 = arith.constant dense<0.000000e+00> : vector<8x32x16xf32>
    %70 = tpu.matmul %69, %55, %cst_21 {dimension_numbers = #tpu.dot_dimension_numbers<[2], [1], [1], [2], [0, 0, 0, 1, 1, 2], [0], [0]>} : vector<8x32x32xbf16>, vector<8x32x16xbf16>, vector<8x32x16xf32> -> vector<8x32x16xf32>
    "tpu.trace_stop"() : () -> ()
    %71 = tpu.concatenate %49, %70 in 2 : vector<8x32x16xf32>, vector<8x32x16xf32> -> vector<8x32x32xf32>
    %72 = vector.shape_cast %71 : vector<8x32x32xf32> to vector<256x32xf32>
    %73 = arith.truncf %72 : vector<256x32xf32> to vector<256x32xbf16>
    %c0_22 = arith.constant 0 : index
    %c0_23 = arith.constant 0 : index
    %74 = vector.load %arg3[%c0_22, %c0_23] : memref<32x32xbf16, #tpu.memory_space<vmem>>, vector<32x32xbf16>
    %cst_24 = arith.constant dense<0.000000e+00> : vector<256x32xf32>
    %75 = tpu.matmul %73, %74, %cst_24 {dimension_numbers = #tpu.dot_dimension_numbers<[1], [0], [0], [1], [0, 0, 1, 1], [], []>} : vector<256x32xbf16>, vector<32x32xbf16>, vector<256x32xf32> -> vector<256x32xf32>
    %c0_25 = arith.constant 0 : index
    %c0_26 = arith.constant 0 : index
    %76 = vector.load %arg4[%c0_25, %c0_26] : memref<1x32xf32, #tpu.memory_space<vmem>>, vector<1x32xf32>
    %77 = vector.broadcast %76 : vector<1x32xf32> to vector<256x32xf32>
    %78 = arith.addf %75, %77 : vector<256x32xf32>
    %79 = vector.shape_cast %78 : vector<256x32xf32> to vector<8x32x32xf32>
    %80 = arith.addf %0, %79 : vector<8x32x32xf32>
    %cst_27 = arith.constant 0.000000e+00 : f32
    %81 = vector.broadcast %cst_27 : f32 to vector<8x16x32xf32>
    %cst_28 = arith.constant 5.000000e-01 : f32
    %82 = vector.broadcast %cst_28 : f32 to vector<8x16x32xf32>
    %83 = arith.mulf %81, %82 : vector<8x16x32xf32>
    %84 = vector.extract_strided_slice %80 {offsets = [0, 0, 0], sizes = [8, 16, 32], strides = [1, 1, 1]} : vector<8x32x32xf32> to vector<8x16x32xf32>
    %85 = arith.addf %83, %84 : vector<8x16x32xf32>
    %cst_29 = arith.constant 5.000000e-01 : f32
    %86 = vector.broadcast %cst_29 : f32 to vector<8x16x32xf32>
    %87 = arith.cmpf oge, %85, %86 : vector<8x16x32xf32>
    %88 = arith.extui %87 : vector<8x16x32xi1> to vector<8x16x32xi32>
    %89 = arith.sitofp %88 : vector<8x16x32xi32> to vector<8x16x32xf32>
    %cst_30 = arith.constant 0.000000e+00 : f32
    %90 = vector.broadcast %cst_30 : f32 to vector<8x16x32xf32>
    %91 = arith.select %87, %90, %85 : vector<8x16x32xi1>, vector<8x16x32xf32>
    %cst_31 = arith.constant 5.000000e-01 : f32
    %92 = vector.broadcast %cst_31 : f32 to vector<8x16x32xf32>
    %93 = arith.mulf %91, %92 : vector<8x16x32xf32>
    %94 = vector.extract_strided_slice %80 {offsets = [0, 16, 0], sizes = [8, 16, 32], strides = [1, 1, 1]} : vector<8x32x32xf32> to vector<8x16x32xf32>
    %95 = arith.addf %93, %94 : vector<8x16x32xf32>
    %cst_32 = arith.constant 5.000000e-01 : f32
    %96 = vector.broadcast %cst_32 : f32 to vector<8x16x32xf32>
    %97 = arith.cmpf oge, %95, %96 : vector<8x16x32xf32>
    %98 = arith.extui %97 : vector<8x16x32xi1> to vector<8x16x32xi32>
    %99 = arith.sitofp %98 : vector<8x16x32xi32> to vector<8x16x32xf32>
    %100 = tpu.concatenate %89, %99 in 1 : vector<8x16x32xf32>, vector<8x16x32xf32> -> vector<8x32x32xf32>
    %101 = vector.shape_cast %100 : vector<8x32x32xf32> to vector<256x32xf32>
    %102 = arith.truncf %101 : vector<256x32xf32> to vector<256x32xbf16>
    %c0_33 = arith.constant 0 : index
    %c0_34 = arith.constant 0 : index
    %103 = vector.load %arg5[%c0_33, %c0_34] : memref<32x128xbf16, #tpu.memory_space<vmem>>, vector<32x128xbf16>
    %cst_35 = arith.constant dense<0.000000e+00> : vector<256x128xf32>
    %104 = tpu.matmul %102, %103, %cst_35 {dimension_numbers = #tpu.dot_dimension_numbers<[1], [0], [0], [1], [0, 0, 1, 1], [], []>} : vector<256x32xbf16>, vector<32x128xbf16>, vector<256x128xf32> -> vector<256x128xf32>
    %c0_36 = arith.constant 0 : index
    %c0_37 = arith.constant 0 : index
    %105 = vector.load %arg6[%c0_36, %c0_37] : memref<1x128xf32, #tpu.memory_space<vmem>>, vector<1x128xf32>
    %106 = vector.broadcast %105 : vector<1x128xf32> to vector<256x128xf32>
    %107 = arith.addf %104, %106 : vector<256x128xf32>
    %108 = vector.shape_cast %107 : vector<256x128xf32> to vector<8x32x128xf32>
    %cst_38 = arith.constant 0.000000e+00 : f32
    %109 = vector.broadcast %cst_38 : f32 to vector<8x16x128xf32>
    %cst_39 = arith.constant 5.000000e-01 : f32
    %110 = vector.broadcast %cst_39 : f32 to vector<8x16x128xf32>
    %111 = arith.mulf %109, %110 : vector<8x16x128xf32>
    %112 = vector.extract_strided_slice %108 {offsets = [0, 0, 0], sizes = [8, 16, 128], strides = [1, 1, 1]} : vector<8x32x128xf32> to vector<8x16x128xf32>
    %113 = arith.addf %111, %112 : vector<8x16x128xf32>
    %cst_40 = arith.constant 5.000000e-01 : f32
    %114 = vector.broadcast %cst_40 : f32 to vector<8x16x128xf32>
    %115 = arith.cmpf oge, %113, %114 : vector<8x16x128xf32>
    %116 = arith.extui %115 : vector<8x16x128xi1> to vector<8x16x128xi32>
    %117 = arith.sitofp %116 : vector<8x16x128xi32> to vector<8x16x128xf32>
    %cst_41 = arith.constant 0.000000e+00 : f32
    %118 = vector.broadcast %cst_41 : f32 to vector<8x16x128xf32>
    %119 = arith.select %115, %118, %113 : vector<8x16x128xi1>, vector<8x16x128xf32>
    %cst_42 = arith.constant 5.000000e-01 : f32
    %120 = vector.broadcast %cst_42 : f32 to vector<8x16x128xf32>
    %121 = arith.mulf %119, %120 : vector<8x16x128xf32>
    %122 = vector.extract_strided_slice %108 {offsets = [0, 16, 0], sizes = [8, 16, 128], strides = [1, 1, 1]} : vector<8x32x128xf32> to vector<8x16x128xf32>
    %123 = arith.addf %121, %122 : vector<8x16x128xf32>
    %cst_43 = arith.constant 5.000000e-01 : f32
    %124 = vector.broadcast %cst_43 : f32 to vector<8x16x128xf32>
    %125 = arith.cmpf oge, %123, %124 : vector<8x16x128xf32>
    %126 = arith.extui %125 : vector<8x16x128xi1> to vector<8x16x128xi32>
    %127 = arith.sitofp %126 : vector<8x16x128xi32> to vector<8x16x128xf32>
    %128 = tpu.concatenate %117, %127 in 1 : vector<8x16x128xf32>, vector<8x16x128xf32> -> vector<8x32x128xf32>
    %129 = vector.shape_cast %128 : vector<8x32x128xf32> to vector<256x128xf32>
    %130 = arith.truncf %129 : vector<256x128xf32> to vector<256x128xbf16>
    %c0_44 = arith.constant 0 : index
    %c0_45 = arith.constant 0 : index
    %131 = vector.load %arg7[%c0_44, %c0_45] : memref<128x32xbf16, #tpu.memory_space<vmem>>, vector<128x32xbf16>
    %cst_46 = arith.constant dense<0.000000e+00> : vector<256x32xf32>
    %132 = tpu.matmul %130, %131, %cst_46 {dimension_numbers = #tpu.dot_dimension_numbers<[1], [0], [0], [1], [0, 0, 1, 1], [], []>} : vector<256x128xbf16>, vector<128x32xbf16>, vector<256x32xf32> -> vector<256x32xf32>
    %c0_47 = arith.constant 0 : index
    %c0_48 = arith.constant 0 : index
    %133 = vector.load %arg8[%c0_47, %c0_48] : memref<1x32xf32, #tpu.memory_space<vmem>>, vector<1x32xf32>
    %134 = vector.broadcast %133 : vector<1x32xf32> to vector<256x32xf32>
    %135 = arith.addf %132, %134 : vector<256x32xf32>
    %136 = vector.shape_cast %135 : vector<256x32xf32> to vector<8x32x32xf32>
    %137 = arith.addf %80, %136 : vector<8x32x32xf32>
    %c0_49 = arith.constant 0 : index
    %c0_50 = arith.constant 0 : index
    %c0_51 = arith.constant 0 : index
    %138 = vector.load %arg9[%c0_49, %c0_50, %c0_51] : memref<8x32x32xf32, #tpu.memory_space<vmem>>, vector<8x32x32xf32>
    tpu.vector_store %arg9[%c0_49, %c0_50, %c0_51], %137 {strides = array<i32>} : memref<8x32x32xf32, #tpu.memory_space<vmem>>, vector<8x32x32xf32>,
    return
  }
}

module attributes {stable_mosaic.version = 11 : i64} {
  func.func @_linear_kernel(%arg0: memref<64x128xf32, #tpu.memory_space<vmem>>, %arg1: memref<128x64xbf16, #tpu.memory_space<vmem>>, %arg2: memref<1x64xf32, #tpu.memory_space<vmem>>, %arg3: memref<64x64xf32, #tpu.memory_space<vmem>>) attributes {dimension_semantics = [], scalar_prefetch = 0 : i64, scratch_operands = 0 : i64, tpu.core_type = #tpu.core_type<tc>} {
    %c0 = arith.constant 0 : index
    %c0_0 = arith.constant 0 : index
    %0 = vector.load %arg0[%c0, %c0_0] : memref<64x128xf32, #tpu.memory_space<vmem>>, vector<64x128xf32>
    %1 = arith.truncf %0 : vector<64x128xf32> to vector<64x128xbf16>
    %c0_1 = arith.constant 0 : index
    %c0_2 = arith.constant 0 : index
    %2 = vector.load %arg1[%c0_1, %c0_2] : memref<128x64xbf16, #tpu.memory_space<vmem>>, vector<128x64xbf16>
    %cst = arith.constant dense<0.000000e+00> : vector<64x64xf32>
    %3 = tpu.matmul %1, %2, %cst {dimension_numbers = #tpu.dot_dimension_numbers<[1], [0], [0], [1], [0, 0, 1, 1], [], []>} : vector<64x128xbf16>, vector<128x64xbf16>, vector<64x64xf32> -> vector<64x64xf32>
    %c0_3 = arith.constant 0 : index
    %c0_4 = arith.constant 0 : index
    %4 = vector.load %arg2[%c0_3, %c0_4] : memref<1x64xf32, #tpu.memory_space<vmem>>, vector<1x64xf32>
    %5 = vector.broadcast %4 : vector<1x64xf32> to vector<64x64xf32>
    %6 = arith.addf %3, %5 : vector<64x64xf32>
    %c0_5 = arith.constant 0 : index
    %c0_6 = arith.constant 0 : index
    %7 = vector.load %arg3[%c0_5, %c0_6] : memref<64x64xf32, #tpu.memory_space<vmem>>, vector<64x64xf32>
    tpu.vector_store %arg3[%c0_5, %c0_6], %6 {strides = array<i32>} : memref<64x64xf32, #tpu.memory_space<vmem>>, vector<64x64xf32>,
    return
  }
}

module attributes {stable_mosaic.version = 11 : i64} {
  func.func @_swin_block_kernel(%arg0: memref<2x32x64xf32, #tpu.memory_space<vmem>>, %arg1: memref<64x192xbf16, #tpu.memory_space<vmem>>, %arg2: memref<1x192xf32, #tpu.memory_space<vmem>>, %arg3: memref<64x64xbf16, #tpu.memory_space<vmem>>, %arg4: memref<1x64xf32, #tpu.memory_space<vmem>>, %arg5: memref<64x256xbf16, #tpu.memory_space<vmem>>, %arg6: memref<1x256xf32, #tpu.memory_space<vmem>>, %arg7: memref<256x64xbf16, #tpu.memory_space<vmem>>, %arg8: memref<1x64xf32, #tpu.memory_space<vmem>>, %arg9: memref<2x32x64xf32, #tpu.memory_space<vmem>>) attributes {dimension_semantics = [], scalar_prefetch = 0 : i64, scratch_operands = 0 : i64, tpu.core_type = #tpu.core_type<tc>} {
    %c0 = arith.constant 0 : index
    %c0_0 = arith.constant 0 : index
    %c0_1 = arith.constant 0 : index
    %0 = vector.load %arg0[%c0, %c0_0, %c0_1] : memref<2x32x64xf32, #tpu.memory_space<vmem>>, vector<2x32x64xf32>
    %cst = arith.constant 0.000000e+00 : f32
    %1 = vector.broadcast %cst : f32 to vector<2x16x64xf32>
    %cst_2 = arith.constant 5.000000e-01 : f32
    %2 = vector.broadcast %cst_2 : f32 to vector<2x16x64xf32>
    %3 = arith.mulf %1, %2 : vector<2x16x64xf32>
    %4 = vector.extract_strided_slice %0 {offsets = [0, 0, 0], sizes = [2, 16, 64], strides = [1, 1, 1]} : vector<2x32x64xf32> to vector<2x16x64xf32>
    %5 = arith.addf %3, %4 : vector<2x16x64xf32>
    %cst_3 = arith.constant 5.000000e-01 : f32
    %6 = vector.broadcast %cst_3 : f32 to vector<2x16x64xf32>
    %7 = arith.cmpf oge, %5, %6 : vector<2x16x64xf32>
    %8 = arith.extui %7 : vector<2x16x64xi1> to vector<2x16x64xi32>
    %9 = arith.sitofp %8 : vector<2x16x64xi32> to vector<2x16x64xf32>
    %cst_4 = arith.constant 0.000000e+00 : f32
    %10 = vector.broadcast %cst_4 : f32 to vector<2x16x64xf32>
    %11 = arith.select %7, %10, %5 : vector<2x16x64xi1>, vector<2x16x64xf32>
    %cst_5 = arith.constant 5.000000e-01 : f32
    %12 = vector.broadcast %cst_5 : f32 to vector<2x16x64xf32>
    %13 = arith.mulf %11, %12 : vector<2x16x64xf32>
    %14 = vector.extract_strided_slice %0 {offsets = [0, 16, 0], sizes = [2, 16, 64], strides = [1, 1, 1]} : vector<2x32x64xf32> to vector<2x16x64xf32>
    %15 = arith.addf %13, %14 : vector<2x16x64xf32>
    %cst_6 = arith.constant 5.000000e-01 : f32
    %16 = vector.broadcast %cst_6 : f32 to vector<2x16x64xf32>
    %17 = arith.cmpf oge, %15, %16 : vector<2x16x64xf32>
    %18 = arith.extui %17 : vector<2x16x64xi1> to vector<2x16x64xi32>
    %19 = arith.sitofp %18 : vector<2x16x64xi32> to vector<2x16x64xf32>
    %20 = tpu.concatenate %9, %19 in 1 : vector<2x16x64xf32>, vector<2x16x64xf32> -> vector<2x32x64xf32>
    %21 = vector.shape_cast %20 : vector<2x32x64xf32> to vector<64x64xf32>
    %22 = arith.truncf %21 : vector<64x64xf32> to vector<64x64xbf16>
    %c0_7 = arith.constant 0 : index
    %c0_8 = arith.constant 0 : index
    %23 = vector.load %arg1[%c0_7, %c0_8] : memref<64x192xbf16, #tpu.memory_space<vmem>>, vector<64x192xbf16>
    %cst_9 = arith.constant dense<0.000000e+00> : vector<64x192xf32>
    %24 = tpu.matmul %22, %23, %cst_9 {dimension_numbers = #tpu.dot_dimension_numbers<[1], [0], [0], [1], [0, 0, 1, 1], [], []>} : vector<64x64xbf16>, vector<64x192xbf16>, vector<64x192xf32> -> vector<64x192xf32>
    %c0_10 = arith.constant 0 : index
    %c0_11 = arith.constant 0 : index
    %25 = vector.load %arg2[%c0_10, %c0_11] : memref<1x192xf32, #tpu.memory_space<vmem>>, vector<1x192xf32>
    %26 = vector.broadcast %25 : vector<1x192xf32> to vector<64x192xf32>
    %27 = arith.addf %24, %26 : vector<64x192xf32>
    %28 = vector.shape_cast %27 : vector<64x192xf32> to vector<2x32x192xf32>
    %29 = vector.extract_strided_slice %28 {offsets = [0, 0, 0], sizes = [2, 32, 16], strides = [1, 1, 1]} : vector<2x32x192xf32> to vector<2x32x16xf32>
    %30 = arith.truncf %29 : vector<2x32x16xf32> to vector<2x32x16xbf16>
    %31 = vector.extract_strided_slice %28 {offsets = [0, 0, 64], sizes = [2, 32, 16], strides = [1, 1, 1]} : vector<2x32x192xf32> to vector<2x32x16xf32>
    %32 = arith.truncf %31 : vector<2x32x16xf32> to vector<2x32x16xbf16>
    %33 = vector.extract_strided_slice %28 {offsets = [0, 0, 128], sizes = [2, 32, 16], strides = [1, 1, 1]} : vector<2x32x192xf32> to vector<2x32x16xf32>
    %34 = arith.truncf %33 : vector<2x32x16xf32> to vector<2x32x16xbf16>
    "tpu.trace_start"() <{level = 10 : i32, message = "wnd,wmd->wnm"}> : () -> ()
    %cst_12 = arith.constant dense<0.000000e+00> : vector<2x32x32xf32>
    %35 = tpu.matmul %30, %32, %cst_12 {dimension_numbers = #tpu.dot_dimension_numbers<[2], [2], [1], [1], [0, 0, 0, 1, 1, 1], [0], [0]>} : vector<2x32x16xbf16>, vector<2x32x16xbf16>, vector<2x32x32xf32> -> vector<2x32x32xf32>
    "tpu.trace_stop"() : () -> ()
    %cst_13 = arith.constant 2.500000e-01 : f32
    %36 = vector.broadcast %cst_13 : f32 to vector<2x32x32xf32>
    %37 = arith.mulf %35, %36 : vector<2x32x32xf32>
    %cst_14 = arith.constant dense<0xFF800000> : vector<2x32xf32>
    %38 = vector.multi_reduction <maximumf>, %37, %cst_14 [2] : vector<2x32x32xf32> to vector<2x32xf32>
    %39 = vector.shape_cast %38 : vector<2x32xf32> to vector<2x32x1xf32>
    %40 = vector.broadcast %39 : vector<2x32x1xf32> to vector<2x32x32xf32>
    %41 = arith.subf %37, %40 : vector<2x32x32xf32>
    %42 = math.exp %41 : vector<2x32x32xf32>
    %cst_15 = arith.constant dense<0.000000e+00> : vector<2x32xf32>
    %43 = vector.multi_reduction <add>, %42, %cst_15 [2] : vector<2x32x32xf32> to vector<2x32xf32>
    %44 = vector.shape_cast %43 : vector<2x32xf32> to vector<2x32x1xf32>
    %45 = tpu.reciprocal %44 {approx = true} : vector<2x32x1xf32> -> vector<2x32x1xf32>
    %46 = vector.broadcast %45 : vector<2x32x1xf32> to vector<2x32x32xf32>
    %47 = arith.mulf %42, %46 : vector<2x32x32xf32>
    %48 = arith.truncf %47 : vector<2x32x32xf32> to vector<2x32x32xbf16>
    "tpu.trace_start"() <{level = 10 : i32, message = "wnm,wmd->wnd"}> : () -> ()
    %cst_16 = arith.constant dense<0.000000e+00> : vector<2x32x16xf32>
    %49 = tpu.matmul %48, %34, %cst_16 {dimension_numbers = #tpu.dot_dimension_numbers<[2], [1], [1], [2], [0, 0, 0, 1, 1, 2], [0], [0]>} : vector<2x32x32xbf16>, vector<2x32x16xbf16>, vector<2x32x16xf32> -> vector<2x32x16xf32>
    "tpu.trace_stop"() : () -> ()
    %50 = vector.extract_strided_slice %28 {offsets = [0, 0, 16], sizes = [2, 32, 16], strides = [1, 1, 1]} : vector<2x32x192xf32> to vector<2x32x16xf32>
    %51 = arith.truncf %50 : vector<2x32x16xf32> to vector<2x32x16xbf16>
    %52 = vector.extract_strided_slice %28 {offsets = [0, 0, 80], sizes = [2, 32, 16], strides = [1, 1, 1]} : vector<2x32x192xf32> to vector<2x32x16xf32>
    %53 = arith.truncf %52 : vector<2x32x16xf32> to vector<2x32x16xbf16>
    %54 = vector.extract_strided_slice %28 {offsets = [0, 0, 144], sizes = [2, 32, 16], strides = [1, 1, 1]} : vector<2x32x192xf32> to vector<2x32x16xf32>
    %55 = arith.truncf %54 : vector<2x32x16xf32> to vector<2x32x16xbf16>
    "tpu.trace_start"() <{level = 10 : i32, message = "wnd,wmd->wnm"}> : () -> ()
    %cst_17 = arith.constant dense<0.000000e+00> : vector<2x32x32xf32>
    %56 = tpu.matmul %51, %53, %cst_17 {dimension_numbers = #tpu.dot_dimension_numbers<[2], [2], [1], [1], [0, 0, 0, 1, 1, 1], [0], [0]>} : vector<2x32x16xbf16>, vector<2x32x16xbf16>, vector<2x32x32xf32> -> vector<2x32x32xf32>
    "tpu.trace_stop"() : () -> ()
    %cst_18 = arith.constant 2.500000e-01 : f32
    %57 = vector.broadcast %cst_18 : f32 to vector<2x32x32xf32>
    %58 = arith.mulf %56, %57 : vector<2x32x32xf32>
    %cst_19 = arith.constant dense<0xFF800000> : vector<2x32xf32>
    %59 = vector.multi_reduction <maximumf>, %58, %cst_19 [2] : vector<2x32x32xf32> to vector<2x32xf32>
    %60 = vector.shape_cast %59 : vector<2x32xf32> to vector<2x32x1xf32>
    %61 = vector.broadcast %60 : vector<2x32x1xf32> to vector<2x32x32xf32>
    %62 = arith.subf %58, %61 : vector<2x32x32xf32>
    %63 = math.exp %62 : vector<2x32x32xf32>
    %cst_20 = arith.constant dense<0.000000e+00> : vector<2x32xf32>
    %64 = vector.multi_reduction <add>, %63, %cst_20 [2] : vector<2x32x32xf32> to vector<2x32xf32>
    %65 = vector.shape_cast %64 : vector<2x32xf32> to vector<2x32x1xf32>
    %66 = tpu.reciprocal %65 {approx = true} : vector<2x32x1xf32> -> vector<2x32x1xf32>
    %67 = vector.broadcast %66 : vector<2x32x1xf32> to vector<2x32x32xf32>
    %68 = arith.mulf %63, %67 : vector<2x32x32xf32>
    %69 = arith.truncf %68 : vector<2x32x32xf32> to vector<2x32x32xbf16>
    "tpu.trace_start"() <{level = 10 : i32, message = "wnm,wmd->wnd"}> : () -> ()
    %cst_21 = arith.constant dense<0.000000e+00> : vector<2x32x16xf32>
    %70 = tpu.matmul %69, %55, %cst_21 {dimension_numbers = #tpu.dot_dimension_numbers<[2], [1], [1], [2], [0, 0, 0, 1, 1, 2], [0], [0]>} : vector<2x32x32xbf16>, vector<2x32x16xbf16>, vector<2x32x16xf32> -> vector<2x32x16xf32>
    "tpu.trace_stop"() : () -> ()
    %71 = vector.extract_strided_slice %28 {offsets = [0, 0, 32], sizes = [2, 32, 16], strides = [1, 1, 1]} : vector<2x32x192xf32> to vector<2x32x16xf32>
    %72 = arith.truncf %71 : vector<2x32x16xf32> to vector<2x32x16xbf16>
    %73 = vector.extract_strided_slice %28 {offsets = [0, 0, 96], sizes = [2, 32, 16], strides = [1, 1, 1]} : vector<2x32x192xf32> to vector<2x32x16xf32>
    %74 = arith.truncf %73 : vector<2x32x16xf32> to vector<2x32x16xbf16>
    %75 = vector.extract_strided_slice %28 {offsets = [0, 0, 160], sizes = [2, 32, 16], strides = [1, 1, 1]} : vector<2x32x192xf32> to vector<2x32x16xf32>
    %76 = arith.truncf %75 : vector<2x32x16xf32> to vector<2x32x16xbf16>
    "tpu.trace_start"() <{level = 10 : i32, message = "wnd,wmd->wnm"}> : () -> ()
    %cst_22 = arith.constant dense<0.000000e+00> : vector<2x32x32xf32>
    %77 = tpu.matmul %72, %74, %cst_22 {dimension_numbers = #tpu.dot_dimension_numbers<[2], [2], [1], [1], [0, 0, 0, 1, 1, 1], [0], [0]>} : vector<2x32x16xbf16>, vector<2x32x16xbf16>, vector<2x32x32xf32> -> vector<2x32x32xf32>
    "tpu.trace_stop"() : () -> ()
    %cst_23 = arith.constant 2.500000e-01 : f32
    %78 = vector.broadcast %cst_23 : f32 to vector<2x32x32xf32>
    %79 = arith.mulf %77, %78 : vector<2x32x32xf32>
    %cst_24 = arith.constant dense<0xFF800000> : vector<2x32xf32>
    %80 = vector.multi_reduction <maximumf>, %79, %cst_24 [2] : vector<2x32x32xf32> to vector<2x32xf32>
    %81 = vector.shape_cast %80 : vector<2x32xf32> to vector<2x32x1xf32>
    %82 = vector.broadcast %81 : vector<2x32x1xf32> to vector<2x32x32xf32>
    %83 = arith.subf %79, %82 : vector<2x32x32xf32>
    %84 = math.exp %83 : vector<2x32x32xf32>
    %cst_25 = arith.constant dense<0.000000e+00> : vector<2x32xf32>
    %85 = vector.multi_reduction <add>, %84, %cst_25 [2] : vector<2x32x32xf32> to vector<2x32xf32>
    %86 = vector.shape_cast %85 : vector<2x32xf32> to vector<2x32x1xf32>
    %87 = tpu.reciprocal %86 {approx = true} : vector<2x32x1xf32> -> vector<2x32x1xf32>
    %88 = vector.broadcast %87 : vector<2x32x1xf32> to vector<2x32x32xf32>
    %89 = arith.mulf %84, %88 : vector<2x32x32xf32>
    %90 = arith.truncf %89 : vector<2x32x32xf32> to vector<2x32x32xbf16>
    "tpu.trace_start"() <{level = 10 : i32, message = "wnm,wmd->wnd"}> : () -> ()
    %cst_26 = arith.constant dense<0.000000e+00> : vector<2x32x16xf32>
    %91 = tpu.matmul %90, %76, %cst_26 {dimension_numbers = #tpu.dot_dimension_numbers<[2], [1], [1], [2], [0, 0, 0, 1, 1, 2], [0], [0]>} : vector<2x32x32xbf16>, vector<2x32x16xbf16>, vector<2x32x16xf32> -> vector<2x32x16xf32>
    "tpu.trace_stop"() : () -> ()
    %92 = vector.extract_strided_slice %28 {offsets = [0, 0, 48], sizes = [2, 32, 16], strides = [1, 1, 1]} : vector<2x32x192xf32> to vector<2x32x16xf32>
    %93 = arith.truncf %92 : vector<2x32x16xf32> to vector<2x32x16xbf16>
    %94 = vector.extract_strided_slice %28 {offsets = [0, 0, 112], sizes = [2, 32, 16], strides = [1, 1, 1]} : vector<2x32x192xf32> to vector<2x32x16xf32>
    %95 = arith.truncf %94 : vector<2x32x16xf32> to vector<2x32x16xbf16>
    %96 = vector.extract_strided_slice %28 {offsets = [0, 0, 176], sizes = [2, 32, 16], strides = [1, 1, 1]} : vector<2x32x192xf32> to vector<2x32x16xf32>
    %97 = arith.truncf %96 : vector<2x32x16xf32> to vector<2x32x16xbf16>
    "tpu.trace_start"() <{level = 10 : i32, message = "wnd,wmd->wnm"}> : () -> ()
    %cst_27 = arith.constant dense<0.000000e+00> : vector<2x32x32xf32>
    %98 = tpu.matmul %93, %95, %cst_27 {dimension_numbers = #tpu.dot_dimension_numbers<[2], [2], [1], [1], [0, 0, 0, 1, 1, 1], [0], [0]>} : vector<2x32x16xbf16>, vector<2x32x16xbf16>, vector<2x32x32xf32> -> vector<2x32x32xf32>
    "tpu.trace_stop"() : () -> ()
    %cst_28 = arith.constant 2.500000e-01 : f32
    %99 = vector.broadcast %cst_28 : f32 to vector<2x32x32xf32>
    %100 = arith.mulf %98, %99 : vector<2x32x32xf32>
    %cst_29 = arith.constant dense<0xFF800000> : vector<2x32xf32>
    %101 = vector.multi_reduction <maximumf>, %100, %cst_29 [2] : vector<2x32x32xf32> to vector<2x32xf32>
    %102 = vector.shape_cast %101 : vector<2x32xf32> to vector<2x32x1xf32>
    %103 = vector.broadcast %102 : vector<2x32x1xf32> to vector<2x32x32xf32>
    %104 = arith.subf %100, %103 : vector<2x32x32xf32>
    %105 = math.exp %104 : vector<2x32x32xf32>
    %cst_30 = arith.constant dense<0.000000e+00> : vector<2x32xf32>
    %106 = vector.multi_reduction <add>, %105, %cst_30 [2] : vector<2x32x32xf32> to vector<2x32xf32>
    %107 = vector.shape_cast %106 : vector<2x32xf32> to vector<2x32x1xf32>
    %108 = tpu.reciprocal %107 {approx = true} : vector<2x32x1xf32> -> vector<2x32x1xf32>
    %109 = vector.broadcast %108 : vector<2x32x1xf32> to vector<2x32x32xf32>
    %110 = arith.mulf %105, %109 : vector<2x32x32xf32>
    %111 = arith.truncf %110 : vector<2x32x32xf32> to vector<2x32x32xbf16>
    "tpu.trace_start"() <{level = 10 : i32, message = "wnm,wmd->wnd"}> : () -> ()
    %cst_31 = arith.constant dense<0.000000e+00> : vector<2x32x16xf32>
    %112 = tpu.matmul %111, %97, %cst_31 {dimension_numbers = #tpu.dot_dimension_numbers<[2], [1], [1], [2], [0, 0, 0, 1, 1, 2], [0], [0]>} : vector<2x32x32xbf16>, vector<2x32x16xbf16>, vector<2x32x16xf32> -> vector<2x32x16xf32>
    "tpu.trace_stop"() : () -> ()
    %113 = tpu.concatenate %49, %70, %91, %112 in 2 : vector<2x32x16xf32>, vector<2x32x16xf32>, vector<2x32x16xf32>, vector<2x32x16xf32> -> vector<2x32x64xf32>
    %114 = vector.shape_cast %113 : vector<2x32x64xf32> to vector<64x64xf32>
    %115 = arith.truncf %114 : vector<64x64xf32> to vector<64x64xbf16>
    %c0_32 = arith.constant 0 : index
    %c0_33 = arith.constant 0 : index
    %116 = vector.load %arg3[%c0_32, %c0_33] : memref<64x64xbf16, #tpu.memory_space<vmem>>, vector<64x64xbf16>
    %cst_34 = arith.constant dense<0.000000e+00> : vector<64x64xf32>
    %117 = tpu.matmul %115, %116, %cst_34 {dimension_numbers = #tpu.dot_dimension_numbers<[1], [0], [0], [1], [0, 0, 1, 1], [], []>} : vector<64x64xbf16>, vector<64x64xbf16>, vector<64x64xf32> -> vector<64x64xf32>
    %c0_35 = arith.constant 0 : index
    %c0_36 = arith.constant 0 : index
    %118 = vector.load %arg4[%c0_35, %c0_36] : memref<1x64xf32, #tpu.memory_space<vmem>>, vector<1x64xf32>
    %119 = vector.broadcast %118 : vector<1x64xf32> to vector<64x64xf32>
    %120 = arith.addf %117, %119 : vector<64x64xf32>
    %121 = vector.shape_cast %120 : vector<64x64xf32> to vector<2x32x64xf32>
    %122 = arith.addf %0, %121 : vector<2x32x64xf32>
    %cst_37 = arith.constant 0.000000e+00 : f32
    %123 = vector.broadcast %cst_37 : f32 to vector<2x16x64xf32>
    %cst_38 = arith.constant 5.000000e-01 : f32
    %124 = vector.broadcast %cst_38 : f32 to vector<2x16x64xf32>
    %125 = arith.mulf %123, %124 : vector<2x16x64xf32>
    %126 = vector.extract_strided_slice %122 {offsets = [0, 0, 0], sizes = [2, 16, 64], strides = [1, 1, 1]} : vector<2x32x64xf32> to vector<2x16x64xf32>
    %127 = arith.addf %125, %126 : vector<2x16x64xf32>
    %cst_39 = arith.constant 5.000000e-01 : f32
    %128 = vector.broadcast %cst_39 : f32 to vector<2x16x64xf32>
    %129 = arith.cmpf oge, %127, %128 : vector<2x16x64xf32>
    %130 = arith.extui %129 : vector<2x16x64xi1> to vector<2x16x64xi32>
    %131 = arith.sitofp %130 : vector<2x16x64xi32> to vector<2x16x64xf32>
    %cst_40 = arith.constant 0.000000e+00 : f32
    %132 = vector.broadcast %cst_40 : f32 to vector<2x16x64xf32>
    %133 = arith.select %129, %132, %127 : vector<2x16x64xi1>, vector<2x16x64xf32>
    %cst_41 = arith.constant 5.000000e-01 : f32
    %134 = vector.broadcast %cst_41 : f32 to vector<2x16x64xf32>
    %135 = arith.mulf %133, %134 : vector<2x16x64xf32>
    %136 = vector.extract_strided_slice %122 {offsets = [0, 16, 0], sizes = [2, 16, 64], strides = [1, 1, 1]} : vector<2x32x64xf32> to vector<2x16x64xf32>
    %137 = arith.addf %135, %136 : vector<2x16x64xf32>
    %cst_42 = arith.constant 5.000000e-01 : f32
    %138 = vector.broadcast %cst_42 : f32 to vector<2x16x64xf32>
    %139 = arith.cmpf oge, %137, %138 : vector<2x16x64xf32>
    %140 = arith.extui %139 : vector<2x16x64xi1> to vector<2x16x64xi32>
    %141 = arith.sitofp %140 : vector<2x16x64xi32> to vector<2x16x64xf32>
    %142 = tpu.concatenate %131, %141 in 1 : vector<2x16x64xf32>, vector<2x16x64xf32> -> vector<2x32x64xf32>
    %143 = vector.shape_cast %142 : vector<2x32x64xf32> to vector<64x64xf32>
    %144 = arith.truncf %143 : vector<64x64xf32> to vector<64x64xbf16>
    %c0_43 = arith.constant 0 : index
    %c0_44 = arith.constant 0 : index
    %145 = vector.load %arg5[%c0_43, %c0_44] : memref<64x256xbf16, #tpu.memory_space<vmem>>, vector<64x256xbf16>
    %cst_45 = arith.constant dense<0.000000e+00> : vector<64x256xf32>
    %146 = tpu.matmul %144, %145, %cst_45 {dimension_numbers = #tpu.dot_dimension_numbers<[1], [0], [0], [1], [0, 0, 1, 1], [], []>} : vector<64x64xbf16>, vector<64x256xbf16>, vector<64x256xf32> -> vector<64x256xf32>
    %c0_46 = arith.constant 0 : index
    %c0_47 = arith.constant 0 : index
    %147 = vector.load %arg6[%c0_46, %c0_47] : memref<1x256xf32, #tpu.memory_space<vmem>>, vector<1x256xf32>
    %148 = vector.broadcast %147 : vector<1x256xf32> to vector<64x256xf32>
    %149 = arith.addf %146, %148 : vector<64x256xf32>
    %150 = vector.shape_cast %149 : vector<64x256xf32> to vector<2x32x256xf32>
    %cst_48 = arith.constant 0.000000e+00 : f32
    %151 = vector.broadcast %cst_48 : f32 to vector<2x16x256xf32>
    %cst_49 = arith.constant 5.000000e-01 : f32
    %152 = vector.broadcast %cst_49 : f32 to vector<2x16x256xf32>
    %153 = arith.mulf %151, %152 : vector<2x16x256xf32>
    %154 = vector.extract_strided_slice %150 {offsets = [0, 0, 0], sizes = [2, 16, 256], strides = [1, 1, 1]} : vector<2x32x256xf32> to vector<2x16x256xf32>
    %155 = arith.addf %153, %154 : vector<2x16x256xf32>
    %cst_50 = arith.constant 5.000000e-01 : f32
    %156 = vector.broadcast %cst_50 : f32 to vector<2x16x256xf32>
    %157 = arith.cmpf oge, %155, %156 : vector<2x16x256xf32>
    %158 = arith.extui %157 : vector<2x16x256xi1> to vector<2x16x256xi32>
    %159 = arith.sitofp %158 : vector<2x16x256xi32> to vector<2x16x256xf32>
    %cst_51 = arith.constant 0.000000e+00 : f32
    %160 = vector.broadcast %cst_51 : f32 to vector<2x16x256xf32>
    %161 = arith.select %157, %160, %155 : vector<2x16x256xi1>, vector<2x16x256xf32>
    %cst_52 = arith.constant 5.000000e-01 : f32
    %162 = vector.broadcast %cst_52 : f32 to vector<2x16x256xf32>
    %163 = arith.mulf %161, %162 : vector<2x16x256xf32>
    %164 = vector.extract_strided_slice %150 {offsets = [0, 16, 0], sizes = [2, 16, 256], strides = [1, 1, 1]} : vector<2x32x256xf32> to vector<2x16x256xf32>
    %165 = arith.addf %163, %164 : vector<2x16x256xf32>
    %cst_53 = arith.constant 5.000000e-01 : f32
    %166 = vector.broadcast %cst_53 : f32 to vector<2x16x256xf32>
    %167 = arith.cmpf oge, %165, %166 : vector<2x16x256xf32>
    %168 = arith.extui %167 : vector<2x16x256xi1> to vector<2x16x256xi32>
    %169 = arith.sitofp %168 : vector<2x16x256xi32> to vector<2x16x256xf32>
    %170 = tpu.concatenate %159, %169 in 1 : vector<2x16x256xf32>, vector<2x16x256xf32> -> vector<2x32x256xf32>
    %171 = vector.shape_cast %170 : vector<2x32x256xf32> to vector<64x256xf32>
    %172 = arith.truncf %171 : vector<64x256xf32> to vector<64x256xbf16>
    %c0_54 = arith.constant 0 : index
    %c0_55 = arith.constant 0 : index
    %173 = vector.load %arg7[%c0_54, %c0_55] : memref<256x64xbf16, #tpu.memory_space<vmem>>, vector<256x64xbf16>
    %cst_56 = arith.constant dense<0.000000e+00> : vector<64x64xf32>
    %174 = tpu.matmul %172, %173, %cst_56 {dimension_numbers = #tpu.dot_dimension_numbers<[1], [0], [0], [1], [0, 0, 1, 1], [], []>} : vector<64x256xbf16>, vector<256x64xbf16>, vector<64x64xf32> -> vector<64x64xf32>
    %c0_57 = arith.constant 0 : index
    %c0_58 = arith.constant 0 : index
    %175 = vector.load %arg8[%c0_57, %c0_58] : memref<1x64xf32, #tpu.memory_space<vmem>>, vector<1x64xf32>
    %176 = vector.broadcast %175 : vector<1x64xf32> to vector<64x64xf32>
    %177 = arith.addf %174, %176 : vector<64x64xf32>
    %178 = vector.shape_cast %177 : vector<64x64xf32> to vector<2x32x64xf32>
    %179 = arith.addf %122, %178 : vector<2x32x64xf32>
    %c0_59 = arith.constant 0 : index
    %c0_60 = arith.constant 0 : index
    %c0_61 = arith.constant 0 : index
    %180 = vector.load %arg9[%c0_59, %c0_60, %c0_61] : memref<2x32x64xf32, #tpu.memory_space<vmem>>, vector<2x32x64xf32>
    tpu.vector_store %arg9[%c0_59, %c0_60, %c0_61], %179 {strides = array<i32>} : memref<2x32x64xf32, #tpu.memory_space<vmem>>, vector<2x32x64xf32>,
    return
  }
}

</mosaic_0001>

<llo_original>
// kernel: spiking_former_encoder_forward.4
$region0: #{spiking_former_encoder_forward.4}
  #allocation0 [shape = 'u32[]', space=smem, size = 0x4, offset = 0x4, fixed_abs, tag = 'smem constant byte address 0x4 - core index']
  #allocation1 [shape = 'u32[144,128]{1,0:T(1,128)}', space=vmem, size = 0x12000, scoped, tag = 'internal scratch']
  %s0 = inlined_call_operand.vmem [shape: f32[64,128], index: 0, kind: input, shape index: {}]
  %s1 = inlined_call_operand.vmem [shape: bf16[128,64], index: 1, kind: input, shape index: {}]
  %s2 = inlined_call_operand.vmem [shape: f32[1,64], index: 2, kind: input, shape index: {}]
  %s3 = inlined_call_operand.vmem [shape: f32[64,64], index: 3, kind: output, shape index: {}]
  %s4 = sld [smem:[#allocation0]]
  $region22: #{spiking_former_encoder_forward.4} parent=0
    _
  %s6 = ssub.s32 1, %s4
  %s7 = scalar_select 0, %s6, %s4
  // Predicated region
  $region2: #{spiking_former_encoder_forward.4} parent=0 // pred_check
    _
  $region3: #{spiking_former_encoder_forward.4} parent=0 // pred_check_branch
    %9 = sbr.rel (0) target = $region5
  $region4: #{spiking_former_encoder_forward.4} parent=0 // pred_region
    _
  $region5: #{spiking_former_encoder_forward.4} parent=0 // pred_fallthru
    _
  // Predicated region
  $region6: #{spiking_former_encoder_forward.4} parent=0 // pred_check
    _
  $region7: #{spiking_former_encoder_forward.4} parent=0 // pred_check_branch
    %11 = sbr.rel (0) target = $region9
  $region8: #{spiking_former_encoder_forward.4} parent=0 // pred_region
    _
  $region9: #{spiking_former_encoder_forward.4} parent=0 // pred_fallthru
    _
  // Predicated region
  $region10: #{spiking_former_encoder_forward.4} parent=0 // pred_check
    _
  $region11: #{spiking_former_encoder_forward.4} parent=0 // pred_check_branch
    %13 = sbr.rel (0) target = $region13
  $region12: #{spiking_former_encoder_forward.4} parent=0 // pred_region
    _
  $region13: #{spiking_former_encoder_forward.4} parent=0 // pred_fallthru
    _
  %v15 = vld [vmem:[%s0] sm:$0xff]
  %v16 = vld [vmem:[%s0 + $0x8] sm:$0xff]
  %v17 = vld [vmem:[%s0 + $0x10] sm:$0xff]
  %v18 = vld [vmem:[%s0 + $0x18] sm:$0xff]
  %v19 = vld [vmem:[%s0 + $0x20] sm:$0xff]
  %v20 = vld [vmem:[%s0 + $0x28] sm:$0xff]
  %v21 = vld [vmem:[%s0 + $0x30] sm:$0xff]
  %v22 = vld [vmem:[%s0 + $0x38] sm:$0xff]
  %v23 = vpack.c.bf16 %v16, %v15
  %v24 = vpack.c.bf16 %v18, %v17
  %v25 = vpack.c.bf16 %v20, %v19
  %v26 = vpack.c.bf16 %v22, %v21
  %v27 = vld [vmem:[%s1] sm:$0xf]
  %v28 = vld [vmem:[%s1 + $0x4] sm:$0xf]
  %v29 = vld [vmem:[%s1 + $0x8] sm:$0xf]
  %v30 = vld [vmem:[%s1 + $0xc] sm:$0xf]
  %v31 = vld [vmem:[%s1 + $0x10] sm:$0xf]
  %v32 = vld [vmem:[%s1 + $0x14] sm:$0xf]
  %v33 = vld [vmem:[%s1 + $0x18] sm:$0xf]
  %v34 = vld [vmem:[%s1 + $0x1c] sm:$0xf]
  %v35 = vld [vmem:[%s1 + $0x20] sm:$0xf]
  %v36 = vld [vmem:[%s1 + $0x24] sm:$0xf]
  %v37 = vld [vmem:[%s1 + $0x28] sm:$0xf]
  %v38 = vld [vmem:[%s1 + $0x2c] sm:$0xf]
  %v39 = vld [vmem:[%s1 + $0x30] sm:$0xf]
  %v40 = vld [vmem:[%s1 + $0x34] sm:$0xf]
  %v41 = vld [vmem:[%s1 + $0x38] sm:$0xf]
  %v42 = vld [vmem:[%s1 + $0x3c] sm:$0xf]
  %v43 = vld [vmem:[%s2] sm:$0x1]
  %v45 = vlaneseq
  %v46 = vshrl.u32 %v45, 7
  %v47 = vsub.s32 0, %v46
  %v48 = vrot.slane %v43, %v47
  %v66 = vunpack.c.l.b16 %v27
  %v67 = vunpack.c.l.b16 %v28
  %v68 = vunpack.c.l.b16 %v29
  %v69 = vunpack.c.l.b16 %v30
  %v70 = vunpack.c.l.b16 %v31
  %v71 = vunpack.c.l.b16 %v32
  %v72 = vunpack.c.l.b16 %v33
  %v73 = vunpack.c.l.b16 %v34
  %v74 = vunpack.c.l.b16 %v35
  %v75 = vunpack.c.l.b16 %v36
  %v76 = vunpack.c.l.b16 %v37
  %v77 = vunpack.c.l.b16 %v38
  %v78 = vunpack.c.l.b16 %v39
  %v79 = vunpack.c.l.b16 %v40
  %v80 = vunpack.c.l.b16 %v41
  %v81 = vunpack.c.l.b16 %v42
  %v82 = vpack.c.b16 %v67, %v66
  %v83 = vpack.c.b16 %v69, %v68
  %v84 = vpack.c.b16 %v71, %v70
  %v85 = vpack.c.b16 %v73, %v72
  %v86 = vpack.c.b16 %v75, %v74
  %v87 = vpack.c.b16 %v77, %v76
  %v88 = vpack.c.b16 %v79, %v78
  %v89 = vpack.c.b16 %v81, %v80
  %98 = vmatprep.subr.bf16.mxu0 0
  %99 = vmatpush1.bf16.msra.mxu0 %v82
  %100 = vmatprep.subr.bf16.mxu0 0
  %101 = vmatpush1.bf16.msra.mxu0 %v83
  %102 = vmatprep.subr.bf16.mxu0 0
  %103 = vmatpush1.bf16.msra.mxu0 %v84
  %104 = vmatprep.subr.bf16.mxu0 0
  %105 = vmatpush1.bf16.msra.mxu0 %v85
  %106 = vmatprep.subr.bf16.mxu0 0
  %107 = vmatpush1.bf16.msra.mxu0 %v86
  %108 = vmatprep.subr.bf16.mxu0 0
  %109 = vmatpush1.bf16.msra.mxu0 %v87
  %110 = vmatprep.subr.bf16.mxu0 0
  %111 = vmatpush1.bf16.msra.mxu0 %v88
  %112 = vmatprep.subr.bf16.mxu0 0
  %113 = vmatpush1.bf16.msra.mxu0 %v89
  %114 = vmatprep.subr.bf16.mxu0 0
  %115 = vmatpush1.bf16.msra.mxu0 0
  %116 = vmatprep.subr.bf16.mxu0 0
  %117 = vmatpush1.bf16.msra.mxu0 0
  %118 = vmatprep.subr.bf16.mxu0 0
  %119 = vmatpush1.bf16.msra.mxu0 0
  %120 = vmatprep.subr.bf16.mxu0 0
  %121 = vmatpush1.bf16.msra.mxu0 0
  %122 = vmatprep.subr.bf16.mxu0 0
  %123 = vmatpush1.bf16.msra.mxu0 0
  %124 = vmatprep.subr.bf16.mxu0 0
  %125 = vmatpush1.bf16.msra.mxu0 0
  %126 = vmatprep.subr.bf16.mxu0 0
  %127 = vmatpush1.bf16.msra.mxu0 0
  %128 = vmatprep.subr.bf16.mxu0 0
  %129 = vmatpush1.bf16.msra.mxu0 0
  %130 = vmatprep.mubr.bf16.mxu0 0
  %131 = vmatmul.mubr.bf16.gmra.mrb[0].mxu0 %v23
  %v132 = vpop.f32.mrb[0].mxu0
  %v133 = vadd.f32 %v48, %v132
  %v134 = vpop.f32.mrb[0].mxu0
  %v135 = vpop.f32.mrb[0].mxu0
  %v136 = vadd.f32 %v48, %v135
  %v137 = vpop.f32.mrb[0].mxu0
  %138 = vmatprep.mubr.bf16.mxu0 0
  %139 = vmatmul.mubr.bf16.gmra.mrb[0].mxu0 %v24
  %v140 = vpop.f32.mrb[0].mxu0
  %v141 = vadd.f32 %v48, %v140
  %v142 = vpop.f32.mrb[0].mxu0
  %v143 = vpop.f32.mrb[0].mxu0
  %v144 = vadd.f32 %v48, %v143
  %v145 = vpop.f32.mrb[0].mxu0
  %146 = vmatprep.mubr.bf16.mxu0 0
  %147 = vmatmul.mubr.bf16.gmra.mrb[0].mxu0 %v25
  %v148 = vpop.f32.mrb[0].mxu0
  %v149 = vadd.f32 %v48, %v148
  %v150 = vpop.f32.mrb[0].mxu0
  %v151 = vpop.f32.mrb[0].mxu0
  %v152 = vadd.f32 %v48, %v151
  %v153 = vpop.f32.mrb[0].mxu0
  %154 = vmatprep.mubr.bf16.mxu0 0
  %155 = vmatmul.mubr.bf16.gmra.mrb[0].mxu0 %v26
  %v156 = vpop.f32.mrb[0].mxu0
  %v157 = vadd.f32 %v48, %v156
  %v158 = vpop.f32.mrb[0].mxu0
  %v159 = vpop.f32.mrb[0].mxu0
  %v160 = vadd.f32 %v48, %v159
  %v161 = vpop.f32.mrb[0].mxu0
  %162 = vdwg.mxu0
  %vm163 = vcmask 523264
  %164 = vst.msk [vmem:[%s3] sm:$0xff] %vm163, %v133
  %165 = vst.msk [vmem:[%s3 + $0x8] sm:$0xff] %vm163, %v136
  %166 = vst.msk [vmem:[%s3 + $0x10] sm:$0xff] %vm163, %v141
  %167 = vst.msk [vmem:[%s3 + $0x18] sm:$0xff] %vm163, %v144
  %168 = vst.msk [vmem:[%s3 + $0x20] sm:$0xff] %vm163, %v149
  %169 = vst.msk [vmem:[%s3 + $0x28] sm:$0xff] %vm163, %v152
  %170 = vst.msk [vmem:[%s3 + $0x30] sm:$0xff] %vm163, %v157
  %171 = vst.msk [vmem:[%s3 + $0x38] sm:$0xff] %vm163, %v160
  // Predicated region
  $region14: #{spiking_former_encoder_forward.4} parent=0 // pred_check
    _
  $region15: #{spiking_former_encoder_forward.4} parent=0 // pred_check_branch
    %173 = sbr.rel (0) target = $region17
  $region16: #{spiking_former_encoder_forward.4} parent=0 // pred_region
    _
  $region17: #{spiking_former_encoder_forward.4} parent=0 // pred_fallthru
    _
  // Predicated region
  $region18: #{spiking_former_encoder_forward.4} parent=0 // pred_check
    _
  $region19: #{spiking_former_encoder_forward.4} parent=0 // pred_check_branch
    %175 = sbr.rel (0) target = $region21
  $region20: #{spiking_former_encoder_forward.4} parent=0 // pred_region
    _
  $region21: #{spiking_former_encoder_forward.4} parent=0 // pred_fallthru
    _

// kernel: spiking_former_encoder_forward.3
$region0: #{spiking_former_encoder_forward.3}
  #allocation0 [shape = 'u32[]', space=smem, size = 0x4, offset = 0x4, fixed_abs, tag = 'smem constant byte address 0x4 - core index']
  #allocation1 [shape = 'u32[144,128]{1,0:T(1,128)}', space=vmem, size = 0x12000, scoped, tag = 'internal scratch']
  %s0 = inlined_call_operand.vmem [shape: f32[8,32,32], index: 0, kind: input, shape index: {}]
  %s1 = inlined_call_operand.vmem [shape: bf16[32,96], index: 1, kind: input, shape index: {}]
  %s2 = inlined_call_operand.vmem [shape: f32[1,96], index: 2, kind: input, shape index: {}]
  %s3 = inlined_call_operand.vmem [shape: bf16[32,32], index: 3, kind: input, shape index: {}]
  %s4 = inlined_call_operand.vmem [shape: f32[1,32], index: 4, kind: input, shape index: {}]
  %s5 = inlined_call_operand.vmem [shape: bf16[32,128], index: 5, kind: input, shape index: {}]
  %s6 = inlined_call_operand.vmem [shape: f32[1,128], index: 6, kind: input, shape index: {}]
  %s7 = inlined_call_operand.vmem [shape: bf16[128,32], index: 7, kind: input, shape index: {}]
  %s8 = inlined_call_operand.vmem [shape: f32[1,32], index: 8, kind: input, shape index: {}]
  %s9 = inlined_call_operand.vmem [shape: f32[8,32,32], index: 9, kind: output, shape index: {}]
  %s10 = sld [smem:[#allocation0]]
  $region46: #{spiking_former_encoder_forward.3} parent=0
    _
  %s12 = ssub.s32 1, %s10
  %s13 = scalar_select 0, %s12, %s10
  // Predicated region
  $region2: #{spiking_former_encoder_forward.3} parent=0 // pred_check
    _
  $region3: #{spiking_former_encoder_forward.3} parent=0 // pred_check_branch
    %15 = sbr.rel (0) target = $region5
  $region4: #{spiking_former_encoder_forward.3} parent=0 // pred_region
    _
  $region5: #{spiking_former_encoder_forward.3} parent=0 // pred_fallthru
    _
  // Predicated region
  $region6: #{spiking_former_encoder_forward.3} parent=0 // pred_check
    _
  $region7: #{spiking_former_encoder_forward.3} parent=0 // pred_check_branch
    %17 = sbr.rel (0) target = $region9
  $region8: #{spiking_former_encoder_forward.3} parent=0 // pred_region
    _
  $region9: #{spiking_former_encoder_forward.3} parent=0 // pred_fallthru
    _
  // Predicated region
  $region10: #{spiking_former_encoder_forward.3} parent=0 // pred_check
    _
  $region11: #{spiking_former_encoder_forward.3} parent=0 // pred_check_branch
    %19 = sbr.rel (0) target = $region13
  $region12: #{spiking_former_encoder_forward.3} parent=0 // pred_region
    _
  $region13: #{spiking_former_encoder_forward.3} parent=0 // pred_fallthru
    _
  // Predicated region
  $region14: #{spiking_former_encoder_forward.3} parent=0 // pred_check
    _
  $region15: #{spiking_former_encoder_forward.3} parent=0 // pred_check_branch
    %21 = sbr.rel (0) target = $region17
  $region16: #{spiking_former_encoder_forward.3} parent=0 // pred_region
    _
  $region17: #{spiking_former_encoder_forward.3} parent=0 // pred_fallthru
    _
  // Predicated region
  $region18: #{spiking_former_encoder_forward.3} parent=0 // pred_check
    _
  $region19: #{spiking_former_encoder_forward.3} parent=0 // pred_check_branch
    %23 = sbr.rel (0) target = $region21
  $region20: #{spiking_former_encoder_forward.3} parent=0 // pred_region
    _
  $region21: #{spiking_former_encoder_forward.3} parent=0 // pred_fallthru
    _
  // Predicated region
  $region22: #{spiking_former_encoder_forward.3} parent=0 // pred_check
    _
  $region23: #{spiking_former_encoder_forward.3} parent=0 // pred_check_branch
    %25 = sbr.rel (0) target = $region25
  $region24: #{spiking_former_encoder_forward.3} parent=0 // pred_region
    _
  $region25: #{spiking_former_encoder_forward.3} parent=0 // pred_fallthru
    _
  // Predicated region
  $region26: #{spiking_former_encoder_forward.3} parent=0 // pred_check
    _
  $region27: #{spiking_former_encoder_forward.3} parent=0 // pred_check_branch
    %27 = sbr.rel (0) target = $region29
  $region28: #{spiking_former_encoder_forward.3} parent=0 // pred_region
    _
  $region29: #{spiking_former_encoder_forward.3} parent=0 // pred_fallthru
    _
  // Predicated region
  $region30: #{spiking_former_encoder_forward.3} parent=0 // pred_check
    _
  $region31: #{spiking_former_encoder_forward.3} parent=0 // pred_check_branch
    %29 = sbr.rel (0) target = $region33
  $region32: #{spiking_former_encoder_forward.3} parent=0 // pred_region
    _
  $region33: #{spiking_former_encoder_forward.3} parent=0 // pred_fallthru
    _
  // Predicated region
  $region34: #{spiking_former_encoder_forward.3} parent=0 // pred_check
    _
  $region35: #{spiking_former_encoder_forward.3} parent=0 // pred_check_branch
    %31 = sbr.rel (0) target = $region37
  $region36: #{spiking_former_encoder_forward.3} parent=0 // pred_region
    _
  $region37: #{spiking_former_encoder_forward.3} parent=0 // pred_fallthru
    _
  %v33 = vld [vmem:[%s0] sm:$0xff]
  %v34 = vld [vmem:[%s0 + $0x8] sm:$0xff]
  %v35 = vld [vmem:[%s0 + $0x10] sm:$0xff]
  %v36 = vld [vmem:[%s0 + $0x18] sm:$0xff]
  %v37 = vld [vmem:[%s0 + $0x20] sm:$0xff]
  %v38 = vld [vmem:[%s0 + $0x28] sm:$0xff]
  %v39 = vld [vmem:[%s0 + $0x30] sm:$0xff]
  %v40 = vld [vmem:[%s0 + $0x38] sm:$0xff]
  %v41 = vld [vmem:[%s0 + $0x40] sm:$0xff]
  %v42 = vld [vmem:[%s0 + $0x48] sm:$0xff]
  %v43 = vld [vmem:[%s0 + $0x50] sm:$0xff]
  %v44 = vld [vmem:[%s0 + $0x58] sm:$0xff]
  %v45 = vld [vmem:[%s0 + $0x60] sm:$0xff]
  %v46 = vld [vmem:[%s0 + $0x68] sm:$0xff]
  %v47 = vld [vmem:[%s0 + $0x70] sm:$0xff]
  %v48 = vld [vmem:[%s0 + $0x78] sm:$0xff]
  %v49 = vld [vmem:[%s0 + $0x80] sm:$0xff]
  %v50 = vld [vmem:[%s0 + $0x88] sm:$0xff]
  %v51 = vld [vmem:[%s0 + $0x90] sm:$0xff]
  %v52 = vld [vmem:[%s0 + $0x98] sm:$0xff]
  %v53 = vld [vmem:[%s0 + $0xa0] sm:$0xff]
  %v54 = vld [vmem:[%s0 + $0xa8] sm:$0xff]
  %v55 = vld [vmem:[%s0 + $0xb0] sm:$0xff]
  %v56 = vld [vmem:[%s0 + $0xb8] sm:$0xff]
  %v57 = vld [vmem:[%s0 + $0xc0] sm:$0xff]
  %v58 = vld [vmem:[%s0 + $0xc8] sm:$0xff]
  %v59 = vld [vmem:[%s0 + $0xd0] sm:$0xff]
  %v60 = vld [vmem:[%s0 + $0xd8] sm:$0xff]
  %v61 = vld [vmem:[%s0 + $0xe0] sm:$0xff]
  %v62 = vld [vmem:[%s0 + $0xe8] sm:$0xff]
  %v63 = vld [vmem:[%s0 + $0xf0] sm:$0xff]
  %v64 = vld [vmem:[%s0 + $0xf8] sm:$0xff]
  %v65 = vadd.f32 %v33, 0.0
  %v66 = vadd.f32 %v34, 0.0
  %v67 = vadd.f32 %v37, 0.0
  %v68 = vadd.f32 %v38, 0.0
  %v69 = vadd.f32 %v41, 0.0
  %v70 = vadd.f32 %v42, 0.0
  %v71 = vadd.f32 %v45, 0.0
  %v72 = vadd.f32 %v46, 0.0
  %v73 = vadd.f32 %v49, 0.0
  %v74 = vadd.f32 %v50, 0.0
  %v75 = vadd.f32 %v53, 0.0
  %v76 = vadd.f32 %v54, 0.0
  %v77 = vadd.f32 %v57, 0.0
  %v78 = vadd.f32 %v58, 0.0
  %v79 = vadd.f32 %v61, 0.0
  %v80 = vadd.f32 %v62, 0.0
  %vm81 = vcmp.ge.f32.partialorder %v65, 0.5
  %vm82 = vcmp.ge.f32.partialorder %v66, 0.5
  %vm83 = vcmp.ge.f32.partialorder %v67, 0.5
  %vm84 = vcmp.ge.f32.partialorder %v68, 0.5
  %vm85 = vcmp.ge.f32.partialorder %v69, 0.5
  %vm86 = vcmp.ge.f32.partialorder %v70, 0.5
  %vm87 = vcmp.ge.f32.partialorder %v71, 0.5
  %vm88 = vcmp.ge.f32.partialorder %v72, 0.5
  %vm89 = vcmp.ge.f32.partialorder %v73, 0.5
  %vm90 = vcmp.ge.f32.partialorder %v74, 0.5
  %vm91 = vcmp.ge.f32.partialorder %v75, 0.5
  %vm92 = vcmp.ge.f32.partialorder %v76, 0.5
  %vm93 = vcmp.ge.f32.partialorder %v77, 0.5
  %vm94 = vcmp.ge.f32.partialorder %v78, 0.5
  %vm95 = vcmp.ge.f32.partialorder %v79, 0.5
  %vm96 = vcmp.ge.f32.partialorder %v80, 0.5
  %v97 = vsel %vm81, 1, 0
  %v98 = vsel %vm82, 1, 0
  %v99 = vsel %vm83, 1, 0
  %v100 = vsel %vm84, 1, 0
  %v101 = vsel %vm85, 1, 0
  %v102 = vsel %vm86, 1, 0
  %v103 = vsel %vm87, 1, 0
  %v104 = vsel %vm88, 1, 0
  %v105 = vsel %vm89, 1, 0
  %v106 = vsel %vm90, 1, 0
  %v107 = vsel %vm91, 1, 0
  %v108 = vsel %vm92, 1, 0
  %v109 = vsel %vm93, 1, 0
  %v110 = vsel %vm94, 1, 0
  %v111 = vsel %vm95, 1, 0
  %v112 = vsel %vm96, 1, 0
  %v113 = vcvt.s32.f32 %v97
  %v114 = vcvt.s32.f32 %v98
  %v115 = vcvt.s32.f32 %v99
  %v116 = vcvt.s32.f32 %v100
  %v117 = vcvt.s32.f32 %v101
  %v118 = vcvt.s32.f32 %v102
  %v119 = vcvt.s32.f32 %v103
  %v120 = vcvt.s32.f32 %v104
  %v121 = vcvt.s32.f32 %v105
  %v122 = vcvt.s32.f32 %v106
  %v123 = vcvt.s32.f32 %v107
  %v124 = vcvt.s32.f32 %v108
  %v125 = vcvt.s32.f32 %v109
  %v126 = vcvt.s32.f32 %v110
  %v127 = vcvt.s32.f32 %v111
  %v128 = vcvt.s32.f32 %v112
  %v129 = vsel %vm81, 0.0, %v65
  %v130 = vsel %vm82, 0.0, %v66
  %v131 = vsel %vm83, 0.0, %v67
  %v132 = vsel %vm84, 0.0, %v68
  %v133 = vsel %vm85, 0.0, %v69
  %v134 = vsel %vm86, 0.0, %v70
  %v135 = vsel %vm87, 0.0, %v71
  %v136 = vsel %vm88, 0.0, %v72
  %v137 = vsel %vm89, 0.0, %v73
  %v138 = vsel %vm90, 0.0, %v74
  %v139 = vsel %vm91, 0.0, %v75
  %v140 = vsel %vm92, 0.0, %v76
  %v141 = vsel %vm93, 0.0, %v77
  %v142 = vsel %vm94, 0.0, %v78
  %v143 = vsel %vm95, 0.0, %v79
  %v144 = vsel %vm96, 0.0, %v80
  %v145 = vmul.f32 %v129, 0.5
  %v146 = vmul.f32 %v130, 0.5
  %v147 = vmul.f32 %v131, 0.5
  %v148 = vmul.f32 %v132, 0.5
  %v149 = vmul.f32 %v133, 0.5
  %v150 = vmul.f32 %v134, 0.5
  %v151 = vmul.f32 %v135, 0.5
  %v152 = vmul.f32 %v136, 0.5
  %v153 = vmul.f32 %v137, 0.5
  %v154 = vmul.f32 %v138, 0.5
  %v155 = vmul.f32 %v139, 0.5
  %v156 = vmul.f32 %v140, 0.5
  %v157 = vmul.f32 %v141, 0.5
  %v158 = vmul.f32 %v142, 0.5
  %v159 = vmul.f32 %v143, 0.5
  %v160 = vmul.f32 %v144, 0.5
  %v161 = vadd.f32 %v145, %v35
  %v162 = vadd.f32 %v146, %v36
  %v163 = vadd.f32 %v147, %v39
  %v164 = vadd.f32 %v148, %v40
  %v165 = vadd.f32 %v149, %v43
  %v166 = vadd.f32 %v150, %v44
  %v167 = vadd.f32 %v151, %v47
  %v168 = vadd.f32 %v152, %v48
  %v169 = vadd.f32 %v153, %v51
  %v170 = vadd.f32 %v154, %v52
  %v171 = vadd.f32 %v155, %v55
  %v172 = vadd.f32 %v156, %v56
  %v173 = vadd.f32 %v157, %v59
  %v174 = vadd.f32 %v158, %v60
  %v175 = vadd.f32 %v159, %v63
  %v176 = vadd.f32 %v160, %v64
  %vm177 = vcmp.ge.f32.partialorder %v161, 0.5
  %vm178 = vcmp.ge.f32.partialorder %v162, 0.5
  %vm179 = vcmp.ge.f32.partialorder %v163, 0.5
  %vm180 = vcmp.ge.f32.partialorder %v164, 0.5
  %vm181 = vcmp.ge.f32.partialorder %v165, 0.5
  %vm182 = vcmp.ge.f32.partialorder %v166, 0.5
  %vm183 = vcmp.ge.f32.partialorder %v167, 0.5
  %vm184 = vcmp.ge.f32.partialorder %v168, 0.5
  %vm185 = vcmp.ge.f32.partialorder %v169, 0.5
  %vm186 = vcmp.ge.f32.partialorder %v170, 0.5
  %vm187 = vcmp.ge.f32.partialorder %v171, 0.5
  %vm188 = vcmp.ge.f32.partialorder %v172, 0.5
  %vm189 = vcmp.ge.f32.partialorder %v173, 0.5
  %vm190 = vcmp.ge.f32.partialorder %v174, 0.5
  %vm191 = vcmp.ge.f32.partialorder %v175, 0.5
  %vm192 = vcmp.ge.f32.partialorder %v176, 0.5
  %v193 = vsel %vm177, 1, 0
  %v194 = vsel %vm178, 1, 0
  %v195 = vsel %vm179, 1, 0
  %v196 = vsel %vm180, 1, 0
  %v197 = vsel %vm181, 1, 0
  %v198 = vsel %vm182, 1, 0
  %v199 = vsel %vm183, 1, 0
  %v200 = vsel %vm184, 1, 0
  %v201 = vsel %vm185, 1, 0
  %v202 = vsel %vm186, 1, 0
  %v203 = vsel %vm187, 1, 0
  %v204 = vsel %vm188, 1, 0
  %v205 = vsel %vm189, 1, 0
  %v206 = vsel %vm190, 1, 0
  %v207 = vsel %vm191, 1, 0
  %v208 = vsel %vm192, 1, 0
  %v209 = vcvt.s32.f32 %v193
  %v210 = vcvt.s32.f32 %v194
  %v211 = vcvt.s32.f32 %v195
  %v212 = vcvt.s32.f32 %v196
  %v213 = vcvt.s32.f32 %v197
  %v214 = vcvt.s32.f32 %v198
  %v215 = vcvt.s32.f32 %v199
  %v216 = vcvt.s32.f32 %v200
  %v217 = vcvt.s32.f32 %v201
  %v218 = vcvt.s32.f32 %v202
  %v219 = vcvt.s32.f32 %v203
  %v220 = vcvt.s32.f32 %v204
  %v221 = vcvt.s32.f32 %v205
  %v222 = vcvt.s32.f32 %v206
  %v223 = vcvt.s32.f32 %v207
  %v224 = vcvt.s32.f32 %v208
  %v225 = vpack.c.bf16 %v114, %v113
  %v226 = vpack.c.bf16 %v210, %v209
  %v227 = vpack.c.bf16 %v116, %v115
  %v228 = vpack.c.bf16 %v212, %v211
  %v229 = vpack.c.bf16 %v118, %v117
  %v230 = vpack.c.bf16 %v214, %v213
  %v231 = vpack.c.bf16 %v120, %v119
  %v232 = vpack.c.bf16 %v216, %v215
  %v233 = vpack.c.bf16 %v122, %v121
  %v234 = vpack.c.bf16 %v218, %v217
  %v235 = vpack.c.bf16 %v124, %v123
  %v236 = vpack.c.bf16 %v220, %v219
  %v237 = vpack.c.bf16 %v126, %v125
  %v238 = vpack.c.bf16 %v222, %v221
  %v239 = vpack.c.bf16 %v128, %v127
  %v240 = vpack.c.bf16 %v224, %v223
  %v241 = vld [vmem:[%s1] sm:$0xf]
  %v242 = vld [vmem:[%s1 + $0x4] sm:$0xf]
  %v243 = vld [vmem:[%s1 + $0x8] sm:$0xf]
  %v244 = vld [vmem:[%s1 + $0xc] sm:$0xf]
  %v245 = vld [vmem:[%s2] sm:$0x1]
  %v247 = vlaneseq
  %v248 = vshrl.u32 %v247, 7
  %v249 = vsub.s32 0, %v248
  %v250 = vrot.slane %v245, %v249
  %v256 = vunpack.c.l.b16 %v241
  %v257 = vunpack.c.l.b16 %v242
  %v258 = vunpack.c.l.b16 %v243
  %v259 = vunpack.c.l.b16 %v244
  %v260 = vpack.c.b16 %v257, %v256
  %v261 = vpack.c.b16 %v259, %v258
  %vm264 = vcmask 261120
  %v266 = vsel %vm264, %v225, 0
  %v269 = vsel %vm264, %v226, 0
  %v272 = vsel %vm264, %v227, 0
  %v275 = vsel %vm264, %v228, 0
  %v278 = vsel %vm264, %v229, 0
  %v281 = vsel %vm264, %v230, 0
  %v284 = vsel %vm264, %v231, 0
  %v287 = vsel %vm264, %v232, 0
  %v290 = vsel %vm264, %v233, 0
  %v293 = vsel %vm264, %v234, 0
  %v296 = vsel %vm264, %v235, 0
  %v299 = vsel %vm264, %v236, 0
  %v302 = vsel %vm264, %v237, 0
  %v305 = vsel %vm264, %v238, 0
  %v308 = vsel %vm264, %v239, 0
  %v311 = vsel %vm264, %v240, 0
  %313 = vmatprep.subr.bf16.mxu0 0
  %314 = vmatpush1.bf16.msra.mxu0 %v260
  %315 = vmatprep.subr.bf16.mxu0 0
  %316 = vmatpush1.bf16.msra.mxu0 %v261
  %317 = vmatprep.subr.bf16.mxu0 0
  %318 = vmatpush1.bf16.msra.mxu0 0
  %319 = vmatprep.subr.bf16.mxu0 0
  %320 = vmatpush1.bf16.msra.mxu0 0
  %321 = vmatprep.subr.bf16.mxu0 0
  %322 = vmatpush1.bf16.msra.mxu0 0
  %323 = vmatprep.subr.bf16.mxu0 0
  %324 = vmatpush1.bf16.msra.mxu0 0
  %325 = vmatprep.subr.bf16.mxu0 0
  %326 = vmatpush1.bf16.msra.mxu0 0
  %327 = vmatprep.subr.bf16.mxu0 0
  %328 = vmatpush1.bf16.msra.mxu0 0
  %329 = vmatprep.subr.bf16.mxu0 0
  %330 = vmatpush1.bf16.msra.mxu0 0
  %331 = vmatprep.subr.bf16.mxu0 0
  %332 = vmatpush1.bf16.msra.mxu0 0
  %333 = vmatprep.subr.bf16.mxu0 0
  %334 = vmatpush1.bf16.msra.mxu0 0
  %335 = vmatprep.subr.bf16.mxu0 0
  %336 = vmatpush1.bf16.msra.mxu0 0
  %337 = vmatprep.subr.bf16.mxu0 0
  %338 = vmatpush1.bf16.msra.mxu0 0
  %339 = vmatprep.subr.bf16.mxu0 0
  %340 = vmatpush1.bf16.msra.mxu0 0
  %341 = vmatprep.subr.bf16.mxu0 0
  %342 = vmatpush1.bf16.msra.mxu0 0
  %343 = vmatprep.subr.bf16.mxu0 0
  %344 = vmatpush1.bf16.msra.mxu0 0
  %345 = vmatprep.mubr.bf16.mxu0 0
  %346 = vmatmul.mubr.bf16.gmra.mrb[0].mxu0 %v266
  %v347 = vpop.f32.mrb[0].mxu0
  %v348 = vadd.f32 %v250, %v347
  %v349 = vpop.f32.mrb[0].mxu0
  %v350 = vpop.f32.mrb[0].mxu0
  %v351 = vadd.f32 %v250, %v350
  %v352 = vpop.f32.mrb[0].mxu0
  %353 = vmatprep.mubr.bf16.mxu0 0
  %354 = vmatmul.mubr.bf16.gmra.mrb[0].mxu0 %v269
  %v355 = vpop.f32.mrb[0].mxu0
  %v356 = vadd.f32 %v250, %v355
  %v357 = vpop.f32.mrb[0].mxu0
  %v358 = vpop.f32.mrb[0].mxu0
  %v359 = vadd.f32 %v250, %v358
  %v360 = vpop.f32.mrb[0].mxu0
  %361 = vmatprep.mubr.bf16.mxu0 0
  %362 = vmatmul.mubr.bf16.gmra.mrb[0].mxu0 %v272
  %v363 = vpop.f32.mrb[0].mxu0
  %v364 = vadd.f32 %v250, %v363
  %v365 = vpop.f32.mrb[0].mxu0
  %v366 = vpop.f32.mrb[0].mxu0
  %v367 = vadd.f32 %v250, %v366
  %v368 = vpop.f32.mrb[0].mxu0
  %369 = vmatprep.mubr.bf16.mxu0 0
  %370 = vmatmul.mubr.bf16.gmra.mrb[0].mxu0 %v275
  %v371 = vpop.f32.mrb[0].mxu0
  %v372 = vadd.f32 %v250, %v371
  %v373 = vpop.f32.mrb[0].mxu0
  %v374 = vpop.f32.mrb[0].mxu0
  %v375 = vadd.f32 %v250, %v374
  %v376 = vpop.f32.mrb[0].mxu0
  %377 = vmatprep.mubr.bf16.mxu0 0
  %378 = vmatmul.mubr.bf16.gmra.mrb[0].mxu0 %v278
  %v379 = vpop.f32.mrb[0].mxu0
  %v380 = vadd.f32 %v250, %v379
  %v381 = vpop.f32.mrb[0].mxu0
  %v382 = vpop.f32.mrb[0].mxu0
  %v383 = vadd.f32 %v250, %v382
  %v384 = vpop.f32.mrb[0].mxu0
  %385 = vmatprep.mubr.bf16.mxu0 0
  %386 = vmatmul.mubr.bf16.gmra.mrb[0].mxu0 %v281
  %v387 = vpop.f32.mrb[0].mxu0
  %v388 = vadd.f32 %v250, %v387
  %v389 = vpop.f32.mrb[0].mxu0
  %v390 = vpop.f32.mrb[0].mxu0
  %v391 = vadd.f32 %v250, %v390
  %v392 = vpop.f32.mrb[0].mxu0
  %393 = vmatprep.mubr.bf16.mxu0 0
  %394 = vmatmul.mubr.bf16.gmra.mrb[0].mxu0 %v284
  %v395 = vpop.f32.mrb[0].mxu0
  %v396 = vadd.f32 %v250, %v395
  %v397 = vpop.f32.mrb[0].mxu0
  %v398 = vpop.f32.mrb[0].mxu0
  %v399 = vadd.f32 %v250, %v398
  %v400 = vpop.f32.mrb[0].mxu0
  %401 = vmatprep.mubr.bf16.mxu0 0
  %402 = vmatmul.mubr.bf16.gmra.mrb[0].mxu0 %v287
  %v403 = vpop.f32.mrb[0].mxu0
  %v404 = vadd.f32 %v250, %v403
  %v405 = vpop.f32.mrb[0].mxu0
  %v406 = vpop.f32.mrb[0].mxu0
  %v407 = vadd.f32 %v250, %v406
  %v408 = vpop.f32.mrb[0].mxu0
  %409 = vmatprep.mubr.bf16.mxu0 0
  %410 = vmatmul.mubr.bf16.gmra.mrb[0].mxu0 %v290
  %v411 = vpop.f32.mrb[0].mxu0
  %v412 = vadd.f32 %v250, %v411
  %v413 = vpop.f32.mrb[0].mxu0
  %v414 = vpop.f32.mrb[0].mxu0
  %v415 = vadd.f32 %v250, %v414
  %v416 = vpop.f32.mrb[0].mxu0
  %417 = vmatprep.mubr.bf16.mxu0 0
  %418 = vmatmul.mubr.bf16.gmra.mrb[0].mxu0 %v293
  %v419 = vpop.f32.mrb[0].mxu0
  %v420 = vadd.f32 %v250, %v419
  %v421 = vpop.f32.mrb[0].mxu0
  %v422 = vpop.f32.mrb[0].mxu0
  %v423 = vadd.f32 %v250, %v422
  %v424 = vpop.f32.mrb[0].mxu0
  %425 = vmatprep.mubr.bf16.mxu0 0
  %426 = vmatmul.mubr.bf16.gmra.mrb[0].mxu0 %v296
  %v427 = vpop.f32.mrb[0].mxu0
  %v428 = vadd.f32 %v250, %v427
  %v429 = vpop.f32.mrb[0].mxu0
  %v430 = vpop.f32.mrb[0].mxu0
  %v431 = vadd.f32 %v250, %v430
  %v432 = vpop.f32.mrb[0].mxu0
  %433 = vmatprep.mubr.bf16.mxu0 0
  %434 = vmatmul.mubr.bf16.gmra.mrb[0].mxu0 %v299
  %v435 = vpop.f32.mrb[0].mxu0
  %v436 = vadd.f32 %v250, %v435
  %v437 = vpop.f32.mrb[0].mxu0
  %v438 = vpop.f32.mrb[0].mxu0
  %v439 = vadd.f32 %v250, %v438
  %v440 = vpop.f32.mrb[0].mxu0
  %441 = vmatprep.mubr.bf16.mxu0 0
  %442 = vmatmul.mubr.bf16.gmra.mrb[0].mxu0 %v302
  %v443 = vpop.f32.mrb[0].mxu0
  %v444 = vadd.f32 %v250, %v443
  %v445 = vpop.f32.mrb[0].mxu0
  %v446 = vpop.f32.mrb[0].mxu0
  %v447 = vadd.f32 %v250, %v446
  %v448 = vpop.f32.mrb[0].mxu0
  %449 = vmatprep.mubr.bf16.mxu0 0
  %450 = vmatmul.mubr.bf16.gmra.mrb[0].mxu0 %v305
  %v451 = vpop.f32.mrb[0].mxu0
  %v452 = vadd.f32 %v250, %v451
  %v453 = vpop.f32.mrb[0].mxu0
  %v454 = vpop.f32.mrb[0].mxu0
  %v455 = vadd.f32 %v250, %v454
  %v456 = vpop.f32.mrb[0].mxu0
  %457 = vmatprep.mubr.bf16.mxu0 0
  %458 = vmatmul.mubr.bf16.gmra.mrb[0].mxu0 %v308
  %v459 = vpop.f32.mrb[0].mxu0
  %v460 = vadd.f32 %v250, %v459
  %v461 = vpop.f32.mrb[0].mxu0
  %v462 = vpop.f32.mrb[0].mxu0
  %v463 = vadd.f32 %v250, %v462
  %v464 = vpop.f32.mrb[0].mxu0
  %465 = vmatprep.mubr.bf16.mxu0 0
  %466 = vmatmul.mubr.bf16.gmra.mrb[0].mxu0 %v311
  %v467 = vpop.f32.mrb[0].mxu0
  %v468 = vadd.f32 %v250, %v467
  %v469 = vpop.f32.mrb[0].mxu0
  %v470 = vpop.f32.mrb[0].mxu0
  %v471 = vadd.f32 %v250, %v470
  %v472 = vpop.f32.mrb[0].mxu0
  %473 = vdwg.mxu0
  %v474 = vpack.c.bf16 %v351, %v348
  %v475 = vpack.c.bf16 %v359, %v356
  %v476 = vpack.c.bf16 %v367, %v364
  %v477 = vpack.c.bf16 %v375, %v372
  %v478 = vpack.c.bf16 %v383, %v380
  %v479 = vpack.c.bf16 %v391, %v388
  %v480 = vpack.c.bf16 %v399, %v396
  %v481 = vpack.c.bf16 %v407, %v404
  %v482 = vpack.c.bf16 %v415, %v412
  %v483 = vpack.c.bf16 %v423, %v420
  %v484 = vpack.c.bf16 %v431, %v428
  %v485 = vpack.c.bf16 %v439, %v436
  %v486 = vpack.c.bf16 %v447, %v444
  %v487 = vpack.c.bf16 %v455, %v452
  %v488 = vpack.c.bf16 %v463, %v460
  %v489 = vpack.c.bf16 %v471, %v468
  %492 = vrot.lane.b32.xlu0 %v474, 96
  %v493 = vpop.permute.xlu0 %492
  %494 = vrot.lane.b32.xlu0 %v475, 96
  %v495 = vpop.permute.xlu0 %494
  %vm496 = vcmask 130048
  %v498 = vsel %vm496, %v474, 0
  %v501 = vsel %vm496, %v475, 0
  %v504 = vsel %vm496, %v493, 0
  %v507 = vsel %vm496, %v495, 0
  %509 = vmatprep.subr.bf16.mxu0 0
  %510 = vmatpush1.bf16.xpose.msra.mxu0 %v504
  %511 = vmatprep.subr.bf16.mxu0 0
  %512 = vmatpush1.bf16.xpose.msra.mxu0 %v507
  %513 = vmatprep.subr.bf16.mxu0 0
  %514 = vmatpush1.bf16.xpose.msra.mxu0 0
  %515 = vmatprep.subr.bf16.mxu0 0
  %516 = vmatpush1.bf16.xpose.msra.mxu0 0
  %517 = vmatprep.subr.bf16.mxu0 0
  %518 = vmatpush1.bf16.xpose.msra.mxu0 0
  %519 = vmatprep.subr.bf16.mxu0 0
  %520 = vmatpush1.bf16.xpose.msra.mxu0 0
  %521 = vmatprep.subr.bf16.mxu0 0
  %522 = vmatpush1.bf16.xpose.msra.mxu0 0
  %523 = vmatprep.subr.bf16.mxu0 0
  %524 = vmatpush1.bf16.xpose.msra.mxu0 0
  %525 = vmatprep.subr.bf16.mxu0 0
  %526 = vmatpush1.bf16.xpose.msra.mxu0 0
  %527 = vmatprep.subr.bf16.mxu0 0
  %528 = vmatpush1.bf16.xpose.msra.mxu0 0
  %529 = vmatprep.subr.bf16.mxu0 0
  %530 = vmatpush1.bf16.xpose.msra.mxu0 0
  %531 = vmatprep.subr.bf16.mxu0 0
  %532 = vmatpush1.bf16.xpose.msra.mxu0 0
  %533 = vmatprep.subr.bf16.mxu0 0
  %534 = vmatpush1.bf16.xpose.msra.mxu0 0
  %535 = vmatprep.subr.bf16.mxu0 0
  %536 = vmatpush1.bf16.xpose.msra.mxu0 0
  %537 = vmatprep.subr.bf16.mxu0 0
  %538 = vmatpush1.bf16.xpose.msra.mxu0 0
  %539 = vmatprep.subr.bf16.mxu0 0
  %540 = vmatpush1.bf16.xpose.msra.mxu0 0
  %541 = vmatprep.mubr.bf16.mxu0 0
  %542 = vmatmul.mubr.bf16.gmra.mrb[0].mxu0 %v498
  %v543 = vpop.f32.mrb[0].mxu0
  %v544 = vadd.f32 0.0, %v543
  %v545 = vpop.f32.mrb[0].mxu0
  %v546 = vpop.f32.mrb[0].mxu0
  %v547 = vadd.f32 0.0, %v546
  %v548 = vpop.f32.mrb[0].mxu0
  %549 = vmatprep.mubr.bf16.mxu0 0
  %550 = vmatmul.mubr.bf16.gmra.mrb[0].mxu0 %v501
  %v551 = vpop.f32.mrb[0].mxu0
  %v552 = vadd.f32 0.0, %v551
  %v553 = vpop.f32.mrb[0].mxu0
  %v554 = vpop.f32.mrb[0].mxu0
  %v555 = vadd.f32 0.0, %v554
  %v556 = vpop.f32.mrb[0].mxu0
  %557 = vdwg.mxu0
  %560 = vrot.lane.b32.xlu0 %v476, 96
  %v561 = vpop.permute.xlu0 %560
  %562 = vrot.lane.b32.xlu0 %v477, 96
  %v563 = vpop.permute.xlu0 %562
  %v565 = vsel %vm496, %v476, 0
  %v568 = vsel %vm496, %v477, 0
  %v571 = vsel %vm496, %v561, 0
  %v574 = vsel %vm496, %v563, 0
  %576 = vmatprep.subr.bf16.mxu0 0
  %577 = vmatpush1.bf16.xpose.msra.mxu0 %v571
  %578 = vmatprep.subr.bf16.mxu0 0
  %579 = vmatpush1.bf16.xpose.msra.mxu0 %v574
  %580 = vmatprep.subr.bf16.mxu0 0
  %581 = vmatpush1.bf16.xpose.msra.mxu0 0
  %582 = vmatprep.subr.bf16.mxu0 0
  %583 = vmatpush1.bf16.xpose.msra.mxu0 0
  %584 = vmatprep.subr.bf16.mxu0 0
  %585 = vmatpush1.bf16.xpose.msra.mxu0 0
  %586 = vmatprep.subr.bf16.mxu0 0
  %587 = vmatpush1.bf16.xpose.msra.mxu0 0
  %588 = vmatprep.subr.bf16.mxu0 0
  %589 = vmatpush1.bf16.xpose.msra.mxu0 0
  %590 = vmatprep.subr.bf16.mxu0 0
  %591 = vmatpush1.bf16.xpose.msra.mxu0 0
  %592 = vmatprep.subr.bf16.mxu0 0
  %593 = vmatpush1.bf16.xpose.msra.mxu0 0
  %594 = vmatprep.subr.bf16.mxu0 0
  %595 = vmatpush1.bf16.xpose.msra.mxu0 0
  %596 = vmatprep.subr.bf16.mxu0 0
  %597 = vmatpush1.bf16.xpose.msra.mxu0 0
  %598 = vmatprep.subr.bf16.mxu0 0
  %599 = vmatpush1.bf16.xpose.msra.mxu0 0
  %600 = vmatprep.subr.bf16.mxu0 0
  %601 = vmatpush1.bf16.xpose.msra.mxu0 0
  %602 = vmatprep.subr.bf16.mxu0 0
  %603 = vmatpush1.bf16.xpose.msra.mxu0 0
  %604 = vmatprep.subr.bf16.mxu0 0
  %605 = vmatpush1.bf16.xpose.msra.mxu0 0
  %606 = vmatprep.subr.bf16.mxu0 0
  %607 = vmatpush1.bf16.xpose.msra.mxu0 0
  %608 = vmatprep.mubr.bf16.mxu0 0
  %609 = vmatmul.mubr.bf16.gmra.mrb[0].mxu0 %v565
  %v610 = vpop.f32.mrb[0].mxu0
  %v611 = vadd.f32 0.0, %v610
  %v612 = vpop.f32.mrb[0].mxu0
  %v613 = vpop.f32.mrb[0].mxu0
  %v614 = vadd.f32 0.0, %v613
  %v615 = vpop.f32.mrb[0].mxu0
  %616 = vmatprep.mubr.bf16.mxu0 0
  %617 = vmatmul.mubr.bf16.gmra.mrb[0].mxu0 %v568
  %v618 = vpop.f32.mrb[0].mxu0
  %v619 = vadd.f32 0.0, %v618
  %v620 = vpop.f32.mrb[0].mxu0
  %v621 = vpop.f32.mrb[0].mxu0
  %v622 = vadd.f32 0.0, %v621
  %v623 = vpop.f32.mrb[0].mxu0
  %624 = vdwg.mxu0
  %627 = vrot.lane.b32.xlu0 %v478, 96
  %v628 = vpop.permute.xlu0 %627
  %629 = vrot.lane.b32.xlu0 %v479, 96
  %v630 = vpop.permute.xlu0 %629
  %v632 = vsel %vm496, %v478, 0
  %v635 = vsel %vm496, %v479, 0
  %v638 = vsel %vm496, %v628, 0
  %v641 = vsel %vm496, %v630, 0
  %643 = vmatprep.subr.bf16.mxu0 0
  %644 = vmatpush1.bf16.xpose.msra.mxu0 %v638
  %645 = vmatprep.subr.bf16.mxu0 0
  %646 = vmatpush1.bf16.xpose.msra.mxu0 %v641
  %647 = vmatprep.subr.bf16.mxu0 0
  %648 = vmatpush1.bf16.xpose.msra.mxu0 0
  %649 = vmatprep.subr.bf16.mxu0 0
  %650 = vmatpush1.bf16.xpose.msra.mxu0 0
  %651 = vmatprep.subr.bf16.mxu0 0
  %652 = vmatpush1.bf16.xpose.msra.mxu0 0
  %653 = vmatprep.subr.bf16.mxu0 0
  %654 = vmatpush1.bf16.xpose.msra.mxu0 0
  %655 = vmatprep.subr.bf16.mxu0 0
  %656 = vmatpush1.bf16.xpose.msra.mxu0 0
  %657 = vmatprep.subr.bf16.mxu0 0
  %658 = vmatpush1.bf16.xpose.msra.mxu0 0
  %659 = vmatprep.subr.bf16.mxu0 0
  %660 = vmatpush1.bf16.xpose.msra.mxu0 0
  %661 = vmatprep.subr.bf16.mxu0 0
  %662 = vmatpush1.bf16.xpose.msra.mxu0 0
  %663 = vmatprep.subr.bf16.mxu0 0
  %664 = vmatpush1.bf16.xpose.msra.mxu0 0
  %665 = vmatprep.subr.bf16.mxu0 0
  %666 = vmatpush1.bf16.xpose.msra.mxu0 0
  %667 = vmatprep.subr.bf16.mxu0 0
  %668 = vmatpush1.bf16.xpose.msra.mxu0 0
  %669 = vmatprep.subr.bf16.mxu0 0
  %670 = vmatpush1.bf16.xpose.msra.mxu0 0
  %671 = vmatprep.subr.bf16.mxu0 0
  %672 = vmatpush1.bf16.xpose.msra.mxu0 0
  %673 = vmatprep.subr.bf16.mxu0 0
  %674 = vmatpush1.bf16.xpose.msra.mxu0 0
  %675 = vmatprep.mubr.bf16.mxu0 0
  %676 = vmatmul.mubr.bf16.gmra.mrb[0].mxu0 %v632
  %v677 = vpop.f32.mrb[0].mxu0
  %v678 = vadd.f32 0.0, %v677
  %v679 = vpop.f32.mrb[0].mxu0
  %v680 = vpop.f32.mrb[0].mxu0
  %v681 = vadd.f32 0.0, %v680
  %v682 = vpop.f32.mrb[0].mxu0
  %683 = vmatprep.mubr.bf16.mxu0 0
  %684 = vmatmul.mubr.bf16.gmra.mrb[0].mxu0 %v635
  %v685 = vpop.f32.mrb[0].mxu0
  %v686 = vadd.f32 0.0, %v685
  %v687 = vpop.f32.mrb[0].mxu0
  %v688 = vpop.f32.mrb[0].mxu0
  %v689 = vadd.f32 0.0, %v688
  %v690 = vpop.f32.mrb[0].mxu0
  %691 = vdwg.mxu0
  %694 = vrot.lane.b32.xlu0 %v480, 96
  %v695 = vpop.permute.xlu0 %694
  %696 = vrot.lane.b32.xlu0 %v481, 96
  %v697 = vpop.permute.xlu0 %696
  %v699 = vsel %vm496, %v480, 0
  %v702 = vsel %vm496, %v481, 0
  %v705 = vsel %vm496, %v695, 0
  %v708 = vsel %vm496, %v697, 0
  %710 = vmatprep.subr.bf16.mxu0 0
  %711 = vmatpush1.bf16.xpose.msra.mxu0 %v705
  %712 = vmatprep.subr.bf16.mxu0 0
  %713 = vmatpush1.bf16.xpose.msra.mxu0 %v708
  %714 = vmatprep.subr.bf16.mxu0 0
  %715 = vmatpush1.bf16.xpose.msra.mxu0 0
  %716 = vmatprep.subr.bf16.mxu0 0
  %717 = vmatpush1.bf16.xpose.msra.mxu0 0
  %718 = vmatprep.subr.bf16.mxu0 0
  %719 = vmatpush1.bf16.xpose.msra.mxu0 0
  %720 = vmatprep.subr.bf16.mxu0 0
  %721 = vmatpush1.bf16.xpose.msra.mxu0 0
  %722 = vmatprep.subr.bf16.mxu0 0
  %723 = vmatpush1.bf16.xpose.msra.mxu0 0
  %724 = vmatprep.subr.bf16.mxu0 0
  %725 = vmatpush1.bf16.xpose.msra.mxu0 0
  %726 = vmatprep.subr.bf16.mxu0 0
  %727 = vmatpush1.bf16.xpose.msra.mxu0 0
  %728 = vmatprep.subr.bf16.mxu0 0
  %729 = vmatpush1.bf16.xpose.msra.mxu0 0
  %730 = vmatprep.subr.bf16.mxu0 0
  %731 = vmatpush1.bf16.xpose.msra.mxu0 0
  %732 = vmatprep.subr.bf16.mxu0 0
  %733 = vmatpush1.bf16.xpose.msra.mxu0 0
  %734 = vmatprep.subr.bf16.mxu0 0
  %735 = vmatpush1.bf16.xpose.msra.mxu0 0
  %736 = vmatprep.subr.bf16.mxu0 0
  %737 = vmatpush1.bf16.xpose.msra.mxu0 0
  %738 = vmatprep.subr.bf16.mxu0 0
  %739 = vmatpush1.bf16.xpose.msra.mxu0 0
  %740 = vmatprep.subr.bf16.mxu0 0
  %741 = vmatpush1.bf16.xpose.msra.mxu0 0
  %742 = vmatprep.mubr.bf16.mxu0 0
  %743 = vmatmul.mubr.bf16.gmra.mrb[0].mxu0 %v699
  %v744 = vpop.f32.mrb[0].mxu0
  %v745 = vadd.f32 0.0, %v744
  %v746 = vpop.f32.mrb[0].mxu0
  %v747 = vpop.f32.mrb[0].mxu0
  %v748 = vadd.f32 0.0, %v747
  %v749 = vpop.f32.mrb[0].mxu0
  %750 = vmatprep.mubr.bf16.mxu0 0
  %751 = vmatmul.mubr.bf16.gmra.mrb[0].mxu0 %v702
  %v752 = vpop.f32.mrb[0].mxu0
  %v753 = vadd.f32 0.0, %v752
  %v754 = vpop.f32.mrb[0].mxu0
  %v755 = vpop.f32.mrb[0].mxu0
  %v756 = vadd.f32 0.0, %v755
  %v757 = vpop.f32.mrb[0].mxu0
  %758 = vdwg.mxu0
  %761 = vrot.lane.b32.xlu0 %v482, 96
  %v762 = vpop.permute.xlu0 %761
  %763 = vrot.lane.b32.xlu0 %v483, 96
  %v764 = vpop.permute.xlu0 %763
  %v766 = vsel %vm496, %v482, 0
  %v769 = vsel %vm496, %v483, 0
  %v772 = vsel %vm496, %v762, 0
  %v775 = vsel %vm496, %v764, 0
  %777 = vmatprep.subr.bf16.mxu0 0
  %778 = vmatpush1.bf16.xpose.msra.mxu0 %v772
  %779 = vmatprep.subr.bf16.mxu0 0
  %780 = vmatpush1.bf16.xpose.msra.mxu0 %v775
  %781 = vmatprep.subr.bf16.mxu0 0
  %782 = vmatpush1.bf16.xpose.msra.mxu0 0
  %783 = vmatprep.subr.bf16.mxu0 0
  %784 = vmatpush1.bf16.xpose.msra.mxu0 0
  %785 = vmatprep.subr.bf16.mxu0 0
  %786 = vmatpush1.bf16.xpose.msra.mxu0 0
  %787 = vmatprep.subr.bf16.mxu0 0
  %788 = vmatpush1.bf16.xpose.msra.mxu0 0
  %789 = vmatprep.subr.bf16.mxu0 0
  %790 = vmatpush1.bf16.xpose.msra.mxu0 0
  %791 = vmatprep.subr.bf16.mxu0 0
  %792 = vmatpush1.bf16.xpose.msra.mxu0 0
  %793 = vmatprep.subr.bf16.mxu0 0
  %794 = vmatpush1.bf16.xpose.msra.mxu0 0
  %795 = vmatprep.subr.bf16.mxu0 0
  %796 = vmatpush1.bf16.xpose.msra.mxu0 0
  %797 = vmatprep.subr.bf16.mxu0 0
  %798 = vmatpush1.bf16.xpose.msra.mxu0 0
  %799 = vmatprep.subr.bf16.mxu0 0
  %800 = vmatpush1.bf16.xpose.msra.mxu0 0
  %801 = vmatprep.subr.bf16.mxu0 0
  %802 = vmatpush1.bf16.xpose.msra.mxu0 0
  %803 = vmatprep.subr.bf16.mxu0 0
  %804 = vmatpush1.bf16.xpose.msra.mxu0 0
  %805 = vmatprep.subr.bf16.mxu0 0
  %806 = vmatpush1.bf16.xpose.msra.mxu0 0
  %807 = vmatprep.subr.bf16.mxu0 0
  %808 = vmatpush1.bf16.xpose.msra.mxu0 0
  %809 = vmatprep.mubr.bf16.mxu0 0
  %810 = vmatmul.mubr.bf16.gmra.mrb[0].mxu0 %v766
  %v811 = vpop.f32.mrb[0].mxu0
  %v812 = vadd.f32 0.0, %v811
  %v813 = vpop.f32.mrb[0].mxu0
  %v814 = vpop.f32.mrb[0].mxu0
  %v815 = vadd.f32 0.0, %v814
  %v816 = vpop.f32.mrb[0].mxu0
  %817 = vmatprep.mubr.bf16.mxu0 0
  %818 = vmatmul.mubr.bf16.gmra.mrb[0].mxu0 %v769
  %v819 = vpop.f32.mrb[0].mxu0
  %v820 = vadd.f32 0.0, %v819
  %v821 = vpop.f32.mrb[0].mxu0
  %v822 = vpop.f32.mrb[0].mxu0
  %v823 = vadd.f32 0.0, %v822
  %v824 = vpop.f32.mrb[0].mxu0
  %825 = vdwg.mxu0
  %828 = vrot.lane.b32.xlu0 %v484, 96
  %v829 = vpop.permute.xlu0 %828
  %830 = vrot.lane.b32.xlu0 %v485, 96
  %v831 = vpop.permute.xlu0 %830
  %v833 = vsel %vm496, %v484, 0
  %v836 = vsel %vm496, %v485, 0
  %v839 = vsel %vm496, %v829, 0
  %v842 = vsel %vm496, %v831, 0
  %844 = vmatprep.subr.bf16.mxu0 0
  %845 = vmatpush1.bf16.xpose.msra.mxu0 %v839
  %846 = vmatprep.subr.bf16.mxu0 0
  %847 = vmatpush1.bf16.xpose.msra.mxu0 %v842
  %848 = vmatprep.subr.bf16.mxu0 0
  %849 = vmatpush1.bf16.xpose.msra.mxu0 0
  %850 = vmatprep.subr.bf16.mxu0 0
  %851 = vmatpush1.bf16.xpose.msra.mxu0 0
  %852 = vmatprep.subr.bf16.mxu0 0
  %853 = vmatpush1.bf16.xpose.msra.mxu0 0
  %854 = vmatprep.subr.bf16.mxu0 0
  %855 = vmatpush1.bf16.xpose.msra.mxu0 0
  %856 = vmatprep.subr.bf16.mxu0 0
  %857 = vmatpush1.bf16.xpose.msra.mxu0 0
  %858 = vmatprep.subr.bf16.mxu0 0
  %859 = vmatpush1.bf16.xpose.msra.mxu0 0
  %860 = vmatprep.subr.bf16.mxu0 0
  %861 = vmatpush1.bf16.xpose.msra.mxu0 0
  %862 = vmatprep.subr.bf16.mxu0 0
  %863 = vmatpush1.bf16.xpose.msra.mxu0 0
  %864 = vmatprep.subr.bf16.mxu0 0
  %865 = vmatpush1.bf16.xpose.msra.mxu0 0
  %866 = vmatprep.subr.bf16.mxu0 0
  %867 = vmatpush1.bf16.xpose.msra.mxu0 0
  %868 = vmatprep.subr.bf16.mxu0 0
  %869 = vmatpush1.bf16.xpose.msra.mxu0 0
  %870 = vmatprep.subr.bf16.mxu0 0
  %871 = vmatpush1.bf16.xpose.msra.mxu0 0
  %872 = vmatprep.subr.bf16.mxu0 0
  %873 = vmatpush1.bf16.xpose.msra.mxu0 0
  %874 = vmatprep.subr.bf16.mxu0 0
  %875 = vmatpush1.bf16.xpose.msra.mxu0 0
  %876 = vmatprep.mubr.bf16.mxu0 0
  %877 = vmatmul.mubr.bf16.gmra.mrb[0].mxu0 %v833
  %v878 = vpop.f32.mrb[0].mxu0
  %v879 = vadd.f32 0.0, %v878
  %v880 = vpop.f32.mrb[0].mxu0
  %v881 = vpop.f32.mrb[0].mxu0
  %v882 = vadd.f32 0.0, %v881
  %v883 = vpop.f32.mrb[0].mxu0
  %884 = vmatprep.mubr.bf16.mxu0 0
  %885 = vmatmul.mubr.bf16.gmra.mrb[0].mxu0 %v836
  %v886 = vpop.f32.mrb[0].mxu0
  %v887 = vadd.f32 0.0, %v886
  %v888 = vpop.f32.mrb[0].mxu0
  %v889 = vpop.f32.mrb[0].mxu0
  %v890 = vadd.f32 0.0, %v889
  %v891 = vpop.f32.mrb[0].mxu0
  %892 = vdwg.mxu0
  %895 = vrot.lane.b32.xlu0 %v486, 96
  %v896 = vpop.permute.xlu0 %895
  %897 = vrot.lane.b32.xlu0 %v487, 96
  %v898 = vpop.permute.xlu0 %897
  %v900 = vsel %vm496, %v486, 0
  %v903 = vsel %vm496, %v487, 0
  %v906 = vsel %vm496, %v896, 0
  %v909 = vsel %vm496, %v898, 0
  %911 = vmatprep.subr.bf16.mxu0 0
  %912 = vmatpush1.bf16.xpose.msra.mxu0 %v906
  %913 = vmatprep.subr.bf16.mxu0 0
  %914 = vmatpush1.bf16.xpose.msra.mxu0 %v909
  %915 = vmatprep.subr.bf16.mxu0 0
  %916 = vmatpush1.bf16.xpose.msra.mxu0 0
  %917 = vmatprep.subr.bf16.mxu0 0
  %918 = vmatpush1.bf16.xpose.msra.mxu0 0
  %919 = vmatprep.subr.bf16.mxu0 0
  %920 = vmatpush1.bf16.xpose.msra.mxu0 0
  %921 = vmatprep.subr.bf16.mxu0 0
  %922 = vmatpush1.bf16.xpose.msra.mxu0 0
  %923 = vmatprep.subr.bf16.mxu0 0
  %924 = vmatpush1.bf16.xpose.msra.mxu0 0
  %925 = vmatprep.subr.bf16.mxu0 0
  %926 = vmatpush1.bf16.xpose.msra.mxu0 0
  %927 = vmatprep.subr.bf16.mxu0 0
  %928 = vmatpush1.bf16.xpose.msra.mxu0 0
  %929 = vmatprep.subr.bf16.mxu0 0
  %930 = vmatpush1.bf16.xpose.msra.mxu0 0
  %931 = vmatprep.subr.bf16.mxu0 0
  %932 = vmatpush1.bf16.xpose.msra.mxu0 0
  %933 = vmatprep.subr.bf16.mxu0 0
  %934 = vmatpush1.bf16.xpose.msra.mxu0 0
  %935 = vmatprep.subr.bf16.mxu0 0
  %936 = vmatpush1.bf16.xpose.msra.mxu0 0
  %937 = vmatprep.subr.bf16.mxu0 0
  %938 = vmatpush1.bf16.xpose.msra.mxu0 0
  %939 = vmatprep.subr.bf16.mxu0 0
  %940 = vmatpush1.bf16.xpose.msra.mxu0 0
  %941 = vmatprep.subr.bf16.mxu0 0
  %942 = vmatpush1.bf16.xpose.msra.mxu0 0
  %943 = vmatprep.mubr.bf16.mxu0 0
  %944 = vmatmul.mubr.bf16.gmra.mrb[0].mxu0 %v900
  %v945 = vpop.f32.mrb[0].mxu0
  %v946 = vadd.f32 0.0, %v945
  %v947 = vpop.f32.mrb[0].mxu0
  %v948 = vpop.f32.mrb[0].mxu0
  %v949 = vadd.f32 0.0, %v948
  %v950 = vpop.f32.mrb[0].mxu0
  %951 = vmatprep.mubr.bf16.mxu0 0
  %952 = vmatmul.mubr.bf16.gmra.mrb[0].mxu0 %v903
  %v953 = vpop.f32.mrb[0].mxu0
  %v954 = vadd.f32 0.0, %v953
  %v955 = vpop.f32.mrb[0].mxu0
  %v956 = vpop.f32.mrb[0].mxu0
  %v957 = vadd.f32 0.0, %v956
  %v958 = vpop.f32.mrb[0].mxu0
  %959 = vdwg.mxu0
  %962 = vrot.lane.b32.xlu0 %v488, 96
  %v963 = vpop.permute.xlu0 %962
  %964 = vrot.lane.b32.xlu0 %v489, 96
  %v965 = vpop.permute.xlu0 %964
  %v967 = vsel %vm496, %v488, 0
  %v970 = vsel %vm496, %v489, 0
  %v973 = vsel %vm496, %v963, 0
  %v976 = vsel %vm496, %v965, 0
  %978 = vmatprep.subr.bf16.mxu0 0
  %979 = vmatpush1.bf16.xpose.msra.mxu0 %v973
  %980 = vmatprep.subr.bf16.mxu0 0
  %981 = vmatpush1.bf16.xpose.msra.mxu0 %v976
  %982 = vmatprep.subr.bf16.mxu0 0
  %983 = vmatpush1.bf16.xpose.msra.mxu0 0
  %984 = vmatprep.subr.bf16.mxu0 0
  %985 = vmatpush1.bf16.xpose.msra.mxu0 0
  %986 = vmatprep.subr.bf16.mxu0 0
  %987 = vmatpush1.bf16.xpose.msra.mxu0 0
  %988 = vmatprep.subr.bf16.mxu0 0
  %989 = vmatpush1.bf16.xpose.msra.mxu0 0
  %990 = vmatprep.subr.bf16.mxu0 0
  %991 = vmatpush1.bf16.xpose.msra.mxu0 0
  %992 = vmatprep.subr.bf16.mxu0 0
  %993 = vmatpush1.bf16.xpose.msra.mxu0 0
  %994 = vmatprep.subr.bf16.mxu0 0
  %995 = vmatpush1.bf16.xpose.msra.mxu0 0
  %996 = vmatprep.subr.bf16.mxu0 0
  %997 = vmatpush1.bf16.xpose.msra.mxu0 0
  %998 = vmatprep.subr.bf16.mxu0 0
  %999 = vmatpush1.bf16.xpose.msra.mxu0 0
  %1000 = vmatprep.subr.bf16.mxu0 0
  %1001 = vmatpush1.bf16.xpose.msra.mxu0 0
  %1002 = vmatprep.subr.bf16.mxu0 0
  %1003 = vmatpush1.bf16.xpose.msra.mxu0 0
  %1004 = vmatprep.subr.bf16.mxu0 0
  %1005 = vmatpush1.bf16.xpose.msra.mxu0 0
  %1006 = vmatprep.subr.bf16.mxu0 0
  %1007 = vmatpush1.bf16.xpose.msra.mxu0 0
  %1008 = vmatprep.subr.bf16.mxu0 0
  %1009 = vmatpush1.bf16.xpose.msra.mxu0 0
  %1010 = vmatprep.mubr.bf16.mxu0 0
  %1011 = vmatmul.mubr.bf16.gmra.mrb[0].mxu0 %v967
  %v1012 = vpop.f32.mrb[0].mxu0
  %v1013 = vadd.f32 0.0, %v1012
  %v1014 = vpop.f32.mrb[0].mxu0
  %v1015 = vpop.f32.mrb[0].mxu0
  %v1016 = vadd.f32 0.0, %v1015
  %v1017 = vpop.f32.mrb[0].mxu0
  %1018 = vmatprep.mubr.bf16.mxu0 0
  %1019 = vmatmul.mubr.bf16.gmra.mrb[0].mxu0 %v970
  %v1020 = vpop.f32.mrb[0].mxu0
  %v1021 = vadd.f32 0.0, %v1020
  %v1022 = vpop.f32.mrb[0].mxu0
  %v1023 = vpop.f32.mrb[0].mxu0
  %v1024 = vadd.f32 0.0, %v1023
  %v1025 = vpop.f32.mrb[0].mxu0
  %1026 = vdwg.mxu0
  %v1027 = vmul.f32 %v544, 0.25
  %v1028 = vmul.f32 %v547, 0.25
  %v1029 = vmul.f32 %v552, 0.25
  %v1030 = vmul.f32 %v555, 0.25
  %v1031 = vmul.f32 %v611, 0.25
  %v1032 = vmul.f32 %v614, 0.25
  %v1033 = vmul.f32 %v619, 0.25
  %v1034 = vmul.f32 %v622, 0.25
  %v1035 = vmul.f32 %v678, 0.25
  %v1036 = vmul.f32 %v681, 0.25
  %v1037 = vmul.f32 %v686, 0.25
  %v1038 = vmul.f32 %v689, 0.25
  %v1039 = vmul.f32 %v745, 0.25
  %v1040 = vmul.f32 %v748, 0.25
  %v1041 = vmul.f32 %v753, 0.25
  %v1042 = vmul.f32 %v756, 0.25
  %v1043 = vmul.f32 %v812, 0.25
  %v1044 = vmul.f32 %v815, 0.25
  %v1045 = vmul.f32 %v820, 0.25
  %v1046 = vmul.f32 %v823, 0.25
  %v1047 = vmul.f32 %v879, 0.25
  %v1048 = vmul.f32 %v882, 0.25
  %v1049 = vmul.f32 %v887, 0.25
  %v1050 = vmul.f32 %v890, 0.25
  %v1051 = vmul.f32 %v946, 0.25
  %v1052 = vmul.f32 %v949, 0.25
  %v1053 = vmul.f32 %v954, 0.25
  %v1054 = vmul.f32 %v957, 0.25
  %v1055 = vmul.f32 %v1013, 0.25
  %v1056 = vmul.f32 %v1016, 0.25
  %v1057 = vmul.f32 %v1021, 0.25
  %v1058 = vmul.f32 %v1024, 0.25
  %v1059 = vsel %vm264, %v1027, -inf
  %1060 = vmax.xlane.f32.xlu0 %v1059
  %v1061 = vpop.xlane.xlu0 %1060
  %v1062 = vsel %vm264, %v1028, -inf
  %1063 = vmax.xlane.f32.xlu0 %v1062
  %v1064 = vpop.xlane.xlu0 %1063
  %v1065 = vsel %vm264, %v1029, -inf
  %1066 = vmax.xlane.f32.xlu0 %v1065
  %v1067 = vpop.xlane.xlu0 %1066
  %v1068 = vsel %vm264, %v1030, -inf
  %1069 = vmax.xlane.f32.xlu0 %v1068
  %v1070 = vpop.xlane.xlu0 %1069
  %v1071 = vsel %vm264, %v1031, -inf
  %1072 = vmax.xlane.f32.xlu0 %v1071
  %v1073 = vpop.xlane.xlu0 %1072
  %v1074 = vsel %vm264, %v1032, -inf
  %1075 = vmax.xlane.f32.xlu0 %v1074
  %v1076 = vpop.xlane.xlu0 %1075
  %v1077 = vsel %vm264, %v1033, -inf
  %1078 = vmax.xlane.f32.xlu0 %v1077
  %v1079 = vpop.xlane.xlu0 %1078
  %v1080 = vsel %vm264, %v1034, -inf
  %1081 = vmax.xlane.f32.xlu0 %v1080
  %v1082 = vpop.xlane.xlu0 %1081
  %v1083 = vsel %vm264, %v1035, -inf
  %1084 = vmax.xlane.f32.xlu0 %v1083
  %v1085 = vpop.xlane.xlu0 %1084
  %v1086 = vsel %vm264, %v1036, -inf
  %1087 = vmax.xlane.f32.xlu0 %v1086
  %v1088 = vpop.xlane.xlu0 %1087
  %v1089 = vsel %vm264, %v1037, -inf
  %1090 = vmax.xlane.f32.xlu0 %v1089
  %v1091 = vpop.xlane.xlu0 %1090
  %v1092 = vsel %vm264, %v1038, -inf
  %1093 = vmax.xlane.f32.xlu0 %v1092
  %v1094 = vpop.xlane.xlu0 %1093
  %v1095 = vsel %vm264, %v1039, -inf
  %1096 = vmax.xlane.f32.xlu0 %v1095
  %v1097 = vpop.xlane.xlu0 %1096
  %v1098 = vsel %vm264, %v1040, -inf
  %1099 = vmax.xlane.f32.xlu0 %v1098
  %v1100 = vpop.xlane.xlu0 %1099
  %v1101 = vsel %vm264, %v1041, -inf
  %1102 = vmax.xlane.f32.xlu0 %v1101
  %v1103 = vpop.xlane.xlu0 %1102
  %v1104 = vsel %vm264, %v1042, -inf
  %1105 = vmax.xlane.f32.xlu0 %v1104
  %v1106 = vpop.xlane.xlu0 %1105
  %v1107 = vsel %vm264, %v1043, -inf
  %1108 = vmax.xlane.f32.xlu0 %v1107
  %v1109 = vpop.xlane.xlu0 %1108
  %v1110 = vsel %vm264, %v1044, -inf
  %1111 = vmax.xlane.f32.xlu0 %v1110
  %v1112 = vpop.xlane.xlu0 %1111
  %v1113 = vsel %vm264, %v1045, -inf
  %1114 = vmax.xlane.f32.xlu0 %v1113
  %v1115 = vpop.xlane.xlu0 %1114
  %v1116 = vsel %vm264, %v1046, -inf
  %1117 = vmax.xlane.f32.xlu0 %v1116
  %v1118 = vpop.xlane.xlu0 %1117
  %v1119 = vsel %vm264, %v1047, -inf
  %1120 = vmax.xlane.f32.xlu0 %v1119
  %v1121 = vpop.xlane.xlu0 %1120
  %v1122 = vsel %vm264, %v1048, -inf
  %1123 = vmax.xlane.f32.xlu0 %v1122
  %v1124 = vpop.xlane.xlu0 %1123
  %v1125 = vsel %vm264, %v1049, -inf
  %1126 = vmax.xlane.f32.xlu0 %v1125
  %v1127 = vpop.xlane.xlu0 %1126
  %v1128 = vsel %vm264, %v1050, -inf
  %1129 = vmax.xlane.f32.xlu0 %v1128
  %v1130 = vpop.xlane.xlu0 %1129
  %v1131 = vsel %vm264, %v1051, -inf
  %1132 = vmax.xlane.f32.xlu0 %v1131
  %v1133 = vpop.xlane.xlu0 %1132
  %v1134 = vsel %vm264, %v1052, -inf
  %1135 = vmax.xlane.f32.xlu0 %v1134
  %v1136 = vpop.xlane.xlu0 %1135
  %v1137 = vsel %vm264, %v1053, -inf
  %1138 = vmax.xlane.f32.xlu0 %v1137
  %v1139 = vpop.xlane.xlu0 %1138
  %v1140 = vsel %vm264, %v1054, -inf
  %1141 = vmax.xlane.f32.xlu0 %v1140
  %v1142 = vpop.xlane.xlu0 %1141
  %v1143 = vsel %vm264, %v1055, -inf
  %1144 = vmax.xlane.f32.xlu0 %v1143
  %v1145 = vpop.xlane.xlu0 %1144
  %v1146 = vsel %vm264, %v1056, -inf
  %1147 = vmax.xlane.f32.xlu0 %v1146
  %v1148 = vpop.xlane.xlu0 %1147
  %v1149 = vsel %vm264, %v1057, -inf
  %1150 = vmax.xlane.f32.xlu0 %v1149
  %v1151 = vpop.xlane.xlu0 %1150
  %v1152 = vsel %vm264, %v1058, -inf
  %1153 = vmax.xlane.f32.xlu0 %v1152
  %v1154 = vpop.xlane.xlu0 %1153
  %v1155 = vsub.f32 %v1027, %v1061
  %v1156 = vsub.f32 %v1028, %v1064
  %v1157 = vsub.f32 %v1029, %v1067
  %v1158 = vsub.f32 %v1030, %v1070
  %v1159 = vsub.f32 %v1031, %v1073
  %v1160 = vsub.f32 %v1032, %v1076
  %v1161 = vsub.f32 %v1033, %v1079
  %v1162 = vsub.f32 %v1034, %v1082
  %v1163 = vsub.f32 %v1035, %v1085
  %v1164 = vsub.f32 %v1036, %v1088
  %v1165 = vsub.f32 %v1037, %v1091
  %v1166 = vsub.f32 %v1038, %v1094
  %v1167 = vsub.f32 %v1039, %v1097
  %v1168 = vsub.f32 %v1040, %v1100
  %v1169 = vsub.f32 %v1041, %v1103
  %v1170 = vsub.f32 %v1042, %v1106
  %v1171 = vsub.f32 %v1043, %v1109
  %v1172 = vsub.f32 %v1044, %v1112
  %v1173 = vsub.f32 %v1045, %v1115
  %v1174 = vsub.f32 %v1046, %v1118
  %v1175 = vsub.f32 %v1047, %v1121
  %v1176 = vsub.f32 %v1048, %v1124
  %v1177 = vsub.f32 %v1049, %v1127
  %v1178 = vsub.f32 %v1050, %v1130
  %v1179 = vsub.f32 %v1051, %v1133
  %v1180 = vsub.f32 %v1052, %v1136
  %v1181 = vsub.f32 %v1053, %v1139
  %v1182 = vsub.f32 %v1054, %v1142
  %v1183 = vsub.f32 %v1055, %v1145
  %v1184 = vsub.f32 %v1056, %v1148
  %v1185 = vsub.f32 %v1057, %v1151
  %v1186 = vsub.f32 %v1058, %v1154
  %v1187 = vmul.f32 %v1155, 1.442695
  %v1188 = vpow.pop %v1187
  %v1189 = vmul.f32 %v1156, 1.442695
  %v1190 = vpow.pop %v1189
  %v1191 = vmul.f32 %v1157, 1.442695
  %v1192 = vpow.pop %v1191
  %v1193 = vmul.f32 %v1158, 1.442695
  %v1194 = vpow.pop %v1193
  %v1195 = vmul.f32 %v1159, 1.442695
  %v1196 = vpow.pop %v1195
  %v1197 = vmul.f32 %v1160, 1.442695
  %v1198 = vpow.pop %v1197
  %v1199 = vmul.f32 %v1161, 1.442695
  %v1200 = vpow.pop %v1199
  %v1201 = vmul.f32 %v1162, 1.442695
  %v1202 = vpow.pop %v1201
  %v1203 = vmul.f32 %v1163, 1.442695
  %v1204 = vpow.pop %v1203
  %v1205 = vmul.f32 %v1164, 1.442695
  %v1206 = vpow.pop %v1205
  %v1207 = vmul.f32 %v1165, 1.442695
  %v1208 = vpow.pop %v1207
  %v1209 = vmul.f32 %v1166, 1.442695
  %v1210 = vpow.pop %v1209
  %v1211 = vmul.f32 %v1167, 1.442695
  %v1212 = vpow.pop %v1211
  %v1213 = vmul.f32 %v1168, 1.442695
  %v1214 = vpow.pop %v1213
  %v1215 = vmul.f32 %v1169, 1.442695
  %v1216 = vpow.pop %v1215
  %v1217 = vmul.f32 %v1170, 1.442695
  %v1218 = vpow.pop %v1217
  %v1219 = vmul.f32 %v1171, 1.442695
  %v1220 = vpow.pop %v1219
  %v1221 = vmul.f32 %v1172, 1.442695
  %v1222 = vpow.pop %v1221
  %v1223 = vmul.f32 %v1173, 1.442695
  %v1224 = vpow.pop %v1223
  %v1225 = vmul.f32 %v1174, 1.442695
  %v1226 = vpow.pop %v1225
  %v1227 = vmul.f32 %v1175, 1.442695
  %v1228 = vpow.pop %v1227
  %v1229 = vmul.f32 %v1176, 1.442695
  %v1230 = vpow.pop %v1229
  %v1231 = vmul.f32 %v1177, 1.442695
  %v1232 = vpow.pop %v1231
  %v1233 = vmul.f32 %v1178, 1.442695
  %v1234 = vpow.pop %v1233
  %v1235 = vmul.f32 %v1179, 1.442695
  %v1236 = vpow.pop %v1235
  %v1237 = vmul.f32 %v1180, 1.442695
  %v1238 = vpow.pop %v1237
  %v1239 = vmul.f32 %v1181, 1.442695
  %v1240 = vpow.pop %v1239
  %v1241 = vmul.f32 %v1182, 1.442695
  %v1242 = vpow.pop %v1241
  %v1243 = vmul.f32 %v1183, 1.442695
  %v1244 = vpow.pop %v1243
  %v1245 = vmul.f32 %v1184, 1.442695
  %v1246 = vpow.pop %v1245
  %v1247 = vmul.f32 %v1185, 1.442695
  %v1248 = vpow.pop %v1247
  %v1249 = vmul.f32 %v1186, 1.442695
  %v1250 = vpow.pop %v1249
  %v1251 = vsel %vm264, %v1188, 0.0
  %1252 = vadd.xlane.f32.xlu0 %v1251
  %v1253 = vpop.xlane.xlu0 %1252
  %v1254 = vsel %vm264, %v1190, 0.0
  %1255 = vadd.xlane.f32.xlu0 %v1254
  %v1256 = vpop.xlane.xlu0 %1255
  %v1257 = vsel %vm264, %v1192, 0.0
  %1258 = vadd.xlane.f32.xlu0 %v1257
  %v1259 = vpop.xlane.xlu0 %1258
  %v1260 = vsel %vm264, %v1194, 0.0
  %1261 = vadd.xlane.f32.xlu0 %v1260
  %v1262 = vpop.xlane.xlu0 %1261
  %v1263 = vsel %vm264, %v1196, 0.0
  %1264 = vadd.xlane.f32.xlu0 %v1263
  %v1265 = vpop.xlane.xlu0 %1264
  %v1266 = vsel %vm264, %v1198, 0.0
  %1267 = vadd.xlane.f32.xlu0 %v1266
  %v1268 = vpop.xlane.xlu0 %1267
  %v1269 = vsel %vm264, %v1200, 0.0
  %1270 = vadd.xlane.f32.xlu0 %v1269
  %v1271 = vpop.xlane.xlu0 %1270
  %v1272 = vsel %vm264, %v1202, 0.0
  %1273 = vadd.xlane.f32.xlu0 %v1272
  %v1274 = vpop.xlane.xlu0 %1273
  %v1275 = vsel %vm264, %v1204, 0.0
  %1276 = vadd.xlane.f32.xlu0 %v1275
  %v1277 = vpop.xlane.xlu0 %1276
  %v1278 = vsel %vm264, %v1206, 0.0
  %1279 = vadd.xlane.f32.xlu0 %v1278
  %v1280 = vpop.xlane.xlu0 %1279
  %v1281 = vsel %vm264, %v1208, 0.0
  %1282 = vadd.xlane.f32.xlu0 %v1281
  %v1283 = vpop.xlane.xlu0 %1282
  %v1284 = vsel %vm264, %v1210, 0.0
  %1285 = vadd.xlane.f32.xlu0 %v1284
  %v1286 = vpop.xlane.xlu0 %1285
  %v1287 = vsel %vm264, %v1212, 0.0
  %1288 = vadd.xlane.f32.xlu0 %v1287
  %v1289 = vpop.xlane.xlu0 %1288
  %v1290 = vsel %vm264, %v1214, 0.0
  %1291 = vadd.xlane.f32.xlu0 %v1290
  %v1292 = vpop.xlane.xlu0 %1291
  %v1293 = vsel %vm264, %v1216, 0.0
  %1294 = vadd.xlane.f32.xlu0 %v1293
  %v1295 = vpop.xlane.xlu0 %1294
  %v1296 = vsel %vm264, %v1218, 0.0
  %1297 = vadd.xlane.f32.xlu0 %v1296
  %v1298 = vpop.xlane.xlu0 %1297
  %v1299 = vsel %vm264, %v1220, 0.0
  %1300 = vadd.xlane.f32.xlu0 %v1299
  %v1301 = vpop.xlane.xlu0 %1300
  %v1302 = vsel %vm264, %v1222, 0.0
  %1303 = vadd.xlane.f32.xlu0 %v1302
  %v1304 = vpop.xlane.xlu0 %1303
  %v1305 = vsel %vm264, %v1224, 0.0
  %1306 = vadd.xlane.f32.xlu0 %v1305
  %v1307 = vpop.xlane.xlu0 %1306
  %v1308 = vsel %vm264, %v1226, 0.0
  %1309 = vadd.xlane.f32.xlu0 %v1308
  %v1310 = vpop.xlane.xlu0 %1309
  %v1311 = vsel %vm264, %v1228, 0.0
  %1312 = vadd.xlane.f32.xlu0 %v1311
  %v1313 = vpop.xlane.xlu0 %1312
  %v1314 = vsel %vm264, %v1230, 0.0
  %1315 = vadd.xlane.f32.xlu0 %v1314
  %v1316 = vpop.xlane.xlu0 %1315
  %v1317 = vsel %vm264, %v1232, 0.0
  %1318 = vadd.xlane.f32.xlu0 %v1317
  %v1319 = vpop.xlane.xlu0 %1318
  %v1320 = vsel %vm264, %v1234, 0.0
  %1321 = vadd.xlane.f32.xlu0 %v1320
  %v1322 = vpop.xlane.xlu0 %1321
  %v1323 = vsel %vm264, %v1236, 0.0
  %1324 = vadd.xlane.f32.xlu0 %v1323
  %v1325 = vpop.xlane.xlu0 %1324
  %v1326 = vsel %vm264, %v1238, 0.0
  %1327 = vadd.xlane.f32.xlu0 %v1326
  %v1328 = vpop.xlane.xlu0 %1327
  %v1329 = vsel %vm264, %v1240, 0.0
  %1330 = vadd.xlane.f32.xlu0 %v1329
  %v1331 = vpop.xlane.xlu0 %1330
  %v1332 = vsel %vm264, %v1242, 0.0
  %1333 = vadd.xlane.f32.xlu0 %v1332
  %v1334 = vpop.xlane.xlu0 %1333
  %v1335 = vsel %vm264, %v1244, 0.0
  %1336 = vadd.xlane.f32.xlu0 %v1335
  %v1337 = vpop.xlane.xlu0 %1336
  %v1338 = vsel %vm264, %v1246, 0.0
  %1339 = vadd.xlane.f32.xlu0 %v1338
  %v1340 = vpop.xlane.xlu0 %1339
  %v1341 = vsel %vm264, %v1248, 0.0
  %1342 = vadd.xlane.f32.xlu0 %v1341
  %v1343 = vpop.xlane.xlu0 %1342
  %v1344 = vsel %vm264, %v1250, 0.0
  %1345 = vadd.xlane.f32.xlu0 %v1344
  %v1346 = vpop.xlane.xlu0 %1345
  %v1347 = vrcp.pop %v1253
  %v1348 = vrcp.pop %v1256
  %v1349 = vrcp.pop %v1259
  %v1350 = vrcp.pop %v1262
  %v1351 = vrcp.pop %v1265
  %v1352 = vrcp.pop %v1268
  %v1353 = vrcp.pop %v1271
  %v1354 = vrcp.pop %v1274
  %v1355 = vrcp.pop %v1277
  %v1356 = vrcp.pop %v1280
  %v1357 = vrcp.pop %v1283
  %v1358 = vrcp.pop %v1286
  %v1359 = vrcp.pop %v1289
  %v1360 = vrcp.pop %v1292
  %v1361 = vrcp.pop %v1295
  %v1362 = vrcp.pop %v1298
  %v1363 = vrcp.pop %v1301
  %v1364 = vrcp.pop %v1304
  %v1365 = vrcp.pop %v1307
  %v1366 = vrcp.pop %v1310
  %v1367 = vrcp.pop %v1313
  %v1368 = vrcp.pop %v1316
  %v1369 = vrcp.pop %v1319
  %v1370 = vrcp.pop %v1322
  %v1371 = vrcp.pop %v1325
  %v1372 = vrcp.pop %v1328
  %v1373 = vrcp.pop %v1331
  %v1374 = vrcp.pop %v1334
  %v1375 = vrcp.pop %v1337
  %v1376 = vrcp.pop %v1340
  %v1377 = vrcp.pop %v1343
  %v1378 = vrcp.pop %v1346
  %v1379 = vmul.f32 %v1188, %v1347
  %v1380 = vmul.f32 %v1190, %v1348
  %v1381 = vmul.f32 %v1192, %v1349
  %v1382 = vmul.f32 %v1194, %v1350
  %v1383 = vmul.f32 %v1196, %v1351
  %v1384 = vmul.f32 %v1198, %v1352
  %v1385 = vmul.f32 %v1200, %v1353
  %v1386 = vmul.f32 %v1202, %v1354
  %v1387 = vmul.f32 %v1204, %v1355
  %v1388 = vmul.f32 %v1206, %v1356
  %v1389 = vmul.f32 %v1208, %v1357
  %v1390 = vmul.f32 %v1210, %v1358
  %v1391 = vmul.f32 %v1212, %v1359
  %v1392 = vmul.f32 %v1214, %v1360
  %v1393 = vmul.f32 %v1216, %v1361
  %v1394 = vmul.f32 %v1218, %v1362
  %v1395 = vmul.f32 %v1220, %v1363
  %v1396 = vmul.f32 %v1222, %v1364
  %v1397 = vmul.f32 %v1224, %v1365
  %v1398 = vmul.f32 %v1226, %v1366
  %v1399 = vmul.f32 %v1228, %v1367
  %v1400 = vmul.f32 %v1230, %v1368
  %v1401 = vmul.f32 %v1232, %v1369
  %v1402 = vmul.f32 %v1234, %v1370
  %v1403 = vmul.f32 %v1236, %v1371
  %v1404 = vmul.f32 %v1238, %v1372
  %v1405 = vmul.f32 %v1240, %v1373
  %v1406 = vmul.f32 %v1242, %v1374
  %v1407 = vmul.f32 %v1244, %v1375
  %v1408 = vmul.f32 %v1246, %v1376
  %v1409 = vmul.f32 %v1248, %v1377
  %v1410 = vmul.f32 %v1250, %v1378
  %v1411 = vpack.c.bf16 %v1380, %v1379
  %v1412 = vpack.c.bf16 %v1382, %v1381
  %v1413 = vpack.c.bf16 %v1384, %v1383
  %v1414 = vpack.c.bf16 %v1386, %v1385
  %v1415 = vpack.c.bf16 %v1388, %v1387
  %v1416 = vpack.c.bf16 %v1390, %v1389
  %v1417 = vpack.c.bf16 %v1392, %v1391
  %v1418 = vpack.c.bf16 %v1394, %v1393
  %v1419 = vpack.c.bf16 %v1396, %v1395
  %v1420 = vpack.c.bf16 %v1398, %v1397
  %v1421 = vpack.c.bf16 %v1400, %v1399
  %v1422 = vpack.c.bf16 %v1402, %v1401
  %v1423 = vpack.c.bf16 %v1404, %v1403
  %v1424 = vpack.c.bf16 %v1406, %v1405
  %v1425 = vpack.c.bf16 %v1408, %v1407
  %v1426 = vpack.c.bf16 %v1410, %v1409
  %1427 = vrot.lane.b32.xlu0 %v474, 64
  %v1428 = vpop.permute.xlu0 %1427
  %1429 = vrot.lane.b32.xlu0 %v475, 64
  %v1430 = vpop.permute.xlu0 %1429
  %v1434 = vsel %vm264, %v1411, 0
  %v1437 = vsel %vm264, %v1412, 0
  %1439 = vmatprep.subr.bf16.mxu0 0
  %1440 = vmatpush1.bf16.msra.mxu0 %v1428
  %1441 = vmatprep.subr.bf16.mxu0 0
  %1442 = vmatpush1.bf16.msra.mxu0 %v1430
  %1443 = vmatprep.subr.bf16.mxu0 0
  %1444 = vmatpush1.bf16.msra.mxu0 0
  %1445 = vmatprep.subr.bf16.mxu0 0
  %1446 = vmatpush1.bf16.msra.mxu0 0
  %1447 = vmatprep.subr.bf16.mxu0 0
  %1448 = vmatpush1.bf16.msra.mxu0 0
  %1449 = vmatprep.subr.bf16.mxu0 0
  %1450 = vmatpush1.bf16.msra.mxu0 0
  %1451 = vmatprep.subr.bf16.mxu0 0
  %1452 = vmatpush1.bf16.msra.mxu0 0
  %1453 = vmatprep.subr.bf16.mxu0 0
  %1454 = vmatpush1.bf16.msra.mxu0 0
  %1455 = vmatprep.subr.bf16.mxu0 0
  %1456 = vmatpush1.bf16.msra.mxu0 0
  %1457 = vmatprep.subr.bf16.mxu0 0
  %1458 = vmatpush1.bf16.msra.mxu0 0
  %1459 = vmatprep.subr.bf16.mxu0 0
  %1460 = vmatpush1.bf16.msra.mxu0 0
  %1461 = vmatprep.subr.bf16.mxu0 0
  %1462 = vmatpush1.bf16.msra.mxu0 0
  %1463 = vmatprep.subr.bf16.mxu0 0
  %1464 = vmatpush1.bf16.msra.mxu0 0
  %1465 = vmatprep.subr.bf16.mxu0 0
  %1466 = vmatpush1.bf16.msra.mxu0 0
  %1467 = vmatprep.subr.bf16.mxu0 0
  %1468 = vmatpush1.bf16.msra.mxu0 0
  %1469 = vmatprep.subr.bf16.mxu0 0
  %1470 = vmatpush1.bf16.msra.mxu0 0
  %1471 = vmatprep.mubr.bf16.mxu0 0
  %1472 = vmatmul.mubr.bf16.gmra.mrb[0].mxu0 %v1434
  %v1473 = vpop.f32.mrb[0].mxu0
  %v1474 = vadd.f32 0.0, %v1473
  %v1475 = vpop.f32.mrb[0].mxu0
  %v1476 = vpop.f32.mrb[0].mxu0
  %v1477 = vadd.f32 0.0, %v1476
  %v1478 = vpop.f32.mrb[0].mxu0
  %1479 = vmatprep.mubr.bf16.mxu0 0
  %1480 = vmatmul.mubr.bf16.gmra.mrb[0].mxu0 %v1437
  %v1481 = vpop.f32.mrb[0].mxu0
  %v1482 = vadd.f32 0.0, %v1481
  %v1483 = vpop.f32.mrb[0].mxu0
  %v1484 = vpop.f32.mrb[0].mxu0
  %v1485 = vadd.f32 0.0, %v1484
  %v1486 = vpop.f32.mrb[0].mxu0
  %1487 = vdwg.mxu0
  %1488 = vrot.lane.b32.xlu0 %v476, 64
  %v1489 = vpop.permute.xlu0 %1488
  %1490 = vrot.lane.b32.xlu0 %v477, 64
  %v1491 = vpop.permute.xlu0 %1490
  %v1495 = vsel %vm264, %v1413, 0
  %v1498 = vsel %vm264, %v1414, 0
  %1500 = vmatprep.subr.bf16.mxu0 0
  %1501 = vmatpush1.bf16.msra.mxu0 %v1489
  %1502 = vmatprep.subr.bf16.mxu0 0
  %1503 = vmatpush1.bf16.msra.mxu0 %v1491
  %1504 = vmatprep.subr.bf16.mxu0 0
  %1505 = vmatpush1.bf16.msra.mxu0 0
  %1506 = vmatprep.subr.bf16.mxu0 0
  %1507 = vmatpush1.bf16.msra.mxu0 0
  %1508 = vmatprep.subr.bf16.mxu0 0
  %1509 = vmatpush1.bf16.msra.mxu0 0
  %1510 = vmatprep.subr.bf16.mxu0 0
  %1511 = vmatpush1.bf16.msra.mxu0 0
  %1512 = vmatprep.subr.bf16.mxu0 0
  %1513 = vmatpush1.bf16.msra.mxu0 0
  %1514 = vmatprep.subr.bf16.mxu0 0
  %1515 = vmatpush1.bf16.msra.mxu0 0
  %1516 = vmatprep.subr.bf16.mxu0 0
  %1517 = vmatpush1.bf16.msra.mxu0 0
  %1518 = vmatprep.subr.bf16.mxu0 0
  %1519 = vmatpush1.bf16.msra.mxu0 0
  %1520 = vmatprep.subr.bf16.mxu0 0
  %1521 = vmatpush1.bf16.msra.mxu0 0
  %1522 = vmatprep.subr.bf16.mxu0 0
  %1523 = vmatpush1.bf16.msra.mxu0 0
  %1524 = vmatprep.subr.bf16.mxu0 0
  %1525 = vmatpush1.bf16.msra.mxu0 0
  %1526 = vmatprep.subr.bf16.mxu0 0
  %1527 = vmatpush1.bf16.msra.mxu0 0
  %1528 = vmatprep.subr.bf16.mxu0 0
  %1529 = vmatpush1.bf16.msra.mxu0 0
  %1530 = vmatprep.subr.bf16.mxu0 0
  %1531 = vmatpush1.bf16.msra.mxu0 0
  %1532 = vmatprep.mubr.bf16.mxu0 0
  %1533 = vmatmul.mubr.bf16.gmra.mrb[0].mxu0 %v1495
  %v1534 = vpop.f32.mrb[0].mxu0
  %v1535 = vadd.f32 0.0, %v1534
  %v1536 = vpop.f32.mrb[0].mxu0
  %v1537 = vpop.f32.mrb[0].mxu0
  %v1538 = vadd.f32 0.0, %v1537
  %v1539 = vpop.f32.mrb[0].mxu0
  %1540 = vmatprep.mubr.bf16.mxu0 0
  %1541 = vmatmul.mubr.bf16.gmra.mrb[0].mxu0 %v1498
  %v1542 = vpop.f32.mrb[0].mxu0
  %v1543 = vadd.f32 0.0, %v1542
  %v1544 = vpop.f32.mrb[0].mxu0
  %v1545 = vpop.f32.mrb[0].mxu0
  %v1546 = vadd.f32 0.0, %v1545
  %v1547 = vpop.f32.mrb[0].mxu0
  %1548 = vdwg.mxu0
  %1549 = vrot.lane.b32.xlu0 %v478, 64
  %v1550 = vpop.permute.xlu0 %1549
  %1551 = vrot.lane.b32.xlu0 %v479, 64
  %v1552 = vpop.permute.xlu0 %1551
  %v1556 = vsel %vm264, %v1415, 0
  %v1559 = vsel %vm264, %v1416, 0
  %1561 = vmatprep.subr.bf16.mxu0 0
  %1562 = vmatpush1.bf16.msra.mxu0 %v1550
  %1563 = vmatprep.subr.bf16.mxu0 0
  %1564 = vmatpush1.bf16.msra.mxu0 %v1552
  %1565 = vmatprep.subr.bf16.mxu0 0
  %1566 = vmatpush1.bf16.msra.mxu0 0
  %1567 = vmatprep.subr.bf16.mxu0 0
  %1568 = vmatpush1.bf16.msra.mxu0 0
  %1569 = vmatprep.subr.bf16.mxu0 0
  %1570 = vmatpush1.bf16.msra.mxu0 0
  %1571 = vmatprep.subr.bf16.mxu0 0
  %1572 = vmatpush1.bf16.msra.mxu0 0
  %1573 = vmatprep.subr.bf16.mxu0 0
  %1574 = vmatpush1.bf16.msra.mxu0 0
  %1575 = vmatprep.subr.bf16.mxu0 0
  %1576 = vmatpush1.bf16.msra.mxu0 0
  %1577 = vmatprep.subr.bf16.mxu0 0
  %1578 = vmatpush1.bf16.msra.mxu0 0
  %1579 = vmatprep.subr.bf16.mxu0 0
  %1580 = vmatpush1.bf16.msra.mxu0 0
  %1581 = vmatprep.subr.bf16.mxu0 0
  %1582 = vmatpush1.bf16.msra.mxu0 0
  %1583 = vmatprep.subr.bf16.mxu0 0
  %1584 = vmatpush1.bf16.msra.mxu0 0
  %1585 = vmatprep.subr.bf16.mxu0 0
  %1586 = vmatpush1.bf16.msra.mxu0 0
  %1587 = vmatprep.subr.bf16.mxu0 0
  %1588 = vmatpush1.bf16.msra.mxu0 0
  %1589 = vmatprep.subr.bf16.mxu0 0
  %1590 = vmatpush1.bf16.msra.mxu0 0
  %1591 = vmatprep.subr.bf16.mxu0 0
  %1592 = vmatpush1.bf16.msra.mxu0 0
  %1593 = vmatprep.mubr.bf16.mxu0 0
  %1594 = vmatmul.mubr.bf16.gmra.mrb[0].mxu0 %v1556
  %v1595 = vpop.f32.mrb[0].mxu0
  %v1596 = vadd.f32 0.0, %v1595
  %v1597 = vpop.f32.mrb[0].mxu0
  %v1598 = vpop.f32.mrb[0].mxu0
  %v1599 = vadd.f32 0.0, %v1598
  %v1600 = vpop.f32.mrb[0].mxu0
  %1601 = vmatprep.mubr.bf16.mxu0 0
  %1602 = vmatmul.mubr.bf16.gmra.mrb[0].mxu0 %v1559
  %v1603 = vpop.f32.mrb[0].mxu0
  %v1604 = vadd.f32 0.0, %v1603
  %v1605 = vpop.f32.mrb[0].mxu0
  %v1606 = vpop.f32.mrb[0].mxu0
  %v1607 = vadd.f32 0.0, %v1606
  %v1608 = vpop.f32.mrb[0].mxu0
  %1609 = vdwg.mxu0
  %1610 = vrot.lane.b32.xlu0 %v480, 64
  %v1611 = vpop.permute.xlu0 %1610
  %1612 = vrot.lane.b32.xlu0 %v481, 64
  %v1613 = vpop.permute.xlu0 %1612
  %v1617 = vsel %vm264, %v1417, 0
  %v1620 = vsel %vm264, %v1418, 0
  %1622 = vmatprep.subr.bf16.mxu0 0
  %1623 = vmatpush1.bf16.msra.mxu0 %v1611
  %1624 = vmatprep.subr.bf16.mxu0 0
  %1625 = vmatpush1.bf16.msra.mxu0 %v1613
  %1626 = vmatprep.subr.bf16.mxu0 0
  %1627 = vmatpush1.bf16.msra.mxu0 0
  %1628 = vmatprep.subr.bf16.mxu0 0
  %1629 = vmatpush1.bf16.msra.mxu0 0
  %1630 = vmatprep.subr.bf16.mxu0 0
  %1631 = vmatpush1.bf16.msra.mxu0 0
  %1632 = vmatprep.subr.bf16.mxu0 0
  %1633 = vmatpush1.bf16.msra.mxu0 0
  %1634 = vmatprep.subr.bf16.mxu0 0
  %1635 = vmatpush1.bf16.msra.mxu0 0
  %1636 = vmatprep.subr.bf16.mxu0 0
  %1637 = vmatpush1.bf16.msra.mxu0 0
  %1638 = vmatprep.subr.bf16.mxu0 0
  %1639 = vmatpush1.bf16.msra.mxu0 0
  %1640 = vmatprep.subr.bf16.mxu0 0
  %1641 = vmatpush1.bf16.msra.mxu0 0
  %1642 = vmatprep.subr.bf16.mxu0 0
  %1643 = vmatpush1.bf16.msra.mxu0 0
  %1644 = vmatprep.subr.bf16.mxu0 0
  %1645 = vmatpush1.bf16.msra.mxu0 0
  %1646 = vmatprep.subr.bf16.mxu0 0
  %1647 = vmatpush1.bf16.msra.mxu0 0
  %1648 = vmatprep.subr.bf16.mxu0 0
  %1649 = vmatpush1.bf16.msra.mxu0 0
  %1650 = vmatprep.subr.bf16.mxu0 0
  %1651 = vmatpush1.bf16.msra.mxu0 0
  %1652 = vmatprep.subr.bf16.mxu0 0
  %1653 = vmatpush1.bf16.msra.mxu0 0
  %1654 = vmatprep.mubr.bf16.mxu0 0
  %1655 = vmatmul.mubr.bf16.gmra.mrb[0].mxu0 %v1617
  %v1656 = vpop.f32.mrb[0].mxu0
  %v1657 = vadd.f32 0.0, %v1656
  %v1658 = vpop.f32.mrb[0].mxu0
  %v1659 = vpop.f32.mrb[0].mxu0
  %v1660 = vadd.f32 0.0, %v1659
  %v1661 = vpop.f32.mrb[0].mxu0
  %1662 = vmatprep.mubr.bf16.mxu0 0
  %1663 = vmatmul.mubr.bf16.gmra.mrb[0].mxu0 %v1620
  %v1664 = vpop.f32.mrb[0].mxu0
  %v1665 = vadd.f32 0.0, %v1664
  %v1666 = vpop.f32.mrb[0].mxu0
  %v1667 = vpop.f32.mrb[0].mxu0
  %v1668 = vadd.f32 0.0, %v1667
  %v1669 = vpop.f32.mrb[0].mxu0
  %1670 = vdwg.mxu0
  %1671 = vrot.lane.b32.xlu0 %v482, 64
  %v1672 = vpop.permute.xlu0 %1671
  %1673 = vrot.lane.b32.xlu0 %v483, 64
  %v1674 = vpop.permute.xlu0 %1673
  %v1678 = vsel %vm264, %v1419, 0
  %v1681 = vsel %vm264, %v1420, 0
  %1683 = vmatprep.subr.bf16.mxu0 0
  %1684 = vmatpush1.bf16.msra.mxu0 %v1672
  %1685 = vmatprep.subr.bf16.mxu0 0
  %1686 = vmatpush1.bf16.msra.mxu0 %v1674
  %1687 = vmatprep.subr.bf16.mxu0 0
  %1688 = vmatpush1.bf16.msra.mxu0 0
  %1689 = vmatprep.subr.bf16.mxu0 0
  %1690 = vmatpush1.bf16.msra.mxu0 0
  %1691 = vmatprep.subr.bf16.mxu0 0
  %1692 = vmatpush1.bf16.msra.mxu0 0
  %1693 = vmatprep.subr.bf16.mxu0 0
  %1694 = vmatpush1.bf16.msra.mxu0 0
  %1695 = vmatprep.subr.bf16.mxu0 0
  %1696 = vmatpush1.bf16.msra.mxu0 0
  %1697 = vmatprep.subr.bf16.mxu0 0
  %1698 = vmatpush1.bf16.msra.mxu0 0
  %1699 = vmatprep.subr.bf16.mxu0 0
  %1700 = vmatpush1.bf16.msra.mxu0 0
  %1701 = vmatprep.subr.bf16.mxu0 0
  %1702 = vmatpush1.bf16.msra.mxu0 0
  %1703 = vmatprep.subr.bf16.mxu0 0
  %1704 = vmatpush1.bf16.msra.mxu0 0
  %1705 = vmatprep.subr.bf16.mxu0 0
  %1706 = vmatpush1.bf16.msra.mxu0 0
  %1707 = vmatprep.subr.bf16.mxu0 0
  %1708 = vmatpush1.bf16.msra.mxu0 0
  %1709 = vmatprep.subr.bf16.mxu0 0
  %1710 = vmatpush1.bf16.msra.mxu0 0
  %1711 = vmatprep.subr.bf16.mxu0 0
  %1712 = vmatpush1.bf16.msra.mxu0 0
  %1713 = vmatprep.subr.bf16.mxu0 0
  %1714 = vmatpush1.bf16.msra.mxu0 0
  %1715 = vmatprep.mubr.bf16.mxu0 0
  %1716 = vmatmul.mubr.bf16.gmra.mrb[0].mxu0 %v1678
  %v1717 = vpop.f32.mrb[0].mxu0
  %v1718 = vadd.f32 0.0, %v1717
  %v1719 = vpop.f32.mrb[0].mxu0
  %v1720 = vpop.f32.mrb[0].mxu0
  %v1721 = vadd.f32 0.0, %v1720
  %v1722 = vpop.f32.mrb[0].mxu0
  %1723 = vmatprep.mubr.bf16.mxu0 0
  %1724 = vmatmul.mubr.bf16.gmra.mrb[0].mxu0 %v1681
  %v1725 = vpop.f32.mrb[0].mxu0
  %v1726 = vadd.f32 0.0, %v1725
  %v1727 = vpop.f32.mrb[0].mxu0
  %v1728 = vpop.f32.mrb[0].mxu0
  %v1729 = vadd.f32 0.0, %v1728
  %v1730 = vpop.f32.mrb[0].mxu0
  %1731 = vdwg.mxu0
  %1732 = vrot.lane.b32.xlu0 %v484, 64
  %v1733 = vpop.permute.xlu0 %1732
  %1734 = vrot.lane.b32.xlu0 %v485, 64
  %v1735 = vpop.permute.xlu0 %1734
  %v1739 = vsel %vm264, %v1421, 0
  %v1742 = vsel %vm264, %v1422, 0
  %1744 = vmatprep.subr.bf16.mxu0 0
  %1745 = vmatpush1.bf16.msra.mxu0 %v1733
  %1746 = vmatprep.subr.bf16.mxu0 0
  %1747 = vmatpush1.bf16.msra.mxu0 %v1735
  %1748 = vmatprep.subr.bf16.mxu0 0
  %1749 = vmatpush1.bf16.msra.mxu0 0
  %1750 = vmatprep.subr.bf16.mxu0 0
  %1751 = vmatpush1.bf16.msra.mxu0 0
  %1752 = vmatprep.subr.bf16.mxu0 0
  %1753 = vmatpush1.bf16.msra.mxu0 0
  %1754 = vmatprep.subr.bf16.mxu0 0
  %1755 = vmatpush1.bf16.msra.mxu0 0
  %1756 = vmatprep.subr.bf16.mxu0 0
  %1757 = vmatpush1.bf16.msra.mxu0 0
  %1758 = vmatprep.subr.bf16.mxu0 0
  %1759 = vmatpush1.bf16.msra.mxu0 0
  %1760 = vmatprep.subr.bf16.mxu0 0
  %1761 = vmatpush1.bf16.msra.mxu0 0
  %1762 = vmatprep.subr.bf16.mxu0 0
  %1763 = vmatpush1.bf16.msra.mxu0 0
  %1764 = vmatprep.subr.bf16.mxu0 0
  %1765 = vmatpush1.bf16.msra.mxu0 0
  %1766 = vmatprep.subr.bf16.mxu0 0
  %1767 = vmatpush1.bf16.msra.mxu0 0
  %1768 = vmatprep.subr.bf16.mxu0 0
  %1769 = vmatpush1.bf16.msra.mxu0 0
  %1770 = vmatprep.subr.bf16.mxu0 0
  %1771 = vmatpush1.bf16.msra.mxu0 0
  %1772 = vmatprep.subr.bf16.mxu0 0
  %1773 = vmatpush1.bf16.msra.mxu0 0
  %1774 = vmatprep.subr.bf16.mxu0 0
  %1775 = vmatpush1.bf16.msra.mxu0 0
  %1776 = vmatprep.mubr.bf16.mxu0 0
  %1777 = vmatmul.mubr.bf16.gmra.mrb[0].mxu0 %v1739
  %v1778 = vpop.f32.mrb[0].mxu0
  %v1779 = vadd.f32 0.0, %v1778
  %v1780 = vpop.f32.mrb[0].mxu0
  %v1781 = vpop.f32.mrb[0].mxu0
  %v1782 = vadd.f32 0.0, %v1781
  %v1783 = vpop.f32.mrb[0].mxu0
  %1784 = vmatprep.mubr.bf16.mxu0 0
  %1785 = vmatmul.mubr.bf16.gmra.mrb[0].mxu0 %v1742
  %v1786 = vpop.f32.mrb[0].mxu0
  %v1787 = vadd.f32 0.0, %v1786
  %v1788 = vpop.f32.mrb[0].mxu0
  %v1789 = vpop.f32.mrb[0].mxu0
  %v1790 = vadd.f32 0.0, %v1789
  %v1791 = vpop.f32.mrb[0].mxu0
  %1792 = vdwg.mxu0
  %1793 = vrot.lane.b32.xlu0 %v486, 64
  %v1794 = vpop.permute.xlu0 %1793
  %1795 = vrot.lane.b32.xlu0 %v487, 64
  %v1796 = vpop.permute.xlu0 %1795
  %v1800 = vsel %vm264, %v1423, 0
  %v1803 = vsel %vm264, %v1424, 0
  %1805 = vmatprep.subr.bf16.mxu0 0
  %1806 = vmatpush1.bf16.msra.mxu0 %v1794
  %1807 = vmatprep.subr.bf16.mxu0 0
  %1808 = vmatpush1.bf16.msra.mxu0 %v1796
  %1809 = vmatprep.subr.bf16.mxu0 0
  %1810 = vmatpush1.bf16.msra.mxu0 0
  %1811 = vmatprep.subr.bf16.mxu0 0
  %1812 = vmatpush1.bf16.msra.mxu0 0
  %1813 = vmatprep.subr.bf16.mxu0 0
  %1814 = vmatpush1.bf16.msra.mxu0 0
  %1815 = vmatprep.subr.bf16.mxu0 0
  %1816 = vmatpush1.bf16.msra.mxu0 0
  %1817 = vmatprep.subr.bf16.mxu0 0
  %1818 = vmatpush1.bf16.msra.mxu0 0
  %1819 = vmatprep.subr.bf16.mxu0 0
  %1820 = vmatpush1.bf16.msra.mxu0 0
  %1821 = vmatprep.subr.bf16.mxu0 0
  %1822 = vmatpush1.bf16.msra.mxu0 0
  %1823 = vmatprep.subr.bf16.mxu0 0
  %1824 = vmatpush1.bf16.msra.mxu0 0
  %1825 = vmatprep.subr.bf16.mxu0 0
  %1826 = vmatpush1.bf16.msra.mxu0 0
  %1827 = vmatprep.subr.bf16.mxu0 0
  %1828 = vmatpush1.bf16.msra.mxu0 0
  %1829 = vmatprep.subr.bf16.mxu0 0
  %1830 = vmatpush1.bf16.msra.mxu0 0
  %1831 = vmatprep.subr.bf16.mxu0 0
  %1832 = vmatpush1.bf16.msra.mxu0 0
  %1833 = vmatprep.subr.bf16.mxu0 0
  %1834 = vmatpush1.bf16.msra.mxu0 0
  %1835 = vmatprep.subr.bf16.mxu0 0
  %1836 = vmatpush1.bf16.msra.mxu0 0
  %1837 = vmatprep.mubr.bf16.mxu0 0
  %1838 = vmatmul.mubr.bf16.gmra.mrb[0].mxu0 %v1800
  %v1839 = vpop.f32.mrb[0].mxu0
  %v1840 = vadd.f32 0.0, %v1839
  %v1841 = vpop.f32.mrb[0].mxu0
  %v1842 = vpop.f32.mrb[0].mxu0
  %v1843 = vadd.f32 0.0, %v1842
  %v1844 = vpop.f32.mrb[0].mxu0
  %1845 = vmatprep.mubr.bf16.mxu0 0
  %1846 = vmatmul.mubr.bf16.gmra.mrb[0].mxu0 %v1803
  %v1847 = vpop.f32.mrb[0].mxu0
  %v1848 = vadd.f32 0.0, %v1847
  %v1849 = vpop.f32.mrb[0].mxu0
  %v1850 = vpop.f32.mrb[0].mxu0
  %v1851 = vadd.f32 0.0, %v1850
  %v1852 = vpop.f32.mrb[0].mxu0
  %1853 = vdwg.mxu0
  %1854 = vrot.lane.b32.xlu0 %v488, 64
  %v1855 = vpop.permute.xlu0 %1854
  %1856 = vrot.lane.b32.xlu0 %v489, 64
  %v1857 = vpop.permute.xlu0 %1856
  %v1861 = vsel %vm264, %v1425, 0
  %v1864 = vsel %vm264, %v1426, 0
  %1866 = vmatprep.subr.bf16.mxu0 0
  %1867 = vmatpush1.bf16.msra.mxu0 %v1855
  %1868 = vmatprep.subr.bf16.mxu0 0
  %1869 = vmatpush1.bf16.msra.mxu0 %v1857
  %1870 = vmatprep.subr.bf16.mxu0 0
  %1871 = vmatpush1.bf16.msra.mxu0 0
  %1872 = vmatprep.subr.bf16.mxu0 0
  %1873 = vmatpush1.bf16.msra.mxu0 0
  %1874 = vmatprep.subr.bf16.mxu0 0
  %1875 = vmatpush1.bf16.msra.mxu0 0
  %1876 = vmatprep.subr.bf16.mxu0 0
  %1877 = vmatpush1.bf16.msra.mxu0 0
  %1878 = vmatprep.subr.bf16.mxu0 0
  %1879 = vmatpush1.bf16.msra.mxu0 0
  %1880 = vmatprep.subr.bf16.mxu0 0
  %1881 = vmatpush1.bf16.msra.mxu0 0
  %1882 = vmatprep.subr.bf16.mxu0 0
  %1883 = vmatpush1.bf16.msra.mxu0 0
  %1884 = vmatprep.subr.bf16.mxu0 0
  %1885 = vmatpush1.bf16.msra.mxu0 0
  %1886 = vmatprep.subr.bf16.mxu0 0
  %1887 = vmatpush1.bf16.msra.mxu0 0
  %1888 = vmatprep.subr.bf16.mxu0 0
  %1889 = vmatpush1.bf16.msra.mxu0 0
  %1890 = vmatprep.subr.bf16.mxu0 0
  %1891 = vmatpush1.bf16.msra.mxu0 0
  %1892 = vmatprep.subr.bf16.mxu0 0
  %1893 = vmatpush1.bf16.msra.mxu0 0
  %1894 = vmatprep.subr.bf16.mxu0 0
  %1895 = vmatpush1.bf16.msra.mxu0 0
  %1896 = vmatprep.subr.bf16.mxu0 0
  %1897 = vmatpush1.bf16.msra.mxu0 0
  %1898 = vmatprep.mubr.bf16.mxu0 0
  %1899 = vmatmul.mubr.bf16.gmra.mrb[0].mxu0 %v1861
  %v1900 = vpop.f32.mrb[0].mxu0
  %v1901 = vadd.f32 0.0, %v1900
  %v1902 = vpop.f32.mrb[0].mxu0
  %v1903 = vpop.f32.mrb[0].mxu0
  %v1904 = vadd.f32 0.0, %v1903
  %v1905 = vpop.f32.mrb[0].mxu0
  %1906 = vmatprep.mubr.bf16.mxu0 0
  %1907 = vmatmul.mubr.bf16.gmra.mrb[0].mxu0 %v1864
  %v1908 = vpop.f32.mrb[0].mxu0
  %v1909 = vadd.f32 0.0, %v1908
  %v1910 = vpop.f32.mrb[0].mxu0
  %v1911 = vpop.f32.mrb[0].mxu0
  %v1912 = vadd.f32 0.0, %v1911
  %v1913 = vpop.f32.mrb[0].mxu0
  %1914 = vdwg.mxu0
  %1915 = vrot.lane.b32.xlu0 %v474, 112
  %v1916 = vpop.permute.xlu0 %1915
  %1917 = vrot.lane.b32.xlu0 %v475, 112
  %v1918 = vpop.permute.xlu0 %1917
  %1919 = vrot.lane.b32.xlu0 %v474, 80
  %v1920 = vpop.permute.xlu0 %1919
  %1921 = vrot.lane.b32.xlu0 %v475, 80
  %v1922 = vpop.permute.xlu0 %1921
  %v1924 = vsel %vm496, %v1916, 0
  %v1927 = vsel %vm496, %v1918, 0
  %v1930 = vsel %vm496, %v1920, 0
  %v1933 = vsel %vm496, %v1922, 0
  %1935 = vmatprep.subr.bf16.mxu0 0
  %1936 = vmatpush1.bf16.xpose.msra.mxu0 %v1930
  %1937 = vmatprep.subr.bf16.mxu0 0
  %1938 = vmatpush1.bf16.xpose.msra.mxu0 %v1933
  %1939 = vmatprep.subr.bf16.mxu0 0
  %1940 = vmatpush1.bf16.xpose.msra.mxu0 0
  %1941 = vmatprep.subr.bf16.mxu0 0
  %1942 = vmatpush1.bf16.xpose.msra.mxu0 0
  %1943 = vmatprep.subr.bf16.mxu0 0
  %1944 = vmatpush1.bf16.xpose.msra.mxu0 0
  %1945 = vmatprep.subr.bf16.mxu0 0
  %1946 = vmatpush1.bf16.xpose.msra.mxu0 0
  %1947 = vmatprep.subr.bf16.mxu0 0
  %1948 = vmatpush1.bf16.xpose.msra.mxu0 0
  %1949 = vmatprep.subr.bf16.mxu0 0
  %1950 = vmatpush1.bf16.xpose.msra.mxu0 0
  %1951 = vmatprep.subr.bf16.mxu0 0
  %1952 = vmatpush1.bf16.xpose.msra.mxu0 0
  %1953 = vmatprep.subr.bf16.mxu0 0
  %1954 = vmatpush1.bf16.xpose.msra.mxu0 0
  %1955 = vmatprep.subr.bf16.mxu0 0
  %1956 = vmatpush1.bf16.xpose.msra.mxu0 0
  %1957 = vmatprep.subr.bf16.mxu0 0
  %1958 = vmatpush1.bf16.xpose.msra.mxu0 0
  %1959 = vmatprep.subr.bf16.mxu0 0
  %1960 = vmatpush1.bf16.xpose.msra.mxu0 0
  %1961 = vmatprep.subr.bf16.mxu0 0
  %1962 = vmatpush1.bf16.xpose.msra.mxu0 0
  %1963 = vmatprep.subr.bf16.mxu0 0
  %1964 = vmatpush1.bf16.xpose.msra.mxu0 0
  %1965 = vmatprep.subr.bf16.mxu0 0
  %1966 = vmatpush1.bf16.xpose.msra.mxu0 0
  %1967 = vmatprep.mubr.bf16.mxu0 0
  %1968 = vmatmul.mubr.bf16.gmra.mrb[0].mxu0 %v1924
  %v1969 = vpop.f32.mrb[0].mxu0
  %v1970 = vadd.f32 0.0, %v1969
  %v1971 = vpop.f32.mrb[0].mxu0
  %v1972 = vpop.f32.mrb[0].mxu0
  %v1973 = vadd.f32 0.0, %v1972
  %v1974 = vpop.f32.mrb[0].mxu0
  %1975 = vmatprep.mubr.bf16.mxu0 0
  %1976 = vmatmul.mubr.bf16.gmra.mrb[0].mxu0 %v1927
  %v1977 = vpop.f32.mrb[0].mxu0
  %v1978 = vadd.f32 0.0, %v1977
  %v1979 = vpop.f32.mrb[0].mxu0
  %v1980 = vpop.f32.mrb[0].mxu0
  %v1981 = vadd.f32 0.0, %v1980
  %v1982 = vpop.f32.mrb[0].mxu0
  %1983 = vdwg.mxu0
  %1984 = vrot.lane.b32.xlu0 %v476, 112
  %v1985 = vpop.permute.xlu0 %1984
  %1986 = vrot.lane.b32.xlu0 %v477, 112
  %v1987 = vpop.permute.xlu0 %1986
  %1988 = vrot.lane.b32.xlu0 %v476, 80
  %v1989 = vpop.permute.xlu0 %1988
  %1990 = vrot.lane.b32.xlu0 %v477, 80
  %v1991 = vpop.permute.xlu0 %1990
  %v1993 = vsel %vm496, %v1985, 0
  %v1996 = vsel %vm496, %v1987, 0
  %v1999 = vsel %vm496, %v1989, 0
  %v2002 = vsel %vm496, %v1991, 0
  %2004 = vmatprep.subr.bf16.mxu0 0
  %2005 = vmatpush1.bf16.xpose.msra.mxu0 %v1999
  %2006 = vmatprep.subr.bf16.mxu0 0
  %2007 = vmatpush1.bf16.xpose.msra.mxu0 %v2002
  %2008 = vmatprep.subr.bf16.mxu0 0
  %2009 = vmatpush1.bf16.xpose.msra.mxu0 0
  %2010 = vmatprep.subr.bf16.mxu0 0
  %2011 = vmatpush1.bf16.xpose.msra.mxu0 0
  %2012 = vmatprep.subr.bf16.mxu0 0
  %2013 = vmatpush1.bf16.xpose.msra.mxu0 0
  %2014 = vmatprep.subr.bf16.mxu0 0
  %2015 = vmatpush1.bf16.xpose.msra.mxu0 0
  %2016 = vmatprep.subr.bf16.mxu0 0
  %2017 = vmatpush1.bf16.xpose.msra.mxu0 0
  %2018 = vmatprep.subr.bf16.mxu0 0
  %2019 = vmatpush1.bf16.xpose.msra.mxu0 0
  %2020 = vmatprep.subr.bf16.mxu0 0
  %2021 = vmatpush1.bf16.xpose.msra.mxu0 0
  %2022 = vmatprep.subr.bf16.mxu0 0
  %2023 = vmatpush1.bf16.xpose.msra.mxu0 0
  %2024 = vmatprep.subr.bf16.mxu0 0
  %2025 = vmatpush1.bf16.xpose.msra.mxu0 0
  %2026 = vmatprep.subr.bf16.mxu0 0
  %2027 = vmatpush1.bf16.xpose.msra.mxu0 0
  %2028 = vmatprep.subr.bf16.mxu0 0
  %2029 = vmatpush1.bf16.xpose.msra.mxu0 0
  %2030 = vmatprep.subr.bf16.mxu0 0
  %2031 = vmatpush1.bf16.xpose.msra.mxu0 0
  %2032 = vmatprep.subr.bf16.mxu0 0
  %2033 = vmatpush1.bf16.xpose.msra.mxu0 0
  %2034 = vmatprep.subr.bf16.mxu0 0
  %2035 = vmatpush1.bf16.xpose.msra.mxu0 0
  %2036 = vmatprep.mubr.bf16.mxu0 0
  %2037 = vmatmul.mubr.bf16.gmra.mrb[0].mxu0 %v1993
  %v2038 = vpop.f32.mrb[0].mxu0
  %v2039 = vadd.f32 0.0, %v2038
  %v2040 = vpop.f32.mrb[0].mxu0
  %v2041 = vpop.f32.mrb[0].mxu0
  %v2042 = vadd.f32 0.0, %v2041
  %v2043 = vpop.f32.mrb[0].mxu0
  %2044 = vmatprep.mubr.bf16.mxu0 0
  %2045 = vmatmul.mubr.bf16.gmra.mrb[0].mxu0 %v1996
  %v2046 = vpop.f32.mrb[0].mxu0
  %v2047 = vadd.f32 0.0, %v2046
  %v2048 = vpop.f32.mrb[0].mxu0
  %v2049 = vpop.f32.mrb[0].mxu0
  %v2050 = vadd.f32 0.0, %v2049
  %v2051 = vpop.f32.mrb[0].mxu0
  %2052 = vdwg.mxu0
  %2053 = vrot.lane.b32.xlu0 %v478, 112
  %v2054 = vpop.permute.xlu0 %2053
  %2055 = vrot.lane.b32.xlu0 %v479, 112
  %v2056 = vpop.permute.xlu0 %2055
  %2057 = vrot.lane.b32.xlu0 %v478, 80
  %v2058 = vpop.permute.xlu0 %2057
  %2059 = vrot.lane.b32.xlu0 %v479, 80
  %v2060 = vpop.permute.xlu0 %2059
  %v2062 = vsel %vm496, %v2054, 0
  %v2065 = vsel %vm496, %v2056, 0
  %v2068 = vsel %vm496, %v2058, 0
  %v2071 = vsel %vm496, %v2060, 0
  %2073 = vmatprep.subr.bf16.mxu0 0
  %2074 = vmatpush1.bf16.xpose.msra.mxu0 %v2068
  %2075 = vmatprep.subr.bf16.mxu0 0
  %2076 = vmatpush1.bf16.xpose.msra.mxu0 %v2071
  %2077 = vmatprep.subr.bf16.mxu0 0
  %2078 = vmatpush1.bf16.xpose.msra.mxu0 0
  %2079 = vmatprep.subr.bf16.mxu0 0
  %2080 = vmatpush1.bf16.xpose.msra.mxu0 0
  %2081 = vmatprep.subr.bf16.mxu0 0
  %2082 = vmatpush1.bf16.xpose.msra.mxu0 0
  %2083 = vmatprep.subr.bf16.mxu0 0
  %2084 = vmatpush1.bf16.xpose.msra.mxu0 0
  %2085 = vmatprep.subr.bf16.mxu0 0
  %2086 = vmatpush1.bf16.xpose.msra.mxu0 0
  %2087 = vmatprep.subr.bf16.mxu0 0
  %2088 = vmatpush1.bf16.xpose.msra.mxu0 0
  %2089 = vmatprep.subr.bf16.mxu0 0
  %2090 = vmatpush1.bf16.xpose.msra.mxu0 0
  %2091 = vmatprep.subr.bf16.mxu0 0
  %2092 = vmatpush1.bf16.xpose.msra.mxu0 0
  %2093 = vmatprep.subr.bf16.mxu0 0
  %2094 = vmatpush1.bf16.xpose.msra.mxu0 0
  %2095 = vmatprep.subr.bf16.mxu0 0
  %2096 = vmatpush1.bf16.xpose.msra.mxu0 0
  %2097 = vmatprep.subr.bf16.mxu0 0
  %2098 = vmatpush1.bf16.xpose.msra.mxu0 0
  %2099 = vmatprep.subr.bf16.mxu0 0
  %2100 = vmatpush1.bf16.xpose.msra.mxu0 0
  %2101 = vmatprep.subr.bf16.mxu0 0
  %2102 = vmatpush1.bf16.xpose.msra.mxu0 0
  %2103 = vmatprep.subr.bf16.mxu0 0
  %2104 = vmatpush1.bf16.xpose.msra.mxu0 0
  %2105 = vmatprep.mubr.bf16.mxu0 0
  %2106 = vmatmul.mubr.bf16.gmra.mrb[0].mxu0 %v2062
  %v2107 = vpop.f32.mrb[0].mxu0
  %v2108 = vadd.f32 0.0, %v2107
  %v2109 = vpop.f32.mrb[0].mxu0
  %v2110 = vpop.f32.mrb[0].mxu0
  %v2111 = vadd.f32 0.0, %v2110
  %v2112 = vpop.f32.mrb[0].mxu0
  %2113 = vmatprep.mubr.bf16.mxu0 0
  %2114 = vmatmul.mubr.bf16.gmra.mrb[0].mxu0 %v2065
  %v2115 = vpop.f32.mrb[0].mxu0
  %v2116 = vadd.f32 0.0, %v2115
  %v2117 = vpop.f32.mrb[0].mxu0
  %v2118 = vpop.f32.mrb[0].mxu0
  %v2119 = vadd.f32 0.0, %v2118
  %v2120 = vpop.f32.mrb[0].mxu0
  %2121 = vdwg.mxu0
  %2122 = vrot.lane.b32.xlu0 %v480, 112
  %v2123 = vpop.permute.xlu0 %2122
  %2124 = vrot.lane.b32.xlu0 %v481, 112
  %v2125 = vpop.permute.xlu0 %2124
  %2126 = vrot.lane.b32.xlu0 %v480, 80
  %v2127 = vpop.permute.xlu0 %2126
  %2128 = vrot.lane.b32.xlu0 %v481, 80
  %v2129 = vpop.permute.xlu0 %2128
  %v2131 = vsel %vm496, %v2123, 0
  %v2134 = vsel %vm496, %v2125, 0
  %v2137 = vsel %vm496, %v2127, 0
  %v2140 = vsel %vm496, %v2129, 0
  %2142 = vmatprep.subr.bf16.mxu0 0
  %2143 = vmatpush1.bf16.xpose.msra.mxu0 %v2137
  %2144 = vmatprep.subr.bf16.mxu0 0
  %2145 = vmatpush1.bf16.xpose.msra.mxu0 %v2140
  %2146 = vmatprep.subr.bf16.mxu0 0
  %2147 = vmatpush1.bf16.xpose.msra.mxu0 0
  %2148 = vmatprep.subr.bf16.mxu0 0
  %2149 = vmatpush1.bf16.xpose.msra.mxu0 0
  %2150 = vmatprep.subr.bf16.mxu0 0
  %2151 = vmatpush1.bf16.xpose.msra.mxu0 0
  %2152 = vmatprep.subr.bf16.mxu0 0
  %2153 = vmatpush1.bf16.xpose.msra.mxu0 0
  %2154 = vmatprep.subr.bf16.mxu0 0
  %2155 = vmatpush1.bf16.xpose.msra.mxu0 0
  %2156 = vmatprep.subr.bf16.mxu0 0
  %2157 = vmatpush1.bf16.xpose.msra.mxu0 0
  %2158 = vmatprep.subr.bf16.mxu0 0
  %2159 = vmatpush1.bf16.xpose.msra.mxu0 0
  %2160 = vmatprep.subr.bf16.mxu0 0
  %2161 = vmatpush1.bf16.xpose.msra.mxu0 0
  %2162 = vmatprep.subr.bf16.mxu0 0
  %2163 = vmatpush1.bf16.xpose.msra.mxu0 0
  %2164 = vmatprep.subr.bf16.mxu0 0
  %2165 = vmatpush1.bf16.xpose.msra.mxu0 0
  %2166 = vmatprep.subr.bf16.mxu0 0
  %2167 = vmatpush1.bf16.xpose.msra.mxu0 0
  %2168 = vmatprep.subr.bf16.mxu0 0
  %2169 = vmatpush1.bf16.xpose.msra.mxu0 0
  %2170 = vmatprep.subr.bf16.mxu0 0
  %2171 = vmatpush1.bf16.xpose.msra.mxu0 0
  %2172 = vmatprep.subr.bf16.mxu0 0
  %2173 = vmatpush1.bf16.xpose.msra.mxu0 0
  %2174 = vmatprep.mubr.bf16.mxu0 0
  %2175 = vmatmul.mubr.bf16.gmra.mrb[0].mxu0 %v2131
  %v2176 = vpop.f32.mrb[0].mxu0
  %v2177 = vadd.f32 0.0, %v2176
  %v2178 = vpop.f32.mrb[0].mxu0
  %v2179 = vpop.f32.mrb[0].mxu0
  %v2180 = vadd.f32 0.0, %v2179
  %v2181 = vpop.f32.mrb[0].mxu0
  %2182 = vmatprep.mubr.bf16.mxu0 0
  %2183 = vmatmul.mubr.bf16.gmra.mrb[0].mxu0 %v2134
  %v2184 = vpop.f32.mrb[0].mxu0
  %v2185 = vadd.f32 0.0, %v2184
  %v2186 = vpop.f32.mrb[0].mxu0
  %v2187 = vpop.f32.mrb[0].mxu0
  %v2188 = vadd.f32 0.0, %v2187
  %v2189 = vpop.f32.mrb[0].mxu0
  %2190 = vdwg.mxu0
  %2191 = vrot.lane.b32.xlu0 %v482, 112
  %v2192 = vpop.permute.xlu0 %2191
  %2193 = vrot.lane.b32.xlu0 %v483, 112
  %v2194 = vpop.permute.xlu0 %2193
  %2195 = vrot.lane.b32.xlu0 %v482, 80
  %v2196 = vpop.permute.xlu0 %2195
  %2197 = vrot.lane.b32.xlu0 %v483, 80
  %v2198 = vpop.permute.xlu0 %2197
  %v2200 = vsel %vm496, %v2192, 0
  %v2203 = vsel %vm496, %v2194, 0
  %v2206 = vsel %vm496, %v2196, 0
  %v2209 = vsel %vm496, %v2198, 0
  %2211 = vmatprep.subr.bf16.mxu0 0
  %2212 = vmatpush1.bf16.xpose.msra.mxu0 %v2206
  %2213 = vmatprep.subr.bf16.mxu0 0
  %2214 = vmatpush1.bf16.xpose.msra.mxu0 %v2209
  %2215 = vmatprep.subr.bf16.mxu0 0
  %2216 = vmatpush1.bf16.xpose.msra.mxu0 0
  %2217 = vmatprep.subr.bf16.mxu0 0
  %2218 = vmatpush1.bf16.xpose.msra.mxu0 0
  %2219 = vmatprep.subr.bf16.mxu0 0
  %2220 = vmatpush1.bf16.xpose.msra.mxu0 0
  %2221 = vmatprep.subr.bf16.mxu0 0
  %2222 = vmatpush1.bf16.xpose.msra.mxu0 0
  %2223 = vmatprep.subr.bf16.mxu0 0
  %2224 = vmatpush1.bf16.xpose.msra.mxu0 0
  %2225 = vmatprep.subr.bf16.mxu0 0
  %2226 = vmatpush1.bf16.xpose.msra.mxu0 0
  %2227 = vmatprep.subr.bf16.mxu0 0
  %2228 = vmatpush1.bf16.xpose.msra.mxu0 0
  %2229 = vmatprep.subr.bf16.mxu0 0
  %2230 = vmatpush1.bf16.xpose.msra.mxu0 0
  %2231 = vmatprep.subr.bf16.mxu0 0
  %2232 = vmatpush1.bf16.xpose.msra.mxu0 0
  %2233 = vmatprep.subr.bf16.mxu0 0
  %2234 = vmatpush1.bf16.xpose.msra.mxu0 0
  %2235 = vmatprep.subr.bf16.mxu0 0
  %2236 = vmatpush1.bf16.xpose.msra.mxu0 0
  %2237 = vmatprep.subr.bf16.mxu0 0
  %2238 = vmatpush1.bf16.xpose.msra.mxu0 0
  %2239 = vmatprep.subr.bf16.mxu0 0
  %2240 = vmatpush1.bf16.xpose.msra.mxu0 0
  %2241 = vmatprep.subr.bf16.mxu0 0
  %2242 = vmatpush1.bf16.xpose.msra.mxu0 0
  %2243 = vmatprep.mubr.bf16.mxu0 0
  %2244 = vmatmul.mubr.bf16.gmra.mrb[0].mxu0 %v2200
  %v2245 = vpop.f32.mrb[0].mxu0
  %v2246 = vadd.f32 0.0, %v2245
  %v2247 = vpop.f32.mrb[0].mxu0
  %v2248 = vpop.f32.mrb[0].mxu0
  %v2249 = vadd.f32 0.0, %v2248
  %v2250 = vpop.f32.mrb[0].mxu0
  %2251 = vmatprep.mubr.bf16.mxu0 0
  %2252 = vmatmul.mubr.bf16.gmra.mrb[0].mxu0 %v2203
  %v2253 = vpop.f32.mrb[0].mxu0
  %v2254 = vadd.f32 0.0, %v2253
  %v2255 = vpop.f32.mrb[0].mxu0
  %v2256 = vpop.f32.mrb[0].mxu0
  %v2257 = vadd.f32 0.0, %v2256
  %v2258 = vpop.f32.mrb[0].mxu0
  %2259 = vdwg.mxu0
  %2260 = vrot.lane.b32.xlu0 %v484, 112
  %v2261 = vpop.permute.xlu0 %2260
  %2262 = vrot.lane.b32.xlu0 %v485, 112
  %v2263 = vpop.permute.xlu0 %2262
  %2264 = vrot.lane.b32.xlu0 %v484, 80
  %v2265 = vpop.permute.xlu0 %2264
  %2266 = vrot.lane.b32.xlu0 %v485, 80
  %v2267 = vpop.permute.xlu0 %2266
  %v2269 = vsel %vm496, %v2261, 0
  %v2272 = vsel %vm496, %v2263, 0
  %v2275 = vsel %vm496, %v2265, 0
  %v2278 = vsel %vm496, %v2267, 0
  %2280 = vmatprep.subr.bf16.mxu0 0
  %2281 = vmatpush1.bf16.xpose.msra.mxu0 %v2275
  %2282 = vmatprep.subr.bf16.mxu0 0
  %2283 = vmatpush1.bf16.xpose.msra.mxu0 %v2278
  %2284 = vmatprep.subr.bf16.mxu0 0
  %2285 = vmatpush1.bf16.xpose.msra.mxu0 0
  %2286 = vmatprep.subr.bf16.mxu0 0
  %2287 = vmatpush1.bf16.xpose.msra.mxu0 0
  %2288 = vmatprep.subr.bf16.mxu0 0
  %2289 = vmatpush1.bf16.xpose.msra.mxu0 0
  %2290 = vmatprep.subr.bf16.mxu0 0
  %2291 = vmatpush1.bf16.xpose.msra.mxu0 0
  %2292 = vmatprep.subr.bf16.mxu0 0
  %2293 = vmatpush1.bf16.xpose.msra.mxu0 0
  %2294 = vmatprep.subr.bf16.mxu0 0
  %2295 = vmatpush1.bf16.xpose.msra.mxu0 0
  %2296 = vmatprep.subr.bf16.mxu0 0
  %2297 = vmatpush1.bf16.xpose.msra.mxu0 0
  %2298 = vmatprep.subr.bf16.mxu0 0
  %2299 = vmatpush1.bf16.xpose.msra.mxu0 0
  %2300 = vmatprep.subr.bf16.mxu0 0
  %2301 = vmatpush1.bf16.xpose.msra.mxu0 0
  %2302 = vmatprep.subr.bf16.mxu0 0
  %2303 = vmatpush1.bf16.xpose.msra.mxu0 0
  %2304 = vmatprep.subr.bf16.mxu0 0
  %2305 = vmatpush1.bf16.xpose.msra.mxu0 0
  %2306 = vmatprep.subr.bf16.mxu0 0
  %2307 = vmatpush1.bf16.xpose.msra.mxu0 0
  %2308 = vmatprep.subr.bf16.mxu0 0
  %2309 = vmatpush1.bf16.xpose.msra.mxu0 0
  %2310 = vmatprep.subr.bf16.mxu0 0
  %2311 = vmatpush1.bf16.xpose.msra.mxu0 0
  %2312 = vmatprep.mubr.bf16.mxu0 0
  %2313 = vmatmul.mubr.bf16.gmra.mrb[0].mxu0 %v2269
  %v2314 = vpop.f32.mrb[0].mxu0
  %v2315 = vadd.f32 0.0, %v2314
  %v2316 = vpop.f32.mrb[0].mxu0
  %v2317 = vpop.f32.mrb[0].mxu0
  %v2318 = vadd.f32 0.0, %v2317
  %v2319 = vpop.f32.mrb[0].mxu0
  %2320 = vmatprep.mubr.bf16.mxu0 0
  %2321 = vmatmul.mubr.bf16.gmra.mrb[0].mxu0 %v2272
  %v2322 = vpop.f32.mrb[0].mxu0
  %v2323 = vadd.f32 0.0, %v2322
  %v2324 = vpop.f32.mrb[0].mxu0
  %v2325 = vpop.f32.mrb[0].mxu0
  %v2326 = vadd.f32 0.0, %v2325
  %v2327 = vpop.f32.mrb[0].mxu0
  %2328 = vdwg.mxu0
  %2329 = vrot.lane.b32.xlu0 %v486, 112
  %v2330 = vpop.permute.xlu0 %2329
  %2331 = vrot.lane.b32.xlu0 %v487, 112
  %v2332 = vpop.permute.xlu0 %2331
  %2333 = vrot.lane.b32.xlu0 %v486, 80
  %v2334 = vpop.permute.xlu0 %2333
  %2335 = vrot.lane.b32.xlu0 %v487, 80
  %v2336 = vpop.permute.xlu0 %2335
  %v2338 = vsel %vm496, %v2330, 0
  %v2341 = vsel %vm496, %v2332, 0
  %v2344 = vsel %vm496, %v2334, 0
  %v2347 = vsel %vm496, %v2336, 0
  %2349 = vmatprep.subr.bf16.mxu0 0
  %2350 = vmatpush1.bf16.xpose.msra.mxu0 %v2344
  %2351 = vmatprep.subr.bf16.mxu0 0
  %2352 = vmatpush1.bf16.xpose.msra.mxu0 %v2347
  %2353 = vmatprep.subr.bf16.mxu0 0
  %2354 = vmatpush1.bf16.xpose.msra.mxu0 0
  %2355 = vmatprep.subr.bf16.mxu0 0
  %2356 = vmatpush1.bf16.xpose.msra.mxu0 0
  %2357 = vmatprep.subr.bf16.mxu0 0
  %2358 = vmatpush1.bf16.xpose.msra.mxu0 0
  %2359 = vmatprep.subr.bf16.mxu0 0
  %2360 = vmatpush1.bf16.xpose.msra.mxu0 0
  %2361 = vmatprep.subr.bf16.mxu0 0
  %2362 = vmatpush1.bf16.xpose.msra.mxu0 0
  %2363 = vmatprep.subr.bf16.mxu0 0
  %2364 = vmatpush1.bf16.xpose.msra.mxu0 0
  %2365 = vmatprep.subr.bf16.mxu0 0
  %2366 = vmatpush1.bf16.xpose.msra.mxu0 0
  %2367 = vmatprep.subr.bf16.mxu0 0
  %2368 = vmatpush1.bf16.xpose.msra.mxu0 0
  %2369 = vmatprep.subr.bf16.mxu0 0
  %2370 = vmatpush1.bf16.xpose.msra.mxu0 0
  %2371 = vmatprep.subr.bf16.mxu0 0
  %2372 = vmatpush1.bf16.xpose.msra.mxu0 0
  %2373 = vmatprep.subr.bf16.mxu0 0
  %2374 = vmatpush1.bf16.xpose.msra.mxu0 0
  %2375 = vmatprep.subr.bf16.mxu0 0
  %2376 = vmatpush1.bf16.xpose.msra.mxu0 0
  %2377 = vmatprep.subr.bf16.mxu0 0
  %2378 = vmatpush1.bf16.xpose.msra.mxu0 0
  %2379 = vmatprep.subr.bf16.mxu0 0
  %2380 = vmatpush1.bf16.xpose.msra.mxu0 0
  %2381 = vmatprep.mubr.bf16.mxu0 0
  %2382 = vmatmul.mubr.bf16.gmra.mrb[0].mxu0 %v2338
  %v2383 = vpop.f32.mrb[0].mxu0
  %v2384 = vadd.f32 0.0, %v2383
  %v2385 = vpop.f32.mrb[0].mxu0
  %v2386 = vpop.f32.mrb[0].mxu0
  %v2387 = vadd.f32 0.0, %v2386
  %v2388 = vpop.f32.mrb[0].mxu0
  %2389 = vmatprep.mubr.bf16.mxu0 0
  %2390 = vmatmul.mubr.bf16.gmra.mrb[0].mxu0 %v2341
  %v2391 = vpop.f32.mrb[0].mxu0
  %v2392 = vadd.f32 0.0, %v2391
  %v2393 = vpop.f32.mrb[0].mxu0
  %v2394 = vpop.f32.mrb[0].mxu0
  %v2395 = vadd.f32 0.0, %v2394
  %v2396 = vpop.f32.mrb[0].mxu0
  %2397 = vdwg.mxu0
  %2398 = vrot.lane.b32.xlu0 %v488, 112
  %v2399 = vpop.permute.xlu0 %2398
  %2400 = vrot.lane.b32.xlu0 %v489, 112
  %v2401 = vpop.permute.xlu0 %2400
  %2402 = vrot.lane.b32.xlu0 %v488, 80
  %v2403 = vpop.permute.xlu0 %2402
  %2404 = vrot.lane.b32.xlu0 %v489, 80
  %v2405 = vpop.permute.xlu0 %2404
  %v2407 = vsel %vm496, %v2399, 0
  %v2410 = vsel %vm496, %v2401, 0
  %v2413 = vsel %vm496, %v2403, 0
  %v2416 = vsel %vm496, %v2405, 0
  %2418 = vmatprep.subr.bf16.mxu0 0
  %2419 = vmatpush1.bf16.xpose.msra.mxu0 %v2413
  %2420 = vmatprep.subr.bf16.mxu0 0
  %2421 = vmatpush1.bf16.xpose.msra.mxu0 %v2416
  %2422 = vmatprep.subr.bf16.mxu0 0
  %2423 = vmatpush1.bf16.xpose.msra.mxu0 0
  %2424 = vmatprep.subr.bf16.mxu0 0
  %2425 = vmatpush1.bf16.xpose.msra.mxu0 0
  %2426 = vmatprep.subr.bf16.mxu0 0
  %2427 = vmatpush1.bf16.xpose.msra.mxu0 0
  %2428 = vmatprep.subr.bf16.mxu0 0
  %2429 = vmatpush1.bf16.xpose.msra.mxu0 0
  %2430 = vmatprep.subr.bf16.mxu0 0
  %2431 = vmatpush1.bf16.xpose.msra.mxu0 0
  %2432 = vmatprep.subr.bf16.mxu0 0
  %2433 = vmatpush1.bf16.xpose.msra.mxu0 0
  %2434 = vmatprep.subr.bf16.mxu0 0
  %2435 = vmatpush1.bf16.xpose.msra.mxu0 0
  %2436 = vmatprep.subr.bf16.mxu0 0
  %2437 = vmatpush1.bf16.xpose.msra.mxu0 0
  %2438 = vmatprep.subr.bf16.mxu0 0
  %2439 = vmatpush1.bf16.xpose.msra.mxu0 0
  %2440 = vmatprep.subr.bf16.mxu0 0
  %2441 = vmatpush1.bf16.xpose.msra.mxu0 0
  %2442 = vmatprep.subr.bf16.mxu0 0
  %2443 = vmatpush1.bf16.xpose.msra.mxu0 0
  %2444 = vmatprep.subr.bf16.mxu0 0
  %2445 = vmatpush1.bf16.xpose.msra.mxu0 0
  %2446 = vmatprep.subr.bf16.mxu0 0
  %2447 = vmatpush1.bf16.xpose.msra.mxu0 0
  %2448 = vmatprep.subr.bf16.mxu0 0
  %2449 = vmatpush1.bf16.xpose.msra.mxu0 0
  %2450 = vmatprep.mubr.bf16.mxu0 0
  %2451 = vmatmul.mubr.bf16.gmra.mrb[0].mxu0 %v2407
  %v2452 = vpop.f32.mrb[0].mxu0
  %v2453 = vadd.f32 0.0, %v2452
  %v2454 = vpop.f32.mrb[0].mxu0
  %v2455 = vpop.f32.mrb[0].mxu0
  %v2456 = vadd.f32 0.0, %v2455
  %v2457 = vpop.f32.mrb[0].mxu0
  %2458 = vmatprep.mubr.bf16.mxu0 0
  %2459 = vmatmul.mubr.bf16.gmra.mrb[0].mxu0 %v2410
  %v2460 = vpop.f32.mrb[0].mxu0
  %v2461 = vadd.f32 0.0, %v2460
  %v2462 = vpop.f32.mrb[0].mxu0
  %v2463 = vpop.f32.mrb[0].mxu0
  %v2464 = vadd.f32 0.0, %v2463
  %v2465 = vpop.f32.mrb[0].mxu0
  %2466 = vdwg.mxu0
  %v2467 = vmul.f32 %v1970, 0.25
  %v2468 = vmul.f32 %v1973, 0.25
  %v2469 = vmul.f32 %v1978, 0.25
  %v2470 = vmul.f32 %v1981, 0.25
  %v2471 = vmul.f32 %v2039, 0.25
  %v2472 = vmul.f32 %v2042, 0.25
  %v2473 = vmul.f32 %v2047, 0.25
  %v2474 = vmul.f32 %v2050, 0.25
  %v2475 = vmul.f32 %v2108, 0.25
  %v2476 = vmul.f32 %v2111, 0.25
  %v2477 = vmul.f32 %v2116, 0.25
  %v2478 = vmul.f32 %v2119, 0.25
  %v2479 = vmul.f32 %v2177, 0.25
  %v2480 = vmul.f32 %v2180, 0.25
  %v2481 = vmul.f32 %v2185, 0.25
  %v2482 = vmul.f32 %v2188, 0.25
  %v2483 = vmul.f32 %v2246, 0.25
  %v2484 = vmul.f32 %v2249, 0.25
  %v2485 = vmul.f32 %v2254, 0.25
  %v2486 = vmul.f32 %v2257, 0.25
  %v2487 = vmul.f32 %v2315, 0.25
  %v2488 = vmul.f32 %v2318, 0.25
  %v2489 = vmul.f32 %v2323, 0.25
  %v2490 = vmul.f32 %v2326, 0.25
  %v2491 = vmul.f32 %v2384, 0.25
  %v2492 = vmul.f32 %v2387, 0.25
  %v2493 = vmul.f32 %v2392, 0.25
  %v2494 = vmul.f32 %v2395, 0.25
  %v2495 = vmul.f32 %v2453, 0.25
  %v2496 = vmul.f32 %v2456, 0.25
  %v2497 = vmul.f32 %v2461, 0.25
  %v2498 = vmul.f32 %v2464, 0.25
  %v2499 = vsel %vm264, %v2467, -inf
  %2500 = vmax.xlane.f32.xlu0 %v2499
  %v2501 = vpop.xlane.xlu0 %2500
  %v2502 = vsel %vm264, %v2468, -inf
  %2503 = vmax.xlane.f32.xlu0 %v2502
  %v2504 = vpop.xlane.xlu0 %2503
  %v2505 = vsel %vm264, %v2469, -inf
  %2506 = vmax.xlane.f32.xlu0 %v2505
  %v2507 = vpop.xlane.xlu0 %2506
  %v2508 = vsel %vm264, %v2470, -inf
  %2509 = vmax.xlane.f32.xlu0 %v2508
  %v2510 = vpop.xlane.xlu0 %2509
  %v2511 = vsel %vm264, %v2471, -inf
  %2512 = vmax.xlane.f32.xlu0 %v2511
  %v2513 = vpop.xlane.xlu0 %2512
  %v2514 = vsel %vm264, %v2472, -inf
  %2515 = vmax.xlane.f32.xlu0 %v2514
  %v2516 = vpop.xlane.xlu0 %2515
  %v2517 = vsel %vm264, %v2473, -inf
  %2518 = vmax.xlane.f32.xlu0 %v2517
  %v2519 = vpop.xlane.xlu0 %2518
  %v2520 = vsel %vm264, %v2474, -inf
  %2521 = vmax.xlane.f32.xlu0 %v2520
  %v2522 = vpop.xlane.xlu0 %2521
  %v2523 = vsel %vm264, %v2475, -inf
  %2524 = vmax.xlane.f32.xlu0 %v2523
  %v2525 = vpop.xlane.xlu0 %2524
  %v2526 = vsel %vm264, %v2476, -inf
  %2527 = vmax.xlane.f32.xlu0 %v2526
  %v2528 = vpop.xlane.xlu0 %2527
  %v2529 = vsel %vm264, %v2477, -inf
  %2530 = vmax.xlane.f32.xlu0 %v2529
  %v2531 = vpop.xlane.xlu0 %2530
  %v2532 = vsel %vm264, %v2478, -inf
  %2533 = vmax.xlane.f32.xlu0 %v2532
  %v2534 = vpop.xlane.xlu0 %2533
  %v2535 = vsel %vm264, %v2479, -inf
  %2536 = vmax.xlane.f32.xlu0 %v2535
  %v2537 = vpop.xlane.xlu0 %2536
  %v2538 = vsel %vm264, %v2480, -inf
  %2539 = vmax.xlane.f32.xlu0 %v2538
  %v2540 = vpop.xlane.xlu0 %2539
  %v2541 = vsel %vm264, %v2481, -inf
  %2542 = vmax.xlane.f32.xlu0 %v2541
  %v2543 = vpop.xlane.xlu0 %2542
  %v2544 = vsel %vm264, %v2482, -inf
  %2545 = vmax.xlane.f32.xlu0 %v2544
  %v2546 = vpop.xlane.xlu0 %2545
  %v2547 = vsel %vm264, %v2483, -inf
  %2548 = vmax.xlane.f32.xlu0 %v2547
  %v2549 = vpop.xlane.xlu0 %2548
  %v2550 = vsel %vm264, %v2484, -inf
  %2551 = vmax.xlane.f32.xlu0 %v2550
  %v2552 = vpop.xlane.xlu0 %2551
  %v2553 = vsel %vm264, %v2485, -inf
  %2554 = vmax.xlane.f32.xlu0 %v2553
  %v2555 = vpop.xlane.xlu0 %2554
  %v2556 = vsel %vm264, %v2486, -inf
  %2557 = vmax.xlane.f32.xlu0 %v2556
  %v2558 = vpop.xlane.xlu0 %2557
  %v2559 = vsel %vm264, %v2487, -inf
  %2560 = vmax.xlane.f32.xlu0 %v2559
  %v2561 = vpop.xlane.xlu0 %2560
  %v2562 = vsel %vm264, %v2488, -inf
  %2563 = vmax.xlane.f32.xlu0 %v2562
  %v2564 = vpop.xlane.xlu0 %2563
  %v2565 = vsel %vm264, %v2489, -inf
  %2566 = vmax.xlane.f32.xlu0 %v2565
  %v2567 = vpop.xlane.xlu0 %2566
  %v2568 = vsel %vm264, %v2490, -inf
  %2569 = vmax.xlane.f32.xlu0 %v2568
  %v2570 = vpop.xlane.xlu0 %2569
  %v2571 = vsel %vm264, %v2491, -inf
  %2572 = vmax.xlane.f32.xlu0 %v2571
  %v2573 = vpop.xlane.xlu0 %2572
  %v2574 = vsel %vm264, %v2492, -inf
  %2575 = vmax.xlane.f32.xlu0 %v2574
  %v2576 = vpop.xlane.xlu0 %2575
  %v2577 = vsel %vm264, %v2493, -inf
  %2578 = vmax.xlane.f32.xlu0 %v2577
  %v2579 = vpop.xlane.xlu0 %2578
  %v2580 = vsel %vm264, %v2494, -inf
  %2581 = vmax.xlane.f32.xlu0 %v2580
  %v2582 = vpop.xlane.xlu0 %2581
  %v2583 = vsel %vm264, %v2495, -inf
  %2584 = vmax.xlane.f32.xlu0 %v2583
  %v2585 = vpop.xlane.xlu0 %2584
  %v2586 = vsel %vm264, %v2496, -inf
  %2587 = vmax.xlane.f32.xlu0 %v2586
  %v2588 = vpop.xlane.xlu0 %2587
  %v2589 = vsel %vm264, %v2497, -inf
  %2590 = vmax.xlane.f32.xlu0 %v2589
  %v2591 = vpop.xlane.xlu0 %2590
  %v2592 = vsel %vm264, %v2498, -inf
  %2593 = vmax.xlane.f32.xlu0 %v2592
  %v2594 = vpop.xlane.xlu0 %2593
  %v2595 = vsub.f32 %v2467, %v2501
  %v2596 = vsub.f32 %v2468, %v2504
  %v2597 = vsub.f32 %v2469, %v2507
  %v2598 = vsub.f32 %v2470, %v2510
  %v2599 = vsub.f32 %v2471, %v2513
  %v2600 = vsub.f32 %v2472, %v2516
  %v2601 = vsub.f32 %v2473, %v2519
  %v2602 = vsub.f32 %v2474, %v2522
  %v2603 = vsub.f32 %v2475, %v2525
  %v2604 = vsub.f32 %v2476, %v2528
  %v2605 = vsub.f32 %v2477, %v2531
  %v2606 = vsub.f32 %v2478, %v2534
  %v2607 = vsub.f32 %v2479, %v2537
  %v2608 = vsub.f32 %v2480, %v2540
  %v2609 = vsub.f32 %v2481, %v2543
  %v2610 = vsub.f32 %v2482, %v2546
  %v2611 = vsub.f32 %v2483, %v2549
  %v2612 = vsub.f32 %v2484, %v2552
  %v2613 = vsub.f32 %v2485, %v2555
  %v2614 = vsub.f32 %v2486, %v2558
  %v2615 = vsub.f32 %v2487, %v2561
  %v2616 = vsub.f32 %v2488, %v2564
  %v2617 = vsub.f32 %v2489, %v2567
  %v2618 = vsub.f32 %v2490, %v2570
  %v2619 = vsub.f32 %v2491, %v2573
  %v2620 = vsub.f32 %v2492, %v2576
  %v2621 = vsub.f32 %v2493, %v2579
  %v2622 = vsub.f32 %v2494, %v2582
  %v2623 = vsub.f32 %v2495, %v2585
  %v2624 = vsub.f32 %v2496, %v2588
  %v2625 = vsub.f32 %v2497, %v2591
  %v2626 = vsub.f32 %v2498, %v2594
  %v2627 = vmul.f32 %v2595, 1.442695
  %v2628 = vpow.pop %v2627
  %v2629 = vmul.f32 %v2596, 1.442695
  %v2630 = vpow.pop %v2629
  %v2631 = vmul.f32 %v2597, 1.442695
  %v2632 = vpow.pop %v2631
  %v2633 = vmul.f32 %v2598, 1.442695
  %v2634 = vpow.pop %v2633
  %v2635 = vmul.f32 %v2599, 1.442695
  %v2636 = vpow.pop %v2635
  %v2637 = vmul.f32 %v2600, 1.442695
  %v2638 = vpow.pop %v2637
  %v2639 = vmul.f32 %v2601, 1.442695
  %v2640 = vpow.pop %v2639
  %v2641 = vmul.f32 %v2602, 1.442695
  %v2642 = vpow.pop %v2641
  %v2643 = vmul.f32 %v2603, 1.442695
  %v2644 = vpow.pop %v2643
  %v2645 = vmul.f32 %v2604, 1.442695
  %v2646 = vpow.pop %v2645
  %v2647 = vmul.f32 %v2605, 1.442695
  %v2648 = vpow.pop %v2647
  %v2649 = vmul.f32 %v2606, 1.442695
  %v2650 = vpow.pop %v2649
  %v2651 = vmul.f32 %v2607, 1.442695
  %v2652 = vpow.pop %v2651
  %v2653 = vmul.f32 %v2608, 1.442695
  %v2654 = vpow.pop %v2653
  %v2655 = vmul.f32 %v2609, 1.442695
  %v2656 = vpow.pop %v2655
  %v2657 = vmul.f32 %v2610, 1.442695
  %v2658 = vpow.pop %v2657
  %v2659 = vmul.f32 %v2611, 1.442695
  %v2660 = vpow.pop %v2659
  %v2661 = vmul.f32 %v2612, 1.442695
  %v2662 = vpow.pop %v2661
  %v2663 = vmul.f32 %v2613, 1.442695
  %v2664 = vpow.pop %v2663
  %v2665 = vmul.f32 %v2614, 1.442695
  %v2666 = vpow.pop %v2665
  %v2667 = vmul.f32 %v2615, 1.442695
  %v2668 = vpow.pop %v2667
  %v2669 = vmul.f32 %v2616, 1.442695
  %v2670 = vpow.pop %v2669
  %v2671 = vmul.f32 %v2617, 1.442695
  %v2672 = vpow.pop %v2671
  %v2673 = vmul.f32 %v2618, 1.442695
  %v2674 = vpow.pop %v2673
  %v2675 = vmul.f32 %v2619, 1.442695
  %v2676 = vpow.pop %v2675
  %v2677 = vmul.f32 %v2620, 1.442695
  %v2678 = vpow.pop %v2677
  %v2679 = vmul.f32 %v2621, 1.442695
  %v2680 = vpow.pop %v2679
  %v2681 = vmul.f32 %v2622, 1.442695
  %v2682 = vpow.pop %v2681
  %v2683 = vmul.f32 %v2623, 1.442695
  %v2684 = vpow.pop %v2683
  %v2685 = vmul.f32 %v2624, 1.442695
  %v2686 = vpow.pop %v2685
  %v2687 = vmul.f32 %v2625, 1.442695
  %v2688 = vpow.pop %v2687
  %v2689 = vmul.f32 %v2626, 1.442695
  %v2690 = vpow.pop %v2689
  %v2691 = vsel %vm264, %v2628, 0.0
  %2692 = vadd.xlane.f32.xlu0 %v2691
  %v2693 = vpop.xlane.xlu0 %2692
  %v2694 = vsel %vm264, %v2630, 0.0
  %2695 = vadd.xlane.f32.xlu0 %v2694
  %v2696 = vpop.xlane.xlu0 %2695
  %v2697 = vsel %vm264, %v2632, 0.0
  %2698 = vadd.xlane.f32.xlu0 %v2697
  %v2699 = vpop.xlane.xlu0 %2698
  %v2700 = vsel %vm264, %v2634, 0.0
  %2701 = vadd.xlane.f32.xlu0 %v2700
  %v2702 = vpop.xlane.xlu0 %2701
  %v2703 = vsel %vm264, %v2636, 0.0
  %2704 = vadd.xlane.f32.xlu0 %v2703
  %v2705 = vpop.xlane.xlu0 %2704
  %v2706 = vsel %vm264, %v2638, 0.0
  %2707 = vadd.xlane.f32.xlu0 %v2706
  %v2708 = vpop.xlane.xlu0 %2707
  %v2709 = vsel %vm264, %v2640, 0.0
  %2710 = vadd.xlane.f32.xlu0 %v2709
  %v2711 = vpop.xlane.xlu0 %2710
  %v2712 = vsel %vm264, %v2642, 0.0
  %2713 = vadd.xlane.f32.xlu0 %v2712
  %v2714 = vpop.xlane.xlu0 %2713
  %v2715 = vsel %vm264, %v2644, 0.0
  %2716 = vadd.xlane.f32.xlu0 %v2715
  %v2717 = vpop.xlane.xlu0 %2716
  %v2718 = vsel %vm264, %v2646, 0.0
  %2719 = vadd.xlane.f32.xlu0 %v2718
  %v2720 = vpop.xlane.xlu0 %2719
  %v2721 = vsel %vm264, %v2648, 0.0
  %2722 = vadd.xlane.f32.xlu0 %v2721
  %v2723 = vpop.xlane.xlu0 %2722
  %v2724 = vsel %vm264, %v2650, 0.0
  %2725 = vadd.xlane.f32.xlu0 %v2724
  %v2726 = vpop.xlane.xlu0 %2725
  %v2727 = vsel %vm264, %v2652, 0.0
  %2728 = vadd.xlane.f32.xlu0 %v2727
  %v2729 = vpop.xlane.xlu0 %2728
  %v2730 = vsel %vm264, %v2654, 0.0
  %2731 = vadd.xlane.f32.xlu0 %v2730
  %v2732 = vpop.xlane.xlu0 %2731
  %v2733 = vsel %vm264, %v2656, 0.0
  %2734 = vadd.xlane.f32.xlu0 %v2733
  %v2735 = vpop.xlane.xlu0 %2734
  %v2736 = vsel %vm264, %v2658, 0.0
  %2737 = vadd.xlane.f32.xlu0 %v2736
  %v2738 = vpop.xlane.xlu0 %2737
  %v2739 = vsel %vm264, %v2660, 0.0
  %2740 = vadd.xlane.f32.xlu0 %v2739
  %v2741 = vpop.xlane.xlu0 %2740
  %v2742 = vsel %vm264, %v2662, 0.0
  %2743 = vadd.xlane.f32.xlu0 %v2742
  %v2744 = vpop.xlane.xlu0 %2743
  %v2745 = vsel %vm264, %v2664, 0.0
  %2746 = vadd.xlane.f32.xlu0 %v2745
  %v2747 = vpop.xlane.xlu0 %2746
  %v2748 = vsel %vm264, %v2666, 0.0
  %2749 = vadd.xlane.f32.xlu0 %v2748
  %v2750 = vpop.xlane.xlu0 %2749
  %v2751 = vsel %vm264, %v2668, 0.0
  %2752 = vadd.xlane.f32.xlu0 %v2751
  %v2753 = vpop.xlane.xlu0 %2752
  %v2754 = vsel %vm264, %v2670, 0.0
  %2755 = vadd.xlane.f32.xlu0 %v2754
  %v2756 = vpop.xlane.xlu0 %2755
  %v2757 = vsel %vm264, %v2672, 0.0
  %2758 = vadd.xlane.f32.xlu0 %v2757
  %v2759 = vpop.xlane.xlu0 %2758
  %v2760 = vsel %vm264, %v2674, 0.0
  %2761 = vadd.xlane.f32.xlu0 %v2760
  %v2762 = vpop.xlane.xlu0 %2761
  %v2763 = vsel %vm264, %v2676, 0.0
  %2764 = vadd.xlane.f32.xlu0 %v2763
  %v2765 = vpop.xlane.xlu0 %2764
  %v2766 = vsel %vm264, %v2678, 0.0
  %2767 = vadd.xlane.f32.xlu0 %v2766
  %v2768 = vpop.xlane.xlu0 %2767
  %v2769 = vsel %vm264, %v2680, 0.0
  %2770 = vadd.xlane.f32.xlu0 %v2769
  %v2771 = vpop.xlane.xlu0 %2770
  %v2772 = vsel %vm264, %v2682, 0.0
  %2773 = vadd.xlane.f32.xlu0 %v2772
  %v2774 = vpop.xlane.xlu0 %2773
  %v2775 = vsel %vm264, %v2684, 0.0
  %2776 = vadd.xlane.f32.xlu0 %v2775
  %v2777 = vpop.xlane.xlu0 %2776
  %v2778 = vsel %vm264, %v2686, 0.0
  %2779 = vadd.xlane.f32.xlu0 %v2778
  %v2780 = vpop.xlane.xlu0 %2779
  %v2781 = vsel %vm264, %v2688, 0.0
  %2782 = vadd.xlane.f32.xlu0 %v2781
  %v2783 = vpop.xlane.xlu0 %2782
  %v2784 = vsel %vm264, %v2690, 0.0
  %2785 = vadd.xlane.f32.xlu0 %v2784
  %v2786 = vpop.xlane.xlu0 %2785
  %v2787 = vrcp.pop %v2693
  %v2788 = vrcp.pop %v2696
  %v2789 = vrcp.pop %v2699
  %v2790 = vrcp.pop %v2702
  %v2791 = vrcp.pop %v2705
  %v2792 = vrcp.pop %v2708
  %v2793 = vrcp.pop %v2711
  %v2794 = vrcp.pop %v2714
  %v2795 = vrcp.pop %v2717
  %v2796 = vrcp.pop %v2720
  %v2797 = vrcp.pop %v2723
  %v2798 = vrcp.pop %v2726
  %v2799 = vrcp.pop %v2729
  %v2800 = vrcp.pop %v2732
  %v2801 = vrcp.pop %v2735
  %v2802 = vrcp.pop %v2738
  %v2803 = vrcp.pop %v2741
  %v2804 = vrcp.pop %v2744
  %v2805 = vrcp.pop %v2747
  %v2806 = vrcp.pop %v2750
  %v2807 = vrcp.pop %v2753
  %v2808 = vrcp.pop %v2756
  %v2809 = vrcp.pop %v2759
  %v2810 = vrcp.pop %v2762
  %v2811 = vrcp.pop %v2765
  %v2812 = vrcp.pop %v2768
  %v2813 = vrcp.pop %v2771
  %v2814 = vrcp.pop %v2774
  %v2815 = vrcp.pop %v2777
  %v2816 = vrcp.pop %v2780
  %v2817 = vrcp.pop %v2783
  %v2818 = vrcp.pop %v2786
  %v2819 = vmul.f32 %v2628, %v2787
  %v2820 = vmul.f32 %v2630, %v2788
  %v2821 = vmul.f32 %v2632, %v2789
  %v2822 = vmul.f32 %v2634, %v2790
  %v2823 = vmul.f32 %v2636, %v2791
  %v2824 = vmul.f32 %v2638, %v2792
  %v2825 = vmul.f32 %v2640, %v2793
  %v2826 = vmul.f32 %v2642, %v2794
  %v2827 = vmul.f32 %v2644, %v2795
  %v2828 = vmul.f32 %v2646, %v2796
  %v2829 = vmul.f32 %v2648, %v2797
  %v2830 = vmul.f32 %v2650, %v2798
  %v2831 = vmul.f32 %v2652, %v2799
  %v2832 = vmul.f32 %v2654, %v2800
  %v2833 = vmul.f32 %v2656, %v2801
  %v2834 = vmul.f32 %v2658, %v2802
  %v2835 = vmul.f32 %v2660, %v2803
  %v2836 = vmul.f32 %v2662, %v2804
  %v2837 = vmul.f32 %v2664, %v2805
  %v2838 = vmul.f32 %v2666, %v2806
  %v2839 = vmul.f32 %v2668, %v2807
  %v2840 = vmul.f32 %v2670, %v2808
  %v2841 = vmul.f32 %v2672, %v2809
  %v2842 = vmul.f32 %v2674, %v2810
  %v2843 = vmul.f32 %v2676, %v2811
  %v2844 = vmul.f32 %v2678, %v2812
  %v2845 = vmul.f32 %v2680, %v2813
  %v2846 = vmul.f32 %v2682, %v2814
  %v2847 = vmul.f32 %v2684, %v2815
  %v2848 = vmul.f32 %v2686, %v2816
  %v2849 = vmul.f32 %v2688, %v2817
  %v2850 = vmul.f32 %v2690, %v2818
  %v2851 = vpack.c.bf16 %v2820, %v2819
  %v2852 = vpack.c.bf16 %v2822, %v2821
  %v2853 = vpack.c.bf16 %v2824, %v2823
  %v2854 = vpack.c.bf16 %v2826, %v2825
  %v2855 = vpack.c.bf16 %v2828, %v2827
  %v2856 = vpack.c.bf16 %v2830, %v2829
  %v2857 = vpack.c.bf16 %v2832, %v2831
  %v2858 = vpack.c.bf16 %v2834, %v2833
  %v2859 = vpack.c.bf16 %v2836, %v2835
  %v2860 = vpack.c.bf16 %v2838, %v2837
  %v2861 = vpack.c.bf16 %v2840, %v2839
  %v2862 = vpack.c.bf16 %v2842, %v2841
  %v2863 = vpack.c.bf16 %v2844, %v2843
  %v2864 = vpack.c.bf16 %v2846, %v2845
  %v2865 = vpack.c.bf16 %v2848, %v2847
  %v2866 = vpack.c.bf16 %v2850, %v2849
  %2867 = vrot.lane.b32.xlu0 %v474, 48
  %v2868 = vpop.permute.xlu0 %2867
  %2869 = vrot.lane.b32.xlu0 %v475, 48
  %v2870 = vpop.permute.xlu0 %2869
  %v2874 = vsel %vm264, %v2851, 0
  %v2877 = vsel %vm264, %v2852, 0
  %2879 = vmatprep.subr.bf16.mxu0 0
  %2880 = vmatpush1.bf16.msra.mxu0 %v2868
  %2881 = vmatprep.subr.bf16.mxu0 0
  %2882 = vmatpush1.bf16.msra.mxu0 %v2870
  %2883 = vmatprep.subr.bf16.mxu0 0
  %2884 = vmatpush1.bf16.msra.mxu0 0
  %2885 = vmatprep.subr.bf16.mxu0 0
  %2886 = vmatpush1.bf16.msra.mxu0 0
  %2887 = vmatprep.subr.bf16.mxu0 0
  %2888 = vmatpush1.bf16.msra.mxu0 0
  %2889 = vmatprep.subr.bf16.mxu0 0
  %2890 = vmatpush1.bf16.msra.mxu0 0
  %2891 = vmatprep.subr.bf16.mxu0 0
  %2892 = vmatpush1.bf16.msra.mxu0 0
  %2893 = vmatprep.subr.bf16.mxu0 0
  %2894 = vmatpush1.bf16.msra.mxu0 0
  %2895 = vmatprep.subr.bf16.mxu0 0
  %2896 = vmatpush1.bf16.msra.mxu0 0
  %2897 = vmatprep.subr.bf16.mxu0 0
  %2898 = vmatpush1.bf16.msra.mxu0 0
  %2899 = vmatprep.subr.bf16.mxu0 0
  %2900 = vmatpush1.bf16.msra.mxu0 0
  %2901 = vmatprep.subr.bf16.mxu0 0
  %2902 = vmatpush1.bf16.msra.mxu0 0
  %2903 = vmatprep.subr.bf16.mxu0 0
  %2904 = vmatpush1.bf16.msra.mxu0 0
  %2905 = vmatprep.subr.bf16.mxu0 0
  %2906 = vmatpush1.bf16.msra.mxu0 0
  %2907 = vmatprep.subr.bf16.mxu0 0
  %2908 = vmatpush1.bf16.msra.mxu0 0
  %2909 = vmatprep.subr.bf16.mxu0 0
  %2910 = vmatpush1.bf16.msra.mxu0 0
  %2911 = vmatprep.mubr.bf16.mxu0 0
  %2912 = vmatmul.mubr.bf16.gmra.mrb[0].mxu0 %v2874
  %v2913 = vpop.f32.mrb[0].mxu0
  %v2914 = vadd.f32 0.0, %v2913
  %v2915 = vpop.f32.mrb[0].mxu0
  %v2916 = vpop.f32.mrb[0].mxu0
  %v2917 = vadd.f32 0.0, %v2916
  %v2918 = vpop.f32.mrb[0].mxu0
  %2919 = vmatprep.mubr.bf16.mxu0 0
  %2920 = vmatmul.mubr.bf16.gmra.mrb[0].mxu0 %v2877
  %v2921 = vpop.f32.mrb[0].mxu0
  %v2922 = vadd.f32 0.0, %v2921
  %v2923 = vpop.f32.mrb[0].mxu0
  %v2924 = vpop.f32.mrb[0].mxu0
  %v2925 = vadd.f32 0.0, %v2924
  %v2926 = vpop.f32.mrb[0].mxu0
  %2927 = vdwg.mxu0
  %2928 = vrot.lane.b32.xlu0 %v476, 48
  %v2929 = vpop.permute.xlu0 %2928
  %2930 = vrot.lane.b32.xlu0 %v477, 48
  %v2931 = vpop.permute.xlu0 %2930
  %v2935 = vsel %vm264, %v2853, 0
  %v2938 = vsel %vm264, %v2854, 0
  %2940 = vmatprep.subr.bf16.mxu0 0
  %2941 = vmatpush1.bf16.msra.mxu0 %v2929
  %2942 = vmatprep.subr.bf16.mxu0 0
  %2943 = vmatpush1.bf16.msra.mxu0 %v2931
  %2944 = vmatprep.subr.bf16.mxu0 0
  %2945 = vmatpush1.bf16.msra.mxu0 0
  %2946 = vmatprep.subr.bf16.mxu0 0
  %2947 = vmatpush1.bf16.msra.mxu0 0
  %2948 = vmatprep.subr.bf16.mxu0 0
  %2949 = vmatpush1.bf16.msra.mxu0 0
  %2950 = vmatprep.subr.bf16.mxu0 0
  %2951 = vmatpush1.bf16.msra.mxu0 0
  %2952 = vmatprep.subr.bf16.mxu0 0
  %2953 = vmatpush1.bf16.msra.mxu0 0
  %2954 = vmatprep.subr.bf16.mxu0 0
  %2955 = vmatpush1.bf16.msra.mxu0 0
  %2956 = vmatprep.subr.bf16.mxu0 0
  %2957 = vmatpush1.bf16.msra.mxu0 0
  %2958 = vmatprep.subr.bf16.mxu0 0
  %2959 = vmatpush1.bf16.msra.mxu0 0
  %2960 = vmatprep.subr.bf16.mxu0 0
  %2961 = vmatpush1.bf16.msra.mxu0 0
  %2962 = vmatprep.subr.bf16.mxu0 0
  %2963 = vmatpush1.bf16.msra.mxu0 0
  %2964 = vmatprep.subr.bf16.mxu0 0
  %2965 = vmatpush1.bf16.msra.mxu0 0
  %2966 = vmatprep.subr.bf16.mxu0 0
  %2967 = vmatpush1.bf16.msra.mxu0 0
  %2968 = vmatprep.subr.bf16.mxu0 0
  %2969 = vmatpush1.bf16.msra.mxu0 0
  %2970 = vmatprep.subr.bf16.mxu0 0
  %2971 = vmatpush1.bf16.msra.mxu0 0
  %2972 = vmatprep.mubr.bf16.mxu0 0
  %2973 = vmatmul.mubr.bf16.gmra.mrb[0].mxu0 %v2935
  %v2974 = vpop.f32.mrb[0].mxu0
  %v2975 = vadd.f32 0.0, %v2974
  %v2976 = vpop.f32.mrb[0].mxu0
  %v2977 = vpop.f32.mrb[0].mxu0
  %v2978 = vadd.f32 0.0, %v2977
  %v2979 = vpop.f32.mrb[0].mxu0
  %2980 = vmatprep.mubr.bf16.mxu0 0
  %2981 = vmatmul.mubr.bf16.gmra.mrb[0].mxu0 %v2938
  %v2982 = vpop.f32.mrb[0].mxu0
  %v2983 = vadd.f32 0.0, %v2982
  %v2984 = vpop.f32.mrb[0].mxu0
  %v2985 = vpop.f32.mrb[0].mxu0
  %v2986 = vadd.f32 0.0, %v2985
  %v2987 = vpop.f32.mrb[0].mxu0
  %2988 = vdwg.mxu0
  %2989 = vrot.lane.b32.xlu0 %v478, 48
  %v2990 = vpop.permute.xlu0 %2989
  %2991 = vrot.lane.b32.xlu0 %v479, 48
  %v2992 = vpop.permute.xlu0 %2991
  %v2996 = vsel %vm264, %v2855, 0
  %v2999 = vsel %vm264, %v2856, 0
  %3001 = vmatprep.subr.bf16.mxu0 0
  %3002 = vmatpush1.bf16.msra.mxu0 %v2990
  %3003 = vmatprep.subr.bf16.mxu0 0
  %3004 = vmatpush1.bf16.msra.mxu0 %v2992
  %3005 = vmatprep.subr.bf16.mxu0 0
  %3006 = vmatpush1.bf16.msra.mxu0 0
  %3007 = vmatprep.subr.bf16.mxu0 0
  %3008 = vmatpush1.bf16.msra.mxu0 0
  %3009 = vmatprep.subr.bf16.mxu0 0
  %3010 = vmatpush1.bf16.msra.mxu0 0
  %3011 = vmatprep.subr.bf16.mxu0 0
  %3012 = vmatpush1.bf16.msra.mxu0 0
  %3013 = vmatprep.subr.bf16.mxu0 0
  %3014 = vmatpush1.bf16.msra.mxu0 0
  %3015 = vmatprep.subr.bf16.mxu0 0
  %3016 = vmatpush1.bf16.msra.mxu0 0
  %3017 = vmatprep.subr.bf16.mxu0 0
  %3018 = vmatpush1.bf16.msra.mxu0 0
  %3019 = vmatprep.subr.bf16.mxu0 0
  %3020 = vmatpush1.bf16.msra.mxu0 0
  %3021 = vmatprep.subr.bf16.mxu0 0
  %3022 = vmatpush1.bf16.msra.mxu0 0
  %3023 = vmatprep.subr.bf16.mxu0 0
  %3024 = vmatpush1.bf16.msra.mxu0 0
  %3025 = vmatprep.subr.bf16.mxu0 0
  %3026 = vmatpush1.bf16.msra.mxu0 0
  %3027 = vmatprep.subr.bf16.mxu0 0
  %3028 = vmatpush1.bf16.msra.mxu0 0
  %3029 = vmatprep.subr.bf16.mxu0 0
  %3030 = vmatpush1.bf16.msra.mxu0 0
  %3031 = vmatprep.subr.bf16.mxu0 0
  %3032 = vmatpush1.bf16.msra.mxu0 0
  %3033 = vmatprep.mubr.bf16.mxu0 0
  %3034 = vmatmul.mubr.bf16.gmra.mrb[0].mxu0 %v2996
  %v3035 = vpop.f32.mrb[0].mxu0
  %v3036 = vadd.f32 0.0, %v3035
  %v3037 = vpop.f32.mrb[0].mxu0
  %v3038 = vpop.f32.mrb[0].mxu0
  %v3039 = vadd.f32 0.0, %v3038
  %v3040 = vpop.f32.mrb[0].mxu0
  %3041 = vmatprep.mubr.bf16.mxu0 0
  %3042 = vmatmul.mubr.bf16.gmra.mrb[0].mxu0 %v2999
  %v3043 = vpop.f32.mrb[0].mxu0
  %v3044 = vadd.f32 0.0, %v3043
  %v3045 = vpop.f32.mrb[0].mxu0
  %v3046 = vpop.f32.mrb[0].mxu0
  %v3047 = vadd.f32 0.0, %v3046
  %v3048 = vpop.f32.mrb[0].mxu0
  %3049 = vdwg.mxu0
  %3050 = vrot.lane.b32.xlu0 %v480, 48
  %v3051 = vpop.permute.xlu0 %3050
  %3052 = vrot.lane.b32.xlu0 %v481, 48
  %v3053 = vpop.permute.xlu0 %3052
  %v3057 = vsel %vm264, %v2857, 0
  %v3060 = vsel %vm264, %v2858, 0
  %3062 = vmatprep.subr.bf16.mxu0 0
  %3063 = vmatpush1.bf16.msra.mxu0 %v3051
  %3064 = vmatprep.subr.bf16.mxu0 0
  %3065 = vmatpush1.bf16.msra.mxu0 %v3053
  %3066 = vmatprep.subr.bf16.mxu0 0
  %3067 = vmatpush1.bf16.msra.mxu0 0
  %3068 = vmatprep.subr.bf16.mxu0 0
  %3069 = vmatpush1.bf16.msra.mxu0 0
  %3070 = vmatprep.subr.bf16.mxu0 0
  %3071 = vmatpush1.bf16.msra.mxu0 0
  %3072 = vmatprep.subr.bf16.mxu0 0
  %3073 = vmatpush1.bf16.msra.mxu0 0
  %3074 = vmatprep.subr.bf16.mxu0 0
  %3075 = vmatpush1.bf16.msra.mxu0 0
  %3076 = vmatprep.subr.bf16.mxu0 0
  %3077 = vmatpush1.bf16.msra.mxu0 0
  %3078 = vmatprep.subr.bf16.mxu0 0
  %3079 = vmatpush1.bf16.msra.mxu0 0
  %3080 = vmatprep.subr.bf16.mxu0 0
  %3081 = vmatpush1.bf16.msra.mxu0 0
  %3082 = vmatprep.subr.bf16.mxu0 0
  %3083 = vmatpush1.bf16.msra.mxu0 0
  %3084 = vmatprep.subr.bf16.mxu0 0
  %3085 = vmatpush1.bf16.msra.mxu0 0
  %3086 = vmatprep.subr.bf16.mxu0 0
  %3087 = vmatpush1.bf16.msra.mxu0 0
  %3088 = vmatprep.subr.bf16.mxu0 0
  %3089 = vmatpush1.bf16.msra.mxu0 0
  %3090 = vmatprep.subr.bf16.mxu0 0
  %3091 = vmatpush1.bf16.msra.mxu0 0
  %3092 = vmatprep.subr.bf16.mxu0 0
  %3093 = vmatpush1.bf16.msra.mxu0 0
  %3094 = vmatprep.mubr.bf16.mxu0 0
  %3095 = vmatmul.mubr.bf16.gmra.mrb[0].mxu0 %v3057
  %v3096 = vpop.f32.mrb[0].mxu0
  %v3097 = vadd.f32 0.0, %v3096
  %v3098 = vpop.f32.mrb[0].mxu0
  %v3099 = vpop.f32.mrb[0].mxu0
  %v3100 = vadd.f32 0.0, %v3099
  %v3101 = vpop.f32.mrb[0].mxu0
  %3102 = vmatprep.mubr.bf16.mxu0 0
  %3103 = vmatmul.mubr.bf16.gmra.mrb[0].mxu0 %v3060
  %v3104 = vpop.f32.mrb[0].mxu0
  %v3105 = vadd.f32 0.0, %v3104
  %v3106 = vpop.f32.mrb[0].mxu0
  %v3107 = vpop.f32.mrb[0].mxu0
  %v3108 = vadd.f32 0.0, %v3107
  %v3109 = vpop.f32.mrb[0].mxu0
  %3110 = vdwg.mxu0
  %3111 = vrot.lane.b32.xlu0 %v482, 48
  %v3112 = vpop.permute.xlu0 %3111
  %3113 = vrot.lane.b32.xlu0 %v483, 48
  %v3114 = vpop.permute.xlu0 %3113
  %v3118 = vsel %vm264, %v2859, 0
  %v3121 = vsel %vm264, %v2860, 0
  %3123 = vmatprep.subr.bf16.mxu0 0
  %3124 = vmatpush1.bf16.msra.mxu0 %v3112
  %3125 = vmatprep.subr.bf16.mxu0 0
  %3126 = vmatpush1.bf16.msra.mxu0 %v3114
  %3127 = vmatprep.subr.bf16.mxu0 0
  %3128 = vmatpush1.bf16.msra.mxu0 0
  %3129 = vmatprep.subr.bf16.mxu0 0
  %3130 = vmatpush1.bf16.msra.mxu0 0
  %3131 = vmatprep.subr.bf16.mxu0 0
  %3132 = vmatpush1.bf16.msra.mxu0 0
  %3133 = vmatprep.subr.bf16.mxu0 0
  %3134 = vmatpush1.bf16.msra.mxu0 0
  %3135 = vmatprep.subr.bf16.mxu0 0
  %3136 = vmatpush1.bf16.msra.mxu0 0
  %3137 = vmatprep.subr.bf16.mxu0 0
  %3138 = vmatpush1.bf16.msra.mxu0 0
  %3139 = vmatprep.subr.bf16.mxu0 0
  %3140 = vmatpush1.bf16.msra.mxu0 0
  %3141 = vmatprep.subr.bf16.mxu0 0
  %3142 = vmatpush1.bf16.msra.mxu0 0
  %3143 = vmatprep.subr.bf16.mxu0 0
  %3144 = vmatpush1.bf16.msra.mxu0 0
  %3145 = vmatprep.subr.bf16.mxu0 0
  %3146 = vmatpush1.bf16.msra.mxu0 0
  %3147 = vmatprep.subr.bf16.mxu0 0
  %3148 = vmatpush1.bf16.msra.mxu0 0
  %3149 = vmatprep.subr.bf16.mxu0 0
  %3150 = vmatpush1.bf16.msra.mxu0 0
  %3151 = vmatprep.subr.bf16.mxu0 0
  %3152 = vmatpush1.bf16.msra.mxu0 0
  %3153 = vmatprep.subr.bf16.mxu0 0
  %3154 = vmatpush1.bf16.msra.mxu0 0
  %3155 = vmatprep.mubr.bf16.mxu0 0
  %3156 = vmatmul.mubr.bf16.gmra.mrb[0].mxu0 %v3118
  %v3157 = vpop.f32.mrb[0].mxu0
  %v3158 = vadd.f32 0.0, %v3157
  %v3159 = vpop.f32.mrb[0].mxu0
  %v3160 = vpop.f32.mrb[0].mxu0
  %v3161 = vadd.f32 0.0, %v3160
  %v3162 = vpop.f32.mrb[0].mxu0
  %3163 = vmatprep.mubr.bf16.mxu0 0
  %3164 = vmatmul.mubr.bf16.gmra.mrb[0].mxu0 %v3121
  %v3165 = vpop.f32.mrb[0].mxu0
  %v3166 = vadd.f32 0.0, %v3165
  %v3167 = vpop.f32.mrb[0].mxu0
  %v3168 = vpop.f32.mrb[0].mxu0
  %v3169 = vadd.f32 0.0, %v3168
  %v3170 = vpop.f32.mrb[0].mxu0
  %3171 = vdwg.mxu0
  %3172 = vrot.lane.b32.xlu0 %v484, 48
  %v3173 = vpop.permute.xlu0 %3172
  %3174 = vrot.lane.b32.xlu0 %v485, 48
  %v3175 = vpop.permute.xlu0 %3174
  %v3179 = vsel %vm264, %v2861, 0
  %v3182 = vsel %vm264, %v2862, 0
  %3184 = vmatprep.subr.bf16.mxu0 0
  %3185 = vmatpush1.bf16.msra.mxu0 %v3173
  %3186 = vmatprep.subr.bf16.mxu0 0
  %3187 = vmatpush1.bf16.msra.mxu0 %v3175
  %3188 = vmatprep.subr.bf16.mxu0 0
  %3189 = vmatpush1.bf16.msra.mxu0 0
  %3190 = vmatprep.subr.bf16.mxu0 0
  %3191 = vmatpush1.bf16.msra.mxu0 0
  %3192 = vmatprep.subr.bf16.mxu0 0
  %3193 = vmatpush1.bf16.msra.mxu0 0
  %3194 = vmatprep.subr.bf16.mxu0 0
  %3195 = vmatpush1.bf16.msra.mxu0 0
  %3196 = vmatprep.subr.bf16.mxu0 0
  %3197 = vmatpush1.bf16.msra.mxu0 0
  %3198 = vmatprep.subr.bf16.mxu0 0
  %3199 = vmatpush1.bf16.msra.mxu0 0
  %3200 = vmatprep.subr.bf16.mxu0 0
  %3201 = vmatpush1.bf16.msra.mxu0 0
  %3202 = vmatprep.subr.bf16.mxu0 0
  %3203 = vmatpush1.bf16.msra.mxu0 0
  %3204 = vmatprep.subr.bf16.mxu0 0
  %3205 = vmatpush1.bf16.msra.mxu0 0
  %3206 = vmatprep.subr.bf16.mxu0 0
  %3207 = vmatpush1.bf16.msra.mxu0 0
  %3208 = vmatprep.subr.bf16.mxu0 0
  %3209 = vmatpush1.bf16.msra.mxu0 0
  %3210 = vmatprep.subr.bf16.mxu0 0
  %3211 = vmatpush1.bf16.msra.mxu0 0
  %3212 = vmatprep.subr.bf16.mxu0 0
  %3213 = vmatpush1.bf16.msra.mxu0 0
  %3214 = vmatprep.subr.bf16.mxu0 0
  %3215 = vmatpush1.bf16.msra.mxu0 0
  %3216 = vmatprep.mubr.bf16.mxu0 0
  %3217 = vmatmul.mubr.bf16.gmra.mrb[0].mxu0 %v3179
  %v3218 = vpop.f32.mrb[0].mxu0
  %v3219 = vadd.f32 0.0, %v3218
  %v3220 = vpop.f32.mrb[0].mxu0
  %v3221 = vpop.f32.mrb[0].mxu0
  %v3222 = vadd.f32 0.0, %v3221
  %v3223 = vpop.f32.mrb[0].mxu0
  %3224 = vmatprep.mubr.bf16.mxu0 0
  %3225 = vmatmul.mubr.bf16.gmra.mrb[0].mxu0 %v3182
  %v3226 = vpop.f32.mrb[0].mxu0
  %v3227 = vadd.f32 0.0, %v3226
  %v3228 = vpop.f32.mrb[0].mxu0
  %v3229 = vpop.f32.mrb[0].mxu0
  %v3230 = vadd.f32 0.0, %v3229
  %v3231 = vpop.f32.mrb[0].mxu0
  %3232 = vdwg.mxu0
  %3233 = vrot.lane.b32.xlu0 %v486, 48
  %v3234 = vpop.permute.xlu0 %3233
  %3235 = vrot.lane.b32.xlu0 %v487, 48
  %v3236 = vpop.permute.xlu0 %3235
  %v3240 = vsel %vm264, %v2863, 0
  %v3243 = vsel %vm264, %v2864, 0
  %3245 = vmatprep.subr.bf16.mxu0 0
  %3246 = vmatpush1.bf16.msra.mxu0 %v3234
  %3247 = vmatprep.subr.bf16.mxu0 0
  %3248 = vmatpush1.bf16.msra.mxu0 %v3236
  %3249 = vmatprep.subr.bf16.mxu0 0
  %3250 = vmatpush1.bf16.msra.mxu0 0
  %3251 = vmatprep.subr.bf16.mxu0 0
  %3252 = vmatpush1.bf16.msra.mxu0 0
  %3253 = vmatprep.subr.bf16.mxu0 0
  %3254 = vmatpush1.bf16.msra.mxu0 0
  %3255 = vmatprep.subr.bf16.mxu0 0
  %3256 = vmatpush1.bf16.msra.mxu0 0
  %3257 = vmatprep.subr.bf16.mxu0 0
  %3258 = vmatpush1.bf16.msra.mxu0 0
  %3259 = vmatprep.subr.bf16.mxu0 0
  %3260 = vmatpush1.bf16.msra.mxu0 0
  %3261 = vmatprep.subr.bf16.mxu0 0
  %3262 = vmatpush1.bf16.msra.mxu0 0
  %3263 = vmatprep.subr.bf16.mxu0 0
  %3264 = vmatpush1.bf16.msra.mxu0 0
  %3265 = vmatprep.subr.bf16.mxu0 0
  %3266 = vmatpush1.bf16.msra.mxu0 0
  %3267 = vmatprep.subr.bf16.mxu0 0
  %3268 = vmatpush1.bf16.msra.mxu0 0
  %3269 = vmatprep.subr.bf16.mxu0 0
  %3270 = vmatpush1.bf16.msra.mxu0 0
  %3271 = vmatprep.subr.bf16.mxu0 0
  %3272 = vmatpush1.bf16.msra.mxu0 0
  %3273 = vmatprep.subr.bf16.mxu0 0
  %3274 = vmatpush1.bf16.msra.mxu0 0
  %3275 = vmatprep.subr.bf16.mxu0 0
  %3276 = vmatpush1.bf16.msra.mxu0 0
  %3277 = vmatprep.mubr.bf16.mxu0 0
  %3278 = vmatmul.mubr.bf16.gmra.mrb[0].mxu0 %v3240
  %v3279 = vpop.f32.mrb[0].mxu0
  %v3280 = vadd.f32 0.0, %v3279
  %v3281 = vpop.f32.mrb[0].mxu0
  %v3282 = vpop.f32.mrb[0].mxu0
  %v3283 = vadd.f32 0.0, %v3282
  %v3284 = vpop.f32.mrb[0].mxu0
  %3285 = vmatprep.mubr.bf16.mxu0 0
  %3286 = vmatmul.mubr.bf16.gmra.mrb[0].mxu0 %v3243
  %v3287 = vpop.f32.mrb[0].mxu0
  %v3288 = vadd.f32 0.0, %v3287
  %v3289 = vpop.f32.mrb[0].mxu0
  %v3290 = vpop.f32.mrb[0].mxu0
  %v3291 = vadd.f32 0.0, %v3290
  %v3292 = vpop.f32.mrb[0].mxu0
  %3293 = vdwg.mxu0
  %3294 = vrot.lane.b32.xlu0 %v488, 48
  %v3295 = vpop.permute.xlu0 %3294
  %3296 = vrot.lane.b32.xlu0 %v489, 48
  %v3297 = vpop.permute.xlu0 %3296
  %v3301 = vsel %vm264, %v2865, 0
  %v3304 = vsel %vm264, %v2866, 0
  %3306 = vmatprep.subr.bf16.mxu0 0
  %3307 = vmatpush1.bf16.msra.mxu0 %v3295
  %3308 = vmatprep.subr.bf16.mxu0 0
  %3309 = vmatpush1.bf16.msra.mxu0 %v3297
  %3310 = vmatprep.subr.bf16.mxu0 0
  %3311 = vmatpush1.bf16.msra.mxu0 0
  %3312 = vmatprep.subr.bf16.mxu0 0
  %3313 = vmatpush1.bf16.msra.mxu0 0
  %3314 = vmatprep.subr.bf16.mxu0 0
  %3315 = vmatpush1.bf16.msra.mxu0 0
  %3316 = vmatprep.subr.bf16.mxu0 0
  %3317 = vmatpush1.bf16.msra.mxu0 0
  %3318 = vmatprep.subr.bf16.mxu0 0
  %3319 = vmatpush1.bf16.msra.mxu0 0
  %3320 = vmatprep.subr.bf16.mxu0 0
  %3321 = vmatpush1.bf16.msra.mxu0 0
  %3322 = vmatprep.subr.bf16.mxu0 0
  %3323 = vmatpush1.bf16.msra.mxu0 0
  %3324 = vmatprep.subr.bf16.mxu0 0
  %3325 = vmatpush1.bf16.msra.mxu0 0
  %3326 = vmatprep.subr.bf16.mxu0 0
  %3327 = vmatpush1.bf16.msra.mxu0 0
  %3328 = vmatprep.subr.bf16.mxu0 0
  %3329 = vmatpush1.bf16.msra.mxu0 0
  %3330 = vmatprep.subr.bf16.mxu0 0
  %3331 = vmatpush1.bf16.msra.mxu0 0
  %3332 = vmatprep.subr.bf16.mxu0 0
  %3333 = vmatpush1.bf16.msra.mxu0 0
  %3334 = vmatprep.subr.bf16.mxu0 0
  %3335 = vmatpush1.bf16.msra.mxu0 0
  %3336 = vmatprep.subr.bf16.mxu0 0
  %3337 = vmatpush1.bf16.msra.mxu0 0
  %3338 = vmatprep.mubr.bf16.mxu0 0
  %3339 = vmatmul.mubr.bf16.gmra.mrb[0].mxu0 %v3301
  %v3340 = vpop.f32.mrb[0].mxu0
  %v3341 = vadd.f32 0.0, %v3340
  %v3342 = vpop.f32.mrb[0].mxu0
  %v3343 = vpop.f32.mrb[0].mxu0
  %v3344 = vadd.f32 0.0, %v3343
  %v3345 = vpop.f32.mrb[0].mxu0
  %3346 = vmatprep.mubr.bf16.mxu0 0
  %3347 = vmatmul.mubr.bf16.gmra.mrb[0].mxu0 %v3304
  %v3348 = vpop.f32.mrb[0].mxu0
  %v3349 = vadd.f32 0.0, %v3348
  %v3350 = vpop.f32.mrb[0].mxu0
  %v3351 = vpop.f32.mrb[0].mxu0
  %v3352 = vadd.f32 0.0, %v3351
  %v3353 = vpop.f32.mrb[0].mxu0
  %3354 = vdwg.mxu0
  %3387 = vrot.lane.b32.xlu0 %v2914, 16
  %v3388 = vpop.permute.xlu0 %3387
  %3389 = vrot.lane.b32.xlu0 %v2917, 16
  %v3390 = vpop.permute.xlu0 %3389
  %3391 = vrot.lane.b32.xlu0 %v2922, 16
  %v3392 = vpop.permute.xlu0 %3391
  %3393 = vrot.lane.b32.xlu0 %v2925, 16
  %v3394 = vpop.permute.xlu0 %3393
  %3395 = vrot.lane.b32.xlu0 %v2975, 16
  %v3396 = vpop.permute.xlu0 %3395
  %3397 = vrot.lane.b32.xlu0 %v2978, 16
  %v3398 = vpop.permute.xlu0 %3397
  %3399 = vrot.lane.b32.xlu0 %v2983, 16
  %v3400 = vpop.permute.xlu0 %3399
  %3401 = vrot.lane.b32.xlu0 %v2986, 16
  %v3402 = vpop.permute.xlu0 %3401
  %3403 = vrot.lane.b32.xlu0 %v3036, 16
  %v3404 = vpop.permute.xlu0 %3403
  %3405 = vrot.lane.b32.xlu0 %v3039, 16
  %v3406 = vpop.permute.xlu0 %3405
  %3407 = vrot.lane.b32.xlu0 %v3044, 16
  %v3408 = vpop.permute.xlu0 %3407
  %3409 = vrot.lane.b32.xlu0 %v3047, 16
  %v3410 = vpop.permute.xlu0 %3409
  %3411 = vrot.lane.b32.xlu0 %v3097, 16
  %v3412 = vpop.permute.xlu0 %3411
  %3413 = vrot.lane.b32.xlu0 %v3100, 16
  %v3414 = vpop.permute.xlu0 %3413
  %3415 = vrot.lane.b32.xlu0 %v3105, 16
  %v3416 = vpop.permute.xlu0 %3415
  %3417 = vrot.lane.b32.xlu0 %v3108, 16
  %v3418 = vpop.permute.xlu0 %3417
  %3419 = vrot.lane.b32.xlu0 %v3158, 16
  %v3420 = vpop.permute.xlu0 %3419
  %3421 = vrot.lane.b32.xlu0 %v3161, 16
  %v3422 = vpop.permute.xlu0 %3421
  %3423 = vrot.lane.b32.xlu0 %v3166, 16
  %v3424 = vpop.permute.xlu0 %3423
  %3425 = vrot.lane.b32.xlu0 %v3169, 16
  %v3426 = vpop.permute.xlu0 %3425
  %3427 = vrot.lane.b32.xlu0 %v3219, 16
  %v3428 = vpop.permute.xlu0 %3427
  %3429 = vrot.lane.b32.xlu0 %v3222, 16
  %v3430 = vpop.permute.xlu0 %3429
  %3431 = vrot.lane.b32.xlu0 %v3227, 16
  %v3432 = vpop.permute.xlu0 %3431
  %3433 = vrot.lane.b32.xlu0 %v3230, 16
  %v3434 = vpop.permute.xlu0 %3433
  %3435 = vrot.lane.b32.xlu0 %v3280, 16
  %v3436 = vpop.permute.xlu0 %3435
  %3437 = vrot.lane.b32.xlu0 %v3283, 16
  %v3438 = vpop.permute.xlu0 %3437
  %3439 = vrot.lane.b32.xlu0 %v3288, 16
  %v3440 = vpop.permute.xlu0 %3439
  %3441 = vrot.lane.b32.xlu0 %v3291, 16
  %v3442 = vpop.permute.xlu0 %3441
  %3443 = vrot.lane.b32.xlu0 %v3341, 16
  %v3444 = vpop.permute.xlu0 %3443
  %3445 = vrot.lane.b32.xlu0 %v3344, 16
  %v3446 = vpop.permute.xlu0 %3445
  %3447 = vrot.lane.b32.xlu0 %v3349, 16
  %v3448 = vpop.permute.xlu0 %3447
  %3449 = vrot.lane.b32.xlu0 %v3352, 16
  %v3450 = vpop.permute.xlu0 %3449
  %v3483 = vsel %vm496, %v1474, %v3388
  %v3484 = vsel %vm496, %v1477, %v3390
  %v3485 = vsel %vm496, %v1482, %v3392
  %v3486 = vsel %vm496, %v1485, %v3394
  %v3487 = vsel %vm496, %v1535, %v3396
  %v3488 = vsel %vm496, %v1538, %v3398
  %v3489 = vsel %vm496, %v1543, %v3400
  %v3490 = vsel %vm496, %v1546, %v3402
  %v3491 = vsel %vm496, %v1596, %v3404
  %v3492 = vsel %vm496, %v1599, %v3406
  %v3493 = vsel %vm496, %v1604, %v3408
  %v3494 = vsel %vm496, %v1607, %v3410
  %v3495 = vsel %vm496, %v1657, %v3412
  %v3496 = vsel %vm496, %v1660, %v3414
  %v3497 = vsel %vm496, %v1665, %v3416
  %v3498 = vsel %vm496, %v1668, %v3418
  %v3499 = vsel %vm496, %v1718, %v3420
  %v3500 = vsel %vm496, %v1721, %v3422
  %v3501 = vsel %vm496, %v1726, %v3424
  %v3502 = vsel %vm496, %v1729, %v3426
  %v3503 = vsel %vm496, %v1779, %v3428
  %v3504 = vsel %vm496, %v1782, %v3430
  %v3505 = vsel %vm496, %v1787, %v3432
  %v3506 = vsel %vm496, %v1790, %v3434
  %v3507 = vsel %vm496, %v1840, %v3436
  %v3508 = vsel %vm496, %v1843, %v3438
  %v3509 = vsel %vm496, %v1848, %v3440
  %v3510 = vsel %vm496, %v1851, %v3442
  %v3511 = vsel %vm496, %v1901, %v3444
  %v3512 = vsel %vm496, %v1904, %v3446
  %v3513 = vsel %vm496, %v1909, %v3448
  %v3514 = vsel %vm496, %v1912, %v3450
  %v3515 = vpack.c.bf16 %v3484, %v3483
  %v3516 = vpack.c.bf16 %v3486, %v3485
  %v3517 = vpack.c.bf16 %v3488, %v3487
  %v3518 = vpack.c.bf16 %v3490, %v3489
  %v3519 = vpack.c.bf16 %v3492, %v3491
  %v3520 = vpack.c.bf16 %v3494, %v3493
  %v3521 = vpack.c.bf16 %v3496, %v3495
  %v3522 = vpack.c.bf16 %v3498, %v3497
  %v3523 = vpack.c.bf16 %v3500, %v3499
  %v3524 = vpack.c.bf16 %v3502, %v3501
  %v3525 = vpack.c.bf16 %v3504, %v3503
  %v3526 = vpack.c.bf16 %v3506, %v3505
  %v3527 = vpack.c.bf16 %v3508, %v3507
  %v3528 = vpack.c.bf16 %v3510, %v3509
  %v3529 = vpack.c.bf16 %v3512, %v3511
  %v3530 = vpack.c.bf16 %v3514, %v3513
  %v3531 = vld [vmem:[%s3] sm:$0xf]
  %v3532 = vld [vmem:[%s3 + $0x4] sm:$0xf]
  %v3533 = vld [vmem:[%s3 + $0x8] sm:$0xf]
  %v3534 = vld [vmem:[%s3 + $0xc] sm:$0xf]
  %v3535 = vld [vmem:[%s4] sm:$0x1]
  %v3537 = vlaneseq
  %v3538 = vshrl.u32 %v3537, 7
  %v3539 = vsub.s32 0, %v3538
  %v3540 = vrot.slane %v3535, %v3539
  %v3546 = vunpack.c.l.b16 %v3531
  %v3547 = vunpack.c.l.b16 %v3532
  %v3548 = vunpack.c.l.b16 %v3533
  %v3549 = vunpack.c.l.b16 %v3534
  %v3550 = vpack.c.b16 %v3547, %v3546
  %v3551 = vpack.c.b16 %v3549, %v3548
  %v3555 = vsel %vm264, %v3515, 0
  %v3558 = vsel %vm264, %v3516, 0
  %v3561 = vsel %vm264, %v3517, 0
  %v3564 = vsel %vm264, %v3518, 0
  %v3567 = vsel %vm264, %v3519, 0
  %v3570 = vsel %vm264, %v3520, 0
  %v3573 = vsel %vm264, %v3521, 0
  %v3576 = vsel %vm264, %v3522, 0
  %v3579 = vsel %vm264, %v3523, 0
  %v3582 = vsel %vm264, %v3524, 0
  %v3585 = vsel %vm264, %v3525, 0
  %v3588 = vsel %vm264, %v3526, 0
  %v3591 = vsel %vm264, %v3527, 0
  %v3594 = vsel %vm264, %v3528, 0
  %v3597 = vsel %vm264, %v3529, 0
  %v3600 = vsel %vm264, %v3530, 0
  %3602 = vmatprep.subr.bf16.mxu0 0
  %3603 = vmatpush1.bf16.msra.mxu0 %v3550
  %3604 = vmatprep.subr.bf16.mxu0 0
  %3605 = vmatpush1.bf16.msra.mxu0 %v3551
  %3606 = vmatprep.subr.bf16.mxu0 0
  %3607 = vmatpush1.bf16.msra.mxu0 0
  %3608 = vmatprep.subr.bf16.mxu0 0
  %3609 = vmatpush1.bf16.msra.mxu0 0
  %3610 = vmatprep.subr.bf16.mxu0 0
  %3611 = vmatpush1.bf16.msra.mxu0 0
  %3612 = vmatprep.subr.bf16.mxu0 0
  %3613 = vmatpush1.bf16.msra.mxu0 0
  %3614 = vmatprep.subr.bf16.mxu0 0
  %3615 = vmatpush1.bf16.msra.mxu0 0
  %3616 = vmatprep.subr.bf16.mxu0 0
  %3617 = vmatpush1.bf16.msra.mxu0 0
  %3618 = vmatprep.subr.bf16.mxu0 0
  %3619 = vmatpush1.bf16.msra.mxu0 0
  %3620 = vmatprep.subr.bf16.mxu0 0
  %3621 = vmatpush1.bf16.msra.mxu0 0
  %3622 = vmatprep.subr.bf16.mxu0 0
  %3623 = vmatpush1.bf16.msra.mxu0 0
  %3624 = vmatprep.subr.bf16.mxu0 0
  %3625 = vmatpush1.bf16.msra.mxu0 0
  %3626 = vmatprep.subr.bf16.mxu0 0
  %3627 = vmatpush1.bf16.msra.mxu0 0
  %3628 = vmatprep.subr.bf16.mxu0 0
  %3629 = vmatpush1.bf16.msra.mxu0 0
  %3630 = vmatprep.subr.bf16.mxu0 0
  %3631 = vmatpush1.bf16.msra.mxu0 0
  %3632 = vmatprep.subr.bf16.mxu0 0
  %3633 = vmatpush1.bf16.msra.mxu0 0
  %3634 = vmatprep.mubr.bf16.mxu0 0
  %3635 = vmatmul.mubr.bf16.gmra.mrb[0].mxu0 %v3555
  %v3636 = vpop.f32.mrb[0].mxu0
  %v3637 = vadd.f32 %v3540, %v3636
  %v3638 = vpop.f32.mrb[0].mxu0
  %v3639 = vpop.f32.mrb[0].mxu0
  %v3640 = vadd.f32 %v3540, %v3639
  %v3641 = vpop.f32.mrb[0].mxu0
  %3642 = vmatprep.mubr.bf16.mxu0 0
  %3643 = vmatmul.mubr.bf16.gmra.mrb[0].mxu0 %v3558
  %v3644 = vpop.f32.mrb[0].mxu0
  %v3645 = vadd.f32 %v3540, %v3644
  %v3646 = vpop.f32.mrb[0].mxu0
  %v3647 = vpop.f32.mrb[0].mxu0
  %v3648 = vadd.f32 %v3540, %v3647
  %v3649 = vpop.f32.mrb[0].mxu0
  %3650 = vmatprep.mubr.bf16.mxu0 0
  %3651 = vmatmul.mubr.bf16.gmra.mrb[0].mxu0 %v3561
  %v3652 = vpop.f32.mrb[0].mxu0
  %v3653 = vadd.f32 %v3540, %v3652
  %v3654 = vpop.f32.mrb[0].mxu0
  %v3655 = vpop.f32.mrb[0].mxu0
  %v3656 = vadd.f32 %v3540, %v3655
  %v3657 = vpop.f32.mrb[0].mxu0
  %3658 = vmatprep.mubr.bf16.mxu0 0
  %3659 = vmatmul.mubr.bf16.gmra.mrb[0].mxu0 %v3564
  %v3660 = vpop.f32.mrb[0].mxu0
  %v3661 = vadd.f32 %v3540, %v3660
  %v3662 = vpop.f32.mrb[0].mxu0
  %v3663 = vpop.f32.mrb[0].mxu0
  %v3664 = vadd.f32 %v3540, %v3663
  %v3665 = vpop.f32.mrb[0].mxu0
  %3666 = vmatprep.mubr.bf16.mxu0 0
  %3667 = vmatmul.mubr.bf16.gmra.mrb[0].mxu0 %v3567
  %v3668 = vpop.f32.mrb[0].mxu0
  %v3669 = vadd.f32 %v3540, %v3668
  %v3670 = vpop.f32.mrb[0].mxu0
  %v3671 = vpop.f32.mrb[0].mxu0
  %v3672 = vadd.f32 %v3540, %v3671
  %v3673 = vpop.f32.mrb[0].mxu0
  %3674 = vmatprep.mubr.bf16.mxu0 0
  %3675 = vmatmul.mubr.bf16.gmra.mrb[0].mxu0 %v3570
  %v3676 = vpop.f32.mrb[0].mxu0
  %v3677 = vadd.f32 %v3540, %v3676
  %v3678 = vpop.f32.mrb[0].mxu0
  %v3679 = vpop.f32.mrb[0].mxu0
  %v3680 = vadd.f32 %v3540, %v3679
  %v3681 = vpop.f32.mrb[0].mxu0
  %3682 = vmatprep.mubr.bf16.mxu0 0
  %3683 = vmatmul.mubr.bf16.gmra.mrb[0].mxu0 %v3573
  %v3684 = vpop.f32.mrb[0].mxu0
  %v3685 = vadd.f32 %v3540, %v3684
  %v3686 = vpop.f32.mrb[0].mxu0
  %v3687 = vpop.f32.mrb[0].mxu0
  %v3688 = vadd.f32 %v3540, %v3687
  %v3689 = vpop.f32.mrb[0].mxu0
  %3690 = vmatprep.mubr.bf16.mxu0 0
  %3691 = vmatmul.mubr.bf16.gmra.mrb[0].mxu0 %v3576
  %v3692 = vpop.f32.mrb[0].mxu0
  %v3693 = vadd.f32 %v3540, %v3692
  %v3694 = vpop.f32.mrb[0].mxu0
  %v3695 = vpop.f32.mrb[0].mxu0
  %v3696 = vadd.f32 %v3540, %v3695
  %v3697 = vpop.f32.mrb[0].mxu0
  %3698 = vmatprep.mubr.bf16.mxu0 0
  %3699 = vmatmul.mubr.bf16.gmra.mrb[0].mxu0 %v3579
  %v3700 = vpop.f32.mrb[0].mxu0
  %v3701 = vadd.f32 %v3540, %v3700
  %v3702 = vpop.f32.mrb[0].mxu0
  %v3703 = vpop.f32.mrb[0].mxu0
  %v3704 = vadd.f32 %v3540, %v3703
  %v3705 = vpop.f32.mrb[0].mxu0
  %3706 = vmatprep.mubr.bf16.mxu0 0
  %3707 = vmatmul.mubr.bf16.gmra.mrb[0].mxu0 %v3582
  %v3708 = vpop.f32.mrb[0].mxu0
  %v3709 = vadd.f32 %v3540, %v3708
  %v3710 = vpop.f32.mrb[0].mxu0
  %v3711 = vpop.f32.mrb[0].mxu0
  %v3712 = vadd.f32 %v3540, %v3711
  %v3713 = vpop.f32.mrb[0].mxu0
  %3714 = vmatprep.mubr.bf16.mxu0 0
  %3715 = vmatmul.mubr.bf16.gmra.mrb[0].mxu0 %v3585
  %v3716 = vpop.f32.mrb[0].mxu0
  %v3717 = vadd.f32 %v3540, %v3716
  %v3718 = vpop.f32.mrb[0].mxu0
  %v3719 = vpop.f32.mrb[0].mxu0
  %v3720 = vadd.f32 %v3540, %v3719
  %v3721 = vpop.f32.mrb[0].mxu0
  %3722 = vmatprep.mubr.bf16.mxu0 0
  %3723 = vmatmul.mubr.bf16.gmra.mrb[0].mxu0 %v3588
  %v3724 = vpop.f32.mrb[0].mxu0
  %v3725 = vadd.f32 %v3540, %v3724
  %v3726 = vpop.f32.mrb[0].mxu0
  %v3727 = vpop.f32.mrb[0].mxu0
  %v3728 = vadd.f32 %v3540, %v3727
  %v3729 = vpop.f32.mrb[0].mxu0
  %3730 = vmatprep.mubr.bf16.mxu0 0
  %3731 = vmatmul.mubr.bf16.gmra.mrb[0].mxu0 %v3591
  %v3732 = vpop.f32.mrb[0].mxu0
  %v3733 = vadd.f32 %v3540, %v3732
  %v3734 = vpop.f32.mrb[0].mxu0
  %v3735 = vpop.f32.mrb[0].mxu0
  %v3736 = vadd.f32 %v3540, %v3735
  %v3737 = vpop.f32.mrb[0].mxu0
  %3738 = vmatprep.mubr.bf16.mxu0 0
  %3739 = vmatmul.mubr.bf16.gmra.mrb[0].mxu0 %v3594
  %v3740 = vpop.f32.mrb[0].mxu0
  %v3741 = vadd.f32 %v3540, %v3740
  %v3742 = vpop.f32.mrb[0].mxu0
  %v3743 = vpop.f32.mrb[0].mxu0
  %v3744 = vadd.f32 %v3540, %v3743
  %v3745 = vpop.f32.mrb[0].mxu0
  %3746 = vmatprep.mubr.bf16.mxu0 0
  %3747 = vmatmul.mubr.bf16.gmra.mrb[0].mxu0 %v3597
  %v3748 = vpop.f32.mrb[0].mxu0
  %v3749 = vadd.f32 %v3540, %v3748
  %v3750 = vpop.f32.mrb[0].mxu0
  %v3751 = vpop.f32.mrb[0].mxu0
  %v3752 = vadd.f32 %v3540, %v3751
  %v3753 = vpop.f32.mrb[0].mxu0
  %3754 = vmatprep.mubr.bf16.mxu0 0
  %3755 = vmatmul.mubr.bf16.gmra.mrb[0].mxu0 %v3600
  %v3756 = vpop.f32.mrb[0].mxu0
  %v3757 = vadd.f32 %v3540, %v3756
  %v3758 = vpop.f32.mrb[0].mxu0
  %v3759 = vpop.f32.mrb[0].mxu0
  %v3760 = vadd.f32 %v3540, %v3759
  %v3761 = vpop.f32.mrb[0].mxu0
  %3762 = vdwg.mxu0
  %v3763 = vadd.f32 %v33, %v3637
  %v3764 = vadd.f32 %v34, %v3640
  %v3765 = vadd.f32 %v35, %v3645
  %v3766 = vadd.f32 %v36, %v3648
  %v3767 = vadd.f32 %v37, %v3653
  %v3768 = vadd.f32 %v38, %v3656
  %v3769 = vadd.f32 %v39, %v3661
  %v3770 = vadd.f32 %v40, %v3664
  %v3771 = vadd.f32 %v41, %v3669
  %v3772 = vadd.f32 %v42, %v3672
  %v3773 = vadd.f32 %v43, %v3677
  %v3774 = vadd.f32 %v44, %v3680
  %v3775 = vadd.f32 %v45, %v3685
  %v3776 = vadd.f32 %v46, %v3688
  %v3777 = vadd.f32 %v47, %v3693
  %v3778 = vadd.f32 %v48, %v3696
  %v3779 = vadd.f32 %v49, %v3701
  %v3780 = vadd.f32 %v50, %v3704
  %v3781 = vadd.f32 %v51, %v3709
  %v3782 = vadd.f32 %v52, %v3712
  %v3783 = vadd.f32 %v53, %v3717
  %v3784 = vadd.f32 %v54, %v3720
  %v3785 = vadd.f32 %v55, %v3725
  %v3786 = vadd.f32 %v56, %v3728
  %v3787 = vadd.f32 %v57, %v3733
  %v3788 = vadd.f32 %v58, %v3736
  %v3789 = vadd.f32 %v59, %v3741
  %v3790 = vadd.f32 %v60, %v3744
  %v3791 = vadd.f32 %v61, %v3749
  %v3792 = vadd.f32 %v62, %v3752
  %v3793 = vadd.f32 %v63, %v3757
  %v3794 = vadd.f32 %v64, %v3760
  %v3795 = vadd.f32 %v3763, 0.0
  %v3796 = vadd.f32 %v3764, 0.0
  %v3797 = vadd.f32 %v3767, 0.0
  %v3798 = vadd.f32 %v3768, 0.0
  %v3799 = vadd.f32 %v3771, 0.0
  %v3800 = vadd.f32 %v3772, 0.0
  %v3801 = vadd.f32 %v3775, 0.0
  %v3802 = vadd.f32 %v3776, 0.0
  %v3803 = vadd.f32 %v3779, 0.0
  %v3804 = vadd.f32 %v3780, 0.0
  %v3805 = vadd.f32 %v3783, 0.0
  %v3806 = vadd.f32 %v3784, 0.0
  %v3807 = vadd.f32 %v3787, 0.0
  %v3808 = vadd.f32 %v3788, 0.0
  %v3809 = vadd.f32 %v3791, 0.0
  %v3810 = vadd.f32 %v3792, 0.0
  %vm3811 = vcmp.ge.f32.partialorder %v3795, 0.5
  %vm3812 = vcmp.ge.f32.partialorder %v3796, 0.5
  %vm3813 = vcmp.ge.f32.partialorder %v3797, 0.5
  %vm3814 = vcmp.ge.f32.partialorder %v3798, 0.5
  %vm3815 = vcmp.ge.f32.partialorder %v3799, 0.5
  %vm3816 = vcmp.ge.f32.partialorder %v3800, 0.5
  %vm3817 = vcmp.ge.f32.partialorder %v3801, 0.5
  %vm3818 = vcmp.ge.f32.partialorder %v3802, 0.5
  %vm3819 = vcmp.ge.f32.partialorder %v3803, 0.5
  %vm3820 = vcmp.ge.f32.partialorder %v3804, 0.5
  %vm3821 = vcmp.ge.f32.partialorder %v3805, 0.5
  %vm3822 = vcmp.ge.f32.partialorder %v3806, 0.5
  %vm3823 = vcmp.ge.f32.partialorder %v3807, 0.5
  %vm3824 = vcmp.ge.f32.partialorder %v3808, 0.5
  %vm3825 = vcmp.ge.f32.partialorder %v3809, 0.5
  %vm3826 = vcmp.ge.f32.partialorder %v3810, 0.5
  %v3827 = vsel %vm3811, 1, 0
  %v3828 = vsel %vm3812, 1, 0
  %v3829 = vsel %vm3813, 1, 0
  %v3830 = vsel %vm3814, 1, 0
  %v3831 = vsel %vm3815, 1, 0
  %v3832 = vsel %vm3816, 1, 0
  %v3833 = vsel %vm3817, 1, 0
  %v3834 = vsel %vm3818, 1, 0
  %v3835 = vsel %vm3819, 1, 0
  %v3836 = vsel %vm3820, 1, 0
  %v3837 = vsel %vm3821, 1, 0
  %v3838 = vsel %vm3822, 1, 0
  %v3839 = vsel %vm3823, 1, 0
  %v3840 = vsel %vm3824, 1, 0
  %v3841 = vsel %vm3825, 1, 0
  %v3842 = vsel %vm3826, 1, 0
  %v3843 = vcvt.s32.f32 %v3827
  %v3844 = vcvt.s32.f32 %v3828
  %v3845 = vcvt.s32.f32 %v3829
  %v3846 = vcvt.s32.f32 %v3830
  %v3847 = vcvt.s32.f32 %v3831
  %v3848 = vcvt.s32.f32 %v3832
  %v3849 = vcvt.s32.f32 %v3833
  %v3850 = vcvt.s32.f32 %v3834
  %v3851 = vcvt.s32.f32 %v3835
  %v3852 = vcvt.s32.f32 %v3836
  %v3853 = vcvt.s32.f32 %v3837
  %v3854 = vcvt.s32.f32 %v3838
  %v3855 = vcvt.s32.f32 %v3839
  %v3856 = vcvt.s32.f32 %v3840
  %v3857 = vcvt.s32.f32 %v3841
  %v3858 = vcvt.s32.f32 %v3842
  %v3859 = vsel %vm3811, 0.0, %v3795
  %v3860 = vsel %vm3812, 0.0, %v3796
  %v3861 = vsel %vm3813, 0.0, %v3797
  %v3862 = vsel %vm3814, 0.0, %v3798
  %v3863 = vsel %vm3815, 0.0, %v3799
  %v3864 = vsel %vm3816, 0.0, %v3800
  %v3865 = vsel %vm3817, 0.0, %v3801
  %v3866 = vsel %vm3818, 0.0, %v3802
  %v3867 = vsel %vm3819, 0.0, %v3803
  %v3868 = vsel %vm3820, 0.0, %v3804
  %v3869 = vsel %vm3821, 0.0, %v3805
  %v3870 = vsel %vm3822, 0.0, %v3806
  %v3871 = vsel %vm3823, 0.0, %v3807
  %v3872 = vsel %vm3824, 0.0, %v3808
  %v3873 = vsel %vm3825, 0.0, %v3809
  %v3874 = vsel %vm3826, 0.0, %v3810
  %v3875 = vmul.f32 %v3859, 0.5
  %v3876 = vmul.f32 %v3860, 0.5
  %v3877 = vmul.f32 %v3861, 0.5
  %v3878 = vmul.f32 %v3862, 0.5
  %v3879 = vmul.f32 %v3863, 0.5
  %v3880 = vmul.f32 %v3864, 0.5
  %v3881 = vmul.f32 %v3865, 0.5
  %v3882 = vmul.f32 %v3866, 0.5
  %v3883 = vmul.f32 %v3867, 0.5
  %v3884 = vmul.f32 %v3868, 0.5
  %v3885 = vmul.f32 %v3869, 0.5
  %v3886 = vmul.f32 %v3870, 0.5
  %v3887 = vmul.f32 %v3871, 0.5
  %v3888 = vmul.f32 %v3872, 0.5
  %v3889 = vmul.f32 %v3873, 0.5
  %v3890 = vmul.f32 %v3874, 0.5
  %v3891 = vadd.f32 %v3875, %v3765
  %v3892 = vadd.f32 %v3876, %v3766
  %v3893 = vadd.f32 %v3877, %v3769
  %v3894 = vadd.f32 %v3878, %v3770
  %v3895 = vadd.f32 %v3879, %v3773
  %v3896 = vadd.f32 %v3880, %v3774
  %v3897 = vadd.f32 %v3881, %v3777
  %v3898 = vadd.f32 %v3882, %v3778
  %v3899 = vadd.f32 %v3883, %v3781
  %v3900 = vadd.f32 %v3884, %v3782
  %v3901 = vadd.f32 %v3885, %v3785
  %v3902 = vadd.f32 %v3886, %v3786
  %v3903 = vadd.f32 %v3887, %v3789
  %v3904 = vadd.f32 %v3888, %v3790
  %v3905 = vadd.f32 %v3889, %v3793
  %v3906 = vadd.f32 %v3890, %v3794
  %vm3907 = vcmp.ge.f32.partialorder %v3891, 0.5
  %vm3908 = vcmp.ge.f32.partialorder %v3892, 0.5
  %vm3909 = vcmp.ge.f32.partialorder %v3893, 0.5
  %vm3910 = vcmp.ge.f32.partialorder %v3894, 0.5
  %vm3911 = vcmp.ge.f32.partialorder %v3895, 0.5
  %vm3912 = vcmp.ge.f32.partialorder %v3896, 0.5
  %vm3913 = vcmp.ge.f32.partialorder %v3897, 0.5
  %vm3914 = vcmp.ge.f32.partialorder %v3898, 0.5
  %vm3915 = vcmp.ge.f32.partialorder %v3899, 0.5
  %vm3916 = vcmp.ge.f32.partialorder %v3900, 0.5
  %vm3917 = vcmp.ge.f32.partialorder %v3901, 0.5
  %vm3918 = vcmp.ge.f32.partialorder %v3902, 0.5
  %vm3919 = vcmp.ge.f32.partialorder %v3903, 0.5
  %vm3920 = vcmp.ge.f32.partialorder %v3904, 0.5
  %vm3921 = vcmp.ge.f32.partialorder %v3905, 0.5
  %vm3922 = vcmp.ge.f32.partialorder %v3906, 0.5
  %v3923 = vsel %vm3907, 1, 0
  %v3924 = vsel %vm3908, 1, 0
  %v3925 = vsel %vm3909, 1, 0
  %v3926 = vsel %vm3910, 1, 0
  %v3927 = vsel %vm3911, 1, 0
  %v3928 = vsel %vm3912, 1, 0
  %v3929 = vsel %vm3913, 1, 0
  %v3930 = vsel %vm3914, 1, 0
  %v3931 = vsel %vm3915, 1, 0
  %v3932 = vsel %vm3916, 1, 0
  %v3933 = vsel %vm3917, 1, 0
  %v3934 = vsel %vm3918, 1, 0
  %v3935 = vsel %vm3919, 1, 0
  %v3936 = vsel %vm3920, 1, 0
  %v3937 = vsel %vm3921, 1, 0
  %v3938 = vsel %vm3922, 1, 0
  %v3939 = vcvt.s32.f32 %v3923
  %v3940 = vcvt.s32.f32 %v3924
  %v3941 = vcvt.s32.f32 %v3925
  %v3942 = vcvt.s32.f32 %v3926
  %v3943 = vcvt.s32.f32 %v3927
  %v3944 = vcvt.s32.f32 %v3928
  %v3945 = vcvt.s32.f32 %v3929
  %v3946 = vcvt.s32.f32 %v3930
  %v3947 = vcvt.s32.f32 %v3931
  %v3948 = vcvt.s32.f32 %v3932
  %v3949 = vcvt.s32.f32 %v3933
  %v3950 = vcvt.s32.f32 %v3934
  %v3951 = vcvt.s32.f32 %v3935
  %v3952 = vcvt.s32.f32 %v3936
  %v3953 = vcvt.s32.f32 %v3937
  %v3954 = vcvt.s32.f32 %v3938
  %v3955 = vpack.c.bf16 %v3844, %v3843
  %v3956 = vpack.c.bf16 %v3940, %v3939
  %v3957 = vpack.c.bf16 %v3846, %v3845
  %v3958 = vpack.c.bf16 %v3942, %v3941
  %v3959 = vpack.c.bf16 %v3848, %v3847
  %v3960 = vpack.c.bf16 %v3944, %v3943
  %v3961 = vpack.c.bf16 %v3850, %v3849
  %v3962 = vpack.c.bf16 %v3946, %v3945
  %v3963 = vpack.c.bf16 %v3852, %v3851
  %v3964 = vpack.c.bf16 %v3948, %v3947
  %v3965 = vpack.c.bf16 %v3854, %v3853
  %v3966 = vpack.c.bf16 %v3950, %v3949
  %v3967 = vpack.c.bf16 %v3856, %v3855
  %v3968 = vpack.c.bf16 %v3952, %v3951
  %v3969 = vpack.c.bf16 %v3858, %v3857
  %v3970 = vpack.c.bf16 %v3954, %v3953
  %v3971 = vld [vmem:[%s5] sm:$0xf]
  %v3972 = vld [vmem:[%s5 + $0x4] sm:$0xf]
  %v3973 = vld [vmem:[%s5 + $0x8] sm:$0xf]
  %v3974 = vld [vmem:[%s5 + $0xc] sm:$0xf]
  %v3975 = vld [vmem:[%s6] sm:$0x1]
  %v3977 = vlaneseq
  %v3978 = vshrl.u32 %v3977, 7
  %v3979 = vsub.s32 0, %v3978
  %v3980 = vrot.slane %v3975, %v3979
  %v3986 = vunpack.c.l.b16 %v3971
  %v3987 = vunpack.c.l.b16 %v3972
  %v3988 = vunpack.c.l.b16 %v3973
  %v3989 = vunpack.c.l.b16 %v3974
  %v3990 = vpack.c.b16 %v3987, %v3986
  %v3991 = vpack.c.b16 %v3989, %v3988
  %v3995 = vsel %vm264, %v3955, 0
  %v3998 = vsel %vm264, %v3956, 0
  %v4001 = vsel %vm264, %v3957, 0
  %v4004 = vsel %vm264, %v3958, 0
  %v4007 = vsel %vm264, %v3959, 0
  %v4010 = vsel %vm264, %v3960, 0
  %v4013 = vsel %vm264, %v3961, 0
  %v4016 = vsel %vm264, %v3962, 0
  %v4019 = vsel %vm264, %v3963, 0
  %v4022 = vsel %vm264, %v3964, 0
  %v4025 = vsel %vm264, %v3965, 0
  %v4028 = vsel %vm264, %v3966, 0
  %v4031 = vsel %vm264, %v3967, 0
  %v4034 = vsel %vm264, %v3968, 0
  %v4037 = vsel %vm264, %v3969, 0
  %v4040 = vsel %vm264, %v3970, 0
  %4042 = vmatprep.subr.bf16.mxu0 0
  %4043 = vmatpush1.bf16.msra.mxu0 %v3990
  %4044 = vmatprep.subr.bf16.mxu0 0
  %4045 = vmatpush1.bf16.msra.mxu0 %v3991
  %4046 = vmatprep.subr.bf16.mxu0 0
  %4047 = vmatpush1.bf16.msra.mxu0 0
  %4048 = vmatprep.subr.bf16.mxu0 0
  %4049 = vmatpush1.bf16.msra.mxu0 0
  %4050 = vmatprep.subr.bf16.mxu0 0
  %4051 = vmatpush1.bf16.msra.mxu0 0
  %4052 = vmatprep.subr.bf16.mxu0 0
  %4053 = vmatpush1.bf16.msra.mxu0 0
  %4054 = vmatprep.subr.bf16.mxu0 0
  %4055 = vmatpush1.bf16.msra.mxu0 0
  %4056 = vmatprep.subr.bf16.mxu0 0
  %4057 = vmatpush1.bf16.msra.mxu0 0
  %4058 = vmatprep.subr.bf16.mxu0 0
  %4059 = vmatpush1.bf16.msra.mxu0 0
  %4060 = vmatprep.subr.bf16.mxu0 0
  %4061 = vmatpush1.bf16.msra.mxu0 0
  %4062 = vmatprep.subr.bf16.mxu0 0
  %4063 = vmatpush1.bf16.msra.mxu0 0
  %4064 = vmatprep.subr.bf16.mxu0 0
  %4065 = vmatpush1.bf16.msra.mxu0 0
  %4066 = vmatprep.subr.bf16.mxu0 0
  %4067 = vmatpush1.bf16.msra.mxu0 0
  %4068 = vmatprep.subr.bf16.mxu0 0
  %4069 = vmatpush1.bf16.msra.mxu0 0
  %4070 = vmatprep.subr.bf16.mxu0 0
  %4071 = vmatpush1.bf16.msra.mxu0 0
  %4072 = vmatprep.subr.bf16.mxu0 0
  %4073 = vmatpush1.bf16.msra.mxu0 0
  %4074 = vmatprep.mubr.bf16.mxu0 0
  %4075 = vmatmul.mubr.bf16.gmra.mrb[0].mxu0 %v3995
  %v4076 = vpop.f32.mrb[0].mxu0
  %v4077 = vadd.f32 %v3980, %v4076
  %v4078 = vpop.f32.mrb[0].mxu0
  %v4079 = vpop.f32.mrb[0].mxu0
  %v4080 = vadd.f32 %v3980, %v4079
  %v4081 = vpop.f32.mrb[0].mxu0
  %4082 = vmatprep.mubr.bf16.mxu0 0
  %4083 = vmatmul.mubr.bf16.gmra.mrb[0].mxu0 %v3998
  %v4084 = vpop.f32.mrb[0].mxu0
  %v4085 = vadd.f32 %v3980, %v4084
  %v4086 = vpop.f32.mrb[0].mxu0
  %v4087 = vpop.f32.mrb[0].mxu0
  %v4088 = vadd.f32 %v3980, %v4087
  %v4089 = vpop.f32.mrb[0].mxu0
  %4090 = vmatprep.mubr.bf16.mxu0 0
  %4091 = vmatmul.mubr.bf16.gmra.mrb[0].mxu0 %v4001
  %v4092 = vpop.f32.mrb[0].mxu0
  %v4093 = vadd.f32 %v3980, %v4092
  %v4094 = vpop.f32.mrb[0].mxu0
  %v4095 = vpop.f32.mrb[0].mxu0
  %v4096 = vadd.f32 %v3980, %v4095
  %v4097 = vpop.f32.mrb[0].mxu0
  %4098 = vmatprep.mubr.bf16.mxu0 0
  %4099 = vmatmul.mubr.bf16.gmra.mrb[0].mxu0 %v4004
  %v4100 = vpop.f32.mrb[0].mxu0
  %v4101 = vadd.f32 %v3980, %v4100
  %v4102 = vpop.f32.mrb[0].mxu0
  %v4103 = vpop.f32.mrb[0].mxu0
  %v4104 = vadd.f32 %v3980, %v4103
  %v4105 = vpop.f32.mrb[0].mxu0
  %4106 = vmatprep.mubr.bf16.mxu0 0
  %4107 = vmatmul.mubr.bf16.gmra.mrb[0].mxu0 %v4007
  %v4108 = vpop.f32.mrb[0].mxu0
  %v4109 = vadd.f32 %v3980, %v4108
  %v4110 = vpop.f32.mrb[0].mxu0
  %v4111 = vpop.f32.mrb[0].mxu0
  %v4112 = vadd.f32 %v3980, %v4111
  %v4113 = vpop.f32.mrb[0].mxu0
  %4114 = vmatprep.mubr.bf16.mxu0 0
  %4115 = vmatmul.mubr.bf16.gmra.mrb[0].mxu0 %v4010
  %v4116 = vpop.f32.mrb[0].mxu0
  %v4117 = vadd.f32 %v3980, %v4116
  %v4118 = vpop.f32.mrb[0].mxu0
  %v4119 = vpop.f32.mrb[0].mxu0
  %v4120 = vadd.f32 %v3980, %v4119
  %v4121 = vpop.f32.mrb[0].mxu0
  %4122 = vmatprep.mubr.bf16.mxu0 0
  %4123 = vmatmul.mubr.bf16.gmra.mrb[0].mxu0 %v4013
  %v4124 = vpop.f32.mrb[0].mxu0
  %v4125 = vadd.f32 %v3980, %v4124
  %v4126 = vpop.f32.mrb[0].mxu0
  %v4127 = vpop.f32.mrb[0].mxu0
  %v4128 = vadd.f32 %v3980, %v4127
  %v4129 = vpop.f32.mrb[0].mxu0
  %4130 = vmatprep.mubr.bf16.mxu0 0
  %4131 = vmatmul.mubr.bf16.gmra.mrb[0].mxu0 %v4016
  %v4132 = vpop.f32.mrb[0].mxu0
  %v4133 = vadd.f32 %v3980, %v4132
  %v4134 = vpop.f32.mrb[0].mxu0
  %v4135 = vpop.f32.mrb[0].mxu0
  %v4136 = vadd.f32 %v3980, %v4135
  %v4137 = vpop.f32.mrb[0].mxu0
  %4138 = vmatprep.mubr.bf16.mxu0 0
  %4139 = vmatmul.mubr.bf16.gmra.mrb[0].mxu0 %v4019
  %v4140 = vpop.f32.mrb[0].mxu0
  %v4141 = vadd.f32 %v3980, %v4140
  %v4142 = vpop.f32.mrb[0].mxu0
  %v4143 = vpop.f32.mrb[0].mxu0
  %v4144 = vadd.f32 %v3980, %v4143
  %v4145 = vpop.f32.mrb[0].mxu0
  %4146 = vmatprep.mubr.bf16.mxu0 0
  %4147 = vmatmul.mubr.bf16.gmra.mrb[0].mxu0 %v4022
  %v4148 = vpop.f32.mrb[0].mxu0
  %v4149 = vadd.f32 %v3980, %v4148
  %v4150 = vpop.f32.mrb[0].mxu0
  %v4151 = vpop.f32.mrb[0].mxu0
  %v4152 = vadd.f32 %v3980, %v4151
  %v4153 = vpop.f32.mrb[0].mxu0
  %4154 = vmatprep.mubr.bf16.mxu0 0
  %4155 = vmatmul.mubr.bf16.gmra.mrb[0].mxu0 %v4025
  %v4156 = vpop.f32.mrb[0].mxu0
  %v4157 = vadd.f32 %v3980, %v4156
  %v4158 = vpop.f32.mrb[0].mxu0
  %v4159 = vpop.f32.mrb[0].mxu0
  %v4160 = vadd.f32 %v3980, %v4159
  %v4161 = vpop.f32.mrb[0].mxu0
  %4162 = vmatprep.mubr.bf16.mxu0 0
  %4163 = vmatmul.mubr.bf16.gmra.mrb[0].mxu0 %v4028
  %v4164 = vpop.f32.mrb[0].mxu0
  %v4165 = vadd.f32 %v3980, %v4164
  %v4166 = vpop.f32.mrb[0].mxu0
  %v4167 = vpop.f32.mrb[0].mxu0
  %v4168 = vadd.f32 %v3980, %v4167
  %v4169 = vpop.f32.mrb[0].mxu0
  %4170 = vmatprep.mubr.bf16.mxu0 0
  %4171 = vmatmul.mubr.bf16.gmra.mrb[0].mxu0 %v4031
  %v4172 = vpop.f32.mrb[0].mxu0
  %v4173 = vadd.f32 %v3980, %v4172
  %v4174 = vpop.f32.mrb[0].mxu0
  %v4175 = vpop.f32.mrb[0].mxu0
  %v4176 = vadd.f32 %v3980, %v4175
  %v4177 = vpop.f32.mrb[0].mxu0
  %4178 = vmatprep.mubr.bf16.mxu0 0
  %4179 = vmatmul.mubr.bf16.gmra.mrb[0].mxu0 %v4034
  %v4180 = vpop.f32.mrb[0].mxu0
  %v4181 = vadd.f32 %v3980, %v4180
  %v4182 = vpop.f32.mrb[0].mxu0
  %v4183 = vpop.f32.mrb[0].mxu0
  %v4184 = vadd.f32 %v3980, %v4183
  %v4185 = vpop.f32.mrb[0].mxu0
  %4186 = vmatprep.mubr.bf16.mxu0 0
  %4187 = vmatmul.mubr.bf16.gmra.mrb[0].mxu0 %v4037
  %v4188 = vpop.f32.mrb[0].mxu0
  %v4189 = vadd.f32 %v3980, %v4188
  %v4190 = vpop.f32.mrb[0].mxu0
  %v4191 = vpop.f32.mrb[0].mxu0
  %v4192 = vadd.f32 %v3980, %v4191
  %v4193 = vpop.f32.mrb[0].mxu0
  %4194 = vmatprep.mubr.bf16.mxu0 0
  %4195 = vmatmul.mubr.bf16.gmra.mrb[0].mxu0 %v4040
  %v4196 = vpop.f32.mrb[0].mxu0
  %v4197 = vadd.f32 %v3980, %v4196
  %v4198 = vpop.f32.mrb[0].mxu0
  %v4199 = vpop.f32.mrb[0].mxu0
  %v4200 = vadd.f32 %v3980, %v4199
  %v4201 = vpop.f32.mrb[0].mxu0
  %4202 = vdwg.mxu0
  %v4203 = vadd.f32 %v4077, 0.0
  %v4204 = vadd.f32 %v4080, 0.0
  %v4205 = vadd.f32 %v4093, 0.0
  %v4206 = vadd.f32 %v4096, 0.0
  %v4207 = vadd.f32 %v4109, 0.0
  %v4208 = vadd.f32 %v4112, 0.0
  %v4209 = vadd.f32 %v4125, 0.0
  %v4210 = vadd.f32 %v4128, 0.0
  %v4211 = vadd.f32 %v4141, 0.0
  %v4212 = vadd.f32 %v4144, 0.0
  %v4213 = vadd.f32 %v4157, 0.0
  %v4214 = vadd.f32 %v4160, 0.0
  %v4215 = vadd.f32 %v4173, 0.0
  %v4216 = vadd.f32 %v4176, 0.0
  %v4217 = vadd.f32 %v4189, 0.0
  %v4218 = vadd.f32 %v4192, 0.0
  %vm4219 = vcmp.ge.f32.partialorder %v4203, 0.5
  %vm4220 = vcmp.ge.f32.partialorder %v4204, 0.5
  %vm4221 = vcmp.ge.f32.partialorder %v4205, 0.5
  %vm4222 = vcmp.ge.f32.partialorder %v4206, 0.5
  %vm4223 = vcmp.ge.f32.partialorder %v4207, 0.5
  %vm4224 = vcmp.ge.f32.partialorder %v4208, 0.5
  %vm4225 = vcmp.ge.f32.partialorder %v4209, 0.5
  %vm4226 = vcmp.ge.f32.partialorder %v4210, 0.5
  %vm4227 = vcmp.ge.f32.partialorder %v4211, 0.5
  %vm4228 = vcmp.ge.f32.partialorder %v4212, 0.5
  %vm4229 = vcmp.ge.f32.partialorder %v4213, 0.5
  %vm4230 = vcmp.ge.f32.partialorder %v4214, 0.5
  %vm4231 = vcmp.ge.f32.partialorder %v4215, 0.5
  %vm4232 = vcmp.ge.f32.partialorder %v4216, 0.5
  %vm4233 = vcmp.ge.f32.partialorder %v4217, 0.5
  %vm4234 = vcmp.ge.f32.partialorder %v4218, 0.5
  %v4235 = vsel %vm4219, 1, 0
  %v4236 = vsel %vm4220, 1, 0
  %v4237 = vsel %vm4221, 1, 0
  %v4238 = vsel %vm4222, 1, 0
  %v4239 = vsel %vm4223, 1, 0
  %v4240 = vsel %vm4224, 1, 0
  %v4241 = vsel %vm4225, 1, 0
  %v4242 = vsel %vm4226, 1, 0
  %v4243 = vsel %vm4227, 1, 0
  %v4244 = vsel %vm4228, 1, 0
  %v4245 = vsel %vm4229, 1, 0
  %v4246 = vsel %vm4230, 1, 0
  %v4247 = vsel %vm4231, 1, 0
  %v4248 = vsel %vm4232, 1, 0
  %v4249 = vsel %vm4233, 1, 0
  %v4250 = vsel %vm4234, 1, 0
  %v4251 = vcvt.s32.f32 %v4235
  %v4252 = vcvt.s32.f32 %v4236
  %v4253 = vcvt.s32.f32 %v4237
  %v4254 = vcvt.s32.f32 %v4238
  %v4255 = vcvt.s32.f32 %v4239
  %v4256 = vcvt.s32.f32 %v4240
  %v4257 = vcvt.s32.f32 %v4241
  %v4258 = vcvt.s32.f32 %v4242
  %v4259 = vcvt.s32.f32 %v4243
  %v4260 = vcvt.s32.f32 %v4244
  %v4261 = vcvt.s32.f32 %v4245
  %v4262 = vcvt.s32.f32 %v4246
  %v4263 = vcvt.s32.f32 %v4247
  %v4264 = vcvt.s32.f32 %v4248
  %v4265 = vcvt.s32.f32 %v4249
  %v4266 = vcvt.s32.f32 %v4250
  %v4267 = vsel %vm4219, 0.0, %v4203
  %v4268 = vsel %vm4220, 0.0, %v4204
  %v4269 = vsel %vm4221, 0.0, %v4205
  %v4270 = vsel %vm4222, 0.0, %v4206
  %v4271 = vsel %vm4223, 0.0, %v4207
  %v4272 = vsel %vm4224, 0.0, %v4208
  %v4273 = vsel %vm4225, 0.0, %v4209
  %v4274 = vsel %vm4226, 0.0, %v4210
  %v4275 = vsel %vm4227, 0.0, %v4211
  %v4276 = vsel %vm4228, 0.0, %v4212
  %v4277 = vsel %vm4229, 0.0, %v4213
  %v4278 = vsel %vm4230, 0.0, %v4214
  %v4279 = vsel %vm4231, 0.0, %v4215
  %v4280 = vsel %vm4232, 0.0, %v4216
  %v4281 = vsel %vm4233, 0.0, %v4217
  %v4282 = vsel %vm4234, 0.0, %v4218
  %v4283 = vmul.f32 %v4267, 0.5
  %v4284 = vmul.f32 %v4268, 0.5
  %v4285 = vmul.f32 %v4269, 0.5
  %v4286 = vmul.f32 %v4270, 0.5
  %v4287 = vmul.f32 %v4271, 0.5
  %v4288 = vmul.f32 %v4272, 0.5
  %v4289 = vmul.f32 %v4273, 0.5
  %v4290 = vmul.f32 %v4274, 0.5
  %v4291 = vmul.f32 %v4275, 0.5
  %v4292 = vmul.f32 %v4276, 0.5
  %v4293 = vmul.f32 %v4277, 0.5
  %v4294 = vmul.f32 %v4278, 0.5
  %v4295 = vmul.f32 %v4279, 0.5
  %v4296 = vmul.f32 %v4280, 0.5
  %v4297 = vmul.f32 %v4281, 0.5
  %v4298 = vmul.f32 %v4282, 0.5
  %v4299 = vadd.f32 %v4283, %v4085
  %v4300 = vadd.f32 %v4284, %v4088
  %v4301 = vadd.f32 %v4285, %v4101
  %v4302 = vadd.f32 %v4286, %v4104
  %v4303 = vadd.f32 %v4287, %v4117
  %v4304 = vadd.f32 %v4288, %v4120
  %v4305 = vadd.f32 %v4289, %v4133
  %v4306 = vadd.f32 %v4290, %v4136
  %v4307 = vadd.f32 %v4291, %v4149
  %v4308 = vadd.f32 %v4292, %v4152
  %v4309 = vadd.f32 %v4293, %v4165
  %v4310 = vadd.f32 %v4294, %v4168
  %v4311 = vadd.f32 %v4295, %v4181
  %v4312 = vadd.f32 %v4296, %v4184
  %v4313 = vadd.f32 %v4297, %v4197
  %v4314 = vadd.f32 %v4298, %v4200
  %vm4315 = vcmp.ge.f32.partialorder %v4299, 0.5
  %vm4316 = vcmp.ge.f32.partialorder %v4300, 0.5
  %vm4317 = vcmp.ge.f32.partialorder %v4301, 0.5
  %vm4318 = vcmp.ge.f32.partialorder %v4302, 0.5
  %vm4319 = vcmp.ge.f32.partialorder %v4303, 0.5
  %vm4320 = vcmp.ge.f32.partialorder %v4304, 0.5
  %vm4321 = vcmp.ge.f32.partialorder %v4305, 0.5
  %vm4322 = vcmp.ge.f32.partialorder %v4306, 0.5
  %vm4323 = vcmp.ge.f32.partialorder %v4307, 0.5
  %vm4324 = vcmp.ge.f32.partialorder %v4308, 0.5
  %vm4325 = vcmp.ge.f32.partialorder %v4309, 0.5
  %vm4326 = vcmp.ge.f32.partialorder %v4310, 0.5
  %vm4327 = vcmp.ge.f32.partialorder %v4311, 0.5
  %vm4328 = vcmp.ge.f32.partialorder %v4312, 0.5
  %vm4329 = vcmp.ge.f32.partialorder %v4313, 0.5
  %vm4330 = vcmp.ge.f32.partialorder %v4314, 0.5
  %v4331 = vsel %vm4315, 1, 0
  %v4332 = vsel %vm4316, 1, 0
  %v4333 = vsel %vm4317, 1, 0
  %v4334 = vsel %vm4318, 1, 0
  %v4335 = vsel %vm4319, 1, 0
  %v4336 = vsel %vm4320, 1, 0
  %v4337 = vsel %vm4321, 1, 0
  %v4338 = vsel %vm4322, 1, 0
  %v4339 = vsel %vm4323, 1, 0
  %v4340 = vsel %vm4324, 1, 0
  %v4341 = vsel %vm4325, 1, 0
  %v4342 = vsel %vm4326, 1, 0
  %v4343 = vsel %vm4327, 1, 0
  %v4344 = vsel %vm4328, 1, 0
  %v4345 = vsel %vm4329, 1, 0
  %v4346 = vsel %vm4330, 1, 0
  %v4347 = vcvt.s32.f32 %v4331
  %v4348 = vcvt.s32.f32 %v4332
  %v4349 = vcvt.s32.f32 %v4333
  %v4350 = vcvt.s32.f32 %v4334
  %v4351 = vcvt.s32.f32 %v4335
  %v4352 = vcvt.s32.f32 %v4336
  %v4353 = vcvt.s32.f32 %v4337
  %v4354 = vcvt.s32.f32 %v4338
  %v4355 = vcvt.s32.f32 %v4339
  %v4356 = vcvt.s32.f32 %v4340
  %v4357 = vcvt.s32.f32 %v4341
  %v4358 = vcvt.s32.f32 %v4342
  %v4359 = vcvt.s32.f32 %v4343
  %v4360 = vcvt.s32.f32 %v4344
  %v4361 = vcvt.s32.f32 %v4345
  %v4362 = vcvt.s32.f32 %v4346
  %v4363 = vpack.c.bf16 %v4252, %v4251
  %v4364 = vpack.c.bf16 %v4348, %v4347
  %v4365 = vpack.c.bf16 %v4254, %v4253
  %v4366 = vpack.c.bf16 %v4350, %v4349
  %v4367 = vpack.c.bf16 %v4256, %v4255
  %v4368 = vpack.c.bf16 %v4352, %v4351
  %v4369 = vpack.c.bf16 %v4258, %v4257
  %v4370 = vpack.c.bf16 %v4354, %v4353
  %v4371 = vpack.c.bf16 %v4260, %v4259
  %v4372 = vpack.c.bf16 %v4356, %v4355
  %v4373 = vpack.c.bf16 %v4262, %v4261
  %v4374 = vpack.c.bf16 %v4358, %v4357
  %v4375 = vpack.c.bf16 %v4264, %v4263
  %v4376 = vpack.c.bf16 %v4360, %v4359
  %v4377 = vpack.c.bf16 %v4266, %v4265
  %v4378 = vpack.c.bf16 %v4362, %v4361
  %v4379 = vld [vmem:[%s7] sm:$0xf]
  %v4380 = vld [vmem:[%s7 + $0x4] sm:$0xf]
  %v4381 = vld [vmem:[%s7 + $0x8] sm:$0xf]
  %v4382 = vld [vmem:[%s7 + $0xc] sm:$0xf]
  %v4383 = vld [vmem:[%s7 + $0x10] sm:$0xf]
  %v4384 = vld [vmem:[%s7 + $0x14] sm:$0xf]
  %v4385 = vld [vmem:[%s7 + $0x18] sm:$0xf]
  %v4386 = vld [vmem:[%s7 + $0x1c] sm:$0xf]
  %v4387 = vld [vmem:[%s7 + $0x20] sm:$0xf]
  %v4388 = vld [vmem:[%s7 + $0x24] sm:$0xf]
  %v4389 = vld [vmem:[%s7 + $0x28] sm:$0xf]
  %v4390 = vld [vmem:[%s7 + $0x2c] sm:$0xf]
  %v4391 = vld [vmem:[%s7 + $0x30] sm:$0xf]
  %v4392 = vld [vmem:[%s7 + $0x34] sm:$0xf]
  %v4393 = vld [vmem:[%s7 + $0x38] sm:$0xf]
  %v4394 = vld [vmem:[%s7 + $0x3c] sm:$0xf]
  %v4395 = vld [vmem:[%s8] sm:$0x1]
  %v4397 = vlaneseq
  %v4398 = vshrl.u32 %v4397, 7
  %v4399 = vsub.s32 0, %v4398
  %v4400 = vrot.slane %v4395, %v4399
  %v4418 = vunpack.c.l.b16 %v4379
  %v4419 = vunpack.c.l.b16 %v4380
  %v4420 = vunpack.c.l.b16 %v4381
  %v4421 = vunpack.c.l.b16 %v4382
  %v4422 = vunpack.c.l.b16 %v4383
  %v4423 = vunpack.c.l.b16 %v4384
  %v4424 = vunpack.c.l.b16 %v4385
  %v4425 = vunpack.c.l.b16 %v4386
  %v4426 = vunpack.c.l.b16 %v4387
  %v4427 = vunpack.c.l.b16 %v4388
  %v4428 = vunpack.c.l.b16 %v4389
  %v4429 = vunpack.c.l.b16 %v4390
  %v4430 = vunpack.c.l.b16 %v4391
  %v4431 = vunpack.c.l.b16 %v4392
  %v4432 = vunpack.c.l.b16 %v4393
  %v4433 = vunpack.c.l.b16 %v4394
  %v4434 = vpack.c.b16 %v4419, %v4418
  %v4435 = vpack.c.b16 %v4421, %v4420
  %v4436 = vpack.c.b16 %v4423, %v4422
  %v4437 = vpack.c.b16 %v4425, %v4424
  %v4438 = vpack.c.b16 %v4427, %v4426
  %v4439 = vpack.c.b16 %v4429, %v4428
  %v4440 = vpack.c.b16 %v4431, %v4430
  %v4441 = vpack.c.b16 %v4433, %v4432
  %4450 = vmatprep.subr.bf16.mxu0 0
  %4451 = vmatpush1.bf16.msra.mxu0 %v4434
  %4452 = vmatprep.subr.bf16.mxu0 0
  %4453 = vmatpush1.bf16.msra.mxu0 %v4435
  %4454 = vmatprep.subr.bf16.mxu0 0
  %4455 = vmatpush1.bf16.msra.mxu0 %v4436
  %4456 = vmatprep.subr.bf16.mxu0 0
  %4457 = vmatpush1.bf16.msra.mxu0 %v4437
  %4458 = vmatprep.subr.bf16.mxu0 0
  %4459 = vmatpush1.bf16.msra.mxu0 %v4438
  %4460 = vmatprep.subr.bf16.mxu0 0
  %4461 = vmatpush1.bf16.msra.mxu0 %v4439
  %4462 = vmatprep.subr.bf16.mxu0 0
  %4463 = vmatpush1.bf16.msra.mxu0 %v4440
  %4464 = vmatprep.subr.bf16.mxu0 0
  %4465 = vmatpush1.bf16.msra.mxu0 %v4441
  %4466 = vmatprep.subr.bf16.mxu0 0
  %4467 = vmatpush1.bf16.msra.mxu0 0
  %4468 = vmatprep.subr.bf16.mxu0 0
  %4469 = vmatpush1.bf16.msra.mxu0 0
  %4470 = vmatprep.subr.bf16.mxu0 0
  %4471 = vmatpush1.bf16.msra.mxu0 0
  %4472 = vmatprep.subr.bf16.mxu0 0
  %4473 = vmatpush1.bf16.msra.mxu0 0
  %4474 = vmatprep.subr.bf16.mxu0 0
  %4475 = vmatpush1.bf16.msra.mxu0 0
  %4476 = vmatprep.subr.bf16.mxu0 0
  %4477 = vmatpush1.bf16.msra.mxu0 0
  %4478 = vmatprep.subr.bf16.mxu0 0
  %4479 = vmatpush1.bf16.msra.mxu0 0
  %4480 = vmatprep.subr.bf16.mxu0 0
  %4481 = vmatpush1.bf16.msra.mxu0 0
  %4482 = vmatprep.mubr.bf16.mxu0 0
  %4483 = vmatmul.mubr.bf16.gmra.mrb[0].mxu0 %v4363
  %v4484 = vpop.f32.mrb[0].mxu0
  %v4485 = vadd.f32 %v4400, %v4484
  %v4486 = vpop.f32.mrb[0].mxu0
  %v4487 = vpop.f32.mrb[0].mxu0
  %v4488 = vadd.f32 %v4400, %v4487
  %v4489 = vpop.f32.mrb[0].mxu0
  %4490 = vmatprep.mubr.bf16.mxu0 0
  %4491 = vmatmul.mubr.bf16.gmra.mrb[0].mxu0 %v4364
  %v4492 = vpop.f32.mrb[0].mxu0
  %v4493 = vadd.f32 %v4400, %v4492
  %v4494 = vpop.f32.mrb[0].mxu0
  %v4495 = vpop.f32.mrb[0].mxu0
  %v4496 = vadd.f32 %v4400, %v4495
  %v4497 = vpop.f32.mrb[0].mxu0
  %4498 = vmatprep.mubr.bf16.mxu0 0
  %4499 = vmatmul.mubr.bf16.gmra.mrb[0].mxu0 %v4365
  %v4500 = vpop.f32.mrb[0].mxu0
  %v4501 = vadd.f32 %v4400, %v4500
  %v4502 = vpop.f32.mrb[0].mxu0
  %v4503 = vpop.f32.mrb[0].mxu0
  %v4504 = vadd.f32 %v4400, %v4503
  %v4505 = vpop.f32.mrb[0].mxu0
  %4506 = vmatprep.mubr.bf16.mxu0 0
  %4507 = vmatmul.mubr.bf16.gmra.mrb[0].mxu0 %v4366
  %v4508 = vpop.f32.mrb[0].mxu0
  %v4509 = vadd.f32 %v4400, %v4508
  %v4510 = vpop.f32.mrb[0].mxu0
  %v4511 = vpop.f32.mrb[0].mxu0
  %v4512 = vadd.f32 %v4400, %v4511
  %v4513 = vpop.f32.mrb[0].mxu0
  %4514 = vmatprep.mubr.bf16.mxu0 0
  %4515 = vmatmul.mubr.bf16.gmra.mrb[0].mxu0 %v4367
  %v4516 = vpop.f32.mrb[0].mxu0
  %v4517 = vadd.f32 %v4400, %v4516
  %v4518 = vpop.f32.mrb[0].mxu0
  %v4519 = vpop.f32.mrb[0].mxu0
  %v4520 = vadd.f32 %v4400, %v4519
  %v4521 = vpop.f32.mrb[0].mxu0
  %4522 = vmatprep.mubr.bf16.mxu0 0
  %4523 = vmatmul.mubr.bf16.gmra.mrb[0].mxu0 %v4368
  %v4524 = vpop.f32.mrb[0].mxu0
  %v4525 = vadd.f32 %v4400, %v4524
  %v4526 = vpop.f32.mrb[0].mxu0
  %v4527 = vpop.f32.mrb[0].mxu0
  %v4528 = vadd.f32 %v4400, %v4527
  %v4529 = vpop.f32.mrb[0].mxu0
  %4530 = vmatprep.mubr.bf16.mxu0 0
  %4531 = vmatmul.mubr.bf16.gmra.mrb[0].mxu0 %v4369
  %v4532 = vpop.f32.mrb[0].mxu0
  %v4533 = vadd.f32 %v4400, %v4532
  %v4534 = vpop.f32.mrb[0].mxu0
  %v4535 = vpop.f32.mrb[0].mxu0
  %v4536 = vadd.f32 %v4400, %v4535
  %v4537 = vpop.f32.mrb[0].mxu0
  %4538 = vmatprep.mubr.bf16.mxu0 0
  %4539 = vmatmul.mubr.bf16.gmra.mrb[0].mxu0 %v4370
  %v4540 = vpop.f32.mrb[0].mxu0
  %v4541 = vadd.f32 %v4400, %v4540
  %v4542 = vpop.f32.mrb[0].mxu0
  %v4543 = vpop.f32.mrb[0].mxu0
  %v4544 = vadd.f32 %v4400, %v4543
  %v4545 = vpop.f32.mrb[0].mxu0
  %4546 = vmatprep.mubr.bf16.mxu0 0
  %4547 = vmatmul.mubr.bf16.gmra.mrb[0].mxu0 %v4371
  %v4548 = vpop.f32.mrb[0].mxu0
  %v4549 = vadd.f32 %v4400, %v4548
  %v4550 = vpop.f32.mrb[0].mxu0
  %v4551 = vpop.f32.mrb[0].mxu0
  %v4552 = vadd.f32 %v4400, %v4551
  %v4553 = vpop.f32.mrb[0].mxu0
  %4554 = vmatprep.mubr.bf16.mxu0 0
  %4555 = vmatmul.mubr.bf16.gmra.mrb[0].mxu0 %v4372
  %v4556 = vpop.f32.mrb[0].mxu0
  %v4557 = vadd.f32 %v4400, %v4556
  %v4558 = vpop.f32.mrb[0].mxu0
  %v4559 = vpop.f32.mrb[0].mxu0
  %v4560 = vadd.f32 %v4400, %v4559
  %v4561 = vpop.f32.mrb[0].mxu0
  %4562 = vmatprep.mubr.bf16.mxu0 0
  %4563 = vmatmul.mubr.bf16.gmra.mrb[0].mxu0 %v4373
  %v4564 = vpop.f32.mrb[0].mxu0
  %v4565 = vadd.f32 %v4400, %v4564
  %v4566 = vpop.f32.mrb[0].mxu0
  %v4567 = vpop.f32.mrb[0].mxu0
  %v4568 = vadd.f32 %v4400, %v4567
  %v4569 = vpop.f32.mrb[0].mxu0
  %4570 = vmatprep.mubr.bf16.mxu0 0
  %4571 = vmatmul.mubr.bf16.gmra.mrb[0].mxu0 %v4374
  %v4572 = vpop.f32.mrb[0].mxu0
  %v4573 = vadd.f32 %v4400, %v4572
  %v4574 = vpop.f32.mrb[0].mxu0
  %v4575 = vpop.f32.mrb[0].mxu0
  %v4576 = vadd.f32 %v4400, %v4575
  %v4577 = vpop.f32.mrb[0].mxu0
  %4578 = vmatprep.mubr.bf16.mxu0 0
  %4579 = vmatmul.mubr.bf16.gmra.mrb[0].mxu0 %v4375
  %v4580 = vpop.f32.mrb[0].mxu0
  %v4581 = vadd.f32 %v4400, %v4580
  %v4582 = vpop.f32.mrb[0].mxu0
  %v4583 = vpop.f32.mrb[0].mxu0
  %v4584 = vadd.f32 %v4400, %v4583
  %v4585 = vpop.f32.mrb[0].mxu0
  %4586 = vmatprep.mubr.bf16.mxu0 0
  %4587 = vmatmul.mubr.bf16.gmra.mrb[0].mxu0 %v4376
  %v4588 = vpop.f32.mrb[0].mxu0
  %v4589 = vadd.f32 %v4400, %v4588
  %v4590 = vpop.f32.mrb[0].mxu0
  %v4591 = vpop.f32.mrb[0].mxu0
  %v4592 = vadd.f32 %v4400, %v4591
  %v4593 = vpop.f32.mrb[0].mxu0
  %4594 = vmatprep.mubr.bf16.mxu0 0
  %4595 = vmatmul.mubr.bf16.gmra.mrb[0].mxu0 %v4377
  %v4596 = vpop.f32.mrb[0].mxu0
  %v4597 = vadd.f32 %v4400, %v4596
  %v4598 = vpop.f32.mrb[0].mxu0
  %v4599 = vpop.f32.mrb[0].mxu0
  %v4600 = vadd.f32 %v4400, %v4599
  %v4601 = vpop.f32.mrb[0].mxu0
  %4602 = vmatprep.mubr.bf16.mxu0 0
  %4603 = vmatmul.mubr.bf16.gmra.mrb[0].mxu0 %v4378
  %v4604 = vpop.f32.mrb[0].mxu0
  %v4605 = vadd.f32 %v4400, %v4604
  %v4606 = vpop.f32.mrb[0].mxu0
  %v4607 = vpop.f32.mrb[0].mxu0
  %v4608 = vadd.f32 %v4400, %v4607
  %v4609 = vpop.f32.mrb[0].mxu0
  %4610 = vdwg.mxu0
  %v4611 = vadd.f32 %v3763, %v4485
  %v4612 = vadd.f32 %v3764, %v4488
  %v4613 = vadd.f32 %v3765, %v4493
  %v4614 = vadd.f32 %v3766, %v4496
  %v4615 = vadd.f32 %v3767, %v4501
  %v4616 = vadd.f32 %v3768, %v4504
  %v4617 = vadd.f32 %v3769, %v4509
  %v4618 = vadd.f32 %v3770, %v4512
  %v4619 = vadd.f32 %v3771, %v4517
  %v4620 = vadd.f32 %v3772, %v4520
  %v4621 = vadd.f32 %v3773, %v4525
  %v4622 = vadd.f32 %v3774, %v4528
  %v4623 = vadd.f32 %v3775, %v4533
  %v4624 = vadd.f32 %v3776, %v4536
  %v4625 = vadd.f32 %v3777, %v4541
  %v4626 = vadd.f32 %v3778, %v4544
  %v4627 = vadd.f32 %v3779, %v4549
  %v4628 = vadd.f32 %v3780, %v4552
  %v4629 = vadd.f32 %v3781, %v4557
  %v4630 = vadd.f32 %v3782, %v4560
  %v4631 = vadd.f32 %v3783, %v4565
  %v4632 = vadd.f32 %v3784, %v4568
  %v4633 = vadd.f32 %v3785, %v4573
  %v4634 = vadd.f32 %v3786, %v4576
  %v4635 = vadd.f32 %v3787, %v4581
  %v4636 = vadd.f32 %v3788, %v4584
  %v4637 = vadd.f32 %v3789, %v4589
  %v4638 = vadd.f32 %v3790, %v4592
  %v4639 = vadd.f32 %v3791, %v4597
  %v4640 = vadd.f32 %v3792, %v4600
  %v4641 = vadd.f32 %v3793, %v4605
  %v4642 = vadd.f32 %v3794, %v4608
  %4643 = vst.msk [vmem:[%s9] sm:$0xff] %vm264, %v4611
  %4644 = vst.msk [vmem:[%s9 + $0x8] sm:$0xff] %vm264, %v4612
  %4645 = vst.msk [vmem:[%s9 + $0x10] sm:$0xff] %vm264, %v4613
  %4646 = vst.msk [vmem:[%s9 + $0x18] sm:$0xff] %vm264, %v4614
  %4647 = vst.msk [vmem:[%s9 + $0x20] sm:$0xff] %vm264, %v4615
  %4648 = vst.msk [vmem:[%s9 + $0x28] sm:$0xff] %vm264, %v4616
  %4649 = vst.msk [vmem:[%s9 + $0x30] sm:$0xff] %vm264, %v4617
  %4650 = vst.msk [vmem:[%s9 + $0x38] sm:$0xff] %vm264, %v4618
  %4651 = vst.msk [vmem:[%s9 + $0x40] sm:$0xff] %vm264, %v4619
  %4652 = vst.msk [vmem:[%s9 + $0x48] sm:$0xff] %vm264, %v4620
  %4653 = vst.msk [vmem:[%s9 + $0x50] sm:$0xff] %vm264, %v4621
  %4654 = vst.msk [vmem:[%s9 + $0x58] sm:$0xff] %vm264, %v4622
  %4655 = vst.msk [vmem:[%s9 + $0x60] sm:$0xff] %vm264, %v4623
  %4656 = vst.msk [vmem:[%s9 + $0x68] sm:$0xff] %vm264, %v4624
  %4657 = vst.msk [vmem:[%s9 + $0x70] sm:$0xff] %vm264, %v4625
  %4658 = vst.msk [vmem:[%s9 + $0x78] sm:$0xff] %vm264, %v4626
  %4659 = vst.msk [vmem:[%s9 + $0x80] sm:$0xff] %vm264, %v4627
  %4660 = vst.msk [vmem:[%s9 + $0x88] sm:$0xff] %vm264, %v4628
  %4661 = vst.msk [vmem:[%s9 + $0x90] sm:$0xff] %vm264, %v4629
  %4662 = vst.msk [vmem:[%s9 + $0x98] sm:$0xff] %vm264, %v4630
  %4663 = vst.msk [vmem:[%s9 + $0xa0] sm:$0xff] %vm264, %v4631
  %4664 = vst.msk [vmem:[%s9 + $0xa8] sm:$0xff] %vm264, %v4632
  %4665 = vst.msk [vmem:[%s9 + $0xb0] sm:$0xff] %vm264, %v4633
  %4666 = vst.msk [vmem:[%s9 + $0xb8] sm:$0xff] %vm264, %v4634
  %4667 = vst.msk [vmem:[%s9 + $0xc0] sm:$0xff] %vm264, %v4635
  %4668 = vst.msk [vmem:[%s9 + $0xc8] sm:$0xff] %vm264, %v4636
  %4669 = vst.msk [vmem:[%s9 + $0xd0] sm:$0xff] %vm264, %v4637
  %4670 = vst.msk [vmem:[%s9 + $0xd8] sm:$0xff] %vm264, %v4638
  %4671 = vst.msk [vmem:[%s9 + $0xe0] sm:$0xff] %vm264, %v4639
  %4672 = vst.msk [vmem:[%s9 + $0xe8] sm:$0xff] %vm264, %v4640
  %4673 = vst.msk [vmem:[%s9 + $0xf0] sm:$0xff] %vm264, %v4641
  %4674 = vst.msk [vmem:[%s9 + $0xf8] sm:$0xff] %vm264, %v4642
  // Predicated region
  $region38: #{spiking_former_encoder_forward.3} parent=0 // pred_check
    _
  $region39: #{spiking_former_encoder_forward.3} parent=0 // pred_check_branch
    %4676 = sbr.rel (0) target = $region41
  $region40: #{spiking_former_encoder_forward.3} parent=0 // pred_region
    _
  $region41: #{spiking_former_encoder_forward.3} parent=0 // pred_fallthru
    _
  // Predicated region
  $region42: #{spiking_former_encoder_forward.3} parent=0 // pred_check
    _
  $region43: #{spiking_former_encoder_forward.3} parent=0 // pred_check_branch
    %4678 = sbr.rel (0) target = $region45
  $region44: #{spiking_former_encoder_forward.3} parent=0 // pred_region
    _
  $region45: #{spiking_former_encoder_forward.3} parent=0 // pred_fallthru
    _

// kernel: spiking_former_encoder_forward.5
$region0: #{spiking_former_encoder_forward.5}
  #allocation0 [shape = 'u32[]', space=smem, size = 0x4, offset = 0x4, fixed_abs, tag = 'smem constant byte address 0x4 - core index']
  #allocation1 [shape = 'u32[144,128]{1,0:T(1,128)}', space=vmem, size = 0x12000, scoped, tag = 'internal scratch']
  %s0 = inlined_call_operand.vmem [shape: f32[2,32,64], index: 0, kind: input, shape index: {}]
  %s1 = inlined_call_operand.vmem [shape: bf16[64,192], index: 1, kind: input, shape index: {}]
  %s2 = inlined_call_operand.vmem [shape: f32[1,192], index: 2, kind: input, shape index: {}]
  %s3 = inlined_call_operand.vmem [shape: bf16[64,64], index: 3, kind: input, shape index: {}]
  %s4 = inlined_call_operand.vmem [shape: f32[1,64], index: 4, kind: input, shape index: {}]
  %s5 = inlined_call_operand.vmem [shape: bf16[64,256], index: 5, kind: input, shape index: {}]
  %s6 = inlined_call_operand.vmem [shape: f32[1,256], index: 6, kind: input, shape index: {}]
  %s7 = inlined_call_operand.vmem [shape: bf16[256,64], index: 7, kind: input, shape index: {}]
  %s8 = inlined_call_operand.vmem [shape: f32[1,64], index: 8, kind: input, shape index: {}]
  %s9 = inlined_call_operand.vmem [shape: f32[2,32,64], index: 9, kind: output, shape index: {}]
  %s10 = sld [smem:[#allocation0]]
  $region46: #{spiking_former_encoder_forward.5} parent=0
    _
  %s12 = ssub.s32 1, %s10
  %s13 = scalar_select 0, %s12, %s10
  // Predicated region
  $region2: #{spiking_former_encoder_forward.5} parent=0 // pred_check
    _
  $region3: #{spiking_former_encoder_forward.5} parent=0 // pred_check_branch
    %15 = sbr.rel (0) target = $region5
  $region4: #{spiking_former_encoder_forward.5} parent=0 // pred_region
    _
  $region5: #{spiking_former_encoder_forward.5} parent=0 // pred_fallthru
    _
  // Predicated region
  $region6: #{spiking_former_encoder_forward.5} parent=0 // pred_check
    _
  $region7: #{spiking_former_encoder_forward.5} parent=0 // pred_check_branch
    %17 = sbr.rel (0) target = $region9
  $region8: #{spiking_former_encoder_forward.5} parent=0 // pred_region
    _
  $region9: #{spiking_former_encoder_forward.5} parent=0 // pred_fallthru
    _
  // Predicated region
  $region10: #{spiking_former_encoder_forward.5} parent=0 // pred_check
    _
  $region11: #{spiking_former_encoder_forward.5} parent=0 // pred_check_branch
    %19 = sbr.rel (0) target = $region13
  $region12: #{spiking_former_encoder_forward.5} parent=0 // pred_region
    _
  $region13: #{spiking_former_encoder_forward.5} parent=0 // pred_fallthru
    _
  // Predicated region
  $region14: #{spiking_former_encoder_forward.5} parent=0 // pred_check
    _
  $region15: #{spiking_former_encoder_forward.5} parent=0 // pred_check_branch
    %21 = sbr.rel (0) target = $region17
  $region16: #{spiking_former_encoder_forward.5} parent=0 // pred_region
    _
  $region17: #{spiking_former_encoder_forward.5} parent=0 // pred_fallthru
    _
  // Predicated region
  $region18: #{spiking_former_encoder_forward.5} parent=0 // pred_check
    _
  $region19: #{spiking_former_encoder_forward.5} parent=0 // pred_check_branch
    %23 = sbr.rel (0) target = $region21
  $region20: #{spiking_former_encoder_forward.5} parent=0 // pred_region
    _
  $region21: #{spiking_former_encoder_forward.5} parent=0 // pred_fallthru
    _
  // Predicated region
  $region22: #{spiking_former_encoder_forward.5} parent=0 // pred_check
    _
  $region23: #{spiking_former_encoder_forward.5} parent=0 // pred_check_branch
    %25 = sbr.rel (0) target = $region25
  $region24: #{spiking_former_encoder_forward.5} parent=0 // pred_region
    _
  $region25: #{spiking_former_encoder_forward.5} parent=0 // pred_fallthru
    _
  // Predicated region
  $region26: #{spiking_former_encoder_forward.5} parent=0 // pred_check
    _
  $region27: #{spiking_former_encoder_forward.5} parent=0 // pred_check_branch
    %27 = sbr.rel (0) target = $region29
  $region28: #{spiking_former_encoder_forward.5} parent=0 // pred_region
    _
  $region29: #{spiking_former_encoder_forward.5} parent=0 // pred_fallthru
    _
  // Predicated region
  $region30: #{spiking_former_encoder_forward.5} parent=0 // pred_check
    _
  $region31: #{spiking_former_encoder_forward.5} parent=0 // pred_check_branch
    %29 = sbr.rel (0) target = $region33
  $region32: #{spiking_former_encoder_forward.5} parent=0 // pred_region
    _
  $region33: #{spiking_former_encoder_forward.5} parent=0 // pred_fallthru
    _
  // Predicated region
  $region34: #{spiking_former_encoder_forward.5} parent=0 // pred_check
    _
  $region35: #{spiking_former_encoder_forward.5} parent=0 // pred_check_branch
    %31 = sbr.rel (0) target = $region37
  $region36: #{spiking_former_encoder_forward.5} parent=0 // pred_region
    _
  $region37: #{spiking_former_encoder_forward.5} parent=0 // pred_fallthru
    _
  %v33 = vld [vmem:[%s0] sm:$0xff]
  %v34 = vld [vmem:[%s0 + $0x8] sm:$0xff]
  %v35 = vld [vmem:[%s0 + $0x10] sm:$0xff]
  %v36 = vld [vmem:[%s0 + $0x18] sm:$0xff]
  %v37 = vld [vmem:[%s0 + $0x20] sm:$0xff]
  %v38 = vld [vmem:[%s0 + $0x28] sm:$0xff]
  %v39 = vld [vmem:[%s0 + $0x30] sm:$0xff]
  %v40 = vld [vmem:[%s0 + $0x38] sm:$0xff]
  %v41 = vadd.f32 %v33, 0.0
  %v42 = vadd.f32 %v34, 0.0
  %v43 = vadd.f32 %v37, 0.0
  %v44 = vadd.f32 %v38, 0.0
  %vm45 = vcmp.ge.f32.partialorder %v41, 0.5
  %vm46 = vcmp.ge.f32.partialorder %v42, 0.5
  %vm47 = vcmp.ge.f32.partialorder %v43, 0.5
  %vm48 = vcmp.ge.f32.partialorder %v44, 0.5
  %v49 = vsel %vm45, 1, 0
  %v50 = vsel %vm46, 1, 0
  %v51 = vsel %vm47, 1, 0
  %v52 = vsel %vm48, 1, 0
  %v53 = vcvt.s32.f32 %v49
  %v54 = vcvt.s32.f32 %v50
  %v55 = vcvt.s32.f32 %v51
  %v56 = vcvt.s32.f32 %v52
  %v57 = vsel %vm45, 0.0, %v41
  %v58 = vsel %vm46, 0.0, %v42
  %v59 = vsel %vm47, 0.0, %v43
  %v60 = vsel %vm48, 0.0, %v44
  %v61 = vmul.f32 %v57, 0.5
  %v62 = vmul.f32 %v58, 0.5
  %v63 = vmul.f32 %v59, 0.5
  %v64 = vmul.f32 %v60, 0.5
  %v65 = vadd.f32 %v61, %v35
  %v66 = vadd.f32 %v62, %v36
  %v67 = vadd.f32 %v63, %v39
  %v68 = vadd.f32 %v64, %v40
  %vm69 = vcmp.ge.f32.partialorder %v65, 0.5
  %vm70 = vcmp.ge.f32.partialorder %v66, 0.5
  %vm71 = vcmp.ge.f32.partialorder %v67, 0.5
  %vm72 = vcmp.ge.f32.partialorder %v68, 0.5
  %v73 = vsel %vm69, 1, 0
  %v74 = vsel %vm70, 1, 0
  %v75 = vsel %vm71, 1, 0
  %v76 = vsel %vm72, 1, 0
  %v77 = vcvt.s32.f32 %v73
  %v78 = vcvt.s32.f32 %v74
  %v79 = vcvt.s32.f32 %v75
  %v80 = vcvt.s32.f32 %v76
  %v81 = vpack.c.bf16 %v54, %v53
  %v82 = vpack.c.bf16 %v78, %v77
  %v83 = vpack.c.bf16 %v56, %v55
  %v84 = vpack.c.bf16 %v80, %v79
  %v85 = vld [vmem:[%s1] sm:$0xff]
  %v86 = vld [vmem:[%s1 + $0x8] sm:$0xff]
  %v87 = vld [vmem:[%s1 + $0x10] sm:$0xff]
  %v88 = vld [vmem:[%s1 + $0x18] sm:$0xff]
  %v89 = vld [vmem:[%s1 + $0x20] sm:$0xff]
  %v90 = vld [vmem:[%s1 + $0x28] sm:$0xff]
  %v91 = vld [vmem:[%s1 + $0x30] sm:$0xff]
  %v92 = vld [vmem:[%s1 + $0x38] sm:$0xff]
  %v93 = vld [vmem:[%s2] sm:$0x3]
  %v95 = vlaneseq
  %v96 = vshrl.u32 %v95, 7
  %v97 = vsub.s32 0, %v96
  %v98 = vrot.slane %v93, %v97
  %v99 = vlaneseq
  %v100 = vshrl.u32 %v99, 7
  %v101 = vsub.s32 1, %v100
  %v102 = vrot.slane %v93, %v101
  %v113 = vunpack.c.l.b16 %v85
  %v114 = vunpack.c.h.b16 %v85
  %v115 = vunpack.c.l.b16 %v86
  %v116 = vunpack.c.h.b16 %v86
  %v117 = vunpack.c.l.b16 %v87
  %v118 = vunpack.c.h.b16 %v87
  %v119 = vunpack.c.l.b16 %v88
  %v120 = vunpack.c.h.b16 %v88
  %v121 = vunpack.c.l.b16 %v89
  %v122 = vunpack.c.h.b16 %v89
  %v123 = vunpack.c.l.b16 %v90
  %v124 = vunpack.c.h.b16 %v90
  %v125 = vunpack.c.l.b16 %v91
  %v126 = vunpack.c.h.b16 %v91
  %v127 = vunpack.c.l.b16 %v92
  %v128 = vunpack.c.h.b16 %v92
  %v129 = vpack.c.b16 %v115, %v113
  %v130 = vpack.c.b16 %v116, %v114
  %v131 = vpack.c.b16 %v119, %v117
  %v132 = vpack.c.b16 %v120, %v118
  %v133 = vpack.c.b16 %v123, %v121
  %v134 = vpack.c.b16 %v124, %v122
  %v135 = vpack.c.b16 %v127, %v125
  %v136 = vpack.c.b16 %v128, %v126
  %vm145 = vcmask 523264
  %v147 = vsel %vm145, %v81, 0
  %v150 = vsel %vm145, %v82, 0
  %v153 = vsel %vm145, %v83, 0
  %v156 = vsel %vm145, %v84, 0
  %158 = vmatprep.subr.bf16.mxu0 %v130
  %159 = vmatpush1.bf16.msra.mxu0 %v129
  %160 = vmatprep.subr.bf16.mxu0 %v132
  %161 = vmatpush1.bf16.msra.mxu0 %v131
  %162 = vmatprep.subr.bf16.mxu0 %v134
  %163 = vmatpush1.bf16.msra.mxu0 %v133
  %164 = vmatprep.subr.bf16.mxu0 %v136
  %165 = vmatpush1.bf16.msra.mxu0 %v135
  %166 = vmatprep.subr.bf16.mxu0 0
  %167 = vmatpush1.bf16.msra.mxu0 0
  %168 = vmatprep.subr.bf16.mxu0 0
  %169 = vmatpush1.bf16.msra.mxu0 0
  %170 = vmatprep.subr.bf16.mxu0 0
  %171 = vmatpush1.bf16.msra.mxu0 0
  %172 = vmatprep.subr.bf16.mxu0 0
  %173 = vmatpush1.bf16.msra.mxu0 0
  %174 = vmatprep.subr.bf16.mxu0 0
  %175 = vmatpush1.bf16.msra.mxu0 0
  %176 = vmatprep.subr.bf16.mxu0 0
  %177 = vmatpush1.bf16.msra.mxu0 0
  %178 = vmatprep.subr.bf16.mxu0 0
  %179 = vmatpush1.bf16.msra.mxu0 0
  %180 = vmatprep.subr.bf16.mxu0 0
  %181 = vmatpush1.bf16.msra.mxu0 0
  %182 = vmatprep.subr.bf16.mxu0 0
  %183 = vmatpush1.bf16.msra.mxu0 0
  %184 = vmatprep.subr.bf16.mxu0 0
  %185 = vmatpush1.bf16.msra.mxu0 0
  %186 = vmatprep.subr.bf16.mxu0 0
  %187 = vmatpush1.bf16.msra.mxu0 0
  %188 = vmatprep.subr.bf16.mxu0 0
  %189 = vmatpush1.bf16.msra.mxu0 0
  %190 = vmatprep.mubr.bf16.mxu0 0
  %191 = vmatmul.mubr.bf16.gmra.mrb[0].mxu0 %v147
  %v192 = vpop.f32.mrb[0].mxu0
  %v193 = vadd.f32 %v98, %v192
  %v194 = vpop.f32.mrb[0].mxu0
  %v195 = vadd.f32 %v102, %v194
  %v196 = vpop.f32.mrb[0].mxu0
  %v197 = vadd.f32 %v98, %v196
  %v198 = vpop.f32.mrb[0].mxu0
  %v199 = vadd.f32 %v102, %v198
  %200 = vmatprep.mubr.bf16.mxu0 0
  %201 = vmatmul.mubr.bf16.gmra.mrb[0].mxu0 %v150
  %v202 = vpop.f32.mrb[0].mxu0
  %v203 = vadd.f32 %v98, %v202
  %v204 = vpop.f32.mrb[0].mxu0
  %v205 = vadd.f32 %v102, %v204
  %v206 = vpop.f32.mrb[0].mxu0
  %v207 = vadd.f32 %v98, %v206
  %v208 = vpop.f32.mrb[0].mxu0
  %v209 = vadd.f32 %v102, %v208
  %210 = vmatprep.mubr.bf16.mxu0 0
  %211 = vmatmul.mubr.bf16.gmra.mrb[0].mxu0 %v153
  %v212 = vpop.f32.mrb[0].mxu0
  %v213 = vadd.f32 %v98, %v212
  %v214 = vpop.f32.mrb[0].mxu0
  %v215 = vadd.f32 %v102, %v214
  %v216 = vpop.f32.mrb[0].mxu0
  %v217 = vadd.f32 %v98, %v216
  %v218 = vpop.f32.mrb[0].mxu0
  %v219 = vadd.f32 %v102, %v218
  %220 = vmatprep.mubr.bf16.mxu0 0
  %221 = vmatmul.mubr.bf16.gmra.mrb[0].mxu0 %v156
  %v222 = vpop.f32.mrb[0].mxu0
  %v223 = vadd.f32 %v98, %v222
  %v224 = vpop.f32.mrb[0].mxu0
  %v225 = vadd.f32 %v102, %v224
  %v226 = vpop.f32.mrb[0].mxu0
  %v227 = vadd.f32 %v98, %v226
  %v228 = vpop.f32.mrb[0].mxu0
  %v229 = vadd.f32 %v102, %v228
  %230 = vdwg.mxu0
  %v231 = vpack.c.bf16 %v197, %v193
  %v232 = vpack.c.bf16 %v207, %v203
  %v233 = vpack.c.bf16 %v217, %v213
  %v234 = vpack.c.bf16 %v227, %v223
  %v235 = vpack.c.bf16 %v199, %v195
  %v236 = vpack.c.bf16 %v209, %v205
  %v237 = vpack.c.bf16 %v219, %v215
  %v238 = vpack.c.bf16 %v229, %v225
  %241 = vrot.lane.b32.xlu0 %v231, 64
  %v242 = vpop.permute.xlu0 %241
  %243 = vrot.lane.b32.xlu0 %v232, 64
  %v244 = vpop.permute.xlu0 %243
  %vm245 = vcmask 130048
  %v247 = vsel %vm245, %v231, 0
  %v250 = vsel %vm245, %v232, 0
  %v253 = vsel %vm245, %v242, 0
  %v256 = vsel %vm245, %v244, 0
  %258 = vmatprep.subr.bf16.mxu0 0
  %259 = vmatpush1.bf16.xpose.msra.mxu0 %v253
  %260 = vmatprep.subr.bf16.mxu0 0
  %261 = vmatpush1.bf16.xpose.msra.mxu0 %v256
  %262 = vmatprep.subr.bf16.mxu0 0
  %263 = vmatpush1.bf16.xpose.msra.mxu0 0
  %264 = vmatprep.subr.bf16.mxu0 0
  %265 = vmatpush1.bf16.xpose.msra.mxu0 0
  %266 = vmatprep.subr.bf16.mxu0 0
  %267 = vmatpush1.bf16.xpose.msra.mxu0 0
  %268 = vmatprep.subr.bf16.mxu0 0
  %269 = vmatpush1.bf16.xpose.msra.mxu0 0
  %270 = vmatprep.subr.bf16.mxu0 0
  %271 = vmatpush1.bf16.xpose.msra.mxu0 0
  %272 = vmatprep.subr.bf16.mxu0 0
  %273 = vmatpush1.bf16.xpose.msra.mxu0 0
  %274 = vmatprep.subr.bf16.mxu0 0
  %275 = vmatpush1.bf16.xpose.msra.mxu0 0
  %276 = vmatprep.subr.bf16.mxu0 0
  %277 = vmatpush1.bf16.xpose.msra.mxu0 0
  %278 = vmatprep.subr.bf16.mxu0 0
  %279 = vmatpush1.bf16.xpose.msra.mxu0 0
  %280 = vmatprep.subr.bf16.mxu0 0
  %281 = vmatpush1.bf16.xpose.msra.mxu0 0
  %282 = vmatprep.subr.bf16.mxu0 0
  %283 = vmatpush1.bf16.xpose.msra.mxu0 0
  %284 = vmatprep.subr.bf16.mxu0 0
  %285 = vmatpush1.bf16.xpose.msra.mxu0 0
  %286 = vmatprep.subr.bf16.mxu0 0
  %287 = vmatpush1.bf16.xpose.msra.mxu0 0
  %288 = vmatprep.subr.bf16.mxu0 0
  %289 = vmatpush1.bf16.xpose.msra.mxu0 0
  %290 = vmatprep.mubr.bf16.mxu0 0
  %291 = vmatmul.mubr.bf16.gmra.mrb[0].mxu0 %v247
  %v292 = vpop.f32.mrb[0].mxu0
  %v293 = vadd.f32 0.0, %v292
  %v294 = vpop.f32.mrb[0].mxu0
  %v295 = vpop.f32.mrb[0].mxu0
  %v296 = vadd.f32 0.0, %v295
  %v297 = vpop.f32.mrb[0].mxu0
  %298 = vmatprep.mubr.bf16.mxu0 0
  %299 = vmatmul.mubr.bf16.gmra.mrb[0].mxu0 %v250
  %v300 = vpop.f32.mrb[0].mxu0
  %v301 = vadd.f32 0.0, %v300
  %v302 = vpop.f32.mrb[0].mxu0
  %v303 = vpop.f32.mrb[0].mxu0
  %v304 = vadd.f32 0.0, %v303
  %v305 = vpop.f32.mrb[0].mxu0
  %306 = vdwg.mxu0
  %309 = vrot.lane.b32.xlu0 %v233, 64
  %v310 = vpop.permute.xlu0 %309
  %311 = vrot.lane.b32.xlu0 %v234, 64
  %v312 = vpop.permute.xlu0 %311
  %v314 = vsel %vm245, %v233, 0
  %v317 = vsel %vm245, %v234, 0
  %v320 = vsel %vm245, %v310, 0
  %v323 = vsel %vm245, %v312, 0
  %325 = vmatprep.subr.bf16.mxu0 0
  %326 = vmatpush1.bf16.xpose.msra.mxu0 %v320
  %327 = vmatprep.subr.bf16.mxu0 0
  %328 = vmatpush1.bf16.xpose.msra.mxu0 %v323
  %329 = vmatprep.subr.bf16.mxu0 0
  %330 = vmatpush1.bf16.xpose.msra.mxu0 0
  %331 = vmatprep.subr.bf16.mxu0 0
  %332 = vmatpush1.bf16.xpose.msra.mxu0 0
  %333 = vmatprep.subr.bf16.mxu0 0
  %334 = vmatpush1.bf16.xpose.msra.mxu0 0
  %335 = vmatprep.subr.bf16.mxu0 0
  %336 = vmatpush1.bf16.xpose.msra.mxu0 0
  %337 = vmatprep.subr.bf16.mxu0 0
  %338 = vmatpush1.bf16.xpose.msra.mxu0 0
  %339 = vmatprep.subr.bf16.mxu0 0
  %340 = vmatpush1.bf16.xpose.msra.mxu0 0
  %341 = vmatprep.subr.bf16.mxu0 0
  %342 = vmatpush1.bf16.xpose.msra.mxu0 0
  %343 = vmatprep.subr.bf16.mxu0 0
  %344 = vmatpush1.bf16.xpose.msra.mxu0 0
  %345 = vmatprep.subr.bf16.mxu0 0
  %346 = vmatpush1.bf16.xpose.msra.mxu0 0
  %347 = vmatprep.subr.bf16.mxu0 0
  %348 = vmatpush1.bf16.xpose.msra.mxu0 0
  %349 = vmatprep.subr.bf16.mxu0 0
  %350 = vmatpush1.bf16.xpose.msra.mxu0 0
  %351 = vmatprep.subr.bf16.mxu0 0
  %352 = vmatpush1.bf16.xpose.msra.mxu0 0
  %353 = vmatprep.subr.bf16.mxu0 0
  %354 = vmatpush1.bf16.xpose.msra.mxu0 0
  %355 = vmatprep.subr.bf16.mxu0 0
  %356 = vmatpush1.bf16.xpose.msra.mxu0 0
  %357 = vmatprep.mubr.bf16.mxu0 0
  %358 = vmatmul.mubr.bf16.gmra.mrb[0].mxu0 %v314
  %v359 = vpop.f32.mrb[0].mxu0
  %v360 = vadd.f32 0.0, %v359
  %v361 = vpop.f32.mrb[0].mxu0
  %v362 = vpop.f32.mrb[0].mxu0
  %v363 = vadd.f32 0.0, %v362
  %v364 = vpop.f32.mrb[0].mxu0
  %365 = vmatprep.mubr.bf16.mxu0 0
  %366 = vmatmul.mubr.bf16.gmra.mrb[0].mxu0 %v317
  %v367 = vpop.f32.mrb[0].mxu0
  %v368 = vadd.f32 0.0, %v367
  %v369 = vpop.f32.mrb[0].mxu0
  %v370 = vpop.f32.mrb[0].mxu0
  %v371 = vadd.f32 0.0, %v370
  %v372 = vpop.f32.mrb[0].mxu0
  %373 = vdwg.mxu0
  %v374 = vmul.f32 %v293, 0.25
  %v375 = vmul.f32 %v296, 0.25
  %v376 = vmul.f32 %v301, 0.25
  %v377 = vmul.f32 %v304, 0.25
  %v378 = vmul.f32 %v360, 0.25
  %v379 = vmul.f32 %v363, 0.25
  %v380 = vmul.f32 %v368, 0.25
  %v381 = vmul.f32 %v371, 0.25
  %vm382 = vcmask 261120
  %v383 = vsel %vm382, %v374, -inf
  %384 = vmax.xlane.f32.xlu0 %v383
  %v385 = vpop.xlane.xlu0 %384
  %v386 = vsel %vm382, %v375, -inf
  %387 = vmax.xlane.f32.xlu0 %v386
  %v388 = vpop.xlane.xlu0 %387
  %v389 = vsel %vm382, %v376, -inf
  %390 = vmax.xlane.f32.xlu0 %v389
  %v391 = vpop.xlane.xlu0 %390
  %v392 = vsel %vm382, %v377, -inf
  %393 = vmax.xlane.f32.xlu0 %v392
  %v394 = vpop.xlane.xlu0 %393
  %v395 = vsel %vm382, %v378, -inf
  %396 = vmax.xlane.f32.xlu0 %v395
  %v397 = vpop.xlane.xlu0 %396
  %v398 = vsel %vm382, %v379, -inf
  %399 = vmax.xlane.f32.xlu0 %v398
  %v400 = vpop.xlane.xlu0 %399
  %v401 = vsel %vm382, %v380, -inf
  %402 = vmax.xlane.f32.xlu0 %v401
  %v403 = vpop.xlane.xlu0 %402
  %v404 = vsel %vm382, %v381, -inf
  %405 = vmax.xlane.f32.xlu0 %v404
  %v406 = vpop.xlane.xlu0 %405
  %v407 = vsub.f32 %v374, %v385
  %v408 = vsub.f32 %v375, %v388
  %v409 = vsub.f32 %v376, %v391
  %v410 = vsub.f32 %v377, %v394
  %v411 = vsub.f32 %v378, %v397
  %v412 = vsub.f32 %v379, %v400
  %v413 = vsub.f32 %v380, %v403
  %v414 = vsub.f32 %v381, %v406
  %v415 = vmul.f32 %v407, 1.442695
  %v416 = vpow.pop %v415
  %v417 = vmul.f32 %v408, 1.442695
  %v418 = vpow.pop %v417
  %v419 = vmul.f32 %v409, 1.442695
  %v420 = vpow.pop %v419
  %v421 = vmul.f32 %v410, 1.442695
  %v422 = vpow.pop %v421
  %v423 = vmul.f32 %v411, 1.442695
  %v424 = vpow.pop %v423
  %v425 = vmul.f32 %v412, 1.442695
  %v426 = vpow.pop %v425
  %v427 = vmul.f32 %v413, 1.442695
  %v428 = vpow.pop %v427
  %v429 = vmul.f32 %v414, 1.442695
  %v430 = vpow.pop %v429
  %v431 = vsel %vm382, %v416, 0.0
  %432 = vadd.xlane.f32.xlu0 %v431
  %v433 = vpop.xlane.xlu0 %432
  %v434 = vsel %vm382, %v418, 0.0
  %435 = vadd.xlane.f32.xlu0 %v434
  %v436 = vpop.xlane.xlu0 %435
  %v437 = vsel %vm382, %v420, 0.0
  %438 = vadd.xlane.f32.xlu0 %v437
  %v439 = vpop.xlane.xlu0 %438
  %v440 = vsel %vm382, %v422, 0.0
  %441 = vadd.xlane.f32.xlu0 %v440
  %v442 = vpop.xlane.xlu0 %441
  %v443 = vsel %vm382, %v424, 0.0
  %444 = vadd.xlane.f32.xlu0 %v443
  %v445 = vpop.xlane.xlu0 %444
  %v446 = vsel %vm382, %v426, 0.0
  %447 = vadd.xlane.f32.xlu0 %v446
  %v448 = vpop.xlane.xlu0 %447
  %v449 = vsel %vm382, %v428, 0.0
  %450 = vadd.xlane.f32.xlu0 %v449
  %v451 = vpop.xlane.xlu0 %450
  %v452 = vsel %vm382, %v430, 0.0
  %453 = vadd.xlane.f32.xlu0 %v452
  %v454 = vpop.xlane.xlu0 %453
  %v455 = vrcp.pop %v433
  %v456 = vrcp.pop %v436
  %v457 = vrcp.pop %v439
  %v458 = vrcp.pop %v442
  %v459 = vrcp.pop %v445
  %v460 = vrcp.pop %v448
  %v461 = vrcp.pop %v451
  %v462 = vrcp.pop %v454
  %v463 = vmul.f32 %v416, %v455
  %v464 = vmul.f32 %v418, %v456
  %v465 = vmul.f32 %v420, %v457
  %v466 = vmul.f32 %v422, %v458
  %v467 = vmul.f32 %v424, %v459
  %v468 = vmul.f32 %v426, %v460
  %v469 = vmul.f32 %v428, %v461
  %v470 = vmul.f32 %v430, %v462
  %v471 = vpack.c.bf16 %v464, %v463
  %v472 = vpack.c.bf16 %v466, %v465
  %v473 = vpack.c.bf16 %v468, %v467
  %v474 = vpack.c.bf16 %v470, %v469
  %v476 = vsel %vm382, %v471, 0
  %v479 = vsel %vm382, %v472, 0
  %481 = vmatprep.subr.bf16.mxu0 0
  %482 = vmatpush1.bf16.msra.mxu0 %v235
  %483 = vmatprep.subr.bf16.mxu0 0
  %484 = vmatpush1.bf16.msra.mxu0 %v236
  %485 = vmatprep.subr.bf16.mxu0 0
  %486 = vmatpush1.bf16.msra.mxu0 0
  %487 = vmatprep.subr.bf16.mxu0 0
  %488 = vmatpush1.bf16.msra.mxu0 0
  %489 = vmatprep.subr.bf16.mxu0 0
  %490 = vmatpush1.bf16.msra.mxu0 0
  %491 = vmatprep.subr.bf16.mxu0 0
  %492 = vmatpush1.bf16.msra.mxu0 0
  %493 = vmatprep.subr.bf16.mxu0 0
  %494 = vmatpush1.bf16.msra.mxu0 0
  %495 = vmatprep.subr.bf16.mxu0 0
  %496 = vmatpush1.bf16.msra.mxu0 0
  %497 = vmatprep.subr.bf16.mxu0 0
  %498 = vmatpush1.bf16.msra.mxu0 0
  %499 = vmatprep.subr.bf16.mxu0 0
  %500 = vmatpush1.bf16.msra.mxu0 0
  %501 = vmatprep.subr.bf16.mxu0 0
  %502 = vmatpush1.bf16.msra.mxu0 0
  %503 = vmatprep.subr.bf16.mxu0 0
  %504 = vmatpush1.bf16.msra.mxu0 0
  %505 = vmatprep.subr.bf16.mxu0 0
  %506 = vmatpush1.bf16.msra.mxu0 0
  %507 = vmatprep.subr.bf16.mxu0 0
  %508 = vmatpush1.bf16.msra.mxu0 0
  %509 = vmatprep.subr.bf16.mxu0 0
  %510 = vmatpush1.bf16.msra.mxu0 0
  %511 = vmatprep.subr.bf16.mxu0 0
  %512 = vmatpush1.bf16.msra.mxu0 0
  %513 = vmatprep.mubr.bf16.mxu0 0
  %514 = vmatmul.mubr.bf16.gmra.mrb[0].mxu0 %v476
  %v515 = vpop.f32.mrb[0].mxu0
  %v516 = vadd.f32 0.0, %v515
  %v517 = vpop.f32.mrb[0].mxu0
  %v518 = vpop.f32.mrb[0].mxu0
  %v519 = vadd.f32 0.0, %v518
  %v520 = vpop.f32.mrb[0].mxu0
  %521 = vmatprep.mubr.bf16.mxu0 0
  %522 = vmatmul.mubr.bf16.gmra.mrb[0].mxu0 %v479
  %v523 = vpop.f32.mrb[0].mxu0
  %v524 = vadd.f32 0.0, %v523
  %v525 = vpop.f32.mrb[0].mxu0
  %v526 = vpop.f32.mrb[0].mxu0
  %v527 = vadd.f32 0.0, %v526
  %v528 = vpop.f32.mrb[0].mxu0
  %529 = vdwg.mxu0
  %v531 = vsel %vm382, %v473, 0
  %v534 = vsel %vm382, %v474, 0
  %536 = vmatprep.subr.bf16.mxu0 0
  %537 = vmatpush1.bf16.msra.mxu0 %v237
  %538 = vmatprep.subr.bf16.mxu0 0
  %539 = vmatpush1.bf16.msra.mxu0 %v238
  %540 = vmatprep.subr.bf16.mxu0 0
  %541 = vmatpush1.bf16.msra.mxu0 0
  %542 = vmatprep.subr.bf16.mxu0 0
  %543 = vmatpush1.bf16.msra.mxu0 0
  %544 = vmatprep.subr.bf16.mxu0 0
  %545 = vmatpush1.bf16.msra.mxu0 0
  %546 = vmatprep.subr.bf16.mxu0 0
  %547 = vmatpush1.bf16.msra.mxu0 0
  %548 = vmatprep.subr.bf16.mxu0 0
  %549 = vmatpush1.bf16.msra.mxu0 0
  %550 = vmatprep.subr.bf16.mxu0 0
  %551 = vmatpush1.bf16.msra.mxu0 0
  %552 = vmatprep.subr.bf16.mxu0 0
  %553 = vmatpush1.bf16.msra.mxu0 0
  %554 = vmatprep.subr.bf16.mxu0 0
  %555 = vmatpush1.bf16.msra.mxu0 0
  %556 = vmatprep.subr.bf16.mxu0 0
  %557 = vmatpush1.bf16.msra.mxu0 0
  %558 = vmatprep.subr.bf16.mxu0 0
  %559 = vmatpush1.bf16.msra.mxu0 0
  %560 = vmatprep.subr.bf16.mxu0 0
  %561 = vmatpush1.bf16.msra.mxu0 0
  %562 = vmatprep.subr.bf16.mxu0 0
  %563 = vmatpush1.bf16.msra.mxu0 0
  %564 = vmatprep.subr.bf16.mxu0 0
  %565 = vmatpush1.bf16.msra.mxu0 0
  %566 = vmatprep.subr.bf16.mxu0 0
  %567 = vmatpush1.bf16.msra.mxu0 0
  %568 = vmatprep.mubr.bf16.mxu0 0
  %569 = vmatmul.mubr.bf16.gmra.mrb[0].mxu0 %v531
  %v570 = vpop.f32.mrb[0].mxu0
  %v571 = vadd.f32 0.0, %v570
  %v572 = vpop.f32.mrb[0].mxu0
  %v573 = vpop.f32.mrb[0].mxu0
  %v574 = vadd.f32 0.0, %v573
  %v575 = vpop.f32.mrb[0].mxu0
  %576 = vmatprep.mubr.bf16.mxu0 0
  %577 = vmatmul.mubr.bf16.gmra.mrb[0].mxu0 %v534
  %v578 = vpop.f32.mrb[0].mxu0
  %v579 = vadd.f32 0.0, %v578
  %v580 = vpop.f32.mrb[0].mxu0
  %v581 = vpop.f32.mrb[0].mxu0
  %v582 = vadd.f32 0.0, %v581
  %v583 = vpop.f32.mrb[0].mxu0
  %584 = vdwg.mxu0
  %585 = vrot.lane.b32.xlu0 %v231, 112
  %v586 = vpop.permute.xlu0 %585
  %587 = vrot.lane.b32.xlu0 %v232, 112
  %v588 = vpop.permute.xlu0 %587
  %589 = vrot.lane.b32.xlu0 %v231, 48
  %v590 = vpop.permute.xlu0 %589
  %591 = vrot.lane.b32.xlu0 %v232, 48
  %v592 = vpop.permute.xlu0 %591
  %v594 = vsel %vm245, %v586, 0
  %v597 = vsel %vm245, %v588, 0
  %v600 = vsel %vm245, %v590, 0
  %v603 = vsel %vm245, %v592, 0
  %605 = vmatprep.subr.bf16.mxu0 0
  %606 = vmatpush1.bf16.xpose.msra.mxu0 %v600
  %607 = vmatprep.subr.bf16.mxu0 0
  %608 = vmatpush1.bf16.xpose.msra.mxu0 %v603
  %609 = vmatprep.subr.bf16.mxu0 0
  %610 = vmatpush1.bf16.xpose.msra.mxu0 0
  %611 = vmatprep.subr.bf16.mxu0 0
  %612 = vmatpush1.bf16.xpose.msra.mxu0 0
  %613 = vmatprep.subr.bf16.mxu0 0
  %614 = vmatpush1.bf16.xpose.msra.mxu0 0
  %615 = vmatprep.subr.bf16.mxu0 0
  %616 = vmatpush1.bf16.xpose.msra.mxu0 0
  %617 = vmatprep.subr.bf16.mxu0 0
  %618 = vmatpush1.bf16.xpose.msra.mxu0 0
  %619 = vmatprep.subr.bf16.mxu0 0
  %620 = vmatpush1.bf16.xpose.msra.mxu0 0
  %621 = vmatprep.subr.bf16.mxu0 0
  %622 = vmatpush1.bf16.xpose.msra.mxu0 0
  %623 = vmatprep.subr.bf16.mxu0 0
  %624 = vmatpush1.bf16.xpose.msra.mxu0 0
  %625 = vmatprep.subr.bf16.mxu0 0
  %626 = vmatpush1.bf16.xpose.msra.mxu0 0
  %627 = vmatprep.subr.bf16.mxu0 0
  %628 = vmatpush1.bf16.xpose.msra.mxu0 0
  %629 = vmatprep.subr.bf16.mxu0 0
  %630 = vmatpush1.bf16.xpose.msra.mxu0 0
  %631 = vmatprep.subr.bf16.mxu0 0
  %632 = vmatpush1.bf16.xpose.msra.mxu0 0
  %633 = vmatprep.subr.bf16.mxu0 0
  %634 = vmatpush1.bf16.xpose.msra.mxu0 0
  %635 = vmatprep.subr.bf16.mxu0 0
  %636 = vmatpush1.bf16.xpose.msra.mxu0 0
  %637 = vmatprep.mubr.bf16.mxu0 0
  %638 = vmatmul.mubr.bf16.gmra.mrb[0].mxu0 %v594
  %v639 = vpop.f32.mrb[0].mxu0
  %v640 = vadd.f32 0.0, %v639
  %v641 = vpop.f32.mrb[0].mxu0
  %v642 = vpop.f32.mrb[0].mxu0
  %v643 = vadd.f32 0.0, %v642
  %v644 = vpop.f32.mrb[0].mxu0
  %645 = vmatprep.mubr.bf16.mxu0 0
  %646 = vmatmul.mubr.bf16.gmra.mrb[0].mxu0 %v597
  %v647 = vpop.f32.mrb[0].mxu0
  %v648 = vadd.f32 0.0, %v647
  %v649 = vpop.f32.mrb[0].mxu0
  %v650 = vpop.f32.mrb[0].mxu0
  %v651 = vadd.f32 0.0, %v650
  %v652 = vpop.f32.mrb[0].mxu0
  %653 = vdwg.mxu0
  %654 = vrot.lane.b32.xlu0 %v233, 112
  %v655 = vpop.permute.xlu0 %654
  %656 = vrot.lane.b32.xlu0 %v234, 112
  %v657 = vpop.permute.xlu0 %656
  %658 = vrot.lane.b32.xlu0 %v233, 48
  %v659 = vpop.permute.xlu0 %658
  %660 = vrot.lane.b32.xlu0 %v234, 48
  %v661 = vpop.permute.xlu0 %660
  %v663 = vsel %vm245, %v655, 0
  %v666 = vsel %vm245, %v657, 0
  %v669 = vsel %vm245, %v659, 0
  %v672 = vsel %vm245, %v661, 0
  %674 = vmatprep.subr.bf16.mxu0 0
  %675 = vmatpush1.bf16.xpose.msra.mxu0 %v669
  %676 = vmatprep.subr.bf16.mxu0 0
  %677 = vmatpush1.bf16.xpose.msra.mxu0 %v672
  %678 = vmatprep.subr.bf16.mxu0 0
  %679 = vmatpush1.bf16.xpose.msra.mxu0 0
  %680 = vmatprep.subr.bf16.mxu0 0
  %681 = vmatpush1.bf16.xpose.msra.mxu0 0
  %682 = vmatprep.subr.bf16.mxu0 0
  %683 = vmatpush1.bf16.xpose.msra.mxu0 0
  %684 = vmatprep.subr.bf16.mxu0 0
  %685 = vmatpush1.bf16.xpose.msra.mxu0 0
  %686 = vmatprep.subr.bf16.mxu0 0
  %687 = vmatpush1.bf16.xpose.msra.mxu0 0
  %688 = vmatprep.subr.bf16.mxu0 0
  %689 = vmatpush1.bf16.xpose.msra.mxu0 0
  %690 = vmatprep.subr.bf16.mxu0 0
  %691 = vmatpush1.bf16.xpose.msra.mxu0 0
  %692 = vmatprep.subr.bf16.mxu0 0
  %693 = vmatpush1.bf16.xpose.msra.mxu0 0
  %694 = vmatprep.subr.bf16.mxu0 0
  %695 = vmatpush1.bf16.xpose.msra.mxu0 0
  %696 = vmatprep.subr.bf16.mxu0 0
  %697 = vmatpush1.bf16.xpose.msra.mxu0 0
  %698 = vmatprep.subr.bf16.mxu0 0
  %699 = vmatpush1.bf16.xpose.msra.mxu0 0
  %700 = vmatprep.subr.bf16.mxu0 0
  %701 = vmatpush1.bf16.xpose.msra.mxu0 0
  %702 = vmatprep.subr.bf16.mxu0 0
  %703 = vmatpush1.bf16.xpose.msra.mxu0 0
  %704 = vmatprep.subr.bf16.mxu0 0
  %705 = vmatpush1.bf16.xpose.msra.mxu0 0
  %706 = vmatprep.mubr.bf16.mxu0 0
  %707 = vmatmul.mubr.bf16.gmra.mrb[0].mxu0 %v663
  %v708 = vpop.f32.mrb[0].mxu0
  %v709 = vadd.f32 0.0, %v708
  %v710 = vpop.f32.mrb[0].mxu0
  %v711 = vpop.f32.mrb[0].mxu0
  %v712 = vadd.f32 0.0, %v711
  %v713 = vpop.f32.mrb[0].mxu0
  %714 = vmatprep.mubr.bf16.mxu0 0
  %715 = vmatmul.mubr.bf16.gmra.mrb[0].mxu0 %v666
  %v716 = vpop.f32.mrb[0].mxu0
  %v717 = vadd.f32 0.0, %v716
  %v718 = vpop.f32.mrb[0].mxu0
  %v719 = vpop.f32.mrb[0].mxu0
  %v720 = vadd.f32 0.0, %v719
  %v721 = vpop.f32.mrb[0].mxu0
  %722 = vdwg.mxu0
  %v723 = vmul.f32 %v640, 0.25
  %v724 = vmul.f32 %v643, 0.25
  %v725 = vmul.f32 %v648, 0.25
  %v726 = vmul.f32 %v651, 0.25
  %v727 = vmul.f32 %v709, 0.25
  %v728 = vmul.f32 %v712, 0.25
  %v729 = vmul.f32 %v717, 0.25
  %v730 = vmul.f32 %v720, 0.25
  %v731 = vsel %vm382, %v723, -inf
  %732 = vmax.xlane.f32.xlu0 %v731
  %v733 = vpop.xlane.xlu0 %732
  %v734 = vsel %vm382, %v724, -inf
  %735 = vmax.xlane.f32.xlu0 %v734
  %v736 = vpop.xlane.xlu0 %735
  %v737 = vsel %vm382, %v725, -inf
  %738 = vmax.xlane.f32.xlu0 %v737
  %v739 = vpop.xlane.xlu0 %738
  %v740 = vsel %vm382, %v726, -inf
  %741 = vmax.xlane.f32.xlu0 %v740
  %v742 = vpop.xlane.xlu0 %741
  %v743 = vsel %vm382, %v727, -inf
  %744 = vmax.xlane.f32.xlu0 %v743
  %v745 = vpop.xlane.xlu0 %744
  %v746 = vsel %vm382, %v728, -inf
  %747 = vmax.xlane.f32.xlu0 %v746
  %v748 = vpop.xlane.xlu0 %747
  %v749 = vsel %vm382, %v729, -inf
  %750 = vmax.xlane.f32.xlu0 %v749
  %v751 = vpop.xlane.xlu0 %750
  %v752 = vsel %vm382, %v730, -inf
  %753 = vmax.xlane.f32.xlu0 %v752
  %v754 = vpop.xlane.xlu0 %753
  %v755 = vsub.f32 %v723, %v733
  %v756 = vsub.f32 %v724, %v736
  %v757 = vsub.f32 %v725, %v739
  %v758 = vsub.f32 %v726, %v742
  %v759 = vsub.f32 %v727, %v745
  %v760 = vsub.f32 %v728, %v748
  %v761 = vsub.f32 %v729, %v751
  %v762 = vsub.f32 %v730, %v754
  %v763 = vmul.f32 %v755, 1.442695
  %v764 = vpow.pop %v763
  %v765 = vmul.f32 %v756, 1.442695
  %v766 = vpow.pop %v765
  %v767 = vmul.f32 %v757, 1.442695
  %v768 = vpow.pop %v767
  %v769 = vmul.f32 %v758, 1.442695
  %v770 = vpow.pop %v769
  %v771 = vmul.f32 %v759, 1.442695
  %v772 = vpow.pop %v771
  %v773 = vmul.f32 %v760, 1.442695
  %v774 = vpow.pop %v773
  %v775 = vmul.f32 %v761, 1.442695
  %v776 = vpow.pop %v775
  %v777 = vmul.f32 %v762, 1.442695
  %v778 = vpow.pop %v777
  %v779 = vsel %vm382, %v764, 0.0
  %780 = vadd.xlane.f32.xlu0 %v779
  %v781 = vpop.xlane.xlu0 %780
  %v782 = vsel %vm382, %v766, 0.0
  %783 = vadd.xlane.f32.xlu0 %v782
  %v784 = vpop.xlane.xlu0 %783
  %v785 = vsel %vm382, %v768, 0.0
  %786 = vadd.xlane.f32.xlu0 %v785
  %v787 = vpop.xlane.xlu0 %786
  %v788 = vsel %vm382, %v770, 0.0
  %789 = vadd.xlane.f32.xlu0 %v788
  %v790 = vpop.xlane.xlu0 %789
  %v791 = vsel %vm382, %v772, 0.0
  %792 = vadd.xlane.f32.xlu0 %v791
  %v793 = vpop.xlane.xlu0 %792
  %v794 = vsel %vm382, %v774, 0.0
  %795 = vadd.xlane.f32.xlu0 %v794
  %v796 = vpop.xlane.xlu0 %795
  %v797 = vsel %vm382, %v776, 0.0
  %798 = vadd.xlane.f32.xlu0 %v797
  %v799 = vpop.xlane.xlu0 %798
  %v800 = vsel %vm382, %v778, 0.0
  %801 = vadd.xlane.f32.xlu0 %v800
  %v802 = vpop.xlane.xlu0 %801
  %v803 = vrcp.pop %v781
  %v804 = vrcp.pop %v784
  %v805 = vrcp.pop %v787
  %v806 = vrcp.pop %v790
  %v807 = vrcp.pop %v793
  %v808 = vrcp.pop %v796
  %v809 = vrcp.pop %v799
  %v810 = vrcp.pop %v802
  %v811 = vmul.f32 %v764, %v803
  %v812 = vmul.f32 %v766, %v804
  %v813 = vmul.f32 %v768, %v805
  %v814 = vmul.f32 %v770, %v806
  %v815 = vmul.f32 %v772, %v807
  %v816 = vmul.f32 %v774, %v808
  %v817 = vmul.f32 %v776, %v809
  %v818 = vmul.f32 %v778, %v810
  %v819 = vpack.c.bf16 %v812, %v811
  %v820 = vpack.c.bf16 %v814, %v813
  %v821 = vpack.c.bf16 %v816, %v815
  %v822 = vpack.c.bf16 %v818, %v817
  %825 = vrot.lane.b32.xlu0 %v235, 112
  %v826 = vpop.permute.xlu0 %825
  %827 = vrot.lane.b32.xlu0 %v236, 112
  %v828 = vpop.permute.xlu0 %827
  %v832 = vsel %vm382, %v819, 0
  %v835 = vsel %vm382, %v820, 0
  %837 = vmatprep.subr.bf16.mxu0 0
  %838 = vmatpush1.bf16.msra.mxu0 %v826
  %839 = vmatprep.subr.bf16.mxu0 0
  %840 = vmatpush1.bf16.msra.mxu0 %v828
  %841 = vmatprep.subr.bf16.mxu0 0
  %842 = vmatpush1.bf16.msra.mxu0 0
  %843 = vmatprep.subr.bf16.mxu0 0
  %844 = vmatpush1.bf16.msra.mxu0 0
  %845 = vmatprep.subr.bf16.mxu0 0
  %846 = vmatpush1.bf16.msra.mxu0 0
  %847 = vmatprep.subr.bf16.mxu0 0
  %848 = vmatpush1.bf16.msra.mxu0 0
  %849 = vmatprep.subr.bf16.mxu0 0
  %850 = vmatpush1.bf16.msra.mxu0 0
  %851 = vmatprep.subr.bf16.mxu0 0
  %852 = vmatpush1.bf16.msra.mxu0 0
  %853 = vmatprep.subr.bf16.mxu0 0
  %854 = vmatpush1.bf16.msra.mxu0 0
  %855 = vmatprep.subr.bf16.mxu0 0
  %856 = vmatpush1.bf16.msra.mxu0 0
  %857 = vmatprep.subr.bf16.mxu0 0
  %858 = vmatpush1.bf16.msra.mxu0 0
  %859 = vmatprep.subr.bf16.mxu0 0
  %860 = vmatpush1.bf16.msra.mxu0 0
  %861 = vmatprep.subr.bf16.mxu0 0
  %862 = vmatpush1.bf16.msra.mxu0 0
  %863 = vmatprep.subr.bf16.mxu0 0
  %864 = vmatpush1.bf16.msra.mxu0 0
  %865 = vmatprep.subr.bf16.mxu0 0
  %866 = vmatpush1.bf16.msra.mxu0 0
  %867 = vmatprep.subr.bf16.mxu0 0
  %868 = vmatpush1.bf16.msra.mxu0 0
  %869 = vmatprep.mubr.bf16.mxu0 0
  %870 = vmatmul.mubr.bf16.gmra.mrb[0].mxu0 %v832
  %v871 = vpop.f32.mrb[0].mxu0
  %v872 = vadd.f32 0.0, %v871
  %v873 = vpop.f32.mrb[0].mxu0
  %v874 = vpop.f32.mrb[0].mxu0
  %v875 = vadd.f32 0.0, %v874
  %v876 = vpop.f32.mrb[0].mxu0
  %877 = vmatprep.mubr.bf16.mxu0 0
  %878 = vmatmul.mubr.bf16.gmra.mrb[0].mxu0 %v835
  %v879 = vpop.f32.mrb[0].mxu0
  %v880 = vadd.f32 0.0, %v879
  %v881 = vpop.f32.mrb[0].mxu0
  %v882 = vpop.f32.mrb[0].mxu0
  %v883 = vadd.f32 0.0, %v882
  %v884 = vpop.f32.mrb[0].mxu0
  %885 = vdwg.mxu0
  %888 = vrot.lane.b32.xlu0 %v237, 112
  %v889 = vpop.permute.xlu0 %888
  %890 = vrot.lane.b32.xlu0 %v238, 112
  %v891 = vpop.permute.xlu0 %890
  %v895 = vsel %vm382, %v821, 0
  %v898 = vsel %vm382, %v822, 0
  %900 = vmatprep.subr.bf16.mxu0 0
  %901 = vmatpush1.bf16.msra.mxu0 %v889
  %902 = vmatprep.subr.bf16.mxu0 0
  %903 = vmatpush1.bf16.msra.mxu0 %v891
  %904 = vmatprep.subr.bf16.mxu0 0
  %905 = vmatpush1.bf16.msra.mxu0 0
  %906 = vmatprep.subr.bf16.mxu0 0
  %907 = vmatpush1.bf16.msra.mxu0 0
  %908 = vmatprep.subr.bf16.mxu0 0
  %909 = vmatpush1.bf16.msra.mxu0 0
  %910 = vmatprep.subr.bf16.mxu0 0
  %911 = vmatpush1.bf16.msra.mxu0 0
  %912 = vmatprep.subr.bf16.mxu0 0
  %913 = vmatpush1.bf16.msra.mxu0 0
  %914 = vmatprep.subr.bf16.mxu0 0
  %915 = vmatpush1.bf16.msra.mxu0 0
  %916 = vmatprep.subr.bf16.mxu0 0
  %917 = vmatpush1.bf16.msra.mxu0 0
  %918 = vmatprep.subr.bf16.mxu0 0
  %919 = vmatpush1.bf16.msra.mxu0 0
  %920 = vmatprep.subr.bf16.mxu0 0
  %921 = vmatpush1.bf16.msra.mxu0 0
  %922 = vmatprep.subr.bf16.mxu0 0
  %923 = vmatpush1.bf16.msra.mxu0 0
  %924 = vmatprep.subr.bf16.mxu0 0
  %925 = vmatpush1.bf16.msra.mxu0 0
  %926 = vmatprep.subr.bf16.mxu0 0
  %927 = vmatpush1.bf16.msra.mxu0 0
  %928 = vmatprep.subr.bf16.mxu0 0
  %929 = vmatpush1.bf16.msra.mxu0 0
  %930 = vmatprep.subr.bf16.mxu0 0
  %931 = vmatpush1.bf16.msra.mxu0 0
  %932 = vmatprep.mubr.bf16.mxu0 0
  %933 = vmatmul.mubr.bf16.gmra.mrb[0].mxu0 %v895
  %v934 = vpop.f32.mrb[0].mxu0
  %v935 = vadd.f32 0.0, %v934
  %v936 = vpop.f32.mrb[0].mxu0
  %v937 = vpop.f32.mrb[0].mxu0
  %v938 = vadd.f32 0.0, %v937
  %v939 = vpop.f32.mrb[0].mxu0
  %940 = vmatprep.mubr.bf16.mxu0 0
  %941 = vmatmul.mubr.bf16.gmra.mrb[0].mxu0 %v898
  %v942 = vpop.f32.mrb[0].mxu0
  %v943 = vadd.f32 0.0, %v942
  %v944 = vpop.f32.mrb[0].mxu0
  %v945 = vpop.f32.mrb[0].mxu0
  %v946 = vadd.f32 0.0, %v945
  %v947 = vpop.f32.mrb[0].mxu0
  %948 = vdwg.mxu0
  %949 = vrot.lane.b32.xlu0 %v231, 96
  %v950 = vpop.permute.xlu0 %949
  %951 = vrot.lane.b32.xlu0 %v232, 96
  %v952 = vpop.permute.xlu0 %951
  %953 = vrot.lane.b32.xlu0 %v231, 32
  %v954 = vpop.permute.xlu0 %953
  %955 = vrot.lane.b32.xlu0 %v232, 32
  %v956 = vpop.permute.xlu0 %955
  %v958 = vsel %vm245, %v950, 0
  %v961 = vsel %vm245, %v952, 0
  %v964 = vsel %vm245, %v954, 0
  %v967 = vsel %vm245, %v956, 0
  %969 = vmatprep.subr.bf16.mxu0 0
  %970 = vmatpush1.bf16.xpose.msra.mxu0 %v964
  %971 = vmatprep.subr.bf16.mxu0 0
  %972 = vmatpush1.bf16.xpose.msra.mxu0 %v967
  %973 = vmatprep.subr.bf16.mxu0 0
  %974 = vmatpush1.bf16.xpose.msra.mxu0 0
  %975 = vmatprep.subr.bf16.mxu0 0
  %976 = vmatpush1.bf16.xpose.msra.mxu0 0
  %977 = vmatprep.subr.bf16.mxu0 0
  %978 = vmatpush1.bf16.xpose.msra.mxu0 0
  %979 = vmatprep.subr.bf16.mxu0 0
  %980 = vmatpush1.bf16.xpose.msra.mxu0 0
  %981 = vmatprep.subr.bf16.mxu0 0
  %982 = vmatpush1.bf16.xpose.msra.mxu0 0
  %983 = vmatprep.subr.bf16.mxu0 0
  %984 = vmatpush1.bf16.xpose.msra.mxu0 0
  %985 = vmatprep.subr.bf16.mxu0 0
  %986 = vmatpush1.bf16.xpose.msra.mxu0 0
  %987 = vmatprep.subr.bf16.mxu0 0
  %988 = vmatpush1.bf16.xpose.msra.mxu0 0
  %989 = vmatprep.subr.bf16.mxu0 0
  %990 = vmatpush1.bf16.xpose.msra.mxu0 0
  %991 = vmatprep.subr.bf16.mxu0 0
  %992 = vmatpush1.bf16.xpose.msra.mxu0 0
  %993 = vmatprep.subr.bf16.mxu0 0
  %994 = vmatpush1.bf16.xpose.msra.mxu0 0
  %995 = vmatprep.subr.bf16.mxu0 0
  %996 = vmatpush1.bf16.xpose.msra.mxu0 0
  %997 = vmatprep.subr.bf16.mxu0 0
  %998 = vmatpush1.bf16.xpose.msra.mxu0 0
  %999 = vmatprep.subr.bf16.mxu0 0
  %1000 = vmatpush1.bf16.xpose.msra.mxu0 0
  %1001 = vmatprep.mubr.bf16.mxu0 0
  %1002 = vmatmul.mubr.bf16.gmra.mrb[0].mxu0 %v958
  %v1003 = vpop.f32.mrb[0].mxu0
  %v1004 = vadd.f32 0.0, %v1003
  %v1005 = vpop.f32.mrb[0].mxu0
  %v1006 = vpop.f32.mrb[0].mxu0
  %v1007 = vadd.f32 0.0, %v1006
  %v1008 = vpop.f32.mrb[0].mxu0
  %1009 = vmatprep.mubr.bf16.mxu0 0
  %1010 = vmatmul.mubr.bf16.gmra.mrb[0].mxu0 %v961
  %v1011 = vpop.f32.mrb[0].mxu0
  %v1012 = vadd.f32 0.0, %v1011
  %v1013 = vpop.f32.mrb[0].mxu0
  %v1014 = vpop.f32.mrb[0].mxu0
  %v1015 = vadd.f32 0.0, %v1014
  %v1016 = vpop.f32.mrb[0].mxu0
  %1017 = vdwg.mxu0
  %1018 = vrot.lane.b32.xlu0 %v233, 96
  %v1019 = vpop.permute.xlu0 %1018
  %1020 = vrot.lane.b32.xlu0 %v234, 96
  %v1021 = vpop.permute.xlu0 %1020
  %1022 = vrot.lane.b32.xlu0 %v233, 32
  %v1023 = vpop.permute.xlu0 %1022
  %1024 = vrot.lane.b32.xlu0 %v234, 32
  %v1025 = vpop.permute.xlu0 %1024
  %v1027 = vsel %vm245, %v1019, 0
  %v1030 = vsel %vm245, %v1021, 0
  %v1033 = vsel %vm245, %v1023, 0
  %v1036 = vsel %vm245, %v1025, 0
  %1038 = vmatprep.subr.bf16.mxu0 0
  %1039 = vmatpush1.bf16.xpose.msra.mxu0 %v1033
  %1040 = vmatprep.subr.bf16.mxu0 0
  %1041 = vmatpush1.bf16.xpose.msra.mxu0 %v1036
  %1042 = vmatprep.subr.bf16.mxu0 0
  %1043 = vmatpush1.bf16.xpose.msra.mxu0 0
  %1044 = vmatprep.subr.bf16.mxu0 0
  %1045 = vmatpush1.bf16.xpose.msra.mxu0 0
  %1046 = vmatprep.subr.bf16.mxu0 0
  %1047 = vmatpush1.bf16.xpose.msra.mxu0 0
  %1048 = vmatprep.subr.bf16.mxu0 0
  %1049 = vmatpush1.bf16.xpose.msra.mxu0 0
  %1050 = vmatprep.subr.bf16.mxu0 0
  %1051 = vmatpush1.bf16.xpose.msra.mxu0 0
  %1052 = vmatprep.subr.bf16.mxu0 0
  %1053 = vmatpush1.bf16.xpose.msra.mxu0 0
  %1054 = vmatprep.subr.bf16.mxu0 0
  %1055 = vmatpush1.bf16.xpose.msra.mxu0 0
  %1056 = vmatprep.subr.bf16.mxu0 0
  %1057 = vmatpush1.bf16.xpose.msra.mxu0 0
  %1058 = vmatprep.subr.bf16.mxu0 0
  %1059 = vmatpush1.bf16.xpose.msra.mxu0 0
  %1060 = vmatprep.subr.bf16.mxu0 0
  %1061 = vmatpush1.bf16.xpose.msra.mxu0 0
  %1062 = vmatprep.subr.bf16.mxu0 0
  %1063 = vmatpush1.bf16.xpose.msra.mxu0 0
  %1064 = vmatprep.subr.bf16.mxu0 0
  %1065 = vmatpush1.bf16.xpose.msra.mxu0 0
  %1066 = vmatprep.subr.bf16.mxu0 0
  %1067 = vmatpush1.bf16.xpose.msra.mxu0 0
  %1068 = vmatprep.subr.bf16.mxu0 0
  %1069 = vmatpush1.bf16.xpose.msra.mxu0 0
  %1070 = vmatprep.mubr.bf16.mxu0 0
  %1071 = vmatmul.mubr.bf16.gmra.mrb[0].mxu0 %v1027
  %v1072 = vpop.f32.mrb[0].mxu0
  %v1073 = vadd.f32 0.0, %v1072
  %v1074 = vpop.f32.mrb[0].mxu0
  %v1075 = vpop.f32.mrb[0].mxu0
  %v1076 = vadd.f32 0.0, %v1075
  %v1077 = vpop.f32.mrb[0].mxu0
  %1078 = vmatprep.mubr.bf16.mxu0 0
  %1079 = vmatmul.mubr.bf16.gmra.mrb[0].mxu0 %v1030
  %v1080 = vpop.f32.mrb[0].mxu0
  %v1081 = vadd.f32 0.0, %v1080
  %v1082 = vpop.f32.mrb[0].mxu0
  %v1083 = vpop.f32.mrb[0].mxu0
  %v1084 = vadd.f32 0.0, %v1083
  %v1085 = vpop.f32.mrb[0].mxu0
  %1086 = vdwg.mxu0
  %v1087 = vmul.f32 %v1004, 0.25
  %v1088 = vmul.f32 %v1007, 0.25
  %v1089 = vmul.f32 %v1012, 0.25
  %v1090 = vmul.f32 %v1015, 0.25
  %v1091 = vmul.f32 %v1073, 0.25
  %v1092 = vmul.f32 %v1076, 0.25
  %v1093 = vmul.f32 %v1081, 0.25
  %v1094 = vmul.f32 %v1084, 0.25
  %v1095 = vsel %vm382, %v1087, -inf
  %1096 = vmax.xlane.f32.xlu0 %v1095
  %v1097 = vpop.xlane.xlu0 %1096
  %v1098 = vsel %vm382, %v1088, -inf
  %1099 = vmax.xlane.f32.xlu0 %v1098
  %v1100 = vpop.xlane.xlu0 %1099
  %v1101 = vsel %vm382, %v1089, -inf
  %1102 = vmax.xlane.f32.xlu0 %v1101
  %v1103 = vpop.xlane.xlu0 %1102
  %v1104 = vsel %vm382, %v1090, -inf
  %1105 = vmax.xlane.f32.xlu0 %v1104
  %v1106 = vpop.xlane.xlu0 %1105
  %v1107 = vsel %vm382, %v1091, -inf
  %1108 = vmax.xlane.f32.xlu0 %v1107
  %v1109 = vpop.xlane.xlu0 %1108
  %v1110 = vsel %vm382, %v1092, -inf
  %1111 = vmax.xlane.f32.xlu0 %v1110
  %v1112 = vpop.xlane.xlu0 %1111
  %v1113 = vsel %vm382, %v1093, -inf
  %1114 = vmax.xlane.f32.xlu0 %v1113
  %v1115 = vpop.xlane.xlu0 %1114
  %v1116 = vsel %vm382, %v1094, -inf
  %1117 = vmax.xlane.f32.xlu0 %v1116
  %v1118 = vpop.xlane.xlu0 %1117
  %v1119 = vsub.f32 %v1087, %v1097
  %v1120 = vsub.f32 %v1088, %v1100
  %v1121 = vsub.f32 %v1089, %v1103
  %v1122 = vsub.f32 %v1090, %v1106
  %v1123 = vsub.f32 %v1091, %v1109
  %v1124 = vsub.f32 %v1092, %v1112
  %v1125 = vsub.f32 %v1093, %v1115
  %v1126 = vsub.f32 %v1094, %v1118
  %v1127 = vmul.f32 %v1119, 1.442695
  %v1128 = vpow.pop %v1127
  %v1129 = vmul.f32 %v1120, 1.442695
  %v1130 = vpow.pop %v1129
  %v1131 = vmul.f32 %v1121, 1.442695
  %v1132 = vpow.pop %v1131
  %v1133 = vmul.f32 %v1122, 1.442695
  %v1134 = vpow.pop %v1133
  %v1135 = vmul.f32 %v1123, 1.442695
  %v1136 = vpow.pop %v1135
  %v1137 = vmul.f32 %v1124, 1.442695
  %v1138 = vpow.pop %v1137
  %v1139 = vmul.f32 %v1125, 1.442695
  %v1140 = vpow.pop %v1139
  %v1141 = vmul.f32 %v1126, 1.442695
  %v1142 = vpow.pop %v1141
  %v1143 = vsel %vm382, %v1128, 0.0
  %1144 = vadd.xlane.f32.xlu0 %v1143
  %v1145 = vpop.xlane.xlu0 %1144
  %v1146 = vsel %vm382, %v1130, 0.0
  %1147 = vadd.xlane.f32.xlu0 %v1146
  %v1148 = vpop.xlane.xlu0 %1147
  %v1149 = vsel %vm382, %v1132, 0.0
  %1150 = vadd.xlane.f32.xlu0 %v1149
  %v1151 = vpop.xlane.xlu0 %1150
  %v1152 = vsel %vm382, %v1134, 0.0
  %1153 = vadd.xlane.f32.xlu0 %v1152
  %v1154 = vpop.xlane.xlu0 %1153
  %v1155 = vsel %vm382, %v1136, 0.0
  %1156 = vadd.xlane.f32.xlu0 %v1155
  %v1157 = vpop.xlane.xlu0 %1156
  %v1158 = vsel %vm382, %v1138, 0.0
  %1159 = vadd.xlane.f32.xlu0 %v1158
  %v1160 = vpop.xlane.xlu0 %1159
  %v1161 = vsel %vm382, %v1140, 0.0
  %1162 = vadd.xlane.f32.xlu0 %v1161
  %v1163 = vpop.xlane.xlu0 %1162
  %v1164 = vsel %vm382, %v1142, 0.0
  %1165 = vadd.xlane.f32.xlu0 %v1164
  %v1166 = vpop.xlane.xlu0 %1165
  %v1167 = vrcp.pop %v1145
  %v1168 = vrcp.pop %v1148
  %v1169 = vrcp.pop %v1151
  %v1170 = vrcp.pop %v1154
  %v1171 = vrcp.pop %v1157
  %v1172 = vrcp.pop %v1160
  %v1173 = vrcp.pop %v1163
  %v1174 = vrcp.pop %v1166
  %v1175 = vmul.f32 %v1128, %v1167
  %v1176 = vmul.f32 %v1130, %v1168
  %v1177 = vmul.f32 %v1132, %v1169
  %v1178 = vmul.f32 %v1134, %v1170
  %v1179 = vmul.f32 %v1136, %v1171
  %v1180 = vmul.f32 %v1138, %v1172
  %v1181 = vmul.f32 %v1140, %v1173
  %v1182 = vmul.f32 %v1142, %v1174
  %v1183 = vpack.c.bf16 %v1176, %v1175
  %v1184 = vpack.c.bf16 %v1178, %v1177
  %v1185 = vpack.c.bf16 %v1180, %v1179
  %v1186 = vpack.c.bf16 %v1182, %v1181
  %1187 = vrot.lane.b32.xlu0 %v235, 96
  %v1188 = vpop.permute.xlu0 %1187
  %1189 = vrot.lane.b32.xlu0 %v236, 96
  %v1190 = vpop.permute.xlu0 %1189
  %v1194 = vsel %vm382, %v1183, 0
  %v1197 = vsel %vm382, %v1184, 0
  %1199 = vmatprep.subr.bf16.mxu0 0
  %1200 = vmatpush1.bf16.msra.mxu0 %v1188
  %1201 = vmatprep.subr.bf16.mxu0 0
  %1202 = vmatpush1.bf16.msra.mxu0 %v1190
  %1203 = vmatprep.subr.bf16.mxu0 0
  %1204 = vmatpush1.bf16.msra.mxu0 0
  %1205 = vmatprep.subr.bf16.mxu0 0
  %1206 = vmatpush1.bf16.msra.mxu0 0
  %1207 = vmatprep.subr.bf16.mxu0 0
  %1208 = vmatpush1.bf16.msra.mxu0 0
  %1209 = vmatprep.subr.bf16.mxu0 0
  %1210 = vmatpush1.bf16.msra.mxu0 0
  %1211 = vmatprep.subr.bf16.mxu0 0
  %1212 = vmatpush1.bf16.msra.mxu0 0
  %1213 = vmatprep.subr.bf16.mxu0 0
  %1214 = vmatpush1.bf16.msra.mxu0 0
  %1215 = vmatprep.subr.bf16.mxu0 0
  %1216 = vmatpush1.bf16.msra.mxu0 0
  %1217 = vmatprep.subr.bf16.mxu0 0
  %1218 = vmatpush1.bf16.msra.mxu0 0
  %1219 = vmatprep.subr.bf16.mxu0 0
  %1220 = vmatpush1.bf16.msra.mxu0 0
  %1221 = vmatprep.subr.bf16.mxu0 0
  %1222 = vmatpush1.bf16.msra.mxu0 0
  %1223 = vmatprep.subr.bf16.mxu0 0
  %1224 = vmatpush1.bf16.msra.mxu0 0
  %1225 = vmatprep.subr.bf16.mxu0 0
  %1226 = vmatpush1.bf16.msra.mxu0 0
  %1227 = vmatprep.subr.bf16.mxu0 0
  %1228 = vmatpush1.bf16.msra.mxu0 0
  %1229 = vmatprep.subr.bf16.mxu0 0
  %1230 = vmatpush1.bf16.msra.mxu0 0
  %1231 = vmatprep.mubr.bf16.mxu0 0
  %1232 = vmatmul.mubr.bf16.gmra.mrb[0].mxu0 %v1194
  %v1233 = vpop.f32.mrb[0].mxu0
  %v1234 = vadd.f32 0.0, %v1233
  %v1235 = vpop.f32.mrb[0].mxu0
  %v1236 = vpop.f32.mrb[0].mxu0
  %v1237 = vadd.f32 0.0, %v1236
  %v1238 = vpop.f32.mrb[0].mxu0
  %1239 = vmatprep.mubr.bf16.mxu0 0
  %1240 = vmatmul.mubr.bf16.gmra.mrb[0].mxu0 %v1197
  %v1241 = vpop.f32.mrb[0].mxu0
  %v1242 = vadd.f32 0.0, %v1241
  %v1243 = vpop.f32.mrb[0].mxu0
  %v1244 = vpop.f32.mrb[0].mxu0
  %v1245 = vadd.f32 0.0, %v1244
  %v1246 = vpop.f32.mrb[0].mxu0
  %1247 = vdwg.mxu0
  %1248 = vrot.lane.b32.xlu0 %v237, 96
  %v1249 = vpop.permute.xlu0 %1248
  %1250 = vrot.lane.b32.xlu0 %v238, 96
  %v1251 = vpop.permute.xlu0 %1250
  %v1255 = vsel %vm382, %v1185, 0
  %v1258 = vsel %vm382, %v1186, 0
  %1260 = vmatprep.subr.bf16.mxu0 0
  %1261 = vmatpush1.bf16.msra.mxu0 %v1249
  %1262 = vmatprep.subr.bf16.mxu0 0
  %1263 = vmatpush1.bf16.msra.mxu0 %v1251
  %1264 = vmatprep.subr.bf16.mxu0 0
  %1265 = vmatpush1.bf16.msra.mxu0 0
  %1266 = vmatprep.subr.bf16.mxu0 0
  %1267 = vmatpush1.bf16.msra.mxu0 0
  %1268 = vmatprep.subr.bf16.mxu0 0
  %1269 = vmatpush1.bf16.msra.mxu0 0
  %1270 = vmatprep.subr.bf16.mxu0 0
  %1271 = vmatpush1.bf16.msra.mxu0 0
  %1272 = vmatprep.subr.bf16.mxu0 0
  %1273 = vmatpush1.bf16.msra.mxu0 0
  %1274 = vmatprep.subr.bf16.mxu0 0
  %1275 = vmatpush1.bf16.msra.mxu0 0
  %1276 = vmatprep.subr.bf16.mxu0 0
  %1277 = vmatpush1.bf16.msra.mxu0 0
  %1278 = vmatprep.subr.bf16.mxu0 0
  %1279 = vmatpush1.bf16.msra.mxu0 0
  %1280 = vmatprep.subr.bf16.mxu0 0
  %1281 = vmatpush1.bf16.msra.mxu0 0
  %1282 = vmatprep.subr.bf16.mxu0 0
  %1283 = vmatpush1.bf16.msra.mxu0 0
  %1284 = vmatprep.subr.bf16.mxu0 0
  %1285 = vmatpush1.bf16.msra.mxu0 0
  %1286 = vmatprep.subr.bf16.mxu0 0
  %1287 = vmatpush1.bf16.msra.mxu0 0
  %1288 = vmatprep.subr.bf16.mxu0 0
  %1289 = vmatpush1.bf16.msra.mxu0 0
  %1290 = vmatprep.subr.bf16.mxu0 0
  %1291 = vmatpush1.bf16.msra.mxu0 0
  %1292 = vmatprep.mubr.bf16.mxu0 0
  %1293 = vmatmul.mubr.bf16.gmra.mrb[0].mxu0 %v1255
  %v1294 = vpop.f32.mrb[0].mxu0
  %v1295 = vadd.f32 0.0, %v1294
  %v1296 = vpop.f32.mrb[0].mxu0
  %v1297 = vpop.f32.mrb[0].mxu0
  %v1298 = vadd.f32 0.0, %v1297
  %v1299 = vpop.f32.mrb[0].mxu0
  %1300 = vmatprep.mubr.bf16.mxu0 0
  %1301 = vmatmul.mubr.bf16.gmra.mrb[0].mxu0 %v1258
  %v1302 = vpop.f32.mrb[0].mxu0
  %v1303 = vadd.f32 0.0, %v1302
  %v1304 = vpop.f32.mrb[0].mxu0
  %v1305 = vpop.f32.mrb[0].mxu0
  %v1306 = vadd.f32 0.0, %v1305
  %v1307 = vpop.f32.mrb[0].mxu0
  %1308 = vdwg.mxu0
  %1309 = vrot.lane.b32.xlu0 %v231, 80
  %v1310 = vpop.permute.xlu0 %1309
  %1311 = vrot.lane.b32.xlu0 %v232, 80
  %v1312 = vpop.permute.xlu0 %1311
  %1313 = vrot.lane.b32.xlu0 %v231, 16
  %v1314 = vpop.permute.xlu0 %1313
  %1315 = vrot.lane.b32.xlu0 %v232, 16
  %v1316 = vpop.permute.xlu0 %1315
  %v1318 = vsel %vm245, %v1310, 0
  %v1321 = vsel %vm245, %v1312, 0
  %v1324 = vsel %vm245, %v1314, 0
  %v1327 = vsel %vm245, %v1316, 0
  %1329 = vmatprep.subr.bf16.mxu0 0
  %1330 = vmatpush1.bf16.xpose.msra.mxu0 %v1324
  %1331 = vmatprep.subr.bf16.mxu0 0
  %1332 = vmatpush1.bf16.xpose.msra.mxu0 %v1327
  %1333 = vmatprep.subr.bf16.mxu0 0
  %1334 = vmatpush1.bf16.xpose.msra.mxu0 0
  %1335 = vmatprep.subr.bf16.mxu0 0
  %1336 = vmatpush1.bf16.xpose.msra.mxu0 0
  %1337 = vmatprep.subr.bf16.mxu0 0
  %1338 = vmatpush1.bf16.xpose.msra.mxu0 0
  %1339 = vmatprep.subr.bf16.mxu0 0
  %1340 = vmatpush1.bf16.xpose.msra.mxu0 0
  %1341 = vmatprep.subr.bf16.mxu0 0
  %1342 = vmatpush1.bf16.xpose.msra.mxu0 0
  %1343 = vmatprep.subr.bf16.mxu0 0
  %1344 = vmatpush1.bf16.xpose.msra.mxu0 0
  %1345 = vmatprep.subr.bf16.mxu0 0
  %1346 = vmatpush1.bf16.xpose.msra.mxu0 0
  %1347 = vmatprep.subr.bf16.mxu0 0
  %1348 = vmatpush1.bf16.xpose.msra.mxu0 0
  %1349 = vmatprep.subr.bf16.mxu0 0
  %1350 = vmatpush1.bf16.xpose.msra.mxu0 0
  %1351 = vmatprep.subr.bf16.mxu0 0
  %1352 = vmatpush1.bf16.xpose.msra.mxu0 0
  %1353 = vmatprep.subr.bf16.mxu0 0
  %1354 = vmatpush1.bf16.xpose.msra.mxu0 0
  %1355 = vmatprep.subr.bf16.mxu0 0
  %1356 = vmatpush1.bf16.xpose.msra.mxu0 0
  %1357 = vmatprep.subr.bf16.mxu0 0
  %1358 = vmatpush1.bf16.xpose.msra.mxu0 0
  %1359 = vmatprep.subr.bf16.mxu0 0
  %1360 = vmatpush1.bf16.xpose.msra.mxu0 0
  %1361 = vmatprep.mubr.bf16.mxu0 0
  %1362 = vmatmul.mubr.bf16.gmra.mrb[0].mxu0 %v1318
  %v1363 = vpop.f32.mrb[0].mxu0
  %v1364 = vadd.f32 0.0, %v1363
  %v1365 = vpop.f32.mrb[0].mxu0
  %v1366 = vpop.f32.mrb[0].mxu0
  %v1367 = vadd.f32 0.0, %v1366
  %v1368 = vpop.f32.mrb[0].mxu0
  %1369 = vmatprep.mubr.bf16.mxu0 0
  %1370 = vmatmul.mubr.bf16.gmra.mrb[0].mxu0 %v1321
  %v1371 = vpop.f32.mrb[0].mxu0
  %v1372 = vadd.f32 0.0, %v1371
  %v1373 = vpop.f32.mrb[0].mxu0
  %v1374 = vpop.f32.mrb[0].mxu0
  %v1375 = vadd.f32 0.0, %v1374
  %v1376 = vpop.f32.mrb[0].mxu0
  %1377 = vdwg.mxu0
  %1378 = vrot.lane.b32.xlu0 %v233, 80
  %v1379 = vpop.permute.xlu0 %1378
  %1380 = vrot.lane.b32.xlu0 %v234, 80
  %v1381 = vpop.permute.xlu0 %1380
  %1382 = vrot.lane.b32.xlu0 %v233, 16
  %v1383 = vpop.permute.xlu0 %1382
  %1384 = vrot.lane.b32.xlu0 %v234, 16
  %v1385 = vpop.permute.xlu0 %1384
  %v1387 = vsel %vm245, %v1379, 0
  %v1390 = vsel %vm245, %v1381, 0
  %v1393 = vsel %vm245, %v1383, 0
  %v1396 = vsel %vm245, %v1385, 0
  %1398 = vmatprep.subr.bf16.mxu0 0
  %1399 = vmatpush1.bf16.xpose.msra.mxu0 %v1393
  %1400 = vmatprep.subr.bf16.mxu0 0
  %1401 = vmatpush1.bf16.xpose.msra.mxu0 %v1396
  %1402 = vmatprep.subr.bf16.mxu0 0
  %1403 = vmatpush1.bf16.xpose.msra.mxu0 0
  %1404 = vmatprep.subr.bf16.mxu0 0
  %1405 = vmatpush1.bf16.xpose.msra.mxu0 0
  %1406 = vmatprep.subr.bf16.mxu0 0
  %1407 = vmatpush1.bf16.xpose.msra.mxu0 0
  %1408 = vmatprep.subr.bf16.mxu0 0
  %1409 = vmatpush1.bf16.xpose.msra.mxu0 0
  %1410 = vmatprep.subr.bf16.mxu0 0
  %1411 = vmatpush1.bf16.xpose.msra.mxu0 0
  %1412 = vmatprep.subr.bf16.mxu0 0
  %1413 = vmatpush1.bf16.xpose.msra.mxu0 0
  %1414 = vmatprep.subr.bf16.mxu0 0
  %1415 = vmatpush1.bf16.xpose.msra.mxu0 0
  %1416 = vmatprep.subr.bf16.mxu0 0
  %1417 = vmatpush1.bf16.xpose.msra.mxu0 0
  %1418 = vmatprep.subr.bf16.mxu0 0
  %1419 = vmatpush1.bf16.xpose.msra.mxu0 0
  %1420 = vmatprep.subr.bf16.mxu0 0
  %1421 = vmatpush1.bf16.xpose.msra.mxu0 0
  %1422 = vmatprep.subr.bf16.mxu0 0
  %1423 = vmatpush1.bf16.xpose.msra.mxu0 0
  %1424 = vmatprep.subr.bf16.mxu0 0
  %1425 = vmatpush1.bf16.xpose.msra.mxu0 0
  %1426 = vmatprep.subr.bf16.mxu0 0
  %1427 = vmatpush1.bf16.xpose.msra.mxu0 0
  %1428 = vmatprep.subr.bf16.mxu0 0
  %1429 = vmatpush1.bf16.xpose.msra.mxu0 0
  %1430 = vmatprep.mubr.bf16.mxu0 0
  %1431 = vmatmul.mubr.bf16.gmra.mrb[0].mxu0 %v1387
  %v1432 = vpop.f32.mrb[0].mxu0
  %v1433 = vadd.f32 0.0, %v1432
  %v1434 = vpop.f32.mrb[0].mxu0
  %v1435 = vpop.f32.mrb[0].mxu0
  %v1436 = vadd.f32 0.0, %v1435
  %v1437 = vpop.f32.mrb[0].mxu0
  %1438 = vmatprep.mubr.bf16.mxu0 0
  %1439 = vmatmul.mubr.bf16.gmra.mrb[0].mxu0 %v1390
  %v1440 = vpop.f32.mrb[0].mxu0
  %v1441 = vadd.f32 0.0, %v1440
  %v1442 = vpop.f32.mrb[0].mxu0
  %v1443 = vpop.f32.mrb[0].mxu0
  %v1444 = vadd.f32 0.0, %v1443
  %v1445 = vpop.f32.mrb[0].mxu0
  %1446 = vdwg.mxu0
  %v1447 = vmul.f32 %v1364, 0.25
  %v1448 = vmul.f32 %v1367, 0.25
  %v1449 = vmul.f32 %v1372, 0.25
  %v1450 = vmul.f32 %v1375, 0.25
  %v1451 = vmul.f32 %v1433, 0.25
  %v1452 = vmul.f32 %v1436, 0.25
  %v1453 = vmul.f32 %v1441, 0.25
  %v1454 = vmul.f32 %v1444, 0.25
  %v1455 = vsel %vm382, %v1447, -inf
  %1456 = vmax.xlane.f32.xlu0 %v1455
  %v1457 = vpop.xlane.xlu0 %1456
  %v1458 = vsel %vm382, %v1448, -inf
  %1459 = vmax.xlane.f32.xlu0 %v1458
  %v1460 = vpop.xlane.xlu0 %1459
  %v1461 = vsel %vm382, %v1449, -inf
  %1462 = vmax.xlane.f32.xlu0 %v1461
  %v1463 = vpop.xlane.xlu0 %1462
  %v1464 = vsel %vm382, %v1450, -inf
  %1465 = vmax.xlane.f32.xlu0 %v1464
  %v1466 = vpop.xlane.xlu0 %1465
  %v1467 = vsel %vm382, %v1451, -inf
  %1468 = vmax.xlane.f32.xlu0 %v1467
  %v1469 = vpop.xlane.xlu0 %1468
  %v1470 = vsel %vm382, %v1452, -inf
  %1471 = vmax.xlane.f32.xlu0 %v1470
  %v1472 = vpop.xlane.xlu0 %1471
  %v1473 = vsel %vm382, %v1453, -inf
  %1474 = vmax.xlane.f32.xlu0 %v1473
  %v1475 = vpop.xlane.xlu0 %1474
  %v1476 = vsel %vm382, %v1454, -inf
  %1477 = vmax.xlane.f32.xlu0 %v1476
  %v1478 = vpop.xlane.xlu0 %1477
  %v1479 = vsub.f32 %v1447, %v1457
  %v1480 = vsub.f32 %v1448, %v1460
  %v1481 = vsub.f32 %v1449, %v1463
  %v1482 = vsub.f32 %v1450, %v1466
  %v1483 = vsub.f32 %v1451, %v1469
  %v1484 = vsub.f32 %v1452, %v1472
  %v1485 = vsub.f32 %v1453, %v1475
  %v1486 = vsub.f32 %v1454, %v1478
  %v1487 = vmul.f32 %v1479, 1.442695
  %v1488 = vpow.pop %v1487
  %v1489 = vmul.f32 %v1480, 1.442695
  %v1490 = vpow.pop %v1489
  %v1491 = vmul.f32 %v1481, 1.442695
  %v1492 = vpow.pop %v1491
  %v1493 = vmul.f32 %v1482, 1.442695
  %v1494 = vpow.pop %v1493
  %v1495 = vmul.f32 %v1483, 1.442695
  %v1496 = vpow.pop %v1495
  %v1497 = vmul.f32 %v1484, 1.442695
  %v1498 = vpow.pop %v1497
  %v1499 = vmul.f32 %v1485, 1.442695
  %v1500 = vpow.pop %v1499
  %v1501 = vmul.f32 %v1486, 1.442695
  %v1502 = vpow.pop %v1501
  %v1503 = vsel %vm382, %v1488, 0.0
  %1504 = vadd.xlane.f32.xlu0 %v1503
  %v1505 = vpop.xlane.xlu0 %1504
  %v1506 = vsel %vm382, %v1490, 0.0
  %1507 = vadd.xlane.f32.xlu0 %v1506
  %v1508 = vpop.xlane.xlu0 %1507
  %v1509 = vsel %vm382, %v1492, 0.0
  %1510 = vadd.xlane.f32.xlu0 %v1509
  %v1511 = vpop.xlane.xlu0 %1510
  %v1512 = vsel %vm382, %v1494, 0.0
  %1513 = vadd.xlane.f32.xlu0 %v1512
  %v1514 = vpop.xlane.xlu0 %1513
  %v1515 = vsel %vm382, %v1496, 0.0
  %1516 = vadd.xlane.f32.xlu0 %v1515
  %v1517 = vpop.xlane.xlu0 %1516
  %v1518 = vsel %vm382, %v1498, 0.0
  %1519 = vadd.xlane.f32.xlu0 %v1518
  %v1520 = vpop.xlane.xlu0 %1519
  %v1521 = vsel %vm382, %v1500, 0.0
  %1522 = vadd.xlane.f32.xlu0 %v1521
  %v1523 = vpop.xlane.xlu0 %1522
  %v1524 = vsel %vm382, %v1502, 0.0
  %1525 = vadd.xlane.f32.xlu0 %v1524
  %v1526 = vpop.xlane.xlu0 %1525
  %v1527 = vrcp.pop %v1505
  %v1528 = vrcp.pop %v1508
  %v1529 = vrcp.pop %v1511
  %v1530 = vrcp.pop %v1514
  %v1531 = vrcp.pop %v1517
  %v1532 = vrcp.pop %v1520
  %v1533 = vrcp.pop %v1523
  %v1534 = vrcp.pop %v1526
  %v1535 = vmul.f32 %v1488, %v1527
  %v1536 = vmul.f32 %v1490, %v1528
  %v1537 = vmul.f32 %v1492, %v1529
  %v1538 = vmul.f32 %v1494, %v1530
  %v1539 = vmul.f32 %v1496, %v1531
  %v1540 = vmul.f32 %v1498, %v1532
  %v1541 = vmul.f32 %v1500, %v1533
  %v1542 = vmul.f32 %v1502, %v1534
  %v1543 = vpack.c.bf16 %v1536, %v1535
  %v1544 = vpack.c.bf16 %v1538, %v1537
  %v1545 = vpack.c.bf16 %v1540, %v1539
  %v1546 = vpack.c.bf16 %v1542, %v1541
  %1547 = vrot.lane.b32.xlu0 %v235, 80
  %v1548 = vpop.permute.xlu0 %1547
  %1549 = vrot.lane.b32.xlu0 %v236, 80
  %v1550 = vpop.permute.xlu0 %1549
  %v1554 = vsel %vm382, %v1543, 0
  %v1557 = vsel %vm382, %v1544, 0
  %1559 = vmatprep.subr.bf16.mxu0 0
  %1560 = vmatpush1.bf16.msra.mxu0 %v1548
  %1561 = vmatprep.subr.bf16.mxu0 0
  %1562 = vmatpush1.bf16.msra.mxu0 %v1550
  %1563 = vmatprep.subr.bf16.mxu0 0
  %1564 = vmatpush1.bf16.msra.mxu0 0
  %1565 = vmatprep.subr.bf16.mxu0 0
  %1566 = vmatpush1.bf16.msra.mxu0 0
  %1567 = vmatprep.subr.bf16.mxu0 0
  %1568 = vmatpush1.bf16.msra.mxu0 0
  %1569 = vmatprep.subr.bf16.mxu0 0
  %1570 = vmatpush1.bf16.msra.mxu0 0
  %1571 = vmatprep.subr.bf16.mxu0 0
  %1572 = vmatpush1.bf16.msra.mxu0 0
  %1573 = vmatprep.subr.bf16.mxu0 0
  %1574 = vmatpush1.bf16.msra.mxu0 0
  %1575 = vmatprep.subr.bf16.mxu0 0
  %1576 = vmatpush1.bf16.msra.mxu0 0
  %1577 = vmatprep.subr.bf16.mxu0 0
  %1578 = vmatpush1.bf16.msra.mxu0 0
  %1579 = vmatprep.subr.bf16.mxu0 0
  %1580 = vmatpush1.bf16.msra.mxu0 0
  %1581 = vmatprep.subr.bf16.mxu0 0
  %1582 = vmatpush1.bf16.msra.mxu0 0
  %1583 = vmatprep.subr.bf16.mxu0 0
  %1584 = vmatpush1.bf16.msra.mxu0 0
  %1585 = vmatprep.subr.bf16.mxu0 0
  %1586 = vmatpush1.bf16.msra.mxu0 0
  %1587 = vmatprep.subr.bf16.mxu0 0
  %1588 = vmatpush1.bf16.msra.mxu0 0
  %1589 = vmatprep.subr.bf16.mxu0 0
  %1590 = vmatpush1.bf16.msra.mxu0 0
  %1591 = vmatprep.mubr.bf16.mxu0 0
  %1592 = vmatmul.mubr.bf16.gmra.mrb[0].mxu0 %v1554
  %v1593 = vpop.f32.mrb[0].mxu0
  %v1594 = vadd.f32 0.0, %v1593
  %v1595 = vpop.f32.mrb[0].mxu0
  %v1596 = vpop.f32.mrb[0].mxu0
  %v1597 = vadd.f32 0.0, %v1596
  %v1598 = vpop.f32.mrb[0].mxu0
  %1599 = vmatprep.mubr.bf16.mxu0 0
  %1600 = vmatmul.mubr.bf16.gmra.mrb[0].mxu0 %v1557
  %v1601 = vpop.f32.mrb[0].mxu0
  %v1602 = vadd.f32 0.0, %v1601
  %v1603 = vpop.f32.mrb[0].mxu0
  %v1604 = vpop.f32.mrb[0].mxu0
  %v1605 = vadd.f32 0.0, %v1604
  %v1606 = vpop.f32.mrb[0].mxu0
  %1607 = vdwg.mxu0
  %1608 = vrot.lane.b32.xlu0 %v237, 80
  %v1609 = vpop.permute.xlu0 %1608
  %1610 = vrot.lane.b32.xlu0 %v238, 80
  %v1611 = vpop.permute.xlu0 %1610
  %v1615 = vsel %vm382, %v1545, 0
  %v1618 = vsel %vm382, %v1546, 0
  %1620 = vmatprep.subr.bf16.mxu0 0
  %1621 = vmatpush1.bf16.msra.mxu0 %v1609
  %1622 = vmatprep.subr.bf16.mxu0 0
  %1623 = vmatpush1.bf16.msra.mxu0 %v1611
  %1624 = vmatprep.subr.bf16.mxu0 0
  %1625 = vmatpush1.bf16.msra.mxu0 0
  %1626 = vmatprep.subr.bf16.mxu0 0
  %1627 = vmatpush1.bf16.msra.mxu0 0
  %1628 = vmatprep.subr.bf16.mxu0 0
  %1629 = vmatpush1.bf16.msra.mxu0 0
  %1630 = vmatprep.subr.bf16.mxu0 0
  %1631 = vmatpush1.bf16.msra.mxu0 0
  %1632 = vmatprep.subr.bf16.mxu0 0
  %1633 = vmatpush1.bf16.msra.mxu0 0
  %1634 = vmatprep.subr.bf16.mxu0 0
  %1635 = vmatpush1.bf16.msra.mxu0 0
  %1636 = vmatprep.subr.bf16.mxu0 0
  %1637 = vmatpush1.bf16.msra.mxu0 0
  %1638 = vmatprep.subr.bf16.mxu0 0
  %1639 = vmatpush1.bf16.msra.mxu0 0
  %1640 = vmatprep.subr.bf16.mxu0 0
  %1641 = vmatpush1.bf16.msra.mxu0 0
  %1642 = vmatprep.subr.bf16.mxu0 0
  %1643 = vmatpush1.bf16.msra.mxu0 0
  %1644 = vmatprep.subr.bf16.mxu0 0
  %1645 = vmatpush1.bf16.msra.mxu0 0
  %1646 = vmatprep.subr.bf16.mxu0 0
  %1647 = vmatpush1.bf16.msra.mxu0 0
  %1648 = vmatprep.subr.bf16.mxu0 0
  %1649 = vmatpush1.bf16.msra.mxu0 0
  %1650 = vmatprep.subr.bf16.mxu0 0
  %1651 = vmatpush1.bf16.msra.mxu0 0
  %1652 = vmatprep.mubr.bf16.mxu0 0
  %1653 = vmatmul.mubr.bf16.gmra.mrb[0].mxu0 %v1615
  %v1654 = vpop.f32.mrb[0].mxu0
  %v1655 = vadd.f32 0.0, %v1654
  %v1656 = vpop.f32.mrb[0].mxu0
  %v1657 = vpop.f32.mrb[0].mxu0
  %v1658 = vadd.f32 0.0, %v1657
  %v1659 = vpop.f32.mrb[0].mxu0
  %1660 = vmatprep.mubr.bf16.mxu0 0
  %1661 = vmatmul.mubr.bf16.gmra.mrb[0].mxu0 %v1618
  %v1662 = vpop.f32.mrb[0].mxu0
  %v1663 = vadd.f32 0.0, %v1662
  %v1664 = vpop.f32.mrb[0].mxu0
  %v1665 = vpop.f32.mrb[0].mxu0
  %v1666 = vadd.f32 0.0, %v1665
  %v1667 = vpop.f32.mrb[0].mxu0
  %1668 = vdwg.mxu0
  %1677 = vrot.lane.b32.xlu0 %v872, 16
  %v1678 = vpop.permute.xlu0 %1677
  %1679 = vrot.lane.b32.xlu0 %v875, 16
  %v1680 = vpop.permute.xlu0 %1679
  %1681 = vrot.lane.b32.xlu0 %v880, 16
  %v1682 = vpop.permute.xlu0 %1681
  %1683 = vrot.lane.b32.xlu0 %v883, 16
  %v1684 = vpop.permute.xlu0 %1683
  %1685 = vrot.lane.b32.xlu0 %v935, 16
  %v1686 = vpop.permute.xlu0 %1685
  %1687 = vrot.lane.b32.xlu0 %v938, 16
  %v1688 = vpop.permute.xlu0 %1687
  %1689 = vrot.lane.b32.xlu0 %v943, 16
  %v1690 = vpop.permute.xlu0 %1689
  %1691 = vrot.lane.b32.xlu0 %v946, 16
  %v1692 = vpop.permute.xlu0 %1691
  %1709 = vrot.lane.b32.xlu0 %v1234, 32
  %v1710 = vpop.permute.xlu0 %1709
  %1711 = vrot.lane.b32.xlu0 %v1237, 32
  %v1712 = vpop.permute.xlu0 %1711
  %1713 = vrot.lane.b32.xlu0 %v1242, 32
  %v1714 = vpop.permute.xlu0 %1713
  %1715 = vrot.lane.b32.xlu0 %v1245, 32
  %v1716 = vpop.permute.xlu0 %1715
  %1717 = vrot.lane.b32.xlu0 %v1295, 32
  %v1718 = vpop.permute.xlu0 %1717
  %1719 = vrot.lane.b32.xlu0 %v1298, 32
  %v1720 = vpop.permute.xlu0 %1719
  %1721 = vrot.lane.b32.xlu0 %v1303, 32
  %v1722 = vpop.permute.xlu0 %1721
  %1723 = vrot.lane.b32.xlu0 %v1306, 32
  %v1724 = vpop.permute.xlu0 %1723
  %1741 = vrot.lane.b32.xlu0 %v1594, 48
  %v1742 = vpop.permute.xlu0 %1741
  %1743 = vrot.lane.b32.xlu0 %v1597, 48
  %v1744 = vpop.permute.xlu0 %1743
  %1745 = vrot.lane.b32.xlu0 %v1602, 48
  %v1746 = vpop.permute.xlu0 %1745
  %1747 = vrot.lane.b32.xlu0 %v1605, 48
  %v1748 = vpop.permute.xlu0 %1747
  %1749 = vrot.lane.b32.xlu0 %v1655, 48
  %v1750 = vpop.permute.xlu0 %1749
  %1751 = vrot.lane.b32.xlu0 %v1658, 48
  %v1752 = vpop.permute.xlu0 %1751
  %1753 = vrot.lane.b32.xlu0 %v1663, 48
  %v1754 = vpop.permute.xlu0 %1753
  %1755 = vrot.lane.b32.xlu0 %v1666, 48
  %v1756 = vpop.permute.xlu0 %1755
  %v1765 = vsel %vm245, %v516, %v1678
  %v1766 = vsel %vm245, %v519, %v1680
  %v1767 = vsel %vm245, %v524, %v1682
  %v1768 = vsel %vm245, %v527, %v1684
  %v1769 = vsel %vm245, %v571, %v1686
  %v1770 = vsel %vm245, %v574, %v1688
  %v1771 = vsel %vm245, %v579, %v1690
  %v1772 = vsel %vm245, %v582, %v1692
  %v1773 = vsel %vm382, %v1765, %v1710
  %v1774 = vsel %vm382, %v1766, %v1712
  %v1775 = vsel %vm382, %v1767, %v1714
  %v1776 = vsel %vm382, %v1768, %v1716
  %v1777 = vsel %vm382, %v1769, %v1718
  %v1778 = vsel %vm382, %v1770, %v1720
  %v1779 = vsel %vm382, %v1771, %v1722
  %v1780 = vsel %vm382, %v1772, %v1724
  %vm1781 = vcmask 392192
  %v1782 = vsel %vm1781, %v1773, %v1742
  %v1783 = vsel %vm1781, %v1774, %v1744
  %v1784 = vsel %vm1781, %v1775, %v1746
  %v1785 = vsel %vm1781, %v1776, %v1748
  %v1786 = vsel %vm1781, %v1777, %v1750
  %v1787 = vsel %vm1781, %v1778, %v1752
  %v1788 = vsel %vm1781, %v1779, %v1754
  %v1789 = vsel %vm1781, %v1780, %v1756
  %v1790 = vpack.c.bf16 %v1783, %v1782
  %v1791 = vpack.c.bf16 %v1785, %v1784
  %v1792 = vpack.c.bf16 %v1787, %v1786
  %v1793 = vpack.c.bf16 %v1789, %v1788
  %v1794 = vld [vmem:[%s3] sm:$0xf]
  %v1795 = vld [vmem:[%s3 + $0x4] sm:$0xf]
  %v1796 = vld [vmem:[%s3 + $0x8] sm:$0xf]
  %v1797 = vld [vmem:[%s3 + $0xc] sm:$0xf]
  %v1798 = vld [vmem:[%s3 + $0x10] sm:$0xf]
  %v1799 = vld [vmem:[%s3 + $0x14] sm:$0xf]
  %v1800 = vld [vmem:[%s3 + $0x18] sm:$0xf]
  %v1801 = vld [vmem:[%s3 + $0x1c] sm:$0xf]
  %v1802 = vld [vmem:[%s4] sm:$0x1]
  %v1804 = vlaneseq
  %v1805 = vshrl.u32 %v1804, 7
  %v1806 = vsub.s32 0, %v1805
  %v1807 = vrot.slane %v1802, %v1806
  %v1817 = vunpack.c.l.b16 %v1794
  %v1818 = vunpack.c.l.b16 %v1795
  %v1819 = vunpack.c.l.b16 %v1796
  %v1820 = vunpack.c.l.b16 %v1797
  %v1821 = vunpack.c.l.b16 %v1798
  %v1822 = vunpack.c.l.b16 %v1799
  %v1823 = vunpack.c.l.b16 %v1800
  %v1824 = vunpack.c.l.b16 %v1801
  %v1825 = vpack.c.b16 %v1818, %v1817
  %v1826 = vpack.c.b16 %v1820, %v1819
  %v1827 = vpack.c.b16 %v1822, %v1821
  %v1828 = vpack.c.b16 %v1824, %v1823
  %v1834 = vsel %vm145, %v1790, 0
  %v1837 = vsel %vm145, %v1791, 0
  %v1840 = vsel %vm145, %v1792, 0
  %v1843 = vsel %vm145, %v1793, 0
  %1845 = vmatprep.subr.bf16.mxu0 0
  %1846 = vmatpush1.bf16.msra.mxu0 %v1825
  %1847 = vmatprep.subr.bf16.mxu0 0
  %1848 = vmatpush1.bf16.msra.mxu0 %v1826
  %1849 = vmatprep.subr.bf16.mxu0 0
  %1850 = vmatpush1.bf16.msra.mxu0 %v1827
  %1851 = vmatprep.subr.bf16.mxu0 0
  %1852 = vmatpush1.bf16.msra.mxu0 %v1828
  %1853 = vmatprep.subr.bf16.mxu0 0
  %1854 = vmatpush1.bf16.msra.mxu0 0
  %1855 = vmatprep.subr.bf16.mxu0 0
  %1856 = vmatpush1.bf16.msra.mxu0 0
  %1857 = vmatprep.subr.bf16.mxu0 0
  %1858 = vmatpush1.bf16.msra.mxu0 0
  %1859 = vmatprep.subr.bf16.mxu0 0
  %1860 = vmatpush1.bf16.msra.mxu0 0
  %1861 = vmatprep.subr.bf16.mxu0 0
  %1862 = vmatpush1.bf16.msra.mxu0 0
  %1863 = vmatprep.subr.bf16.mxu0 0
  %1864 = vmatpush1.bf16.msra.mxu0 0
  %1865 = vmatprep.subr.bf16.mxu0 0
  %1866 = vmatpush1.bf16.msra.mxu0 0
  %1867 = vmatprep.subr.bf16.mxu0 0
  %1868 = vmatpush1.bf16.msra.mxu0 0
  %1869 = vmatprep.subr.bf16.mxu0 0
  %1870 = vmatpush1.bf16.msra.mxu0 0
  %1871 = vmatprep.subr.bf16.mxu0 0
  %1872 = vmatpush1.bf16.msra.mxu0 0
  %1873 = vmatprep.subr.bf16.mxu0 0
  %1874 = vmatpush1.bf16.msra.mxu0 0
  %1875 = vmatprep.subr.bf16.mxu0 0
  %1876 = vmatpush1.bf16.msra.mxu0 0
  %1877 = vmatprep.mubr.bf16.mxu0 0
  %1878 = vmatmul.mubr.bf16.gmra.mrb[0].mxu0 %v1834
  %v1879 = vpop.f32.mrb[0].mxu0
  %v1880 = vadd.f32 %v1807, %v1879
  %v1881 = vpop.f32.mrb[0].mxu0
  %v1882 = vpop.f32.mrb[0].mxu0
  %v1883 = vadd.f32 %v1807, %v1882
  %v1884 = vpop.f32.mrb[0].mxu0
  %1885 = vmatprep.mubr.bf16.mxu0 0
  %1886 = vmatmul.mubr.bf16.gmra.mrb[0].mxu0 %v1837
  %v1887 = vpop.f32.mrb[0].mxu0
  %v1888 = vadd.f32 %v1807, %v1887
  %v1889 = vpop.f32.mrb[0].mxu0
  %v1890 = vpop.f32.mrb[0].mxu0
  %v1891 = vadd.f32 %v1807, %v1890
  %v1892 = vpop.f32.mrb[0].mxu0
  %1893 = vmatprep.mubr.bf16.mxu0 0
  %1894 = vmatmul.mubr.bf16.gmra.mrb[0].mxu0 %v1840
  %v1895 = vpop.f32.mrb[0].mxu0
  %v1896 = vadd.f32 %v1807, %v1895
  %v1897 = vpop.f32.mrb[0].mxu0
  %v1898 = vpop.f32.mrb[0].mxu0
  %v1899 = vadd.f32 %v1807, %v1898
  %v1900 = vpop.f32.mrb[0].mxu0
  %1901 = vmatprep.mubr.bf16.mxu0 0
  %1902 = vmatmul.mubr.bf16.gmra.mrb[0].mxu0 %v1843
  %v1903 = vpop.f32.mrb[0].mxu0
  %v1904 = vadd.f32 %v1807, %v1903
  %v1905 = vpop.f32.mrb[0].mxu0
  %v1906 = vpop.f32.mrb[0].mxu0
  %v1907 = vadd.f32 %v1807, %v1906
  %v1908 = vpop.f32.mrb[0].mxu0
  %1909 = vdwg.mxu0
  %v1910 = vadd.f32 %v33, %v1880
  %v1911 = vadd.f32 %v34, %v1883
  %v1912 = vadd.f32 %v35, %v1888
  %v1913 = vadd.f32 %v36, %v1891
  %v1914 = vadd.f32 %v37, %v1896
  %v1915 = vadd.f32 %v38, %v1899
  %v1916 = vadd.f32 %v39, %v1904
  %v1917 = vadd.f32 %v40, %v1907
  %v1918 = vadd.f32 %v1910, 0.0
  %v1919 = vadd.f32 %v1911, 0.0
  %v1920 = vadd.f32 %v1914, 0.0
  %v1921 = vadd.f32 %v1915, 0.0
  %vm1922 = vcmp.ge.f32.partialorder %v1918, 0.5
  %vm1923 = vcmp.ge.f32.partialorder %v1919, 0.5
  %vm1924 = vcmp.ge.f32.partialorder %v1920, 0.5
  %vm1925 = vcmp.ge.f32.partialorder %v1921, 0.5
  %v1926 = vsel %vm1922, 1, 0
  %v1927 = vsel %vm1923, 1, 0
  %v1928 = vsel %vm1924, 1, 0
  %v1929 = vsel %vm1925, 1, 0
  %v1930 = vcvt.s32.f32 %v1926
  %v1931 = vcvt.s32.f32 %v1927
  %v1932 = vcvt.s32.f32 %v1928
  %v1933 = vcvt.s32.f32 %v1929
  %v1934 = vsel %vm1922, 0.0, %v1918
  %v1935 = vsel %vm1923, 0.0, %v1919
  %v1936 = vsel %vm1924, 0.0, %v1920
  %v1937 = vsel %vm1925, 0.0, %v1921
  %v1938 = vmul.f32 %v1934, 0.5
  %v1939 = vmul.f32 %v1935, 0.5
  %v1940 = vmul.f32 %v1936, 0.5
  %v1941 = vmul.f32 %v1937, 0.5
  %v1942 = vadd.f32 %v1938, %v1912
  %v1943 = vadd.f32 %v1939, %v1913
  %v1944 = vadd.f32 %v1940, %v1916
  %v1945 = vadd.f32 %v1941, %v1917
  %vm1946 = vcmp.ge.f32.partialorder %v1942, 0.5
  %vm1947 = vcmp.ge.f32.partialorder %v1943, 0.5
  %vm1948 = vcmp.ge.f32.partialorder %v1944, 0.5
  %vm1949 = vcmp.ge.f32.partialorder %v1945, 0.5
  %v1950 = vsel %vm1946, 1, 0
  %v1951 = vsel %vm1947, 1, 0
  %v1952 = vsel %vm1948, 1, 0
  %v1953 = vsel %vm1949, 1, 0
  %v1954 = vcvt.s32.f32 %v1950
  %v1955 = vcvt.s32.f32 %v1951
  %v1956 = vcvt.s32.f32 %v1952
  %v1957 = vcvt.s32.f32 %v1953
  %v1958 = vpack.c.bf16 %v1931, %v1930
  %v1959 = vpack.c.bf16 %v1955, %v1954
  %v1960 = vpack.c.bf16 %v1933, %v1932
  %v1961 = vpack.c.bf16 %v1957, %v1956
  %v1962 = vld [vmem:[%s5] sm:$0xff]
  %v1963 = vld [vmem:[%s5 + $0x8] sm:$0xff]
  %v1964 = vld [vmem:[%s5 + $0x10] sm:$0xff]
  %v1965 = vld [vmem:[%s5 + $0x18] sm:$0xff]
  %v1966 = vld [vmem:[%s5 + $0x20] sm:$0xff]
  %v1967 = vld [vmem:[%s5 + $0x28] sm:$0xff]
  %v1968 = vld [vmem:[%s5 + $0x30] sm:$0xff]
  %v1969 = vld [vmem:[%s5 + $0x38] sm:$0xff]
  %v1970 = vld [vmem:[%s6] sm:$0x3]
  %v1972 = vlaneseq
  %v1973 = vshrl.u32 %v1972, 7
  %v1974 = vsub.s32 0, %v1973
  %v1975 = vrot.slane %v1970, %v1974
  %v1976 = vlaneseq
  %v1977 = vshrl.u32 %v1976, 7
  %v1978 = vsub.s32 1, %v1977
  %v1979 = vrot.slane %v1970, %v1978
  %v1990 = vunpack.c.l.b16 %v1962
  %v1991 = vunpack.c.h.b16 %v1962
  %v1992 = vunpack.c.l.b16 %v1963
  %v1993 = vunpack.c.h.b16 %v1963
  %v1994 = vunpack.c.l.b16 %v1964
  %v1995 = vunpack.c.h.b16 %v1964
  %v1996 = vunpack.c.l.b16 %v1965
  %v1997 = vunpack.c.h.b16 %v1965
  %v1998 = vunpack.c.l.b16 %v1966
  %v1999 = vunpack.c.h.b16 %v1966
  %v2000 = vunpack.c.l.b16 %v1967
  %v2001 = vunpack.c.h.b16 %v1967
  %v2002 = vunpack.c.l.b16 %v1968
  %v2003 = vunpack.c.h.b16 %v1968
  %v2004 = vunpack.c.l.b16 %v1969
  %v2005 = vunpack.c.h.b16 %v1969
  %v2006 = vpack.c.b16 %v1992, %v1990
  %v2007 = vpack.c.b16 %v1993, %v1991
  %v2008 = vpack.c.b16 %v1996, %v1994
  %v2009 = vpack.c.b16 %v1997, %v1995
  %v2010 = vpack.c.b16 %v2000, %v1998
  %v2011 = vpack.c.b16 %v2001, %v1999
  %v2012 = vpack.c.b16 %v2004, %v2002
  %v2013 = vpack.c.b16 %v2005, %v2003
  %v2023 = vsel %vm145, %v1958, 0
  %v2026 = vsel %vm145, %v1959, 0
  %v2029 = vsel %vm145, %v1960, 0
  %v2032 = vsel %vm145, %v1961, 0
  %2034 = vmatprep.subr.bf16.mxu0 %v2007
  %2035 = vmatpush1.bf16.msra.mxu0 %v2006
  %2036 = vmatprep.subr.bf16.mxu0 %v2009
  %2037 = vmatpush1.bf16.msra.mxu0 %v2008
  %2038 = vmatprep.subr.bf16.mxu0 %v2011
  %2039 = vmatpush1.bf16.msra.mxu0 %v2010
  %2040 = vmatprep.subr.bf16.mxu0 %v2013
  %2041 = vmatpush1.bf16.msra.mxu0 %v2012
  %2042 = vmatprep.subr.bf16.mxu0 0
  %2043 = vmatpush1.bf16.msra.mxu0 0
  %2044 = vmatprep.subr.bf16.mxu0 0
  %2045 = vmatpush1.bf16.msra.mxu0 0
  %2046 = vmatprep.subr.bf16.mxu0 0
  %2047 = vmatpush1.bf16.msra.mxu0 0
  %2048 = vmatprep.subr.bf16.mxu0 0
  %2049 = vmatpush1.bf16.msra.mxu0 0
  %2050 = vmatprep.subr.bf16.mxu0 0
  %2051 = vmatpush1.bf16.msra.mxu0 0
  %2052 = vmatprep.subr.bf16.mxu0 0
  %2053 = vmatpush1.bf16.msra.mxu0 0
  %2054 = vmatprep.subr.bf16.mxu0 0
  %2055 = vmatpush1.bf16.msra.mxu0 0
  %2056 = vmatprep.subr.bf16.mxu0 0
  %2057 = vmatpush1.bf16.msra.mxu0 0
  %2058 = vmatprep.subr.bf16.mxu0 0
  %2059 = vmatpush1.bf16.msra.mxu0 0
  %2060 = vmatprep.subr.bf16.mxu0 0
  %2061 = vmatpush1.bf16.msra.mxu0 0
  %2062 = vmatprep.subr.bf16.mxu0 0
  %2063 = vmatpush1.bf16.msra.mxu0 0
  %2064 = vmatprep.subr.bf16.mxu0 0
  %2065 = vmatpush1.bf16.msra.mxu0 0
  %2066 = vmatprep.mubr.bf16.mxu0 0
  %2067 = vmatmul.mubr.bf16.gmra.mrb[0].mxu0 %v2023
  %v2068 = vpop.f32.mrb[0].mxu0
  %v2069 = vadd.f32 %v1975, %v2068
  %v2070 = vpop.f32.mrb[0].mxu0
  %v2071 = vadd.f32 %v1979, %v2070
  %v2072 = vpop.f32.mrb[0].mxu0
  %v2073 = vadd.f32 %v1975, %v2072
  %v2074 = vpop.f32.mrb[0].mxu0
  %v2075 = vadd.f32 %v1979, %v2074
  %2076 = vmatprep.mubr.bf16.mxu0 0
  %2077 = vmatmul.mubr.bf16.gmra.mrb[0].mxu0 %v2026
  %v2078 = vpop.f32.mrb[0].mxu0
  %v2079 = vadd.f32 %v1975, %v2078
  %v2080 = vpop.f32.mrb[0].mxu0
  %v2081 = vadd.f32 %v1979, %v2080
  %v2082 = vpop.f32.mrb[0].mxu0
  %v2083 = vadd.f32 %v1975, %v2082
  %v2084 = vpop.f32.mrb[0].mxu0
  %v2085 = vadd.f32 %v1979, %v2084
  %2086 = vmatprep.mubr.bf16.mxu0 0
  %2087 = vmatmul.mubr.bf16.gmra.mrb[0].mxu0 %v2029
  %v2088 = vpop.f32.mrb[0].mxu0
  %v2089 = vadd.f32 %v1975, %v2088
  %v2090 = vpop.f32.mrb[0].mxu0
  %v2091 = vadd.f32 %v1979, %v2090
  %v2092 = vpop.f32.mrb[0].mxu0
  %v2093 = vadd.f32 %v1975, %v2092
  %v2094 = vpop.f32.mrb[0].mxu0
  %v2095 = vadd.f32 %v1979, %v2094
  %2096 = vmatprep.mubr.bf16.mxu0 0
  %2097 = vmatmul.mubr.bf16.gmra.mrb[0].mxu0 %v2032
  %v2098 = vpop.f32.mrb[0].mxu0
  %v2099 = vadd.f32 %v1975, %v2098
  %v2100 = vpop.f32.mrb[0].mxu0
  %v2101 = vadd.f32 %v1979, %v2100
  %v2102 = vpop.f32.mrb[0].mxu0
  %v2103 = vadd.f32 %v1975, %v2102
  %v2104 = vpop.f32.mrb[0].mxu0
  %v2105 = vadd.f32 %v1979, %v2104
  %2106 = vdwg.mxu0
  %v2107 = vadd.f32 %v2069, 0.0
  %v2108 = vadd.f32 %v2071, 0.0
  %v2109 = vadd.f32 %v2073, 0.0
  %v2110 = vadd.f32 %v2075, 0.0
  %v2111 = vadd.f32 %v2089, 0.0
  %v2112 = vadd.f32 %v2091, 0.0
  %v2113 = vadd.f32 %v2093, 0.0
  %v2114 = vadd.f32 %v2095, 0.0
  %vm2115 = vcmp.ge.f32.partialorder %v2107, 0.5
  %vm2116 = vcmp.ge.f32.partialorder %v2108, 0.5
  %vm2117 = vcmp.ge.f32.partialorder %v2109, 0.5
  %vm2118 = vcmp.ge.f32.partialorder %v2110, 0.5
  %vm2119 = vcmp.ge.f32.partialorder %v2111, 0.5
  %vm2120 = vcmp.ge.f32.partialorder %v2112, 0.5
  %vm2121 = vcmp.ge.f32.partialorder %v2113, 0.5
  %vm2122 = vcmp.ge.f32.partialorder %v2114, 0.5
  %v2123 = vsel %vm2115, 1, 0
  %v2124 = vsel %vm2116, 1, 0
  %v2125 = vsel %vm2117, 1, 0
  %v2126 = vsel %vm2118, 1, 0
  %v2127 = vsel %vm2119, 1, 0
  %v2128 = vsel %vm2120, 1, 0
  %v2129 = vsel %vm2121, 1, 0
  %v2130 = vsel %vm2122, 1, 0
  %v2131 = vcvt.s32.f32 %v2123
  %v2132 = vcvt.s32.f32 %v2124
  %v2133 = vcvt.s32.f32 %v2125
  %v2134 = vcvt.s32.f32 %v2126
  %v2135 = vcvt.s32.f32 %v2127
  %v2136 = vcvt.s32.f32 %v2128
  %v2137 = vcvt.s32.f32 %v2129
  %v2138 = vcvt.s32.f32 %v2130
  %v2139 = vsel %vm2115, 0.0, %v2107
  %v2140 = vsel %vm2116, 0.0, %v2108
  %v2141 = vsel %vm2117, 0.0, %v2109
  %v2142 = vsel %vm2118, 0.0, %v2110
  %v2143 = vsel %vm2119, 0.0, %v2111
  %v2144 = vsel %vm2120, 0.0, %v2112
  %v2145 = vsel %vm2121, 0.0, %v2113
  %v2146 = vsel %vm2122, 0.0, %v2114
  %v2147 = vmul.f32 %v2139, 0.5
  %v2148 = vmul.f32 %v2140, 0.5
  %v2149 = vmul.f32 %v2141, 0.5
  %v2150 = vmul.f32 %v2142, 0.5
  %v2151 = vmul.f32 %v2143, 0.5
  %v2152 = vmul.f32 %v2144, 0.5
  %v2153 = vmul.f32 %v2145, 0.5
  %v2154 = vmul.f32 %v2146, 0.5
  %v2155 = vadd.f32 %v2147, %v2079
  %v2156 = vadd.f32 %v2148, %v2081
  %v2157 = vadd.f32 %v2149, %v2083
  %v2158 = vadd.f32 %v2150, %v2085
  %v2159 = vadd.f32 %v2151, %v2099
  %v2160 = vadd.f32 %v2152, %v2101
  %v2161 = vadd.f32 %v2153, %v2103
  %v2162 = vadd.f32 %v2154, %v2105
  %vm2163 = vcmp.ge.f32.partialorder %v2155, 0.5
  %vm2164 = vcmp.ge.f32.partialorder %v2156, 0.5
  %vm2165 = vcmp.ge.f32.partialorder %v2157, 0.5
  %vm2166 = vcmp.ge.f32.partialorder %v2158, 0.5
  %vm2167 = vcmp.ge.f32.partialorder %v2159, 0.5
  %vm2168 = vcmp.ge.f32.partialorder %v2160, 0.5
  %vm2169 = vcmp.ge.f32.partialorder %v2161, 0.5
  %vm2170 = vcmp.ge.f32.partialorder %v2162, 0.5
  %v2171 = vsel %vm2163, 1, 0
  %v2172 = vsel %vm2164, 1, 0
  %v2173 = vsel %vm2165, 1, 0
  %v2174 = vsel %vm2166, 1, 0
  %v2175 = vsel %vm2167, 1, 0
  %v2176 = vsel %vm2168, 1, 0
  %v2177 = vsel %vm2169, 1, 0
  %v2178 = vsel %vm2170, 1, 0
  %v2179 = vcvt.s32.f32 %v2171
  %v2180 = vcvt.s32.f32 %v2172
  %v2181 = vcvt.s32.f32 %v2173
  %v2182 = vcvt.s32.f32 %v2174
  %v2183 = vcvt.s32.f32 %v2175
  %v2184 = vcvt.s32.f32 %v2176
  %v2185 = vcvt.s32.f32 %v2177
  %v2186 = vcvt.s32.f32 %v2178
  %v2187 = vpack.c.bf16 %v2133, %v2131
  %v2188 = vpack.c.bf16 %v2134, %v2132
  %v2189 = vpack.c.bf16 %v2181, %v2179
  %v2190 = vpack.c.bf16 %v2182, %v2180
  %v2191 = vpack.c.bf16 %v2137, %v2135
  %v2192 = vpack.c.bf16 %v2138, %v2136
  %v2193 = vpack.c.bf16 %v2185, %v2183
  %v2194 = vpack.c.bf16 %v2186, %v2184
  %v2195 = vld [vmem:[%s7] sm:$0xf]
  %v2196 = vld [vmem:[%s7 + $0x4] sm:$0xf]
  %v2197 = vld [vmem:[%s7 + $0x8] sm:$0xf]
  %v2198 = vld [vmem:[%s7 + $0xc] sm:$0xf]
  %v2199 = vld [vmem:[%s7 + $0x10] sm:$0xf]
  %v2200 = vld [vmem:[%s7 + $0x14] sm:$0xf]
  %v2201 = vld [vmem:[%s7 + $0x18] sm:$0xf]
  %v2202 = vld [vmem:[%s7 + $0x1c] sm:$0xf]
  %v2203 = vld [vmem:[%s7 + $0x20] sm:$0xf]
  %v2204 = vld [vmem:[%s7 + $0x24] sm:$0xf]
  %v2205 = vld [vmem:[%s7 + $0x28] sm:$0xf]
  %v2206 = vld [vmem:[%s7 + $0x2c] sm:$0xf]
  %v2207 = vld [vmem:[%s7 + $0x30] sm:$0xf]
  %v2208 = vld [vmem:[%s7 + $0x34] sm:$0xf]
  %v2209 = vld [vmem:[%s7 + $0x38] sm:$0xf]
  %v2210 = vld [vmem:[%s7 + $0x3c] sm:$0xf]
  %v2211 = vld [vmem:[%s7 + $0x40] sm:$0xf]
  %v2212 = vld [vmem:[%s7 + $0x44] sm:$0xf]
  %v2213 = vld [vmem:[%s7 + $0x48] sm:$0xf]
  %v2214 = vld [vmem:[%s7 + $0x4c] sm:$0xf]
  %v2215 = vld [vmem:[%s7 + $0x50] sm:$0xf]
  %v2216 = vld [vmem:[%s7 + $0x54] sm:$0xf]
  %v2217 = vld [vmem:[%s7 + $0x58] sm:$0xf]
  %v2218 = vld [vmem:[%s7 + $0x5c] sm:$0xf]
  %v2219 = vld [vmem:[%s7 + $0x60] sm:$0xf]
  %v2220 = vld [vmem:[%s7 + $0x64] sm:$0xf]
  %v2221 = vld [vmem:[%s7 + $0x68] sm:$0xf]
  %v2222 = vld [vmem:[%s7 + $0x6c] sm:$0xf]
  %v2223 = vld [vmem:[%s7 + $0x70] sm:$0xf]
  %v2224 = vld [vmem:[%s7 + $0x74] sm:$0xf]
  %v2225 = vld [vmem:[%s7 + $0x78] sm:$0xf]
  %v2226 = vld [vmem:[%s7 + $0x7c] sm:$0xf]
  %v2227 = vld [vmem:[%s8] sm:$0x1]
  %v2229 = vlaneseq
  %v2230 = vshrl.u32 %v2229, 7
  %v2231 = vsub.s32 0, %v2230
  %v2232 = vrot.slane %v2227, %v2231
  %v2266 = vunpack.c.l.b16 %v2195
  %v2267 = vunpack.c.l.b16 %v2196
  %v2268 = vunpack.c.l.b16 %v2197
  %v2269 = vunpack.c.l.b16 %v2198
  %v2270 = vunpack.c.l.b16 %v2199
  %v2271 = vunpack.c.l.b16 %v2200
  %v2272 = vunpack.c.l.b16 %v2201
  %v2273 = vunpack.c.l.b16 %v2202
  %v2274 = vunpack.c.l.b16 %v2203
  %v2275 = vunpack.c.l.b16 %v2204
  %v2276 = vunpack.c.l.b16 %v2205
  %v2277 = vunpack.c.l.b16 %v2206
  %v2278 = vunpack.c.l.b16 %v2207
  %v2279 = vunpack.c.l.b16 %v2208
  %v2280 = vunpack.c.l.b16 %v2209
  %v2281 = vunpack.c.l.b16 %v2210
  %v2282 = vunpack.c.l.b16 %v2211
  %v2283 = vunpack.c.l.b16 %v2212
  %v2284 = vunpack.c.l.b16 %v2213
  %v2285 = vunpack.c.l.b16 %v2214
  %v2286 = vunpack.c.l.b16 %v2215
  %v2287 = vunpack.c.l.b16 %v2216
  %v2288 = vunpack.c.l.b16 %v2217
  %v2289 = vunpack.c.l.b16 %v2218
  %v2290 = vunpack.c.l.b16 %v2219
  %v2291 = vunpack.c.l.b16 %v2220
  %v2292 = vunpack.c.l.b16 %v2221
  %v2293 = vunpack.c.l.b16 %v2222
  %v2294 = vunpack.c.l.b16 %v2223
  %v2295 = vunpack.c.l.b16 %v2224
  %v2296 = vunpack.c.l.b16 %v2225
  %v2297 = vunpack.c.l.b16 %v2226
  %v2298 = vpack.c.b16 %v2267, %v2266
  %v2299 = vpack.c.b16 %v2269, %v2268
  %v2300 = vpack.c.b16 %v2271, %v2270
  %v2301 = vpack.c.b16 %v2273, %v2272
  %v2302 = vpack.c.b16 %v2275, %v2274
  %v2303 = vpack.c.b16 %v2277, %v2276
  %v2304 = vpack.c.b16 %v2279, %v2278
  %v2305 = vpack.c.b16 %v2281, %v2280
  %v2306 = vpack.c.b16 %v2283, %v2282
  %v2307 = vpack.c.b16 %v2285, %v2284
  %v2308 = vpack.c.b16 %v2287, %v2286
  %v2309 = vpack.c.b16 %v2289, %v2288
  %v2310 = vpack.c.b16 %v2291, %v2290
  %v2311 = vpack.c.b16 %v2293, %v2292
  %v2312 = vpack.c.b16 %v2295, %v2294
  %v2313 = vpack.c.b16 %v2297, %v2296
  %2330 = vmatprep.subr.bf16.mxu0 0
  %2331 = vmatpush1.bf16.msra.mxu0 %v2298
  %2332 = vmatprep.subr.bf16.mxu0 0
  %2333 = vmatpush1.bf16.msra.mxu0 %v2299
  %2334 = vmatprep.subr.bf16.mxu0 0
  %2335 = vmatpush1.bf16.msra.mxu0 %v2300
  %2336 = vmatprep.subr.bf16.mxu0 0
  %2337 = vmatpush1.bf16.msra.mxu0 %v2301
  %2338 = vmatprep.subr.bf16.mxu0 0
  %2339 = vmatpush1.bf16.msra.mxu0 %v2302
  %2340 = vmatprep.subr.bf16.mxu0 0
  %2341 = vmatpush1.bf16.msra.mxu0 %v2303
  %2342 = vmatprep.subr.bf16.mxu0 0
  %2343 = vmatpush1.bf16.msra.mxu0 %v2304
  %2344 = vmatprep.subr.bf16.mxu0 0
  %2345 = vmatpush1.bf16.msra.mxu0 %v2305
  %2346 = vmatprep.subr.bf16.mxu0 0
  %2347 = vmatpush1.bf16.msra.mxu0 %v2306
  %2348 = vmatprep.subr.bf16.mxu0 0
  %2349 = vmatpush1.bf16.msra.mxu0 %v2307
  %2350 = vmatprep.subr.bf16.mxu0 0
  %2351 = vmatpush1.bf16.msra.mxu0 %v2308
  %2352 = vmatprep.subr.bf16.mxu0 0
  %2353 = vmatpush1.bf16.msra.mxu0 %v2309
  %2354 = vmatprep.subr.bf16.mxu0 0
  %2355 = vmatpush1.bf16.msra.mxu0 %v2310
  %2356 = vmatprep.subr.bf16.mxu0 0
  %2357 = vmatpush1.bf16.msra.mxu0 %v2311
  %2358 = vmatprep.subr.bf16.mxu0 0
  %2359 = vmatpush1.bf16.msra.mxu0 %v2312
  %2360 = vmatprep.subr.bf16.mxu0 0
  %2361 = vmatpush1.bf16.msra.mxu0 %v2313
  %2362 = vmatprep.mubr.bf16.mxu0 %v2188
  %2363 = vmatmul.mubr.bf16.gmra.mrb[0].mxu0 %v2187
  %v2364 = vpop.f32.mrb[0].mxu0
  %v2365 = vadd.f32 %v2232, %v2364
  %v2366 = vpop.f32.mrb[0].mxu0
  %v2367 = vpop.f32.mrb[0].mxu0
  %v2368 = vadd.f32 %v2232, %v2367
  %v2369 = vpop.f32.mrb[0].mxu0
  %2370 = vmatprep.mubr.bf16.mxu0 %v2190
  %2371 = vmatmul.mubr.bf16.gmra.mrb[0].mxu0 %v2189
  %v2372 = vpop.f32.mrb[0].mxu0
  %v2373 = vadd.f32 %v2232, %v2372
  %v2374 = vpop.f32.mrb[0].mxu0
  %v2375 = vpop.f32.mrb[0].mxu0
  %v2376 = vadd.f32 %v2232, %v2375
  %v2377 = vpop.f32.mrb[0].mxu0
  %2378 = vmatprep.mubr.bf16.mxu0 %v2192
  %2379 = vmatmul.mubr.bf16.gmra.mrb[0].mxu0 %v2191
  %v2380 = vpop.f32.mrb[0].mxu0
  %v2381 = vadd.f32 %v2232, %v2380
  %v2382 = vpop.f32.mrb[0].mxu0
  %v2383 = vpop.f32.mrb[0].mxu0
  %v2384 = vadd.f32 %v2232, %v2383
  %v2385 = vpop.f32.mrb[0].mxu0
  %2386 = vmatprep.mubr.bf16.mxu0 %v2194
  %2387 = vmatmul.mubr.bf16.gmra.mrb[0].mxu0 %v2193
  %v2388 = vpop.f32.mrb[0].mxu0
  %v2389 = vadd.f32 %v2232, %v2388
  %v2390 = vpop.f32.mrb[0].mxu0
  %v2391 = vpop.f32.mrb[0].mxu0
  %v2392 = vadd.f32 %v2232, %v2391
  %v2393 = vpop.f32.mrb[0].mxu0
  %2394 = vdwg.mxu0
  %v2395 = vadd.f32 %v1910, %v2365
  %v2396 = vadd.f32 %v1911, %v2368
  %v2397 = vadd.f32 %v1912, %v2373
  %v2398 = vadd.f32 %v1913, %v2376
  %v2399 = vadd.f32 %v1914, %v2381
  %v2400 = vadd.f32 %v1915, %v2384
  %v2401 = vadd.f32 %v1916, %v2389
  %v2402 = vadd.f32 %v1917, %v2392
  %2403 = vst.msk [vmem:[%s9] sm:$0xff] %vm145, %v2395
  %2404 = vst.msk [vmem:[%s9 + $0x8] sm:$0xff] %vm145, %v2396
  %2405 = vst.msk [vmem:[%s9 + $0x10] sm:$0xff] %vm145, %v2397
  %2406 = vst.msk [vmem:[%s9 + $0x18] sm:$0xff] %vm145, %v2398
  %2407 = vst.msk [vmem:[%s9 + $0x20] sm:$0xff] %vm145, %v2399
  %2408 = vst.msk [vmem:[%s9 + $0x28] sm:$0xff] %vm145, %v2400
  %2409 = vst.msk [vmem:[%s9 + $0x30] sm:$0xff] %vm145, %v2401
  %2410 = vst.msk [vmem:[%s9 + $0x38] sm:$0xff] %vm145, %v2402
  // Predicated region
  $region38: #{spiking_former_encoder_forward.5} parent=0 // pred_check
    _
  $region39: #{spiking_former_encoder_forward.5} parent=0 // pred_check_branch
    %2412 = sbr.rel (0) target = $region41
  $region40: #{spiking_former_encoder_forward.5} parent=0 // pred_region
    _
  $region41: #{spiking_former_encoder_forward.5} parent=0 // pred_fallthru
    _
  // Predicated region
  $region42: #{spiking_former_encoder_forward.5} parent=0 // pred_check
    _
  $region43: #{spiking_former_encoder_forward.5} parent=0 // pred_check_branch
    %2414 = sbr.rel (0) target = $region45
  $region44: #{spiking_former_encoder_forward.5} parent=0 // pred_region
    _
  $region45: #{spiking_former_encoder_forward.5} parent=0 // pred_fallthru
    _

</llo_original>
